<compile_context>
chip_gen: v7x
topology: tpu7x:2x2x1
jax: 0.10.0
libtpu: 0.0.40
codegen_flags: <defaults>
</compile_context>

<pallas_src>
import math
import functools

import jax
import jax.numpy as jnp
from jax.experimental import pallas as pl
from jax.experimental.pallas import tpu as pltpu

_BN_EPS = 1e-5


def _round_up(x, m):
    return (x + m - 1) // m * m


def _pick_tile(dim, candidates):
    for c in candidates:
        if dim % c == 0:
            return c
    return candidates[-1]


# ----------------------------------------------------------------------------
# Pallas kernels: tiled matmul + bias (+ residual) (+ ReLU)
# ----------------------------------------------------------------------------
def _mm_kernel(x_ref, w_ref, b_ref, o_ref, acc_ref, *, relu):
    k = pl.program_id(2)

    @pl.when(k == 0)
    def _():
        acc_ref[...] = jnp.zeros_like(acc_ref)

    acc_ref[...] += jnp.dot(x_ref[...], w_ref[...],
                            preferred_element_type=jnp.float32)

    @pl.when(k == pl.num_programs(2) - 1)
    def _():
        out = acc_ref[...] + b_ref[...]
        if relu:
            out = jnp.maximum(out, 0.0)
        o_ref[...] = out


def _mm_kernel_res(x_ref, w_ref, b_ref, r_ref, o_ref, acc_ref, *, relu):
    k = pl.program_id(2)

    @pl.when(k == 0)
    def _():
        acc_ref[...] = jnp.zeros_like(acc_ref)

    acc_ref[...] += jnp.dot(x_ref[...], w_ref[...],
                            preferred_element_type=jnp.float32)

    @pl.when(k == pl.num_programs(2) - 1)
    def _():
        out = acc_ref[...] + b_ref[...] + r_ref[...]
        if relu:
            out = jnp.maximum(out, 0.0)
        o_ref[...] = out


def fused_matmul(x, w_padded, shift_padded, res=None, relu=False, n_valid=None):
    """Return maybe_relu(x @ w + shift (+ res))[:M, :n_valid].

    x:            (M, K) float (cast to bf16 inside)
    w_padded:     (Kp, Np) bf16 — pre-padded, BN scale already folded in
    shift_padded: (1, Np) float32
    res:          optional (M, n_valid) float32 residual (added in epilogue)
    """
    M, K = x.shape
    Kp, Np = w_padded.shape
    if n_valid is None:
        n_valid = Np

    Mp = _round_up(M, 16)                          # bf16 sublane packing
    tm = _pick_tile(Mp, (256, 128, 64, 32, 16))
    tk = _pick_tile(Kp, (512, 256, 128))
    tn = _pick_tile(Np, (256, 128))

    xp = x.astype(jnp.bfloat16)
    if (Mp, Kp) != (M, K):
        xp = jnp.pad(xp, ((0, Mp - M), (0, Kp - K)))

    grid = (Mp // tm, Np // tn, Kp // tk)
    x_spec = pl.BlockSpec((tm, tk), lambda i, j, k: (i, k))
    w_spec = pl.BlockSpec((tk, tn), lambda i, j, k: (k, j))
    b_spec = pl.BlockSpec((1, tn), lambda i, j, k: (0, j))
    o_spec = pl.BlockSpec((tm, tn), lambda i, j, k: (i, j))
    scratch = [pltpu.VMEM((tm, tn), jnp.float32)]
    cparams = pltpu.CompilerParams(
        dimension_semantics=("parallel", "parallel", "arbitrary"))

    if res is None:
        out = pl.pallas_call(
            functools.partial(_mm_kernel, relu=relu),
            out_shape=jax.ShapeDtypeStruct((Mp, Np), jnp.float32),
            grid_spec=pltpu.PrefetchScalarGridSpec(
                num_scalar_prefetch=0, grid=grid,
                in_specs=[x_spec, w_spec, b_spec],
                out_specs=o_spec, scratch_shapes=scratch),
            compiler_params=cparams,
        )(xp, w_padded, shift_padded)
    else:
        rp = res.astype(jnp.float32)
        if rp.shape != (Mp, Np):
            rp = jnp.pad(rp, ((0, Mp - M), (0, Np - rp.shape[1])))
        r_spec = pl.BlockSpec((tm, tn), lambda i, j, k: (i, j))
        out = pl.pallas_call(
            functools.partial(_mm_kernel_res, relu=relu),
            out_shape=jax.ShapeDtypeStruct((Mp, Np), jnp.float32),
            grid_spec=pltpu.PrefetchScalarGridSpec(
                num_scalar_prefetch=0, grid=grid,
                in_specs=[x_spec, w_spec, b_spec, r_spec],
                out_specs=o_spec, scratch_shapes=scratch),
            compiler_params=cparams,
        )(xp, w_padded, shift_padded, rp)
    return out[:M, :n_valid]


# ----------------------------------------------------------------------------
# Conv glue (im2col in bf16) around the Pallas kernel
# ----------------------------------------------------------------------------
def _im2col(x, k, stride, padding, dilation):
    """x: (N, H, W, C) -> patches (N, Ho, Wo, k*k*C), channel order (ki, kj, c)."""
    n, h, w, c = x.shape
    xp = jnp.pad(x, ((0, 0), (padding, padding), (padding, padding), (0, 0)))
    ho = (h + 2 * padding - dilation * (k - 1) - 1) // stride + 1
    wo = (w + 2 * padding - dilation * (k - 1) - 1) // stride + 1
    cols = []
    for ki in range(k):
        for kj in range(k):
            r0 = ki * dilation
            c0 = kj * dilation
            patch = xp[:, r0:r0 + stride * (ho - 1) + 1:stride,
                          c0:c0 + stride * (wo - 1) + 1:stride, :]
            cols.append(patch)
    return jnp.concatenate(cols, axis=-1), ho, wo


def conv_bn(x, layer, relu=False, residual=None):
    """x: NHWC f32; layer: prepped conv dict.  Returns NHWC f32."""
    n = x.shape[0]
    k = layer["k"]
    xb = x.astype(jnp.bfloat16)                    # halve im2col HBM traffic
    patches, ho, wo = _im2col(xb, k, layer["stride"], layer["padding"],
                              layer["dilation"])
    m = n * ho * wo
    xm = patches.reshape(m, k * k * layer["cin"])
    rm = None if residual is None else residual.reshape(m, layer["cout"])
    out = fused_matmul(xm, layer["w"], layer["shift"], res=rm, relu=relu,
                       n_valid=layer["cout"])
    return out.reshape(n, ho, wo, layer["cout"])


def basic_block_forward(x, p):
    """BasicBlock: conv3x3-BN-ReLU -> conv3x3-BN (+residual) -> ReLU."""
    res = None
    if p["residual"]:
        res = conv_bn(x, p["downsample"]) if "downsample" in p else x
    out = conv_bn(x, p["conv1"], relu=True)
    out = conv_bn(out, p["conv2"], relu=True, residual=res)
    return out


# ----------------------------------------------------------------------------
# Deterministic parameter construction (mirrors DRN.__init__, arch='D'),
# with weights pre-transposed / BN-folded / padded / cast once at build time.
# ----------------------------------------------------------------------------
class KeyGen:
    def __init__(self, seed=0):
        self.key = jax.random.PRNGKey(seed)
        self.i = 0

    def next(self):
        self.i += 1
        return jax.random.fold_in(self.key, self.i)


def make_conv_w(kg, cin, cout, k):
    # PyTorch: normal(0, sqrt(2 / (k*k*cout)))
    n = k * k * cout
    return jax.random.normal(kg.next(), (cout, cin, k, k), jnp.float32) * math.sqrt(2.0 / n)


def make_bn(c):
    return {"gamma": jnp.ones((c,), jnp.float32), "beta": jnp.zeros((c,), jnp.float32),
            "mean": jnp.zeros((c,), jnp.float32), "var": jnp.ones((c,), jnp.float32)}


def prep_conv(w_oihw, bn, stride, padding, dilation):
    """OIHW + BN -> kernel-ready {(Kp,Np) bf16 weight (BN scale folded), shift}."""
    cout, cin, k, _ = w_oihw.shape
    scale = bn["gamma"] / jnp.sqrt(bn["var"] + _BN_EPS)
    shift = bn["beta"] - bn["mean"] * scale
    wm = jnp.transpose(w_oihw, (2, 3, 1, 0)).reshape(k * k * cin, cout)
    wm = wm * scale[None, :]                       # fold BN scale into weights
    K = k * k * cin
    Kp, Np = _round_up(K, 128), _round_up(cout, 128)
    wp = jnp.pad(wm, ((0, Kp - K), (0, Np - cout))).astype(jnp.bfloat16)
    sp = jnp.pad(shift, (0, Np - cout)).reshape(1, Np).astype(jnp.float32)
    return {"w": wp, "shift": sp, "k": k, "stride": stride, "padding": padding,
            "dilation": dilation, "cin": cin, "cout": cout}


def prep_fc(w_oihw, bias):
    ncls, c = w_oihw.shape[0], w_oihw.shape[1]
    wm = w_oihw.reshape(ncls, c).T
    Kp, Np = _round_up(c, 128), _round_up(ncls, 128)
    wp = jnp.pad(wm, ((0, Kp - c), (0, Np - ncls))).astype(jnp.bfloat16)
    sp = jnp.pad(bias, (0, Np - ncls)).reshape(1, Np).astype(jnp.float32)
    return {"w": wp, "shift": sp, "cout": ncls}


def build_drn_d(kg, layers, channels, input_channels, num_classes):
    state = {"inplanes": channels[0]}
    P = {}

    def conv_layers(name, ch, convs, stride=1, dilation=1):
        mods = []
        for i in range(convs):
            w = make_conv_w(kg, state["inplanes"], ch, 3)
            mods.append(prep_conv(w, make_bn(ch),
                                  stride=stride if i == 0 else 1,
                                  padding=dilation, dilation=dilation))
            state["inplanes"] = ch
        P[name] = {"type": "conv", "mods": mods}

    def res_layer(name, planes, blocks, stride=1, dilation=1, new_level=True,
                  residual=True):
        assert dilation == 1 or dilation % 2 == 0
        blks = []
        dil = (1, 1) if dilation == 1 else (
            (dilation // 2 if new_level else dilation), dilation)
        blk = {
            "conv1": prep_conv(make_conv_w(kg, state["inplanes"], planes, 3),
                               make_bn(planes), stride=stride,
                               padding=dil[0], dilation=dil[0]),
            "conv2": prep_conv(make_conv_w(kg, planes, planes, 3),
                               make_bn(planes), stride=1,
                               padding=dil[1], dilation=dil[1]),
            "residual": residual,
        }
        if stride != 1 or state["inplanes"] != planes:
            blk["downsample"] = prep_conv(
                make_conv_w(kg, state["inplanes"], planes, 1), make_bn(planes),
                stride=stride, padding=0, dilation=1)
        blks.append(blk)
        state["inplanes"] = planes
        for _ in range(1, blocks):
            blks.append({
                "conv1": prep_conv(make_conv_w(kg, state["inplanes"], planes, 3),
                                   make_bn(planes), stride=1,
                                   padding=dilation, dilation=dilation),
                "conv2": prep_conv(make_conv_w(kg, planes, planes, 3),
                                   make_bn(planes), stride=1,
                                   padding=dilation, dilation=dilation),
                "residual": residual,
            })
        P[name] = {"type": "block", "blocks": blks}

    # layer0: 7x7 conv + BN + ReLU
    P["layer0"] = prep_conv(make_conv_w(kg, input_channels, channels[0], 7),
                            make_bn(channels[0]), stride=1, padding=3, dilation=1)
    conv_layers("layer1", channels[0], layers[0], stride=1)
    conv_layers("layer2", channels[1], layers[1], stride=2)
    res_layer("layer3", channels[2], layers[2], stride=2)
    res_layer("layer4", channels[3], layers[3], stride=2)
    res_layer("layer5", channels[4], layers[4], dilation=2, new_level=False)
    if layers[5] != 0:
        res_layer("layer6", channels[5], layers[5], dilation=4, new_level=False)
    if layers[6] != 0:
        conv_layers("layer7", channels[6], layers[6], dilation=2)
    if layers[7] != 0:
        conv_layers("layer8", channels[7], layers[7], dilation=1)
    # fc: 1x1 conv with bias
    fan_in = channels[-1]
    fc_w = make_conv_w(kg, channels[-1], num_classes, 1)
    fc_b = jax.random.uniform(kg.next(), (num_classes,), jnp.float32,
                              -1.0 / math.sqrt(fan_in), 1.0 / math.sqrt(fan_in))
    P["fc"] = prep_fc(fc_w, fc_b)
    return P


# ----------------------------------------------------------------------------
# Forward pass (out_map=False, out_middle=False, mc_dropout=False)
# ----------------------------------------------------------------------------
def drn_forward(x_nchw, P, pool_size):
    x = jnp.transpose(x_nchw, (0, 2, 3, 1)).astype(jnp.float32)  # NCHW -> NHWC

    # layer0: Conv7x7(s1,p3) + BN + ReLU
    x = conv_bn(x, P["layer0"], relu=True)

    for name in ["layer1", "layer2", "layer3", "layer4",
                 "layer5", "layer6", "layer7", "layer8"]:
        if name not in P:
            continue
        lp = P[name]
        if lp["type"] == "conv":
            for m in lp["mods"]:
                x = conv_bn(x, m, relu=True)
        else:
            for b in lp["blocks"]:
                x = basic_block_forward(x, b)

    # avgpool(pool_size) -> fc(1x1 conv, bias) -> view(N, -1)
    n, h, w, c = x.shape
    assert h == pool_size and w == pool_size  # AvgPool2d(pool_size) -> 1x1 output
    pooled = jnp.mean(x, axis=(1, 2))                          # (n, c)
    fc = P["fc"]
    out = fused_matmul(pooled, fc["w"], fc["shift"], relu=False,
                       n_valid=fc["cout"])                     # (n, num_classes)
    return out


# ----------------------------------------------------------------------------
if __name__ == "__main__":
    # Small DRN-D config: layers=(1,)*8, reduced channels, 32x32 input.
    layers = [1, 1, 1, 1, 1, 1, 1, 1]
    channels = (8, 16, 32, 32, 64, 64, 64, 64)
    input_channels = 3
    num_classes = 10
    pool_size = 4  # final spatial size after three stride-2 stages on 32x32

    kg = KeyGen(seed=0)
    params = build_drn_d(kg, layers, channels, input_channels, num_classes)

    x = jax.random.normal(jax.random.PRNGKey(0), (2, 3, 32, 32), jnp.float32)  # NCHW

    fwd = jax.jit(lambda inp: drn_forward(inp, params, pool_size))
    out = jax.block_until_ready(fwd(x))
    assert out.shape == (2, num_classes), out.shape
    assert bool(jnp.all(jnp.isfinite(out)))
    print("KERNEL_OK")
</pallas_src>

<mosaic_0001>
module attributes {stable_mosaic.version = 11 : i64} {
  func.func @_mm_kernel(%arg0: i32, %arg1: i32, %arg2: i32, %arg3: memref<256x256xbf16, #tpu.memory_space<vmem>>, %arg4: memref<256x128xbf16, #tpu.memory_space<vmem>>, %arg5: memref<1x128xf32, #tpu.memory_space<vmem>>, %arg6: memref<256x128xf32, #tpu.memory_space<vmem>>, %arg7: memref<256x128xf32, #tpu.memory_space<vmem>>) attributes {dimension_semantics = [#tpu.dimension_semantics<parallel>, #tpu.dimension_semantics<parallel>, #tpu.dimension_semantics<arbitrary>], iteration_bounds = array<i64: 8, 1, 1>, scalar_prefetch = 0 : i64, scratch_operands = 1 : i64, tpu.core_type = #tpu.core_type<tc>, window_params = [{transform_indices = @transform_0, window_bounds = array<i64: 256, 256>}, {transform_indices = @transform_1, window_bounds = array<i64: 256, 128>}, {transform_indices = @transform_2, window_bounds = array<i64: 1, 128>}, {transform_indices = @transform_3, window_bounds = array<i64: 256, 128>}]} {
    %c0_i32 = arith.constant 0 : i32
    %0 = arith.cmpi eq, %arg2, %c0_i32 : i32
    %1 = arith.extui %0 : i1 to i32
    %c0_i32_0 = arith.constant 0 : i32
    %2 = arith.cmpi ne, %1, %c0_i32_0 : i32
    scf.if %2 {
      %cst_10 = arith.constant 0.000000e+00 : f32
      %12 = vector.broadcast %cst_10 : f32 to vector<256x128xf32>
      %c0_11 = arith.constant 0 : index
      %c0_12 = arith.constant 0 : index
      %13 = vector.load %arg7[%c0_11, %c0_12] : memref<256x128xf32, #tpu.memory_space<vmem>>, vector<256x128xf32>
      tpu.vector_store %arg7[%c0_11, %c0_12], %12 {strides = array<i32>} : memref<256x128xf32, #tpu.memory_space<vmem>>, vector<256x128xf32>,
    } else {
    }
    %c0 = arith.constant 0 : index
    %c0_1 = arith.constant 0 : index
    %3 = vector.load %arg7[%c0, %c0_1] : memref<256x128xf32, #tpu.memory_space<vmem>>, vector<256x128xf32>
    %c0_2 = arith.constant 0 : index
    %c0_3 = arith.constant 0 : index
    %4 = vector.load %arg3[%c0_2, %c0_3] : memref<256x256xbf16, #tpu.memory_space<vmem>>, vector<256x256xbf16>
    %c0_4 = arith.constant 0 : index
    %c0_5 = arith.constant 0 : index
    %5 = vector.load %arg4[%c0_4, %c0_5] : memref<256x128xbf16, #tpu.memory_space<vmem>>, vector<256x128xbf16>
    %cst = arith.constant dense<0.000000e+00> : vector<256x128xf32>
    %6 = tpu.matmul %4, %5, %cst {dimension_numbers = #tpu.dot_dimension_numbers<[1], [0], [0], [1], [0, 0, 1, 1], [], []>} : vector<256x256xbf16>, vector<256x128xbf16>, vector<256x128xf32> -> vector<256x128xf32>
    %7 = arith.addf %3, %6 : vector<256x128xf32>
    %c0_6 = arith.constant 0 : index
    %c0_7 = arith.constant 0 : index
    %8 = vector.load %arg7[%c0_6, %c0_7] : memref<256x128xf32, #tpu.memory_space<vmem>>, vector<256x128xf32>
    tpu.vector_store %arg7[%c0_6, %c0_7], %7 {strides = array<i32>} : memref<256x128xf32, #tpu.memory_space<vmem>>, vector<256x128xf32>,
    %c0_i32_8 = arith.constant 0 : i32
    %9 = arith.cmpi eq, %arg2, %c0_i32_8 : i32
    %10 = arith.extui %9 : i1 to i32
    %c0_i32_9 = arith.constant 0 : i32
    %11 = arith.cmpi ne, %10, %c0_i32_9 : i32
    scf.if %11 {
      %c0_10 = arith.constant 0 : index
      %c0_11 = arith.constant 0 : index
      %12 = vector.load %arg7[%c0_10, %c0_11] : memref<256x128xf32, #tpu.memory_space<vmem>>, vector<256x128xf32>
      %c0_12 = arith.constant 0 : index
      %c0_13 = arith.constant 0 : index
      %13 = vector.load %arg5[%c0_12, %c0_13] : memref<1x128xf32, #tpu.memory_space<vmem>>, vector<1x128xf32>
      %14 = vector.broadcast %13 : vector<1x128xf32> to vector<256x128xf32>
      %15 = arith.addf %12, %14 : vector<256x128xf32>
      %cst_14 = arith.constant 0.000000e+00 : f32
      %16 = vector.broadcast %cst_14 : f32 to vector<256x128xf32>
      %17 = arith.maximumf %15, %16 : vector<256x128xf32>
      %c0_15 = arith.constant 0 : index
      %c0_16 = arith.constant 0 : index
      %18 = vector.load %arg6[%c0_15, %c0_16] : memref<256x128xf32, #tpu.memory_space<vmem>>, vector<256x128xf32>
      tpu.vector_store %arg6[%c0_15, %c0_16], %17 {strides = array<i32>} : memref<256x128xf32, #tpu.memory_space<vmem>>, vector<256x128xf32>,
    } else {
    }
    return
  }
  func.func @transform_0(%arg0: i32, %arg1: i32, %arg2: i32) -> (i32, i32) {
    %c0_i32 = arith.constant 0 : i32
    return %arg0, %arg2 : i32, i32
  }
  func.func @transform_1(%arg0: i32, %arg1: i32, %arg2: i32) -> (i32, i32) {
    %c0_i32 = arith.constant 0 : i32
    return %arg2, %arg1 : i32, i32
  }
  func.func @transform_2(%arg0: i32, %arg1: i32, %arg2: i32) -> (i32, i32) {
    %c0_i32 = arith.constant 0 : i32
    %c0_i32_0 = arith.constant 0 : i32
    return %c0_i32, %arg1 : i32, i32
  }
  func.func @transform_3(%arg0: i32, %arg1: i32, %arg2: i32) -> (i32, i32) {
    %c0_i32 = arith.constant 0 : i32
    return %arg0, %arg1 : i32, i32
  }
}

module attributes {stable_mosaic.version = 11 : i64} {
  func.func @_mm_kernel(%arg0: i32, %arg1: i32, %arg2: i32, %arg3: memref<256x128xbf16, #tpu.memory_space<vmem>>, %arg4: memref<128x128xbf16, #tpu.memory_space<vmem>>, %arg5: memref<1x128xf32, #tpu.memory_space<vmem>>, %arg6: memref<256x128xf32, #tpu.memory_space<vmem>>, %arg7: memref<256x128xf32, #tpu.memory_space<vmem>>) attributes {dimension_semantics = [#tpu.dimension_semantics<parallel>, #tpu.dimension_semantics<parallel>, #tpu.dimension_semantics<arbitrary>], iteration_bounds = array<i64: 8, 1, 1>, scalar_prefetch = 0 : i64, scratch_operands = 1 : i64, tpu.core_type = #tpu.core_type<tc>, window_params = [{transform_indices = @transform_0, window_bounds = array<i64: 256, 128>}, {transform_indices = @transform_1, window_bounds = array<i64: 128, 128>}, {transform_indices = @transform_2, window_bounds = array<i64: 1, 128>}, {transform_indices = @transform_3, window_bounds = array<i64: 256, 128>}]} {
    %c0_i32 = arith.constant 0 : i32
    %0 = arith.cmpi eq, %arg2, %c0_i32 : i32
    %1 = arith.extui %0 : i1 to i32
    %c0_i32_0 = arith.constant 0 : i32
    %2 = arith.cmpi ne, %1, %c0_i32_0 : i32
    scf.if %2 {
      %cst_10 = arith.constant 0.000000e+00 : f32
      %12 = vector.broadcast %cst_10 : f32 to vector<256x128xf32>
      %c0_11 = arith.constant 0 : index
      %c0_12 = arith.constant 0 : index
      %13 = vector.load %arg7[%c0_11, %c0_12] : memref<256x128xf32, #tpu.memory_space<vmem>>, vector<256x128xf32>
      tpu.vector_store %arg7[%c0_11, %c0_12], %12 {strides = array<i32>} : memref<256x128xf32, #tpu.memory_space<vmem>>, vector<256x128xf32>,
    } else {
    }
    %c0 = arith.constant 0 : index
    %c0_1 = arith.constant 0 : index
    %3 = vector.load %arg7[%c0, %c0_1] : memref<256x128xf32, #tpu.memory_space<vmem>>, vector<256x128xf32>
    %c0_2 = arith.constant 0 : index
    %c0_3 = arith.constant 0 : index
    %4 = vector.load %arg3[%c0_2, %c0_3] : memref<256x128xbf16, #tpu.memory_space<vmem>>, vector<256x128xbf16>
    %c0_4 = arith.constant 0 : index
    %c0_5 = arith.constant 0 : index
    %5 = vector.load %arg4[%c0_4, %c0_5] : memref<128x128xbf16, #tpu.memory_space<vmem>>, vector<128x128xbf16>
    %cst = arith.constant dense<0.000000e+00> : vector<256x128xf32>
    %6 = tpu.matmul %4, %5, %cst {dimension_numbers = #tpu.dot_dimension_numbers<[1], [0], [0], [1], [0, 0, 1, 1], [], []>} : vector<256x128xbf16>, vector<128x128xbf16>, vector<256x128xf32> -> vector<256x128xf32>
    %7 = arith.addf %3, %6 : vector<256x128xf32>
    %c0_6 = arith.constant 0 : index
    %c0_7 = arith.constant 0 : index
    %8 = vector.load %arg7[%c0_6, %c0_7] : memref<256x128xf32, #tpu.memory_space<vmem>>, vector<256x128xf32>
    tpu.vector_store %arg7[%c0_6, %c0_7], %7 {strides = array<i32>} : memref<256x128xf32, #tpu.memory_space<vmem>>, vector<256x128xf32>,
    %c0_i32_8 = arith.constant 0 : i32
    %9 = arith.cmpi eq, %arg2, %c0_i32_8 : i32
    %10 = arith.extui %9 : i1 to i32
    %c0_i32_9 = arith.constant 0 : i32
    %11 = arith.cmpi ne, %10, %c0_i32_9 : i32
    scf.if %11 {
      %c0_10 = arith.constant 0 : index
      %c0_11 = arith.constant 0 : index
      %12 = vector.load %arg7[%c0_10, %c0_11] : memref<256x128xf32, #tpu.memory_space<vmem>>, vector<256x128xf32>
      %c0_12 = arith.constant 0 : index
      %c0_13 = arith.constant 0 : index
      %13 = vector.load %arg5[%c0_12, %c0_13] : memref<1x128xf32, #tpu.memory_space<vmem>>, vector<1x128xf32>
      %14 = vector.broadcast %13 : vector<1x128xf32> to vector<256x128xf32>
      %15 = arith.addf %12, %14 : vector<256x128xf32>
      %cst_14 = arith.constant 0.000000e+00 : f32
      %16 = vector.broadcast %cst_14 : f32 to vector<256x128xf32>
      %17 = arith.maximumf %15, %16 : vector<256x128xf32>
      %c0_15 = arith.constant 0 : index
      %c0_16 = arith.constant 0 : index
      %18 = vector.load %arg6[%c0_15, %c0_16] : memref<256x128xf32, #tpu.memory_space<vmem>>, vector<256x128xf32>
      tpu.vector_store %arg6[%c0_15, %c0_16], %17 {strides = array<i32>} : memref<256x128xf32, #tpu.memory_space<vmem>>, vector<256x128xf32>,
    } else {
    }
    return
  }
  func.func @transform_0(%arg0: i32, %arg1: i32, %arg2: i32) -> (i32, i32) {
    %c0_i32 = arith.constant 0 : i32
    return %arg0, %arg2 : i32, i32
  }
  func.func @transform_1(%arg0: i32, %arg1: i32, %arg2: i32) -> (i32, i32) {
    %c0_i32 = arith.constant 0 : i32
    return %arg2, %arg1 : i32, i32
  }
  func.func @transform_2(%arg0: i32, %arg1: i32, %arg2: i32) -> (i32, i32) {
    %c0_i32 = arith.constant 0 : i32
    %c0_i32_0 = arith.constant 0 : i32
    return %c0_i32, %arg1 : i32, i32
  }
  func.func @transform_3(%arg0: i32, %arg1: i32, %arg2: i32) -> (i32, i32) {
    %c0_i32 = arith.constant 0 : i32
    return %arg0, %arg1 : i32, i32
  }
}

module attributes {stable_mosaic.version = 11 : i64} {
  func.func @_mm_kernel(%arg0: i32, %arg1: i32, %arg2: i32, %arg3: memref<256x128xbf16, #tpu.memory_space<vmem>>, %arg4: memref<128x128xbf16, #tpu.memory_space<vmem>>, %arg5: memref<1x128xf32, #tpu.memory_space<vmem>>, %arg6: memref<256x128xf32, #tpu.memory_space<vmem>>, %arg7: memref<256x128xf32, #tpu.memory_space<vmem>>) attributes {dimension_semantics = [#tpu.dimension_semantics<parallel>, #tpu.dimension_semantics<parallel>, #tpu.dimension_semantics<arbitrary>], iteration_bounds = array<i64: 2, 1, 1>, scalar_prefetch = 0 : i64, scratch_operands = 1 : i64, tpu.core_type = #tpu.core_type<tc>, window_params = [{transform_indices = @transform_0, window_bounds = array<i64: 256, 128>}, {transform_indices = @transform_1, window_bounds = array<i64: 128, 128>}, {transform_indices = @transform_2, window_bounds = array<i64: 1, 128>}, {transform_indices = @transform_3, window_bounds = array<i64: 256, 128>}]} {
    %c0_i32 = arith.constant 0 : i32
    %0 = arith.cmpi eq, %arg2, %c0_i32 : i32
    %1 = arith.extui %0 : i1 to i32
    %c0_i32_0 = arith.constant 0 : i32
    %2 = arith.cmpi ne, %1, %c0_i32_0 : i32
    scf.if %2 {
      %cst_10 = arith.constant 0.000000e+00 : f32
      %12 = vector.broadcast %cst_10 : f32 to vector<256x128xf32>
      %c0_11 = arith.constant 0 : index
      %c0_12 = arith.constant 0 : index
      %13 = vector.load %arg7[%c0_11, %c0_12] : memref<256x128xf32, #tpu.memory_space<vmem>>, vector<256x128xf32>
      tpu.vector_store %arg7[%c0_11, %c0_12], %12 {strides = array<i32>} : memref<256x128xf32, #tpu.memory_space<vmem>>, vector<256x128xf32>,
    } else {
    }
    %c0 = arith.constant 0 : index
    %c0_1 = arith.constant 0 : index
    %3 = vector.load %arg7[%c0, %c0_1] : memref<256x128xf32, #tpu.memory_space<vmem>>, vector<256x128xf32>
    %c0_2 = arith.constant 0 : index
    %c0_3 = arith.constant 0 : index
    %4 = vector.load %arg3[%c0_2, %c0_3] : memref<256x128xbf16, #tpu.memory_space<vmem>>, vector<256x128xbf16>
    %c0_4 = arith.constant 0 : index
    %c0_5 = arith.constant 0 : index
    %5 = vector.load %arg4[%c0_4, %c0_5] : memref<128x128xbf16, #tpu.memory_space<vmem>>, vector<128x128xbf16>
    %cst = arith.constant dense<0.000000e+00> : vector<256x128xf32>
    %6 = tpu.matmul %4, %5, %cst {dimension_numbers = #tpu.dot_dimension_numbers<[1], [0], [0], [1], [0, 0, 1, 1], [], []>} : vector<256x128xbf16>, vector<128x128xbf16>, vector<256x128xf32> -> vector<256x128xf32>
    %7 = arith.addf %3, %6 : vector<256x128xf32>
    %c0_6 = arith.constant 0 : index
    %c0_7 = arith.constant 0 : index
    %8 = vector.load %arg7[%c0_6, %c0_7] : memref<256x128xf32, #tpu.memory_space<vmem>>, vector<256x128xf32>
    tpu.vector_store %arg7[%c0_6, %c0_7], %7 {strides = array<i32>} : memref<256x128xf32, #tpu.memory_space<vmem>>, vector<256x128xf32>,
    %c0_i32_8 = arith.constant 0 : i32
    %9 = arith.cmpi eq, %arg2, %c0_i32_8 : i32
    %10 = arith.extui %9 : i1 to i32
    %c0_i32_9 = arith.constant 0 : i32
    %11 = arith.cmpi ne, %10, %c0_i32_9 : i32
    scf.if %11 {
      %c0_10 = arith.constant 0 : index
      %c0_11 = arith.constant 0 : index
      %12 = vector.load %arg7[%c0_10, %c0_11] : memref<256x128xf32, #tpu.memory_space<vmem>>, vector<256x128xf32>
      %c0_12 = arith.constant 0 : index
      %c0_13 = arith.constant 0 : index
      %13 = vector.load %arg5[%c0_12, %c0_13] : memref<1x128xf32, #tpu.memory_space<vmem>>, vector<1x128xf32>
      %14 = vector.broadcast %13 : vector<1x128xf32> to vector<256x128xf32>
      %15 = arith.addf %12, %14 : vector<256x128xf32>
      %cst_14 = arith.constant 0.000000e+00 : f32
      %16 = vector.broadcast %cst_14 : f32 to vector<256x128xf32>
      %17 = arith.maximumf %15, %16 : vector<256x128xf32>
      %c0_15 = arith.constant 0 : index
      %c0_16 = arith.constant 0 : index
      %18 = vector.load %arg6[%c0_15, %c0_16] : memref<256x128xf32, #tpu.memory_space<vmem>>, vector<256x128xf32>
      tpu.vector_store %arg6[%c0_15, %c0_16], %17 {strides = array<i32>} : memref<256x128xf32, #tpu.memory_space<vmem>>, vector<256x128xf32>,
    } else {
    }
    return
  }
  func.func @transform_0(%arg0: i32, %arg1: i32, %arg2: i32) -> (i32, i32) {
    %c0_i32 = arith.constant 0 : i32
    return %arg0, %arg2 : i32, i32
  }
  func.func @transform_1(%arg0: i32, %arg1: i32, %arg2: i32) -> (i32, i32) {
    %c0_i32 = arith.constant 0 : i32
    return %arg2, %arg1 : i32, i32
  }
  func.func @transform_2(%arg0: i32, %arg1: i32, %arg2: i32) -> (i32, i32) {
    %c0_i32 = arith.constant 0 : i32
    %c0_i32_0 = arith.constant 0 : i32
    return %c0_i32, %arg1 : i32, i32
  }
  func.func @transform_3(%arg0: i32, %arg1: i32, %arg2: i32) -> (i32, i32) {
    %c0_i32 = arith.constant 0 : i32
    return %arg0, %arg1 : i32, i32
  }
}

module attributes {stable_mosaic.version = 11 : i64} {
  func.func @_mm_kernel(%arg0: i32, %arg1: i32, %arg2: i32, %arg3: memref<128x256xbf16, #tpu.memory_space<vmem>>, %arg4: memref<256x128xbf16, #tpu.memory_space<vmem>>, %arg5: memref<1x128xf32, #tpu.memory_space<vmem>>, %arg6: memref<128x128xf32, #tpu.memory_space<vmem>>, %arg7: memref<128x128xf32, #tpu.memory_space<vmem>>) attributes {dimension_semantics = [#tpu.dimension_semantics<parallel>, #tpu.dimension_semantics<parallel>, #tpu.dimension_semantics<arbitrary>], iteration_bounds = array<i64: 1, 1, 1>, scalar_prefetch = 0 : i64, scratch_operands = 1 : i64, tpu.core_type = #tpu.core_type<tc>, window_params = [{transform_indices = @transform_0, window_bounds = array<i64: 128, 256>}, {transform_indices = @transform_1, window_bounds = array<i64: 256, 128>}, {transform_indices = @transform_2, window_bounds = array<i64: 1, 128>}, {transform_indices = @transform_3, window_bounds = array<i64: 128, 128>}]} {
    %c0_i32 = arith.constant 0 : i32
    %0 = arith.cmpi eq, %arg2, %c0_i32 : i32
    %1 = arith.extui %0 : i1 to i32
    %c0_i32_0 = arith.constant 0 : i32
    %2 = arith.cmpi ne, %1, %c0_i32_0 : i32
    scf.if %2 {
      %cst_10 = arith.constant 0.000000e+00 : f32
      %12 = vector.broadcast %cst_10 : f32 to vector<128x128xf32>
      %c0_11 = arith.constant 0 : index
      %c0_12 = arith.constant 0 : index
      %13 = vector.load %arg7[%c0_11, %c0_12] : memref<128x128xf32, #tpu.memory_space<vmem>>, vector<128x128xf32>
      tpu.vector_store %arg7[%c0_11, %c0_12], %12 {strides = array<i32>} : memref<128x128xf32, #tpu.memory_space<vmem>>, vector<128x128xf32>,
    } else {
    }
    %c0 = arith.constant 0 : index
    %c0_1 = arith.constant 0 : index
    %3 = vector.load %arg7[%c0, %c0_1] : memref<128x128xf32, #tpu.memory_space<vmem>>, vector<128x128xf32>
    %c0_2 = arith.constant 0 : index
    %c0_3 = arith.constant 0 : index
    %4 = vector.load %arg3[%c0_2, %c0_3] : memref<128x256xbf16, #tpu.memory_space<vmem>>, vector<128x256xbf16>
    %c0_4 = arith.constant 0 : index
    %c0_5 = arith.constant 0 : index
    %5 = vector.load %arg4[%c0_4, %c0_5] : memref<256x128xbf16, #tpu.memory_space<vmem>>, vector<256x128xbf16>
    %cst = arith.constant dense<0.000000e+00> : vector<128x128xf32>
    %6 = tpu.matmul %4, %5, %cst {dimension_numbers = #tpu.dot_dimension_numbers<[1], [0], [0], [1], [0, 0, 1, 1], [], []>} : vector<128x256xbf16>, vector<256x128xbf16>, vector<128x128xf32> -> vector<128x128xf32>
    %7 = arith.addf %3, %6 : vector<128x128xf32>
    %c0_6 = arith.constant 0 : index
    %c0_7 = arith.constant 0 : index
    %8 = vector.load %arg7[%c0_6, %c0_7] : memref<128x128xf32, #tpu.memory_space<vmem>>, vector<128x128xf32>
    tpu.vector_store %arg7[%c0_6, %c0_7], %7 {strides = array<i32>} : memref<128x128xf32, #tpu.memory_space<vmem>>, vector<128x128xf32>,
    %c0_i32_8 = arith.constant 0 : i32
    %9 = arith.cmpi eq, %arg2, %c0_i32_8 : i32
    %10 = arith.extui %9 : i1 to i32
    %c0_i32_9 = arith.constant 0 : i32
    %11 = arith.cmpi ne, %10, %c0_i32_9 : i32
    scf.if %11 {
      %c0_10 = arith.constant 0 : index
      %c0_11 = arith.constant 0 : index
      %12 = vector.load %arg7[%c0_10, %c0_11] : memref<128x128xf32, #tpu.memory_space<vmem>>, vector<128x128xf32>
      %c0_12 = arith.constant 0 : index
      %c0_13 = arith.constant 0 : index
      %13 = vector.load %arg5[%c0_12, %c0_13] : memref<1x128xf32, #tpu.memory_space<vmem>>, vector<1x128xf32>
      %14 = vector.broadcast %13 : vector<1x128xf32> to vector<128x128xf32>
      %15 = arith.addf %12, %14 : vector<128x128xf32>
      %cst_14 = arith.constant 0.000000e+00 : f32
      %16 = vector.broadcast %cst_14 : f32 to vector<128x128xf32>
      %17 = arith.maximumf %15, %16 : vector<128x128xf32>
      %c0_15 = arith.constant 0 : index
      %c0_16 = arith.constant 0 : index
      %18 = vector.load %arg6[%c0_15, %c0_16] : memref<128x128xf32, #tpu.memory_space<vmem>>, vector<128x128xf32>
      tpu.vector_store %arg6[%c0_15, %c0_16], %17 {strides = array<i32>} : memref<128x128xf32, #tpu.memory_space<vmem>>, vector<128x128xf32>,
    } else {
    }
    return
  }
  func.func @transform_0(%arg0: i32, %arg1: i32, %arg2: i32) -> (i32, i32) {
    %c0_i32 = arith.constant 0 : i32
    return %arg0, %arg2 : i32, i32
  }
  func.func @transform_1(%arg0: i32, %arg1: i32, %arg2: i32) -> (i32, i32) {
    %c0_i32 = arith.constant 0 : i32
    return %arg2, %arg1 : i32, i32
  }
  func.func @transform_2(%arg0: i32, %arg1: i32, %arg2: i32) -> (i32, i32) {
    %c0_i32 = arith.constant 0 : i32
    %c0_i32_0 = arith.constant 0 : i32
    return %c0_i32, %arg1 : i32, i32
  }
  func.func @transform_3(%arg0: i32, %arg1: i32, %arg2: i32) -> (i32, i32) {
    %c0_i32 = arith.constant 0 : i32
    return %arg0, %arg1 : i32, i32
  }
}

module attributes {stable_mosaic.version = 11 : i64} {
  func.func @_mm_kernel(%arg0: i32, %arg1: i32, %arg2: i32, %arg3: memref<128x128xbf16, #tpu.memory_space<vmem>>, %arg4: memref<128x128xbf16, #tpu.memory_space<vmem>>, %arg5: memref<1x128xf32, #tpu.memory_space<vmem>>, %arg6: memref<128x128xf32, #tpu.memory_space<vmem>>, %arg7: memref<128x128xf32, #tpu.memory_space<vmem>>) attributes {dimension_semantics = [#tpu.dimension_semantics<parallel>, #tpu.dimension_semantics<parallel>, #tpu.dimension_semantics<arbitrary>], iteration_bounds = array<i64: 1, 1, 1>, scalar_prefetch = 0 : i64, scratch_operands = 1 : i64, tpu.core_type = #tpu.core_type<tc>, window_params = [{transform_indices = @transform_0, window_bounds = array<i64: 128, 128>}, {transform_indices = @transform_1, window_bounds = array<i64: 128, 128>}, {transform_indices = @transform_2, window_bounds = array<i64: 1, 128>}, {transform_indices = @transform_3, window_bounds = array<i64: 128, 128>}]} {
    %c0_i32 = arith.constant 0 : i32
    %0 = arith.cmpi eq, %arg2, %c0_i32 : i32
    %1 = arith.extui %0 : i1 to i32
    %c0_i32_0 = arith.constant 0 : i32
    %2 = arith.cmpi ne, %1, %c0_i32_0 : i32
    scf.if %2 {
      %cst_10 = arith.constant 0.000000e+00 : f32
      %12 = vector.broadcast %cst_10 : f32 to vector<128x128xf32>
      %c0_11 = arith.constant 0 : index
      %c0_12 = arith.constant 0 : index
      %13 = vector.load %arg7[%c0_11, %c0_12] : memref<128x128xf32, #tpu.memory_space<vmem>>, vector<128x128xf32>
      tpu.vector_store %arg7[%c0_11, %c0_12], %12 {strides = array<i32>} : memref<128x128xf32, #tpu.memory_space<vmem>>, vector<128x128xf32>,
    } else {
    }
    %c0 = arith.constant 0 : index
    %c0_1 = arith.constant 0 : index
    %3 = vector.load %arg7[%c0, %c0_1] : memref<128x128xf32, #tpu.memory_space<vmem>>, vector<128x128xf32>
    %c0_2 = arith.constant 0 : index
    %c0_3 = arith.constant 0 : index
    %4 = vector.load %arg3[%c0_2, %c0_3] : memref<128x128xbf16, #tpu.memory_space<vmem>>, vector<128x128xbf16>
    %c0_4 = arith.constant 0 : index
    %c0_5 = arith.constant 0 : index
    %5 = vector.load %arg4[%c0_4, %c0_5] : memref<128x128xbf16, #tpu.memory_space<vmem>>, vector<128x128xbf16>
    %cst = arith.constant dense<0.000000e+00> : vector<128x128xf32>
    %6 = tpu.matmul %4, %5, %cst {dimension_numbers = #tpu.dot_dimension_numbers<[1], [0], [0], [1], [0, 0, 1, 1], [], []>} : vector<128x128xbf16>, vector<128x128xbf16>, vector<128x128xf32> -> vector<128x128xf32>
    %7 = arith.addf %3, %6 : vector<128x128xf32>
    %c0_6 = arith.constant 0 : index
    %c0_7 = arith.constant 0 : index
    %8 = vector.load %arg7[%c0_6, %c0_7] : memref<128x128xf32, #tpu.memory_space<vmem>>, vector<128x128xf32>
    tpu.vector_store %arg7[%c0_6, %c0_7], %7 {strides = array<i32>} : memref<128x128xf32, #tpu.memory_space<vmem>>, vector<128x128xf32>,
    %c0_i32_8 = arith.constant 0 : i32
    %9 = arith.cmpi eq, %arg2, %c0_i32_8 : i32
    %10 = arith.extui %9 : i1 to i32
    %c0_i32_9 = arith.constant 0 : i32
    %11 = arith.cmpi ne, %10, %c0_i32_9 : i32
    scf.if %11 {
      %c0_10 = arith.constant 0 : index
      %c0_11 = arith.constant 0 : index
      %12 = vector.load %arg7[%c0_10, %c0_11] : memref<128x128xf32, #tpu.memory_space<vmem>>, vector<128x128xf32>
      %c0_12 = arith.constant 0 : index
      %c0_13 = arith.constant 0 : index
      %13 = vector.load %arg5[%c0_12, %c0_13] : memref<1x128xf32, #tpu.memory_space<vmem>>, vector<1x128xf32>
      %14 = vector.broadcast %13 : vector<1x128xf32> to vector<128x128xf32>
      %15 = arith.addf %12, %14 : vector<128x128xf32>
      %c0_14 = arith.constant 0 : index
      %c0_15 = arith.constant 0 : index
      %16 = vector.load %arg6[%c0_14, %c0_15] : memref<128x128xf32, #tpu.memory_space<vmem>>, vector<128x128xf32>
      tpu.vector_store %arg6[%c0_14, %c0_15], %15 {strides = array<i32>} : memref<128x128xf32, #tpu.memory_space<vmem>>, vector<128x128xf32>,
    } else {
    }
    return
  }
  func.func @transform_0(%arg0: i32, %arg1: i32, %arg2: i32) -> (i32, i32) {
    %c0_i32 = arith.constant 0 : i32
    return %arg0, %arg2 : i32, i32
  }
  func.func @transform_1(%arg0: i32, %arg1: i32, %arg2: i32) -> (i32, i32) {
    %c0_i32 = arith.constant 0 : i32
    return %arg2, %arg1 : i32, i32
  }
  func.func @transform_2(%arg0: i32, %arg1: i32, %arg2: i32) -> (i32, i32) {
    %c0_i32 = arith.constant 0 : i32
    %c0_i32_0 = arith.constant 0 : i32
    return %c0_i32, %arg1 : i32, i32
  }
  func.func @transform_3(%arg0: i32, %arg1: i32, %arg2: i32) -> (i32, i32) {
    %c0_i32 = arith.constant 0 : i32
    return %arg0, %arg1 : i32, i32
  }
}

module attributes {stable_mosaic.version = 11 : i64} {
  func.func @_mm_kernel_res(%arg0: i32, %arg1: i32, %arg2: i32, %arg3: memref<128x128xbf16, #tpu.memory_space<vmem>>, %arg4: memref<128x128xbf16, #tpu.memory_space<vmem>>, %arg5: memref<1x128xf32, #tpu.memory_space<vmem>>, %arg6: memref<128x128xf32, #tpu.memory_space<vmem>>, %arg7: memref<128x128xf32, #tpu.memory_space<vmem>>, %arg8: memref<128x128xf32, #tpu.memory_space<vmem>>) attributes {dimension_semantics = [#tpu.dimension_semantics<parallel>, #tpu.dimension_semantics<parallel>, #tpu.dimension_semantics<arbitrary>], iteration_bounds = array<i64: 1, 1, 3>, scalar_prefetch = 0 : i64, scratch_operands = 1 : i64, tpu.core_type = #tpu.core_type<tc>, window_params = [{transform_indices = @transform_0, window_bounds = array<i64: 128, 128>}, {transform_indices = @transform_1, window_bounds = array<i64: 128, 128>}, {transform_indices = @transform_2, window_bounds = array<i64: 1, 128>}, {transform_indices = @transform_3, window_bounds = array<i64: 128, 128>}, {transform_indices = @transform_4, window_bounds = array<i64: 128, 128>}]} {
    %c0_i32 = arith.constant 0 : i32
    %0 = arith.cmpi eq, %arg2, %c0_i32 : i32
    %1 = arith.extui %0 : i1 to i32
    %c0_i32_0 = arith.constant 0 : i32
    %2 = arith.cmpi ne, %1, %c0_i32_0 : i32
    scf.if %2 {
      %cst_9 = arith.constant 0.000000e+00 : f32
      %12 = vector.broadcast %cst_9 : f32 to vector<128x128xf32>
      %c0_10 = arith.constant 0 : index
      %c0_11 = arith.constant 0 : index
      %13 = vector.load %arg8[%c0_10, %c0_11] : memref<128x128xf32, #tpu.memory_space<vmem>>, vector<128x128xf32>
      tpu.vector_store %arg8[%c0_10, %c0_11], %12 {strides = array<i32>} : memref<128x128xf32, #tpu.memory_space<vmem>>, vector<128x128xf32>,
    } else {
    }
    %c0 = arith.constant 0 : index
    %c0_1 = arith.constant 0 : index
    %3 = vector.load %arg8[%c0, %c0_1] : memref<128x128xf32, #tpu.memory_space<vmem>>, vector<128x128xf32>
    %c0_2 = arith.constant 0 : index
    %c0_3 = arith.constant 0 : index
    %4 = vector.load %arg3[%c0_2, %c0_3] : memref<128x128xbf16, #tpu.memory_space<vmem>>, vector<128x128xbf16>
    %c0_4 = arith.constant 0 : index
    %c0_5 = arith.constant 0 : index
    %5 = vector.load %arg4[%c0_4, %c0_5] : memref<128x128xbf16, #tpu.memory_space<vmem>>, vector<128x128xbf16>
    %cst = arith.constant dense<0.000000e+00> : vector<128x128xf32>
    %6 = tpu.matmul %4, %5, %cst {dimension_numbers = #tpu.dot_dimension_numbers<[1], [0], [0], [1], [0, 0, 1, 1], [], []>} : vector<128x128xbf16>, vector<128x128xbf16>, vector<128x128xf32> -> vector<128x128xf32>
    %7 = arith.addf %3, %6 : vector<128x128xf32>
    %c0_6 = arith.constant 0 : index
    %c0_7 = arith.constant 0 : index
    %8 = vector.load %arg8[%c0_6, %c0_7] : memref<128x128xf32, #tpu.memory_space<vmem>>, vector<128x128xf32>
    tpu.vector_store %arg8[%c0_6, %c0_7], %7 {strides = array<i32>} : memref<128x128xf32, #tpu.memory_space<vmem>>, vector<128x128xf32>,
    %c2_i32 = arith.constant 2 : i32
    %9 = arith.cmpi eq, %arg2, %c2_i32 : i32
    %10 = arith.extui %9 : i1 to i32
    %c0_i32_8 = arith.constant 0 : i32
    %11 = arith.cmpi ne, %10, %c0_i32_8 : i32
    scf.if %11 {
      %c0_9 = arith.constant 0 : index
      %c0_10 = arith.constant 0 : index
      %12 = vector.load %arg8[%c0_9, %c0_10] : memref<128x128xf32, #tpu.memory_space<vmem>>, vector<128x128xf32>
      %c0_11 = arith.constant 0 : index
      %c0_12 = arith.constant 0 : index
      %13 = vector.load %arg5[%c0_11, %c0_12] : memref<1x128xf32, #tpu.memory_space<vmem>>, vector<1x128xf32>
      %14 = vector.broadcast %13 : vector<1x128xf32> to vector<128x128xf32>
      %15 = arith.addf %12, %14 : vector<128x128xf32>
      %c0_13 = arith.constant 0 : index
      %c0_14 = arith.constant 0 : index
      %16 = vector.load %arg6[%c0_13, %c0_14] : memref<128x128xf32, #tpu.memory_space<vmem>>, vector<128x128xf32>
      %17 = arith.addf %15, %16 : vector<128x128xf32>
      %cst_15 = arith.constant 0.000000e+00 : f32
      %18 = vector.broadcast %cst_15 : f32 to vector<128x128xf32>
      %19 = arith.maximumf %17, %18 : vector<128x128xf32>
      %c0_16 = arith.constant 0 : index
      %c0_17 = arith.constant 0 : index
      %20 = vector.load %arg7[%c0_16, %c0_17] : memref<128x128xf32, #tpu.memory_space<vmem>>, vector<128x128xf32>
      tpu.vector_store %arg7[%c0_16, %c0_17], %19 {strides = array<i32>} : memref<128x128xf32, #tpu.memory_space<vmem>>, vector<128x128xf32>,
    } else {
    }
    return
  }
  func.func @transform_0(%arg0: i32, %arg1: i32, %arg2: i32) -> (i32, i32) {
    %c0_i32 = arith.constant 0 : i32
    return %arg0, %arg2 : i32, i32
  }
  func.func @transform_1(%arg0: i32, %arg1: i32, %arg2: i32) -> (i32, i32) {
    %c0_i32 = arith.constant 0 : i32
    return %arg2, %arg1 : i32, i32
  }
  func.func @transform_2(%arg0: i32, %arg1: i32, %arg2: i32) -> (i32, i32) {
    %c0_i32 = arith.constant 0 : i32
    %c0_i32_0 = arith.constant 0 : i32
    return %c0_i32, %arg1 : i32, i32
  }
  func.func @transform_3(%arg0: i32, %arg1: i32, %arg2: i32) -> (i32, i32) {
    %c0_i32 = arith.constant 0 : i32
    return %arg0, %arg1 : i32, i32
  }
  func.func @transform_4(%arg0: i32, %arg1: i32, %arg2: i32) -> (i32, i32) {
    %c0_i32 = arith.constant 0 : i32
    return %arg0, %arg1 : i32, i32
  }
}

module attributes {stable_mosaic.version = 11 : i64} {
  func.func @_mm_kernel(%arg0: i32, %arg1: i32, %arg2: i32, %arg3: memref<32x128xbf16, #tpu.memory_space<vmem>>, %arg4: memref<128x128xbf16, #tpu.memory_space<vmem>>, %arg5: memref<1x128xf32, #tpu.memory_space<vmem>>, %arg6: memref<32x128xf32, #tpu.memory_space<vmem>>, %arg7: memref<32x128xf32, #tpu.memory_space<vmem>>) attributes {dimension_semantics = [#tpu.dimension_semantics<parallel>, #tpu.dimension_semantics<parallel>, #tpu.dimension_semantics<arbitrary>], iteration_bounds = array<i64: 1, 1, 3>, scalar_prefetch = 0 : i64, scratch_operands = 1 : i64, tpu.core_type = #tpu.core_type<tc>, window_params = [{transform_indices = @transform_0, window_bounds = array<i64: 32, 128>}, {transform_indices = @transform_1, window_bounds = array<i64: 128, 128>}, {transform_indices = @transform_2, window_bounds = array<i64: 1, 128>}, {transform_indices = @transform_3, window_bounds = array<i64: 32, 128>}]} {
    %c0_i32 = arith.constant 0 : i32
    %0 = arith.cmpi eq, %arg2, %c0_i32 : i32
    %1 = arith.extui %0 : i1 to i32
    %c0_i32_0 = arith.constant 0 : i32
    %2 = arith.cmpi ne, %1, %c0_i32_0 : i32
    scf.if %2 {
      %cst_9 = arith.constant 0.000000e+00 : f32
      %12 = vector.broadcast %cst_9 : f32 to vector<32x128xf32>
      %c0_10 = arith.constant 0 : index
      %c0_11 = arith.constant 0 : index
      %13 = vector.load %arg7[%c0_10, %c0_11] : memref<32x128xf32, #tpu.memory_space<vmem>>, vector<32x128xf32>
      tpu.vector_store %arg7[%c0_10, %c0_11], %12 {strides = array<i32>} : memref<32x128xf32, #tpu.memory_space<vmem>>, vector<32x128xf32>,
    } else {
    }
    %c0 = arith.constant 0 : index
    %c0_1 = arith.constant 0 : index
    %3 = vector.load %arg7[%c0, %c0_1] : memref<32x128xf32, #tpu.memory_space<vmem>>, vector<32x128xf32>
    %c0_2 = arith.constant 0 : index
    %c0_3 = arith.constant 0 : index
    %4 = vector.load %arg3[%c0_2, %c0_3] : memref<32x128xbf16, #tpu.memory_space<vmem>>, vector<32x128xbf16>
    %c0_4 = arith.constant 0 : index
    %c0_5 = arith.constant 0 : index
    %5 = vector.load %arg4[%c0_4, %c0_5] : memref<128x128xbf16, #tpu.memory_space<vmem>>, vector<128x128xbf16>
    %cst = arith.constant dense<0.000000e+00> : vector<32x128xf32>
    %6 = tpu.matmul %4, %5, %cst {dimension_numbers = #tpu.dot_dimension_numbers<[1], [0], [0], [1], [0, 0, 1, 1], [], []>} : vector<32x128xbf16>, vector<128x128xbf16>, vector<32x128xf32> -> vector<32x128xf32>
    %7 = arith.addf %3, %6 : vector<32x128xf32>
    %c0_6 = arith.constant 0 : index
    %c0_7 = arith.constant 0 : index
    %8 = vector.load %arg7[%c0_6, %c0_7] : memref<32x128xf32, #tpu.memory_space<vmem>>, vector<32x128xf32>
    tpu.vector_store %arg7[%c0_6, %c0_7], %7 {strides = array<i32>} : memref<32x128xf32, #tpu.memory_space<vmem>>, vector<32x128xf32>,
    %c2_i32 = arith.constant 2 : i32
    %9 = arith.cmpi eq, %arg2, %c2_i32 : i32
    %10 = arith.extui %9 : i1 to i32
    %c0_i32_8 = arith.constant 0 : i32
    %11 = arith.cmpi ne, %10, %c0_i32_8 : i32
    scf.if %11 {
      %c0_9 = arith.constant 0 : index
      %c0_10 = arith.constant 0 : index
      %12 = vector.load %arg7[%c0_9, %c0_10] : memref<32x128xf32, #tpu.memory_space<vmem>>, vector<32x128xf32>
      %c0_11 = arith.constant 0 : index
      %c0_12 = arith.constant 0 : index
      %13 = vector.load %arg5[%c0_11, %c0_12] : memref<1x128xf32, #tpu.memory_space<vmem>>, vector<1x128xf32>
      %14 = vector.broadcast %13 : vector<1x128xf32> to vector<32x128xf32>
      %15 = arith.addf %12, %14 : vector<32x128xf32>
      %cst_13 = arith.constant 0.000000e+00 : f32
      %16 = vector.broadcast %cst_13 : f32 to vector<32x128xf32>
      %17 = arith.maximumf %15, %16 : vector<32x128xf32>
      %c0_14 = arith.constant 0 : index
      %c0_15 = arith.constant 0 : index
      %18 = vector.load %arg6[%c0_14, %c0_15] : memref<32x128xf32, #tpu.memory_space<vmem>>, vector<32x128xf32>
      tpu.vector_store %arg6[%c0_14, %c0_15], %17 {strides = array<i32>} : memref<32x128xf32, #tpu.memory_space<vmem>>, vector<32x128xf32>,
    } else {
    }
    return
  }
  func.func @transform_0(%arg0: i32, %arg1: i32, %arg2: i32) -> (i32, i32) {
    %c0_i32 = arith.constant 0 : i32
    return %arg0, %arg2 : i32, i32
  }
  func.func @transform_1(%arg0: i32, %arg1: i32, %arg2: i32) -> (i32, i32) {
    %c0_i32 = arith.constant 0 : i32
    return %arg2, %arg1 : i32, i32
  }
  func.func @transform_2(%arg0: i32, %arg1: i32, %arg2: i32) -> (i32, i32) {
    %c0_i32 = arith.constant 0 : i32
    %c0_i32_0 = arith.constant 0 : i32
    return %c0_i32, %arg1 : i32, i32
  }
  func.func @transform_3(%arg0: i32, %arg1: i32, %arg2: i32) -> (i32, i32) {
    %c0_i32 = arith.constant 0 : i32
    return %arg0, %arg1 : i32, i32
  }
}

module attributes {stable_mosaic.version = 11 : i64} {
  func.func @_mm_kernel(%arg0: i32, %arg1: i32, %arg2: i32, %arg3: memref<32x128xbf16, #tpu.memory_space<vmem>>, %arg4: memref<128x128xbf16, #tpu.memory_space<vmem>>, %arg5: memref<1x128xf32, #tpu.memory_space<vmem>>, %arg6: memref<32x128xf32, #tpu.memory_space<vmem>>, %arg7: memref<32x128xf32, #tpu.memory_space<vmem>>) attributes {dimension_semantics = [#tpu.dimension_semantics<parallel>, #tpu.dimension_semantics<parallel>, #tpu.dimension_semantics<arbitrary>], iteration_bounds = array<i64: 1, 1, 1>, scalar_prefetch = 0 : i64, scratch_operands = 1 : i64, tpu.core_type = #tpu.core_type<tc>, window_params = [{transform_indices = @transform_0, window_bounds = array<i64: 32, 128>}, {transform_indices = @transform_1, window_bounds = array<i64: 128, 128>}, {transform_indices = @transform_2, window_bounds = array<i64: 1, 128>}, {transform_indices = @transform_3, window_bounds = array<i64: 32, 128>}]} {
    %c0_i32 = arith.constant 0 : i32
    %0 = arith.cmpi eq, %arg2, %c0_i32 : i32
    %1 = arith.extui %0 : i1 to i32
    %c0_i32_0 = arith.constant 0 : i32
    %2 = arith.cmpi ne, %1, %c0_i32_0 : i32
    scf.if %2 {
      %cst_10 = arith.constant 0.000000e+00 : f32
      %12 = vector.broadcast %cst_10 : f32 to vector<32x128xf32>
      %c0_11 = arith.constant 0 : index
      %c0_12 = arith.constant 0 : index
      %13 = vector.load %arg7[%c0_11, %c0_12] : memref<32x128xf32, #tpu.memory_space<vmem>>, vector<32x128xf32>
      tpu.vector_store %arg7[%c0_11, %c0_12], %12 {strides = array<i32>} : memref<32x128xf32, #tpu.memory_space<vmem>>, vector<32x128xf32>,
    } else {
    }
    %c0 = arith.constant 0 : index
    %c0_1 = arith.constant 0 : index
    %3 = vector.load %arg7[%c0, %c0_1] : memref<32x128xf32, #tpu.memory_space<vmem>>, vector<32x128xf32>
    %c0_2 = arith.constant 0 : index
    %c0_3 = arith.constant 0 : index
    %4 = vector.load %arg3[%c0_2, %c0_3] : memref<32x128xbf16, #tpu.memory_space<vmem>>, vector<32x128xbf16>
    %c0_4 = arith.constant 0 : index
    %c0_5 = arith.constant 0 : index
    %5 = vector.load %arg4[%c0_4, %c0_5] : memref<128x128xbf16, #tpu.memory_space<vmem>>, vector<128x128xbf16>
    %cst = arith.constant dense<0.000000e+00> : vector<32x128xf32>
    %6 = tpu.matmul %4, %5, %cst {dimension_numbers = #tpu.dot_dimension_numbers<[1], [0], [0], [1], [0, 0, 1, 1], [], []>} : vector<32x128xbf16>, vector<128x128xbf16>, vector<32x128xf32> -> vector<32x128xf32>
    %7 = arith.addf %3, %6 : vector<32x128xf32>
    %c0_6 = arith.constant 0 : index
    %c0_7 = arith.constant 0 : index
    %8 = vector.load %arg7[%c0_6, %c0_7] : memref<32x128xf32, #tpu.memory_space<vmem>>, vector<32x128xf32>
    tpu.vector_store %arg7[%c0_6, %c0_7], %7 {strides = array<i32>} : memref<32x128xf32, #tpu.memory_space<vmem>>, vector<32x128xf32>,
    %c0_i32_8 = arith.constant 0 : i32
    %9 = arith.cmpi eq, %arg2, %c0_i32_8 : i32
    %10 = arith.extui %9 : i1 to i32
    %c0_i32_9 = arith.constant 0 : i32
    %11 = arith.cmpi ne, %10, %c0_i32_9 : i32
    scf.if %11 {
      %c0_10 = arith.constant 0 : index
      %c0_11 = arith.constant 0 : index
      %12 = vector.load %arg7[%c0_10, %c0_11] : memref<32x128xf32, #tpu.memory_space<vmem>>, vector<32x128xf32>
      %c0_12 = arith.constant 0 : index
      %c0_13 = arith.constant 0 : index
      %13 = vector.load %arg5[%c0_12, %c0_13] : memref<1x128xf32, #tpu.memory_space<vmem>>, vector<1x128xf32>
      %14 = vector.broadcast %13 : vector<1x128xf32> to vector<32x128xf32>
      %15 = arith.addf %12, %14 : vector<32x128xf32>
      %c0_14 = arith.constant 0 : index
      %c0_15 = arith.constant 0 : index
      %16 = vector.load %arg6[%c0_14, %c0_15] : memref<32x128xf32, #tpu.memory_space<vmem>>, vector<32x128xf32>
      tpu.vector_store %arg6[%c0_14, %c0_15], %15 {strides = array<i32>} : memref<32x128xf32, #tpu.memory_space<vmem>>, vector<32x128xf32>,
    } else {
    }
    return
  }
  func.func @transform_0(%arg0: i32, %arg1: i32, %arg2: i32) -> (i32, i32) {
    %c0_i32 = arith.constant 0 : i32
    return %arg0, %arg2 : i32, i32
  }
  func.func @transform_1(%arg0: i32, %arg1: i32, %arg2: i32) -> (i32, i32) {
    %c0_i32 = arith.constant 0 : i32
    return %arg2, %arg1 : i32, i32
  }
  func.func @transform_2(%arg0: i32, %arg1: i32, %arg2: i32) -> (i32, i32) {
    %c0_i32 = arith.constant 0 : i32
    %c0_i32_0 = arith.constant 0 : i32
    return %c0_i32, %arg1 : i32, i32
  }
  func.func @transform_3(%arg0: i32, %arg1: i32, %arg2: i32) -> (i32, i32) {
    %c0_i32 = arith.constant 0 : i32
    return %arg0, %arg1 : i32, i32
  }
}

module attributes {stable_mosaic.version = 11 : i64} {
  func.func @_mm_kernel_res(%arg0: i32, %arg1: i32, %arg2: i32, %arg3: memref<32x128xbf16, #tpu.memory_space<vmem>>, %arg4: memref<128x128xbf16, #tpu.memory_space<vmem>>, %arg5: memref<1x128xf32, #tpu.memory_space<vmem>>, %arg6: memref<32x128xf32, #tpu.memory_space<vmem>>, %arg7: memref<32x128xf32, #tpu.memory_space<vmem>>, %arg8: memref<32x128xf32, #tpu.memory_space<vmem>>) attributes {dimension_semantics = [#tpu.dimension_semantics<parallel>, #tpu.dimension_semantics<parallel>, #tpu.dimension_semantics<arbitrary>], iteration_bounds = array<i64: 1, 1, 3>, scalar_prefetch = 0 : i64, scratch_operands = 1 : i64, tpu.core_type = #tpu.core_type<tc>, window_params = [{transform_indices = @transform_0, window_bounds = array<i64: 32, 128>}, {transform_indices = @transform_1, window_bounds = array<i64: 128, 128>}, {transform_indices = @transform_2, window_bounds = array<i64: 1, 128>}, {transform_indices = @transform_3, window_bounds = array<i64: 32, 128>}, {transform_indices = @transform_4, window_bounds = array<i64: 32, 128>}]} {
    %c0_i32 = arith.constant 0 : i32
    %0 = arith.cmpi eq, %arg2, %c0_i32 : i32
    %1 = arith.extui %0 : i1 to i32
    %c0_i32_0 = arith.constant 0 : i32
    %2 = arith.cmpi ne, %1, %c0_i32_0 : i32
    scf.if %2 {
      %cst_9 = arith.constant 0.000000e+00 : f32
      %12 = vector.broadcast %cst_9 : f32 to vector<32x128xf32>
      %c0_10 = arith.constant 0 : index
      %c0_11 = arith.constant 0 : index
      %13 = vector.load %arg8[%c0_10, %c0_11] : memref<32x128xf32, #tpu.memory_space<vmem>>, vector<32x128xf32>
      tpu.vector_store %arg8[%c0_10, %c0_11], %12 {strides = array<i32>} : memref<32x128xf32, #tpu.memory_space<vmem>>, vector<32x128xf32>,
    } else {
    }
    %c0 = arith.constant 0 : index
    %c0_1 = arith.constant 0 : index
    %3 = vector.load %arg8[%c0, %c0_1] : memref<32x128xf32, #tpu.memory_space<vmem>>, vector<32x128xf32>
    %c0_2 = arith.constant 0 : index
    %c0_3 = arith.constant 0 : index
    %4 = vector.load %arg3[%c0_2, %c0_3] : memref<32x128xbf16, #tpu.memory_space<vmem>>, vector<32x128xbf16>
    %c0_4 = arith.constant 0 : index
    %c0_5 = arith.constant 0 : index
    %5 = vector.load %arg4[%c0_4, %c0_5] : memref<128x128xbf16, #tpu.memory_space<vmem>>, vector<128x128xbf16>
    %cst = arith.constant dense<0.000000e+00> : vector<32x128xf32>
    %6 = tpu.matmul %4, %5, %cst {dimension_numbers = #tpu.dot_dimension_numbers<[1], [0], [0], [1], [0, 0, 1, 1], [], []>} : vector<32x128xbf16>, vector<128x128xbf16>, vector<32x128xf32> -> vector<32x128xf32>
    %7 = arith.addf %3, %6 : vector<32x128xf32>
    %c0_6 = arith.constant 0 : index
    %c0_7 = arith.constant 0 : index
    %8 = vector.load %arg8[%c0_6, %c0_7] : memref<32x128xf32, #tpu.memory_space<vmem>>, vector<32x128xf32>
    tpu.vector_store %arg8[%c0_6, %c0_7], %7 {strides = array<i32>} : memref<32x128xf32, #tpu.memory_space<vmem>>, vector<32x128xf32>,
    %c2_i32 = arith.constant 2 : i32
    %9 = arith.cmpi eq, %arg2, %c2_i32 : i32
    %10 = arith.extui %9 : i1 to i32
    %c0_i32_8 = arith.constant 0 : i32
    %11 = arith.cmpi ne, %10, %c0_i32_8 : i32
    scf.if %11 {
      %c0_9 = arith.constant 0 : index
      %c0_10 = arith.constant 0 : index
      %12 = vector.load %arg8[%c0_9, %c0_10] : memref<32x128xf32, #tpu.memory_space<vmem>>, vector<32x128xf32>
      %c0_11 = arith.constant 0 : index
      %c0_12 = arith.constant 0 : index
      %13 = vector.load %arg5[%c0_11, %c0_12] : memref<1x128xf32, #tpu.memory_space<vmem>>, vector<1x128xf32>
      %14 = vector.broadcast %13 : vector<1x128xf32> to vector<32x128xf32>
      %15 = arith.addf %12, %14 : vector<32x128xf32>
      %c0_13 = arith.constant 0 : index
      %c0_14 = arith.constant 0 : index
      %16 = vector.load %arg6[%c0_13, %c0_14] : memref<32x128xf32, #tpu.memory_space<vmem>>, vector<32x128xf32>
      %17 = arith.addf %15, %16 : vector<32x128xf32>
      %cst_15 = arith.constant 0.000000e+00 : f32
      %18 = vector.broadcast %cst_15 : f32 to vector<32x128xf32>
      %19 = arith.maximumf %17, %18 : vector<32x128xf32>
      %c0_16 = arith.constant 0 : index
      %c0_17 = arith.constant 0 : index
      %20 = vector.load %arg7[%c0_16, %c0_17] : memref<32x128xf32, #tpu.memory_space<vmem>>, vector<32x128xf32>
      tpu.vector_store %arg7[%c0_16, %c0_17], %19 {strides = array<i32>} : memref<32x128xf32, #tpu.memory_space<vmem>>, vector<32x128xf32>,
    } else {
    }
    return
  }
  func.func @transform_0(%arg0: i32, %arg1: i32, %arg2: i32) -> (i32, i32) {
    %c0_i32 = arith.constant 0 : i32
    return %arg0, %arg2 : i32, i32
  }
  func.func @transform_1(%arg0: i32, %arg1: i32, %arg2: i32) -> (i32, i32) {
    %c0_i32 = arith.constant 0 : i32
    return %arg2, %arg1 : i32, i32
  }
  func.func @transform_2(%arg0: i32, %arg1: i32, %arg2: i32) -> (i32, i32) {
    %c0_i32 = arith.constant 0 : i32
    %c0_i32_0 = arith.constant 0 : i32
    return %c0_i32, %arg1 : i32, i32
  }
  func.func @transform_3(%arg0: i32, %arg1: i32, %arg2: i32) -> (i32, i32) {
    %c0_i32 = arith.constant 0 : i32
    return %arg0, %arg1 : i32, i32
  }
  func.func @transform_4(%arg0: i32, %arg1: i32, %arg2: i32) -> (i32, i32) {
    %c0_i32 = arith.constant 0 : i32
    return %arg0, %arg1 : i32, i32
  }
}

module attributes {stable_mosaic.version = 11 : i64} {
  func.func @_mm_kernel_res(%arg0: i32, %arg1: i32, %arg2: i32, %arg3: memref<32x128xbf16, #tpu.memory_space<vmem>>, %arg4: memref<128x128xbf16, #tpu.memory_space<vmem>>, %arg5: memref<1x128xf32, #tpu.memory_space<vmem>>, %arg6: memref<32x128xf32, #tpu.memory_space<vmem>>, %arg7: memref<32x128xf32, #tpu.memory_space<vmem>>, %arg8: memref<32x128xf32, #tpu.memory_space<vmem>>) attributes {dimension_semantics = [#tpu.dimension_semantics<parallel>, #tpu.dimension_semantics<parallel>, #tpu.dimension_semantics<arbitrary>], iteration_bounds = array<i64: 1, 1, 5>, scalar_prefetch = 0 : i64, scratch_operands = 1 : i64, tpu.core_type = #tpu.core_type<tc>, window_params = [{transform_indices = @transform_0, window_bounds = array<i64: 32, 128>}, {transform_indices = @transform_1, window_bounds = array<i64: 128, 128>}, {transform_indices = @transform_2, window_bounds = array<i64: 1, 128>}, {transform_indices = @transform_3, window_bounds = array<i64: 32, 128>}, {transform_indices = @transform_4, window_bounds = array<i64: 32, 128>}]} {
    %c0_i32 = arith.constant 0 : i32
    %0 = arith.cmpi eq, %arg2, %c0_i32 : i32
    %1 = arith.extui %0 : i1 to i32
    %c0_i32_0 = arith.constant 0 : i32
    %2 = arith.cmpi ne, %1, %c0_i32_0 : i32
    scf.if %2 {
      %cst_9 = arith.constant 0.000000e+00 : f32
      %12 = vector.broadcast %cst_9 : f32 to vector<32x128xf32>
      %c0_10 = arith.constant 0 : index
      %c0_11 = arith.constant 0 : index
      %13 = vector.load %arg8[%c0_10, %c0_11] : memref<32x128xf32, #tpu.memory_space<vmem>>, vector<32x128xf32>
      tpu.vector_store %arg8[%c0_10, %c0_11], %12 {strides = array<i32>} : memref<32x128xf32, #tpu.memory_space<vmem>>, vector<32x128xf32>,
    } else {
    }
    %c0 = arith.constant 0 : index
    %c0_1 = arith.constant 0 : index
    %3 = vector.load %arg8[%c0, %c0_1] : memref<32x128xf32, #tpu.memory_space<vmem>>, vector<32x128xf32>
    %c0_2 = arith.constant 0 : index
    %c0_3 = arith.constant 0 : index
    %4 = vector.load %arg3[%c0_2, %c0_3] : memref<32x128xbf16, #tpu.memory_space<vmem>>, vector<32x128xbf16>
    %c0_4 = arith.constant 0 : index
    %c0_5 = arith.constant 0 : index
    %5 = vector.load %arg4[%c0_4, %c0_5] : memref<128x128xbf16, #tpu.memory_space<vmem>>, vector<128x128xbf16>
    %cst = arith.constant dense<0.000000e+00> : vector<32x128xf32>
    %6 = tpu.matmul %4, %5, %cst {dimension_numbers = #tpu.dot_dimension_numbers<[1], [0], [0], [1], [0, 0, 1, 1], [], []>} : vector<32x128xbf16>, vector<128x128xbf16>, vector<32x128xf32> -> vector<32x128xf32>
    %7 = arith.addf %3, %6 : vector<32x128xf32>
    %c0_6 = arith.constant 0 : index
    %c0_7 = arith.constant 0 : index
    %8 = vector.load %arg8[%c0_6, %c0_7] : memref<32x128xf32, #tpu.memory_space<vmem>>, vector<32x128xf32>
    tpu.vector_store %arg8[%c0_6, %c0_7], %7 {strides = array<i32>} : memref<32x128xf32, #tpu.memory_space<vmem>>, vector<32x128xf32>,
    %c4_i32 = arith.constant 4 : i32
    %9 = arith.cmpi eq, %arg2, %c4_i32 : i32
    %10 = arith.extui %9 : i1 to i32
    %c0_i32_8 = arith.constant 0 : i32
    %11 = arith.cmpi ne, %10, %c0_i32_8 : i32
    scf.if %11 {
      %c0_9 = arith.constant 0 : index
      %c0_10 = arith.constant 0 : index
      %12 = vector.load %arg8[%c0_9, %c0_10] : memref<32x128xf32, #tpu.memory_space<vmem>>, vector<32x128xf32>
      %c0_11 = arith.constant 0 : index
      %c0_12 = arith.constant 0 : index
      %13 = vector.load %arg5[%c0_11, %c0_12] : memref<1x128xf32, #tpu.memory_space<vmem>>, vector<1x128xf32>
      %14 = vector.broadcast %13 : vector<1x128xf32> to vector<32x128xf32>
      %15 = arith.addf %12, %14 : vector<32x128xf32>
      %c0_13 = arith.constant 0 : index
      %c0_14 = arith.constant 0 : index
      %16 = vector.load %arg6[%c0_13, %c0_14] : memref<32x128xf32, #tpu.memory_space<vmem>>, vector<32x128xf32>
      %17 = arith.addf %15, %16 : vector<32x128xf32>
      %cst_15 = arith.constant 0.000000e+00 : f32
      %18 = vector.broadcast %cst_15 : f32 to vector<32x128xf32>
      %19 = arith.maximumf %17, %18 : vector<32x128xf32>
      %c0_16 = arith.constant 0 : index
      %c0_17 = arith.constant 0 : index
      %20 = vector.load %arg7[%c0_16, %c0_17] : memref<32x128xf32, #tpu.memory_space<vmem>>, vector<32x128xf32>
      tpu.vector_store %arg7[%c0_16, %c0_17], %19 {strides = array<i32>} : memref<32x128xf32, #tpu.memory_space<vmem>>, vector<32x128xf32>,
    } else {
    }
    return
  }
  func.func @transform_0(%arg0: i32, %arg1: i32, %arg2: i32) -> (i32, i32) {
    %c0_i32 = arith.constant 0 : i32
    return %arg0, %arg2 : i32, i32
  }
  func.func @transform_1(%arg0: i32, %arg1: i32, %arg2: i32) -> (i32, i32) {
    %c0_i32 = arith.constant 0 : i32
    return %arg2, %arg1 : i32, i32
  }
  func.func @transform_2(%arg0: i32, %arg1: i32, %arg2: i32) -> (i32, i32) {
    %c0_i32 = arith.constant 0 : i32
    %c0_i32_0 = arith.constant 0 : i32
    return %c0_i32, %arg1 : i32, i32
  }
  func.func @transform_3(%arg0: i32, %arg1: i32, %arg2: i32) -> (i32, i32) {
    %c0_i32 = arith.constant 0 : i32
    return %arg0, %arg1 : i32, i32
  }
  func.func @transform_4(%arg0: i32, %arg1: i32, %arg2: i32) -> (i32, i32) {
    %c0_i32 = arith.constant 0 : i32
    return %arg0, %arg1 : i32, i32
  }
}

module attributes {stable_mosaic.version = 11 : i64} {
  func.func @_mm_kernel(%arg0: i32, %arg1: i32, %arg2: i32, %arg3: memref<32x128xbf16, #tpu.memory_space<vmem>>, %arg4: memref<128x128xbf16, #tpu.memory_space<vmem>>, %arg5: memref<1x128xf32, #tpu.memory_space<vmem>>, %arg6: memref<32x128xf32, #tpu.memory_space<vmem>>, %arg7: memref<32x128xf32, #tpu.memory_space<vmem>>) attributes {dimension_semantics = [#tpu.dimension_semantics<parallel>, #tpu.dimension_semantics<parallel>, #tpu.dimension_semantics<arbitrary>], iteration_bounds = array<i64: 1, 1, 5>, scalar_prefetch = 0 : i64, scratch_operands = 1 : i64, tpu.core_type = #tpu.core_type<tc>, window_params = [{transform_indices = @transform_0, window_bounds = array<i64: 32, 128>}, {transform_indices = @transform_1, window_bounds = array<i64: 128, 128>}, {transform_indices = @transform_2, window_bounds = array<i64: 1, 128>}, {transform_indices = @transform_3, window_bounds = array<i64: 32, 128>}]} {
    %c0_i32 = arith.constant 0 : i32
    %0 = arith.cmpi eq, %arg2, %c0_i32 : i32
    %1 = arith.extui %0 : i1 to i32
    %c0_i32_0 = arith.constant 0 : i32
    %2 = arith.cmpi ne, %1, %c0_i32_0 : i32
    scf.if %2 {
      %cst_9 = arith.constant 0.000000e+00 : f32
      %12 = vector.broadcast %cst_9 : f32 to vector<32x128xf32>
      %c0_10 = arith.constant 0 : index
      %c0_11 = arith.constant 0 : index
      %13 = vector.load %arg7[%c0_10, %c0_11] : memref<32x128xf32, #tpu.memory_space<vmem>>, vector<32x128xf32>
      tpu.vector_store %arg7[%c0_10, %c0_11], %12 {strides = array<i32>} : memref<32x128xf32, #tpu.memory_space<vmem>>, vector<32x128xf32>,
    } else {
    }
    %c0 = arith.constant 0 : index
    %c0_1 = arith.constant 0 : index
    %3 = vector.load %arg7[%c0, %c0_1] : memref<32x128xf32, #tpu.memory_space<vmem>>, vector<32x128xf32>
    %c0_2 = arith.constant 0 : index
    %c0_3 = arith.constant 0 : index
    %4 = vector.load %arg3[%c0_2, %c0_3] : memref<32x128xbf16, #tpu.memory_space<vmem>>, vector<32x128xbf16>
    %c0_4 = arith.constant 0 : index
    %c0_5 = arith.constant 0 : index
    %5 = vector.load %arg4[%c0_4, %c0_5] : memref<128x128xbf16, #tpu.memory_space<vmem>>, vector<128x128xbf16>
    %cst = arith.constant dense<0.000000e+00> : vector<32x128xf32>
    %6 = tpu.matmul %4, %5, %cst {dimension_numbers = #tpu.dot_dimension_numbers<[1], [0], [0], [1], [0, 0, 1, 1], [], []>} : vector<32x128xbf16>, vector<128x128xbf16>, vector<32x128xf32> -> vector<32x128xf32>
    %7 = arith.addf %3, %6 : vector<32x128xf32>
    %c0_6 = arith.constant 0 : index
    %c0_7 = arith.constant 0 : index
    %8 = vector.load %arg7[%c0_6, %c0_7] : memref<32x128xf32, #tpu.memory_space<vmem>>, vector<32x128xf32>
    tpu.vector_store %arg7[%c0_6, %c0_7], %7 {strides = array<i32>} : memref<32x128xf32, #tpu.memory_space<vmem>>, vector<32x128xf32>,
    %c4_i32 = arith.constant 4 : i32
    %9 = arith.cmpi eq, %arg2, %c4_i32 : i32
    %10 = arith.extui %9 : i1 to i32
    %c0_i32_8 = arith.constant 0 : i32
    %11 = arith.cmpi ne, %10, %c0_i32_8 : i32
    scf.if %11 {
      %c0_9 = arith.constant 0 : index
      %c0_10 = arith.constant 0 : index
      %12 = vector.load %arg7[%c0_9, %c0_10] : memref<32x128xf32, #tpu.memory_space<vmem>>, vector<32x128xf32>
      %c0_11 = arith.constant 0 : index
      %c0_12 = arith.constant 0 : index
      %13 = vector.load %arg5[%c0_11, %c0_12] : memref<1x128xf32, #tpu.memory_space<vmem>>, vector<1x128xf32>
      %14 = vector.broadcast %13 : vector<1x128xf32> to vector<32x128xf32>
      %15 = arith.addf %12, %14 : vector<32x128xf32>
      %cst_13 = arith.constant 0.000000e+00 : f32
      %16 = vector.broadcast %cst_13 : f32 to vector<32x128xf32>
      %17 = arith.maximumf %15, %16 : vector<32x128xf32>
      %c0_14 = arith.constant 0 : index
      %c0_15 = arith.constant 0 : index
      %18 = vector.load %arg6[%c0_14, %c0_15] : memref<32x128xf32, #tpu.memory_space<vmem>>, vector<32x128xf32>
      tpu.vector_store %arg6[%c0_14, %c0_15], %17 {strides = array<i32>} : memref<32x128xf32, #tpu.memory_space<vmem>>, vector<32x128xf32>,
    } else {
    }
    return
  }
  func.func @transform_0(%arg0: i32, %arg1: i32, %arg2: i32) -> (i32, i32) {
    %c0_i32 = arith.constant 0 : i32
    return %arg0, %arg2 : i32, i32
  }
  func.func @transform_1(%arg0: i32, %arg1: i32, %arg2: i32) -> (i32, i32) {
    %c0_i32 = arith.constant 0 : i32
    return %arg2, %arg1 : i32, i32
  }
  func.func @transform_2(%arg0: i32, %arg1: i32, %arg2: i32) -> (i32, i32) {
    %c0_i32 = arith.constant 0 : i32
    %c0_i32_0 = arith.constant 0 : i32
    return %c0_i32, %arg1 : i32, i32
  }
  func.func @transform_3(%arg0: i32, %arg1: i32, %arg2: i32) -> (i32, i32) {
    %c0_i32 = arith.constant 0 : i32
    return %arg0, %arg1 : i32, i32
  }
}

module attributes {stable_mosaic.version = 11 : i64} {
  func.func @_mm_kernel(%arg0: i32, %arg1: i32, %arg2: i32, %arg3: memref<16x128xbf16, #tpu.memory_space<vmem>>, %arg4: memref<128x128xbf16, #tpu.memory_space<vmem>>, %arg5: memref<1x128xf32, #tpu.memory_space<vmem>>, %arg6: memref<16x128xf32, #tpu.memory_space<vmem>>, %arg7: memref<16x128xf32, #tpu.memory_space<vmem>>) attributes {dimension_semantics = [#tpu.dimension_semantics<parallel>, #tpu.dimension_semantics<parallel>, #tpu.dimension_semantics<arbitrary>], iteration_bounds = array<i64: 1, 1, 1>, scalar_prefetch = 0 : i64, scratch_operands = 1 : i64, tpu.core_type = #tpu.core_type<tc>, window_params = [{transform_indices = @transform_0, window_bounds = array<i64: 16, 128>}, {transform_indices = @transform_1, window_bounds = array<i64: 128, 128>}, {transform_indices = @transform_2, window_bounds = array<i64: 1, 128>}, {transform_indices = @transform_3, window_bounds = array<i64: 16, 128>}]} {
    %c0_i32 = arith.constant 0 : i32
    %0 = arith.cmpi eq, %arg2, %c0_i32 : i32
    %1 = arith.extui %0 : i1 to i32
    %c0_i32_0 = arith.constant 0 : i32
    %2 = arith.cmpi ne, %1, %c0_i32_0 : i32
    scf.if %2 {
      %cst_10 = arith.constant 0.000000e+00 : f32
      %12 = vector.broadcast %cst_10 : f32 to vector<16x128xf32>
      %c0_11 = arith.constant 0 : index
      %c0_12 = arith.constant 0 : index
      %13 = vector.load %arg7[%c0_11, %c0_12] : memref<16x128xf32, #tpu.memory_space<vmem>>, vector<16x128xf32>
      tpu.vector_store %arg7[%c0_11, %c0_12], %12 {strides = array<i32>} : memref<16x128xf32, #tpu.memory_space<vmem>>, vector<16x128xf32>,
    } else {
    }
    %c0 = arith.constant 0 : index
    %c0_1 = arith.constant 0 : index
    %3 = vector.load %arg7[%c0, %c0_1] : memref<16x128xf32, #tpu.memory_space<vmem>>, vector<16x128xf32>
    %c0_2 = arith.constant 0 : index
    %c0_3 = arith.constant 0 : index
    %4 = vector.load %arg3[%c0_2, %c0_3] : memref<16x128xbf16, #tpu.memory_space<vmem>>, vector<16x128xbf16>
    %c0_4 = arith.constant 0 : index
    %c0_5 = arith.constant 0 : index
    %5 = vector.load %arg4[%c0_4, %c0_5] : memref<128x128xbf16, #tpu.memory_space<vmem>>, vector<128x128xbf16>
    %cst = arith.constant dense<0.000000e+00> : vector<16x128xf32>
    %6 = tpu.matmul %4, %5, %cst {dimension_numbers = #tpu.dot_dimension_numbers<[1], [0], [0], [1], [0, 0, 1, 1], [], []>} : vector<16x128xbf16>, vector<128x128xbf16>, vector<16x128xf32> -> vector<16x128xf32>
    %7 = arith.addf %3, %6 : vector<16x128xf32>
    %c0_6 = arith.constant 0 : index
    %c0_7 = arith.constant 0 : index
    %8 = vector.load %arg7[%c0_6, %c0_7] : memref<16x128xf32, #tpu.memory_space<vmem>>, vector<16x128xf32>
    tpu.vector_store %arg7[%c0_6, %c0_7], %7 {strides = array<i32>} : memref<16x128xf32, #tpu.memory_space<vmem>>, vector<16x128xf32>,
    %c0_i32_8 = arith.constant 0 : i32
    %9 = arith.cmpi eq, %arg2, %c0_i32_8 : i32
    %10 = arith.extui %9 : i1 to i32
    %c0_i32_9 = arith.constant 0 : i32
    %11 = arith.cmpi ne, %10, %c0_i32_9 : i32
    scf.if %11 {
      %c0_10 = arith.constant 0 : index
      %c0_11 = arith.constant 0 : index
      %12 = vector.load %arg7[%c0_10, %c0_11] : memref<16x128xf32, #tpu.memory_space<vmem>>, vector<16x128xf32>
      %c0_12 = arith.constant 0 : index
      %c0_13 = arith.constant 0 : index
      %13 = vector.load %arg5[%c0_12, %c0_13] : memref<1x128xf32, #tpu.memory_space<vmem>>, vector<1x128xf32>
      %14 = vector.broadcast %13 : vector<1x128xf32> to vector<16x128xf32>
      %15 = arith.addf %12, %14 : vector<16x128xf32>
      %c0_14 = arith.constant 0 : index
      %c0_15 = arith.constant 0 : index
      %16 = vector.load %arg6[%c0_14, %c0_15] : memref<16x128xf32, #tpu.memory_space<vmem>>, vector<16x128xf32>
      tpu.vector_store %arg6[%c0_14, %c0_15], %15 {strides = array<i32>} : memref<16x128xf32, #tpu.memory_space<vmem>>, vector<16x128xf32>,
    } else {
    }
    return
  }
  func.func @transform_0(%arg0: i32, %arg1: i32, %arg2: i32) -> (i32, i32) {
    %c0_i32 = arith.constant 0 : i32
    return %arg0, %arg2 : i32, i32
  }
  func.func @transform_1(%arg0: i32, %arg1: i32, %arg2: i32) -> (i32, i32) {
    %c0_i32 = arith.constant 0 : i32
    return %arg2, %arg1 : i32, i32
  }
  func.func @transform_2(%arg0: i32, %arg1: i32, %arg2: i32) -> (i32, i32) {
    %c0_i32 = arith.constant 0 : i32
    %c0_i32_0 = arith.constant 0 : i32
    return %c0_i32, %arg1 : i32, i32
  }
  func.func @transform_3(%arg0: i32, %arg1: i32, %arg2: i32) -> (i32, i32) {
    %c0_i32 = arith.constant 0 : i32
    return %arg0, %arg1 : i32, i32
  }
}

</mosaic_0001>

<llo_original>
// kernel: _lambda_.17
$region0: #{_lambda_.17}
  #allocation0 [shape = 'u32[]', space=smem, size = 0x4, offset = 0x4, fixed_abs, tag = 'smem constant byte address 0x4 - core index']
  #allocation1 [shape = 'u32[144,128]{1,0:T(1,128)}', space=vmem, size = 0x12000, scoped, tag = 'internal scratch']
  #allocation2 [shape = 'f32[256,128]{1,0:T(8,128)}', space=vmem, size = 0x20000, scoped, tag = 'scratch operand']
  %s0 = inlined_call_operand.vmem [shape: bf16[2048,256], index: 0, kind: input, shape index: {}]
  %s1 = inlined_call_operand.vmem [shape: bf16[256,128], index: 1, kind: input, shape index: {}]
  %s2 = inlined_call_operand.vmem [shape: f32[1,128], index: 2, kind: input, shape index: {}]
  %s3 = inlined_call_operand.vmem [shape: f32[2048,128], index: 3, kind: output, shape index: {}]
  %s4 = sld [smem:[#allocation0]]
  $region53: #{_lambda_.17} parent=0
    _
  %s6 = ssub.s32 1, %s4
  %s7 = scalar_select 0, %s6, %s4
  loop: start=0, step=1, limit=10
  $region2: #{_lambda_.17} parent=0 // loop_pre_header
    _
  $region3: #{_lambda_.17} parent=0 // loop_header
    %s9 = sphi 0, %s13
    %p10 = scmp.ge.s32.totalorder %s9, 10
    %s16 = sphi 0, %s35
    %s17 = sphi 0, %s31
    %s18 = sphi 0, %s27
    %s19 = sphi 0, %s16
    %s20 = sphi 0, %s17
    %s21 = sphi 0, %s18
    %s22 = sphi 0, %s19
    %s23 = sphi 0, %s20
    %s24 = sphi 0, %s21
    %s40 = sphi 0, %s42
    %s43 = sphi 0, %s40
    %s44 = sphi 0, %s43
    %s60 = sphi 0, %s44
    %s68 = sphi 0, %s70
    %s71 = sphi 0, %s68
    %s72 = sphi 0, %s71
    %s88 = sphi 0, %s72
    %s94 = sphi 0, %s96
    %s97 = sphi 0, %s94
    %s98 = sphi 0, %s97
    %s114 = sphi 0, %s98
    %s122 = sphi 0, %s124
    %s125 = sphi 0, %s122
    %s126 = sphi 0, %s125
    %s142 = sphi 0, %s126
  $region4: #{_lambda_.17} parent=0 // loop_header_branch
    %12 = sbr.rel (%p10) target = $region8
  $region5: #{_lambda_.17} parent=0 // loop_body
    %s14 = ssub.s32 %s9, 1
    %s15 = ssub.s32 %s9, 2
    %s25 = sadd.s32 1, %s18
    %p26 = scmp.ge.s32.totalorder %s25, 1
    %s27 = scalar_select %p26, 0, %s25
    %s28 = sadd.s32 1, %s17
    %s29 = scalar_select %p26, %s28, %s17
    %p30 = scmp.ge.s32.totalorder %s29, 1
    %s31 = scalar_select %p30, 0, %s29
    %s32 = sadd.s32 1, %s16
    %s33 = scalar_select %p30, %s32, %s16
    %p34 = scmp.ge.s32.totalorder %s33, 8
    %s35 = scalar_select %p34, 0, %s33
    %s36 = ssub.s32 %s16, %s35
    %s37 = ssub.s32 %s18, %s27
    %s38 = sor.u32 %s36, %s37
    %p39 = scmp.eq.s32.totalorder %s38, 0
    %s41 = sadd.s32 %s40, 1
    %s42 = scalar_select %p39, %s40, %s41
    %p45 = pneg %p39
    %p46 = scmp.eq.s32.totalorder %s9, 7
    %p47 = por %p45, %p46
    %p48 = scmp.ne.s32.totalorder %s40, %s43
    %p49 = scmp.eq.s32.totalorder %s9, 0
    %p50 = por %p48, %p49
    %p51 = scmp.ne.s32.totalorder %s40, %s43
    %p52 = scmp.eq.s32.totalorder %s14, 7
    %p53 = por %p51, %p52
    %p54 = scmp.ne.s32.totalorder %s43, %s44
    %p55 = scmp.eq.s32.totalorder %s14, 0
    %p56 = por %p54, %p55
    %p57 = scmp.ne.s32.totalorder %s43, %s44
    %p58 = scmp.eq.s32.totalorder %s15, 7
    %p59 = por %p57, %p58
    %p61 = scmp.ne.s32.totalorder %s44, %s60
    %p62 = scmp.eq.s32.totalorder %s15, 0
    %p63 = por %p61, %p62
    %s64 = ssub.s32 %s18, %s27
    %s65 = ssub.s32 %s17, %s31
    %s66 = sor.u32 %s64, %s65
    %p67 = scmp.eq.s32.totalorder %s66, 0
    %s69 = sadd.s32 %s68, 1
    %s70 = scalar_select %p67, %s68, %s69
    %p73 = pneg %p67
    %p74 = scmp.eq.s32.totalorder %s9, 7
    %p75 = por %p73, %p74
    %p76 = scmp.ne.s32.totalorder %s68, %s71
    %p77 = scmp.eq.s32.totalorder %s9, 0
    %p78 = por %p76, %p77
    %p79 = scmp.ne.s32.totalorder %s68, %s71
    %p80 = scmp.eq.s32.totalorder %s14, 7
    %p81 = por %p79, %p80
    %p82 = scmp.ne.s32.totalorder %s71, %s72
    %p83 = scmp.eq.s32.totalorder %s14, 0
    %p84 = por %p82, %p83
    %p85 = scmp.ne.s32.totalorder %s71, %s72
    %p86 = scmp.eq.s32.totalorder %s15, 7
    %p87 = por %p85, %p86
    %p89 = scmp.ne.s32.totalorder %s72, %s88
    %p90 = scmp.eq.s32.totalorder %s15, 0
    %p91 = por %p89, %p90
    %s92 = ssub.s32 %s17, %s31
    %p93 = scmp.eq.s32.totalorder %s92, 0
    %s95 = sadd.s32 %s94, 1
    %s96 = scalar_select %p93, %s94, %s95
    %p99 = pneg %p93
    %p100 = scmp.eq.s32.totalorder %s9, 7
    %p101 = por %p99, %p100
    %p102 = scmp.ne.s32.totalorder %s94, %s97
    %p103 = scmp.eq.s32.totalorder %s9, 0
    %p104 = por %p102, %p103
    %p105 = scmp.ne.s32.totalorder %s94, %s97
    %p106 = scmp.eq.s32.totalorder %s14, 7
    %p107 = por %p105, %p106
    %p108 = scmp.ne.s32.totalorder %s97, %s98
    %p109 = scmp.eq.s32.totalorder %s14, 0
    %p110 = por %p108, %p109
    %p111 = scmp.ne.s32.totalorder %s97, %s98
    %p112 = scmp.eq.s32.totalorder %s15, 7
    %p113 = por %p111, %p112
    %p115 = scmp.ne.s32.totalorder %s98, %s114
    %p116 = scmp.eq.s32.totalorder %s15, 0
    %p117 = por %p115, %p116
    %s118 = ssub.s32 %s16, %s35
    %s119 = ssub.s32 %s17, %s31
    %s120 = sor.u32 %s118, %s119
    %p121 = scmp.eq.s32.totalorder %s120, 0
    %s123 = sadd.s32 %s122, 1
    %s124 = scalar_select %p121, %s122, %s123
    %p127 = pneg %p121
    %p128 = scmp.eq.s32.totalorder %s9, 7
    %p129 = por %p127, %p128
    %p130 = scmp.ne.s32.totalorder %s122, %s125
    %p131 = scmp.eq.s32.totalorder %s9, 0
    %p132 = por %p130, %p131
    %p133 = scmp.ne.s32.totalorder %s122, %s125
    %p134 = scmp.eq.s32.totalorder %s14, 7
    %p135 = por %p133, %p134
    %p136 = scmp.ne.s32.totalorder %s125, %s126
    %p137 = scmp.eq.s32.totalorder %s14, 0
    %p138 = por %p136, %p137
    %p139 = scmp.ne.s32.totalorder %s125, %s126
    %p140 = scmp.eq.s32.totalorder %s15, 7
    %p141 = por %p139, %p140
    %p143 = scmp.ne.s32.totalorder %s126, %s142
    %p144 = scmp.eq.s32.totalorder %s15, 0
    %p145 = por %p143, %p144
    %p146 = scmp.le.s32.totalorder 1, %s9
    %p147 = scmp.lt.s32.totalorder %s9, 9
    %p148 = pnand %p146, %p147
    %p149 = pneg %p148
    // Predicated region
    $region9: #{_lambda_.17} parent=5 // pred_check
      _
    $region10: #{_lambda_.17} parent=5 // pred_check_branch
      %151 = sbr.rel (%p148) target = $region12
    $region11: #{_lambda_.17} parent=5 // pred_region
      %s152 = ssub.s32 %s9, 1
      // Predicated region
      $region13: #{_lambda_.17} parent=11 // pred_check
        %p153 = pneg %p84
      $region14: #{_lambda_.17} parent=11 // pred_check_branch
        %155 = sbr.rel (%p153) target = $region16
      $region15: #{_lambda_.17} parent=11 // pred_region
        %s156 = smul.u32 32, %s21
        %p157 = scmp.lt.s32.totalorder %s156, 31
        %s158 = scalar_select %p157, %s156, 31
        %p159 = scmp.lt.s32.totalorder %s20, 0
        %s160 = scalar_select %p159, %s20, 0
        %s161 = sadd.s32 %s160, %s158
        %s162 = smul.addr %s161, 4
        %s163 = scalar_lea.vmem %s1, %s162
        %s164 = smul.u32 32, %s21
      $region16: #{_lambda_.17} parent=11 // pred_fallthru
        _
      // Predicated region
      $region17: #{_lambda_.17} parent=11 // pred_check
        %p165 = pneg %p110
      $region18: #{_lambda_.17} parent=11 // pred_check_branch
        %167 = sbr.rel (%p165) target = $region20
      $region19: #{_lambda_.17} parent=11 // pred_region
        %p168 = scmp.lt.s32.totalorder %s20, 0
        %s169 = scalar_select %p168, %s20, 0
        %s170 = scalar_lea.vmem %s2, %s169
      $region20: #{_lambda_.17} parent=11 // pred_fallthru
        _
    $region12: #{_lambda_.17} parent=5 // pred_fallthru
      _
    %p171 = scmp.lt.s32.totalorder %s9, 8
    // Predicated region
    $region21: #{_lambda_.17} parent=5 // pred_check
      %p172 = pneg %p171
    $region22: #{_lambda_.17} parent=5 // pred_check_branch
      %174 = sbr.rel (%p172) target = $region24
    $region23: #{_lambda_.17} parent=5 // pred_region
      // Predicated region
      $region25: #{_lambda_.17} parent=23 // pred_check
        %p175 = pneg %p50
      $region26: #{_lambda_.17} parent=23 // pred_check_branch
        %177 = sbr.rel (%p175) target = $region28
      $region27: #{_lambda_.17} parent=23 // pred_region
        %s178 = smul.u32 32, %s16
        %s179 = smul.u32 2, %s18
        %p180 = scmp.lt.s32.totalorder %s178, 255
        %s181 = scalar_select %p180, %s178, 255
        %p182 = scmp.lt.s32.totalorder %s179, 1
        %s183 = scalar_select %p182, %s179, 1
        %s184 = smul.addr %s181, 2
        %s185 = sadd.s32 %s183, %s184
        %s186 = smul.addr %s185, 4
        %s187 = scalar_lea.vmem %s0, %s186
        %s188 = smul.u32 32, %s16
        %s189 = smul.u32 2, %s18
      $region28: #{_lambda_.17} parent=23 // pred_fallthru
        _
    $region24: #{_lambda_.17} parent=5 // pred_fallthru
      _
    %p190 = scmp.le.s32.totalorder 1, %s9
    %p191 = scmp.lt.s32.totalorder %s9, 9
    %p192 = pnand %p190, %p191
    %p193 = pneg %p192
    // Predicated region
    $region29: #{_lambda_.17} parent=5 // pred_check
      _
    $region30: #{_lambda_.17} parent=5 // pred_check_branch
      %195 = sbr.rel (%p192) target = $region32
    $region31: #{_lambda_.17} parent=5 // pred_region
      %s196 = ssub.s32 %s9, 1
      %s197 = smul.u32 32, %s19
      %s198 = smul.u32 2, %s21
      %p199 = scmp.lt.s32.totalorder %s197, 255
      %s200 = scalar_select %p199, %s197, 255
      %p201 = scmp.lt.s32.totalorder %s198, 1
      %s202 = scalar_select %p201, %s198, 1
      %s203 = smul.addr %s200, 2
      %s204 = sadd.s32 %s202, %s203
      %s205 = smul.addr %s204, 4
      %s206 = scalar_lea.vmem %s0, %s205
      %p207 = pneg %p56
      %p208 = pneg %p53
      %s209 = smul.u32 32, %s21
      %p210 = scmp.lt.s32.totalorder %s209, 31
      %s211 = scalar_select %p210, %s209, 31
      %p212 = scmp.lt.s32.totalorder %s20, 0
      %s213 = scalar_select %p212, %s20, 0
      %s214 = sadd.s32 %s213, %s211
      %s215 = smul.addr %s214, 4
      %s216 = scalar_lea.vmem %s1, %s215
      %p217 = pneg %p84
      %p218 = pneg %p81
      %p219 = scmp.lt.s32.totalorder %s20, 0
      %s220 = scalar_select %p219, %s20, 0
      %s221 = scalar_lea.vmem %s2, %s220
      %p222 = pneg %p110
      %p223 = pneg %p107
      %p224 = pneg %p138
      %p225 = pneg %p135
      %s226 = smul.u32 32, %s19
      %p227 = scmp.lt.s32.totalorder %s226, 255
      %s228 = scalar_select %p227, %s226, 255
      %p229 = scmp.lt.s32.totalorder %s20, 0
      %s230 = scalar_select %p229, %s20, 0
      %s231 = sadd.s32 %s230, %s228
      %s232 = smul.addr %s231, 8
      %s233 = scalar_lea.vmem %s3, %s232
      %s234 = smul.u32 32, %s19
      %s235 = smul.u32 2, %s21
      %p236 = scmp.lt.s32.totalorder %s234, 255
      %s237 = scalar_select %p236, %s234, 255
      %p238 = scmp.lt.s32.totalorder %s235, 1
      %s239 = scalar_select %p238, %s235, 1
      %s240 = smul.addr %s237, 2
      %s241 = sadd.s32 %s239, %s240
      %s242 = smul.addr %s241, 4
      %s243 = scalar_lea.vmem %s0, %s242
      %s244 = smul.u32 32, %s19
      %s245 = smul.u32 2, %s21
      %s246 = smul.u32 32, %s21
      %p247 = scmp.lt.s32.totalorder %s246, 31
      %s248 = scalar_select %p247, %s246, 31
      %p249 = scmp.lt.s32.totalorder %s20, 0
      %s250 = scalar_select %p249, %s20, 0
      %s251 = sadd.s32 %s250, %s248
      %s252 = smul.addr %s251, 4
      %s253 = scalar_lea.vmem %s1, %s252
      %s254 = smul.u32 32, %s21
      %p255 = scmp.lt.s32.totalorder %s20, 0
      %s256 = scalar_select %p255, %s20, 0
      %s257 = scalar_lea.vmem %s2, %s256
      %s258 = smul.u32 32, %s19
      %p259 = scmp.lt.s32.totalorder %s258, 255
      %s260 = scalar_select %p259, %s258, 255
      %p261 = scmp.lt.s32.totalorder %s20, 0
      %s262 = scalar_select %p261, %s20, 0
      %s263 = sadd.s32 %s262, %s260
      %s264 = smul.addr %s263, 8
      %s265 = scalar_lea.vmem %s3, %s264
      %s266 = smul.u32 32, %s19
      %p268 = scmp.eq.s32.totalorder %s21, 0
      // Predicated region
      $region33: #{_lambda_.17} parent=31 // pred_check
        %p269 = pneg %p268
      $region34: #{_lambda_.17} parent=31 // pred_check_branch
        %271 = sbr.rel (%p269) target = $region36
      $region35: #{_lambda_.17} parent=31 // pred_region
        %272 = vst [vmem:[#allocation2] sm:$0xff] 0.0
        %273 = vst [vmem:[#allocation2 + $0x8] sm:$0xff] 0.0
        %274 = vst [vmem:[#allocation2 + $0x10] sm:$0xff] 0.0
        %275 = vst [vmem:[#allocation2 + $0x18] sm:$0xff] 0.0
        %276 = vst [vmem:[#allocation2 + $0x20] sm:$0xff] 0.0
        %277 = vst [vmem:[#allocation2 + $0x28] sm:$0xff] 0.0
        %278 = vst [vmem:[#allocation2 + $0x30] sm:$0xff] 0.0
        %279 = vst [vmem:[#allocation2 + $0x38] sm:$0xff] 0.0
        %280 = vst [vmem:[#allocation2 + $0x40] sm:$0xff] 0.0
        %281 = vst [vmem:[#allocation2 + $0x48] sm:$0xff] 0.0
        %282 = vst [vmem:[#allocation2 + $0x50] sm:$0xff] 0.0
        %283 = vst [vmem:[#allocation2 + $0x58] sm:$0xff] 0.0
        %284 = vst [vmem:[#allocation2 + $0x60] sm:$0xff] 0.0
        %285 = vst [vmem:[#allocation2 + $0x68] sm:$0xff] 0.0
        %286 = vst [vmem:[#allocation2 + $0x70] sm:$0xff] 0.0
        %287 = vst [vmem:[#allocation2 + $0x78] sm:$0xff] 0.0
        %288 = vst [vmem:[#allocation2 + $0x80] sm:$0xff] 0.0
        %289 = vst [vmem:[#allocation2 + $0x88] sm:$0xff] 0.0
        %290 = vst [vmem:[#allocation2 + $0x90] sm:$0xff] 0.0
        %291 = vst [vmem:[#allocation2 + $0x98] sm:$0xff] 0.0
        %292 = vst [vmem:[#allocation2 + $0xa0] sm:$0xff] 0.0
        %293 = vst [vmem:[#allocation2 + $0xa8] sm:$0xff] 0.0
        %294 = vst [vmem:[#allocation2 + $0xb0] sm:$0xff] 0.0
        %295 = vst [vmem:[#allocation2 + $0xb8] sm:$0xff] 0.0
        %296 = vst [vmem:[#allocation2 + $0xc0] sm:$0xff] 0.0
        %297 = vst [vmem:[#allocation2 + $0xc8] sm:$0xff] 0.0
        %298 = vst [vmem:[#allocation2 + $0xd0] sm:$0xff] 0.0
        %299 = vst [vmem:[#allocation2 + $0xd8] sm:$0xff] 0.0
        %300 = vst [vmem:[#allocation2 + $0xe0] sm:$0xff] 0.0
        %301 = vst [vmem:[#allocation2 + $0xe8] sm:$0xff] 0.0
        %302 = vst [vmem:[#allocation2 + $0xf0] sm:$0xff] 0.0
        %303 = vst [vmem:[#allocation2 + $0xf8] sm:$0xff] 0.0
      $region36: #{_lambda_.17} parent=31 // pred_fallthru
        _
      %v304 = vld [vmem:[#allocation2] sm:$0xff]
      %v305 = vld [vmem:[#allocation2 + $0x8] sm:$0xff]
      %v306 = vld [vmem:[#allocation2 + $0x10] sm:$0xff]
      %v307 = vld [vmem:[#allocation2 + $0x18] sm:$0xff]
      %v308 = vld [vmem:[#allocation2 + $0x20] sm:$0xff]
      %v309 = vld [vmem:[#allocation2 + $0x28] sm:$0xff]
      %v310 = vld [vmem:[#allocation2 + $0x30] sm:$0xff]
      %v311 = vld [vmem:[#allocation2 + $0x38] sm:$0xff]
      %v312 = vld [vmem:[#allocation2 + $0x40] sm:$0xff]
      %v313 = vld [vmem:[#allocation2 + $0x48] sm:$0xff]
      %v314 = vld [vmem:[#allocation2 + $0x50] sm:$0xff]
      %v315 = vld [vmem:[#allocation2 + $0x58] sm:$0xff]
      %v316 = vld [vmem:[#allocation2 + $0x60] sm:$0xff]
      %v317 = vld [vmem:[#allocation2 + $0x68] sm:$0xff]
      %v318 = vld [vmem:[#allocation2 + $0x70] sm:$0xff]
      %v319 = vld [vmem:[#allocation2 + $0x78] sm:$0xff]
      %v320 = vld [vmem:[#allocation2 + $0x80] sm:$0xff]
      %v321 = vld [vmem:[#allocation2 + $0x88] sm:$0xff]
      %v322 = vld [vmem:[#allocation2 + $0x90] sm:$0xff]
      %v323 = vld [vmem:[#allocation2 + $0x98] sm:$0xff]
      %v324 = vld [vmem:[#allocation2 + $0xa0] sm:$0xff]
      %v325 = vld [vmem:[#allocation2 + $0xa8] sm:$0xff]
      %v326 = vld [vmem:[#allocation2 + $0xb0] sm:$0xff]
      %v327 = vld [vmem:[#allocation2 + $0xb8] sm:$0xff]
      %v328 = vld [vmem:[#allocation2 + $0xc0] sm:$0xff]
      %v329 = vld [vmem:[#allocation2 + $0xc8] sm:$0xff]
      %v330 = vld [vmem:[#allocation2 + $0xd0] sm:$0xff]
      %v331 = vld [vmem:[#allocation2 + $0xd8] sm:$0xff]
      %v332 = vld [vmem:[#allocation2 + $0xe0] sm:$0xff]
      %v333 = vld [vmem:[#allocation2 + $0xe8] sm:$0xff]
      %v334 = vld [vmem:[#allocation2 + $0xf0] sm:$0xff]
      %v335 = vld [vmem:[#allocation2 + $0xf8] sm:$0xff]
      %v336 = vld [vmem:[%s243] sm:$0xff]
      %v337 = vld [vmem:[%s243 + $0x8] sm:$0xff]
      %v338 = vld [vmem:[%s243 + $0x10] sm:$0xff]
      %v339 = vld [vmem:[%s243 + $0x18] sm:$0xff]
      %v340 = vld [vmem:[%s243 + $0x20] sm:$0xff]
      %v341 = vld [vmem:[%s243 + $0x28] sm:$0xff]
      %v342 = vld [vmem:[%s243 + $0x30] sm:$0xff]
      %v343 = vld [vmem:[%s243 + $0x38] sm:$0xff]
      %v344 = vld [vmem:[%s243 + $0x40] sm:$0xff]
      %v345 = vld [vmem:[%s243 + $0x48] sm:$0xff]
      %v346 = vld [vmem:[%s243 + $0x50] sm:$0xff]
      %v347 = vld [vmem:[%s243 + $0x58] sm:$0xff]
      %v348 = vld [vmem:[%s243 + $0x60] sm:$0xff]
      %v349 = vld [vmem:[%s243 + $0x68] sm:$0xff]
      %v350 = vld [vmem:[%s243 + $0x70] sm:$0xff]
      %v351 = vld [vmem:[%s243 + $0x78] sm:$0xff]
      %v352 = vld [vmem:[%s243 + $0x80] sm:$0xff]
      %v353 = vld [vmem:[%s243 + $0x88] sm:$0xff]
      %v354 = vld [vmem:[%s243 + $0x90] sm:$0xff]
      %v355 = vld [vmem:[%s243 + $0x98] sm:$0xff]
      %v356 = vld [vmem:[%s243 + $0xa0] sm:$0xff]
      %v357 = vld [vmem:[%s243 + $0xa8] sm:$0xff]
      %v358 = vld [vmem:[%s243 + $0xb0] sm:$0xff]
      %v359 = vld [vmem:[%s243 + $0xb8] sm:$0xff]
      %v360 = vld [vmem:[%s243 + $0xc0] sm:$0xff]
      %v361 = vld [vmem:[%s243 + $0xc8] sm:$0xff]
      %v362 = vld [vmem:[%s243 + $0xd0] sm:$0xff]
      %v363 = vld [vmem:[%s243 + $0xd8] sm:$0xff]
      %v364 = vld [vmem:[%s243 + $0xe0] sm:$0xff]
      %v365 = vld [vmem:[%s243 + $0xe8] sm:$0xff]
      %v366 = vld [vmem:[%s243 + $0xf0] sm:$0xff]
      %v367 = vld [vmem:[%s243 + $0xf8] sm:$0xff]
      %v368 = vld [vmem:[%s253] sm:$0xf]
      %v369 = vld [vmem:[%s253 + $0x4] sm:$0xf]
      %v370 = vld [vmem:[%s253 + $0x8] sm:$0xf]
      %v371 = vld [vmem:[%s253 + $0xc] sm:$0xf]
      %v372 = vld [vmem:[%s253 + $0x10] sm:$0xf]
      %v373 = vld [vmem:[%s253 + $0x14] sm:$0xf]
      %v374 = vld [vmem:[%s253 + $0x18] sm:$0xf]
      %v375 = vld [vmem:[%s253 + $0x1c] sm:$0xf]
      %v376 = vld [vmem:[%s253 + $0x20] sm:$0xf]
      %v377 = vld [vmem:[%s253 + $0x24] sm:$0xf]
      %v378 = vld [vmem:[%s253 + $0x28] sm:$0xf]
      %v379 = vld [vmem:[%s253 + $0x2c] sm:$0xf]
      %v380 = vld [vmem:[%s253 + $0x30] sm:$0xf]
      %v381 = vld [vmem:[%s253 + $0x34] sm:$0xf]
      %v382 = vld [vmem:[%s253 + $0x38] sm:$0xf]
      %v383 = vld [vmem:[%s253 + $0x3c] sm:$0xf]
      %v384 = vld [vmem:[%s253 + $0x40] sm:$0xf]
      %v385 = vld [vmem:[%s253 + $0x44] sm:$0xf]
      %v386 = vld [vmem:[%s253 + $0x48] sm:$0xf]
      %v387 = vld [vmem:[%s253 + $0x4c] sm:$0xf]
      %v388 = vld [vmem:[%s253 + $0x50] sm:$0xf]
      %v389 = vld [vmem:[%s253 + $0x54] sm:$0xf]
      %v390 = vld [vmem:[%s253 + $0x58] sm:$0xf]
      %v391 = vld [vmem:[%s253 + $0x5c] sm:$0xf]
      %v392 = vld [vmem:[%s253 + $0x60] sm:$0xf]
      %v393 = vld [vmem:[%s253 + $0x64] sm:$0xf]
      %v394 = vld [vmem:[%s253 + $0x68] sm:$0xf]
      %v395 = vld [vmem:[%s253 + $0x6c] sm:$0xf]
      %v396 = vld [vmem:[%s253 + $0x70] sm:$0xf]
      %v397 = vld [vmem:[%s253 + $0x74] sm:$0xf]
      %v398 = vld [vmem:[%s253 + $0x78] sm:$0xf]
      %v399 = vld [vmem:[%s253 + $0x7c] sm:$0xf]
      %v432 = vunpack.c.l.b16 %v336
      %v433 = vunpack.c.h.b16 %v336
      %v434 = vunpack.c.l.b16 %v337
      %v435 = vunpack.c.h.b16 %v337
      %v436 = vunpack.c.l.b16 %v338
      %v437 = vunpack.c.h.b16 %v338
      %v438 = vunpack.c.l.b16 %v339
      %v439 = vunpack.c.h.b16 %v339
      %v440 = vunpack.c.l.b16 %v340
      %v441 = vunpack.c.h.b16 %v340
      %v442 = vunpack.c.l.b16 %v341
      %v443 = vunpack.c.h.b16 %v341
      %v444 = vunpack.c.l.b16 %v342
      %v445 = vunpack.c.h.b16 %v342
      %v446 = vunpack.c.l.b16 %v343
      %v447 = vunpack.c.h.b16 %v343
      %v448 = vunpack.c.l.b16 %v344
      %v449 = vunpack.c.h.b16 %v344
      %v450 = vunpack.c.l.b16 %v345
      %v451 = vunpack.c.h.b16 %v345
      %v452 = vunpack.c.l.b16 %v346
      %v453 = vunpack.c.h.b16 %v346
      %v454 = vunpack.c.l.b16 %v347
      %v455 = vunpack.c.h.b16 %v347
      %v456 = vunpack.c.l.b16 %v348
      %v457 = vunpack.c.h.b16 %v348
      %v458 = vunpack.c.l.b16 %v349
      %v459 = vunpack.c.h.b16 %v349
      %v460 = vunpack.c.l.b16 %v350
      %v461 = vunpack.c.h.b16 %v350
      %v462 = vunpack.c.l.b16 %v351
      %v463 = vunpack.c.h.b16 %v351
      %v464 = vunpack.c.l.b16 %v352
      %v465 = vunpack.c.h.b16 %v352
      %v466 = vunpack.c.l.b16 %v353
      %v467 = vunpack.c.h.b16 %v353
      %v468 = vunpack.c.l.b16 %v354
      %v469 = vunpack.c.h.b16 %v354
      %v470 = vunpack.c.l.b16 %v355
      %v471 = vunpack.c.h.b16 %v355
      %v472 = vunpack.c.l.b16 %v356
      %v473 = vunpack.c.h.b16 %v356
      %v474 = vunpack.c.l.b16 %v357
      %v475 = vunpack.c.h.b16 %v357
      %v476 = vunpack.c.l.b16 %v358
      %v477 = vunpack.c.h.b16 %v358
      %v478 = vunpack.c.l.b16 %v359
      %v479 = vunpack.c.h.b16 %v359
      %v480 = vunpack.c.l.b16 %v360
      %v481 = vunpack.c.h.b16 %v360
      %v482 = vunpack.c.l.b16 %v361
      %v483 = vunpack.c.h.b16 %v361
      %v484 = vunpack.c.l.b16 %v362
      %v485 = vunpack.c.h.b16 %v362
      %v486 = vunpack.c.l.b16 %v363
      %v487 = vunpack.c.h.b16 %v363
      %v488 = vunpack.c.l.b16 %v364
      %v489 = vunpack.c.h.b16 %v364
      %v490 = vunpack.c.l.b16 %v365
      %v491 = vunpack.c.h.b16 %v365
      %v492 = vunpack.c.l.b16 %v366
      %v493 = vunpack.c.h.b16 %v366
      %v494 = vunpack.c.l.b16 %v367
      %v495 = vunpack.c.h.b16 %v367
      %v496 = vpack.c.b16 %v434, %v432
      %v497 = vpack.c.b16 %v435, %v433
      %v498 = vpack.c.b16 %v438, %v436
      %v499 = vpack.c.b16 %v439, %v437
      %v500 = vpack.c.b16 %v442, %v440
      %v501 = vpack.c.b16 %v443, %v441
      %v502 = vpack.c.b16 %v446, %v444
      %v503 = vpack.c.b16 %v447, %v445
      %v504 = vpack.c.b16 %v450, %v448
      %v505 = vpack.c.b16 %v451, %v449
      %v506 = vpack.c.b16 %v454, %v452
      %v507 = vpack.c.b16 %v455, %v453
      %v508 = vpack.c.b16 %v458, %v456
      %v509 = vpack.c.b16 %v459, %v457
      %v510 = vpack.c.b16 %v462, %v460
      %v511 = vpack.c.b16 %v463, %v461
      %v512 = vpack.c.b16 %v466, %v464
      %v513 = vpack.c.b16 %v467, %v465
      %v514 = vpack.c.b16 %v470, %v468
      %v515 = vpack.c.b16 %v471, %v469
      %v516 = vpack.c.b16 %v474, %v472
      %v517 = vpack.c.b16 %v475, %v473
      %v518 = vpack.c.b16 %v478, %v476
      %v519 = vpack.c.b16 %v479, %v477
      %v520 = vpack.c.b16 %v482, %v480
      %v521 = vpack.c.b16 %v483, %v481
      %v522 = vpack.c.b16 %v486, %v484
      %v523 = vpack.c.b16 %v487, %v485
      %v524 = vpack.c.b16 %v490, %v488
      %v525 = vpack.c.b16 %v491, %v489
      %v526 = vpack.c.b16 %v494, %v492
      %v527 = vpack.c.b16 %v495, %v493
      %v592 = vunpack.c.l.b16 %v368
      %v593 = vunpack.c.l.b16 %v369
      %v594 = vunpack.c.l.b16 %v370
      %v595 = vunpack.c.l.b16 %v371
      %v596 = vunpack.c.l.b16 %v372
      %v597 = vunpack.c.l.b16 %v373
      %v598 = vunpack.c.l.b16 %v374
      %v599 = vunpack.c.l.b16 %v375
      %v600 = vunpack.c.l.b16 %v376
      %v601 = vunpack.c.l.b16 %v377
      %v602 = vunpack.c.l.b16 %v378
      %v603 = vunpack.c.l.b16 %v379
      %v604 = vunpack.c.l.b16 %v380
      %v605 = vunpack.c.l.b16 %v381
      %v606 = vunpack.c.l.b16 %v382
      %v607 = vunpack.c.l.b16 %v383
      %v608 = vunpack.c.l.b16 %v384
      %v609 = vunpack.c.l.b16 %v385
      %v610 = vunpack.c.l.b16 %v386
      %v611 = vunpack.c.l.b16 %v387
      %v612 = vunpack.c.l.b16 %v388
      %v613 = vunpack.c.l.b16 %v389
      %v614 = vunpack.c.l.b16 %v390
      %v615 = vunpack.c.l.b16 %v391
      %v616 = vunpack.c.l.b16 %v392
      %v617 = vunpack.c.l.b16 %v393
      %v618 = vunpack.c.l.b16 %v394
      %v619 = vunpack.c.l.b16 %v395
      %v620 = vunpack.c.l.b16 %v396
      %v621 = vunpack.c.l.b16 %v397
      %v622 = vunpack.c.l.b16 %v398
      %v623 = vunpack.c.l.b16 %v399
      %v624 = vpack.c.b16 %v593, %v592
      %v625 = vpack.c.b16 %v595, %v594
      %v626 = vpack.c.b16 %v597, %v596
      %v627 = vpack.c.b16 %v599, %v598
      %v628 = vpack.c.b16 %v601, %v600
      %v629 = vpack.c.b16 %v603, %v602
      %v630 = vpack.c.b16 %v605, %v604
      %v631 = vpack.c.b16 %v607, %v606
      %v632 = vpack.c.b16 %v609, %v608
      %v633 = vpack.c.b16 %v611, %v610
      %v634 = vpack.c.b16 %v613, %v612
      %v635 = vpack.c.b16 %v615, %v614
      %v636 = vpack.c.b16 %v617, %v616
      %v637 = vpack.c.b16 %v619, %v618
      %v638 = vpack.c.b16 %v621, %v620
      %v639 = vpack.c.b16 %v623, %v622
      %656 = vmatprep.subr.bf16.mxu0 0
      %657 = vmatpush1.bf16.msra.mxu0 %v624
      %658 = vmatprep.subr.bf16.mxu0 0
      %659 = vmatpush1.bf16.msra.mxu0 %v625
      %660 = vmatprep.subr.bf16.mxu0 0
      %661 = vmatpush1.bf16.msra.mxu0 %v626
      %662 = vmatprep.subr.bf16.mxu0 0
      %663 = vmatpush1.bf16.msra.mxu0 %v627
      %664 = vmatprep.subr.bf16.mxu0 0
      %665 = vmatpush1.bf16.msra.mxu0 %v628
      %666 = vmatprep.subr.bf16.mxu0 0
      %667 = vmatpush1.bf16.msra.mxu0 %v629
      %668 = vmatprep.subr.bf16.mxu0 0
      %669 = vmatpush1.bf16.msra.mxu0 %v630
      %670 = vmatprep.subr.bf16.mxu0 0
      %671 = vmatpush1.bf16.msra.mxu0 %v631
      %672 = vmatprep.subr.bf16.mxu0 0
      %673 = vmatpush1.bf16.msra.mxu0 %v632
      %674 = vmatprep.subr.bf16.mxu0 0
      %675 = vmatpush1.bf16.msra.mxu0 %v633
      %676 = vmatprep.subr.bf16.mxu0 0
      %677 = vmatpush1.bf16.msra.mxu0 %v634
      %678 = vmatprep.subr.bf16.mxu0 0
      %679 = vmatpush1.bf16.msra.mxu0 %v635
      %680 = vmatprep.subr.bf16.mxu0 0
      %681 = vmatpush1.bf16.msra.mxu0 %v636
      %682 = vmatprep.subr.bf16.mxu0 0
      %683 = vmatpush1.bf16.msra.mxu0 %v637
      %684 = vmatprep.subr.bf16.mxu0 0
      %685 = vmatpush1.bf16.msra.mxu0 %v638
      %686 = vmatprep.subr.bf16.mxu0 0
      %687 = vmatpush1.bf16.msra.mxu0 %v639
      %688 = vmatprep.mubr.bf16.mxu0 %v497
      %689 = vmatmul.mubr.bf16.gmra.mrb[0].mxu0 %v496
      %v690 = vpop.f32.mrb[0].mxu0
      %v691 = vadd.f32 0.0, %v690
      %v692 = vpop.f32.mrb[0].mxu0
      %v693 = vpop.f32.mrb[0].mxu0
      %v694 = vadd.f32 0.0, %v693
      %v695 = vpop.f32.mrb[0].mxu0
      %696 = vmatprep.mubr.bf16.mxu0 %v499
      %697 = vmatmul.mubr.bf16.gmra.mrb[0].mxu0 %v498
      %v698 = vpop.f32.mrb[0].mxu0
      %v699 = vadd.f32 0.0, %v698
      %v700 = vpop.f32.mrb[0].mxu0
      %v701 = vpop.f32.mrb[0].mxu0
      %v702 = vadd.f32 0.0, %v701
      %v703 = vpop.f32.mrb[0].mxu0
      %704 = vmatprep.mubr.bf16.mxu0 %v501
      %705 = vmatmul.mubr.bf16.gmra.mrb[0].mxu0 %v500
      %v706 = vpop.f32.mrb[0].mxu0
      %v707 = vadd.f32 0.0, %v706
      %v708 = vpop.f32.mrb[0].mxu0
      %v709 = vpop.f32.mrb[0].mxu0
      %v710 = vadd.f32 0.0, %v709
      %v711 = vpop.f32.mrb[0].mxu0
      %712 = vmatprep.mubr.bf16.mxu0 %v503
      %713 = vmatmul.mubr.bf16.gmra.mrb[0].mxu0 %v502
      %v714 = vpop.f32.mrb[0].mxu0
      %v715 = vadd.f32 0.0, %v714
      %v716 = vpop.f32.mrb[0].mxu0
      %v717 = vpop.f32.mrb[0].mxu0
      %v718 = vadd.f32 0.0, %v717
      %v719 = vpop.f32.mrb[0].mxu0
      %720 = vmatprep.mubr.bf16.mxu0 %v505
      %721 = vmatmul.mubr.bf16.gmra.mrb[0].mxu0 %v504
      %v722 = vpop.f32.mrb[0].mxu0
      %v723 = vadd.f32 0.0, %v722
      %v724 = vpop.f32.mrb[0].mxu0
      %v725 = vpop.f32.mrb[0].mxu0
      %v726 = vadd.f32 0.0, %v725
      %v727 = vpop.f32.mrb[0].mxu0
      %728 = vmatprep.mubr.bf16.mxu0 %v507
      %729 = vmatmul.mubr.bf16.gmra.mrb[0].mxu0 %v506
      %v730 = vpop.f32.mrb[0].mxu0
      %v731 = vadd.f32 0.0, %v730
      %v732 = vpop.f32.mrb[0].mxu0
      %v733 = vpop.f32.mrb[0].mxu0
      %v734 = vadd.f32 0.0, %v733
      %v735 = vpop.f32.mrb[0].mxu0
      %736 = vmatprep.mubr.bf16.mxu0 %v509
      %737 = vmatmul.mubr.bf16.gmra.mrb[0].mxu0 %v508
      %v738 = vpop.f32.mrb[0].mxu0
      %v739 = vadd.f32 0.0, %v738
      %v740 = vpop.f32.mrb[0].mxu0
      %v741 = vpop.f32.mrb[0].mxu0
      %v742 = vadd.f32 0.0, %v741
      %v743 = vpop.f32.mrb[0].mxu0
      %744 = vmatprep.mubr.bf16.mxu0 %v511
      %745 = vmatmul.mubr.bf16.gmra.mrb[0].mxu0 %v510
      %v746 = vpop.f32.mrb[0].mxu0
      %v747 = vadd.f32 0.0, %v746
      %v748 = vpop.f32.mrb[0].mxu0
      %v749 = vpop.f32.mrb[0].mxu0
      %v750 = vadd.f32 0.0, %v749
      %v751 = vpop.f32.mrb[0].mxu0
      %752 = vmatprep.mubr.bf16.mxu0 %v513
      %753 = vmatmul.mubr.bf16.gmra.mrb[0].mxu0 %v512
      %v754 = vpop.f32.mrb[0].mxu0
      %v755 = vadd.f32 0.0, %v754
      %v756 = vpop.f32.mrb[0].mxu0
      %v757 = vpop.f32.mrb[0].mxu0
      %v758 = vadd.f32 0.0, %v757
      %v759 = vpop.f32.mrb[0].mxu0
      %760 = vmatprep.mubr.bf16.mxu0 %v515
      %761 = vmatmul.mubr.bf16.gmra.mrb[0].mxu0 %v514
      %v762 = vpop.f32.mrb[0].mxu0
      %v763 = vadd.f32 0.0, %v762
      %v764 = vpop.f32.mrb[0].mxu0
      %v765 = vpop.f32.mrb[0].mxu0
      %v766 = vadd.f32 0.0, %v765
      %v767 = vpop.f32.mrb[0].mxu0
      %768 = vmatprep.mubr.bf16.mxu0 %v517
      %769 = vmatmul.mubr.bf16.gmra.mrb[0].mxu0 %v516
      %v770 = vpop.f32.mrb[0].mxu0
      %v771 = vadd.f32 0.0, %v770
      %v772 = vpop.f32.mrb[0].mxu0
      %v773 = vpop.f32.mrb[0].mxu0
      %v774 = vadd.f32 0.0, %v773
      %v775 = vpop.f32.mrb[0].mxu0
      %776 = vmatprep.mubr.bf16.mxu0 %v519
      %777 = vmatmul.mubr.bf16.gmra.mrb[0].mxu0 %v518
      %v778 = vpop.f32.mrb[0].mxu0
      %v779 = vadd.f32 0.0, %v778
      %v780 = vpop.f32.mrb[0].mxu0
      %v781 = vpop.f32.mrb[0].mxu0
      %v782 = vadd.f32 0.0, %v781
      %v783 = vpop.f32.mrb[0].mxu0
      %784 = vmatprep.mubr.bf16.mxu0 %v521
      %785 = vmatmul.mubr.bf16.gmra.mrb[0].mxu0 %v520
      %v786 = vpop.f32.mrb[0].mxu0
      %v787 = vadd.f32 0.0, %v786
      %v788 = vpop.f32.mrb[0].mxu0
      %v789 = vpop.f32.mrb[0].mxu0
      %v790 = vadd.f32 0.0, %v789
      %v791 = vpop.f32.mrb[0].mxu0
      %792 = vmatprep.mubr.bf16.mxu0 %v523
      %793 = vmatmul.mubr.bf16.gmra.mrb[0].mxu0 %v522
      %v794 = vpop.f32.mrb[0].mxu0
      %v795 = vadd.f32 0.0, %v794
      %v796 = vpop.f32.mrb[0].mxu0
      %v797 = vpop.f32.mrb[0].mxu0
      %v798 = vadd.f32 0.0, %v797
      %v799 = vpop.f32.mrb[0].mxu0
      %800 = vmatprep.mubr.bf16.mxu0 %v525
      %801 = vmatmul.mubr.bf16.gmra.mrb[0].mxu0 %v524
      %v802 = vpop.f32.mrb[0].mxu0
      %v803 = vadd.f32 0.0, %v802
      %v804 = vpop.f32.mrb[0].mxu0
      %v805 = vpop.f32.mrb[0].mxu0
      %v806 = vadd.f32 0.0, %v805
      %v807 = vpop.f32.mrb[0].mxu0
      %808 = vmatprep.mubr.bf16.mxu0 %v527
      %809 = vmatmul.mubr.bf16.gmra.mrb[0].mxu0 %v526
      %v810 = vpop.f32.mrb[0].mxu0
      %v811 = vadd.f32 0.0, %v810
      %v812 = vpop.f32.mrb[0].mxu0
      %v813 = vpop.f32.mrb[0].mxu0
      %v814 = vadd.f32 0.0, %v813
      %v815 = vpop.f32.mrb[0].mxu0
      %816 = vdwg.mxu0
      %v817 = vadd.f32 %v304, %v691
      %v818 = vadd.f32 %v305, %v694
      %v819 = vadd.f32 %v306, %v699
      %v820 = vadd.f32 %v307, %v702
      %v821 = vadd.f32 %v308, %v707
      %v822 = vadd.f32 %v309, %v710
      %v823 = vadd.f32 %v310, %v715
      %v824 = vadd.f32 %v311, %v718
      %v825 = vadd.f32 %v312, %v723
      %v826 = vadd.f32 %v313, %v726
      %v827 = vadd.f32 %v314, %v731
      %v828 = vadd.f32 %v315, %v734
      %v829 = vadd.f32 %v316, %v739
      %v830 = vadd.f32 %v317, %v742
      %v831 = vadd.f32 %v318, %v747
      %v832 = vadd.f32 %v319, %v750
      %v833 = vadd.f32 %v320, %v755
      %v834 = vadd.f32 %v321, %v758
      %v835 = vadd.f32 %v322, %v763
      %v836 = vadd.f32 %v323, %v766
      %v837 = vadd.f32 %v324, %v771
      %v838 = vadd.f32 %v325, %v774
      %v839 = vadd.f32 %v326, %v779
      %v840 = vadd.f32 %v327, %v782
      %v841 = vadd.f32 %v328, %v787
      %v842 = vadd.f32 %v329, %v790
      %v843 = vadd.f32 %v330, %v795
      %v844 = vadd.f32 %v331, %v798
      %v845 = vadd.f32 %v332, %v803
      %v846 = vadd.f32 %v333, %v806
      %v847 = vadd.f32 %v334, %v811
      %v848 = vadd.f32 %v335, %v814
      %849 = vst [vmem:[#allocation2] sm:$0xff] %v817
      %850 = vst [vmem:[#allocation2 + $0x8] sm:$0xff] %v818
      %851 = vst [vmem:[#allocation2 + $0x10] sm:$0xff] %v819
      %852 = vst [vmem:[#allocation2 + $0x18] sm:$0xff] %v820
      %853 = vst [vmem:[#allocation2 + $0x20] sm:$0xff] %v821
      %854 = vst [vmem:[#allocation2 + $0x28] sm:$0xff] %v822
      %855 = vst [vmem:[#allocation2 + $0x30] sm:$0xff] %v823
      %856 = vst [vmem:[#allocation2 + $0x38] sm:$0xff] %v824
      %857 = vst [vmem:[#allocation2 + $0x40] sm:$0xff] %v825
      %858 = vst [vmem:[#allocation2 + $0x48] sm:$0xff] %v826
      %859 = vst [vmem:[#allocation2 + $0x50] sm:$0xff] %v827
      %860 = vst [vmem:[#allocation2 + $0x58] sm:$0xff] %v828
      %861 = vst [vmem:[#allocation2 + $0x60] sm:$0xff] %v829
      %862 = vst [vmem:[#allocation2 + $0x68] sm:$0xff] %v830
      %863 = vst [vmem:[#allocation2 + $0x70] sm:$0xff] %v831
      %864 = vst [vmem:[#allocation2 + $0x78] sm:$0xff] %v832
      %865 = vst [vmem:[#allocation2 + $0x80] sm:$0xff] %v833
      %866 = vst [vmem:[#allocation2 + $0x88] sm:$0xff] %v834
      %867 = vst [vmem:[#allocation2 + $0x90] sm:$0xff] %v835
      %868 = vst [vmem:[#allocation2 + $0x98] sm:$0xff] %v836
      %869 = vst [vmem:[#allocation2 + $0xa0] sm:$0xff] %v837
      %870 = vst [vmem:[#allocation2 + $0xa8] sm:$0xff] %v838
      %871 = vst [vmem:[#allocation2 + $0xb0] sm:$0xff] %v839
      %872 = vst [vmem:[#allocation2 + $0xb8] sm:$0xff] %v840
      %873 = vst [vmem:[#allocation2 + $0xc0] sm:$0xff] %v841
      %874 = vst [vmem:[#allocation2 + $0xc8] sm:$0xff] %v842
      %875 = vst [vmem:[#allocation2 + $0xd0] sm:$0xff] %v843
      %876 = vst [vmem:[#allocation2 + $0xd8] sm:$0xff] %v844
      %877 = vst [vmem:[#allocation2 + $0xe0] sm:$0xff] %v845
      %878 = vst [vmem:[#allocation2 + $0xe8] sm:$0xff] %v846
      %879 = vst [vmem:[#allocation2 + $0xf0] sm:$0xff] %v847
      %880 = vst [vmem:[#allocation2 + $0xf8] sm:$0xff] %v848
      // Predicated region
      $region37: #{_lambda_.17} parent=31 // pred_check
        %p881 = pneg %p268
      $region38: #{_lambda_.17} parent=31 // pred_check_branch
        %883 = sbr.rel (%p881) target = $region40
      $region39: #{_lambda_.17} parent=31 // pred_region
        %v884 = vld [vmem:[#allocation2] sm:$0xff]
        %v885 = vld [vmem:[#allocation2 + $0x8] sm:$0xff]
        %v886 = vld [vmem:[#allocation2 + $0x10] sm:$0xff]
        %v887 = vld [vmem:[#allocation2 + $0x18] sm:$0xff]
        %v888 = vld [vmem:[#allocation2 + $0x20] sm:$0xff]
        %v889 = vld [vmem:[#allocation2 + $0x28] sm:$0xff]
        %v890 = vld [vmem:[#allocation2 + $0x30] sm:$0xff]
        %v891 = vld [vmem:[#allocation2 + $0x38] sm:$0xff]
        %v892 = vld [vmem:[#allocation2 + $0x40] sm:$0xff]
        %v893 = vld [vmem:[#allocation2 + $0x48] sm:$0xff]
        %v894 = vld [vmem:[#allocation2 + $0x50] sm:$0xff]
        %v895 = vld [vmem:[#allocation2 + $0x58] sm:$0xff]
        %v896 = vld [vmem:[#allocation2 + $0x60] sm:$0xff]
        %v897 = vld [vmem:[#allocation2 + $0x68] sm:$0xff]
        %v898 = vld [vmem:[#allocation2 + $0x70] sm:$0xff]
        %v899 = vld [vmem:[#allocation2 + $0x78] sm:$0xff]
        %v900 = vld [vmem:[#allocation2 + $0x80] sm:$0xff]
        %v901 = vld [vmem:[#allocation2 + $0x88] sm:$0xff]
        %v902 = vld [vmem:[#allocation2 + $0x90] sm:$0xff]
        %v903 = vld [vmem:[#allocation2 + $0x98] sm:$0xff]
        %v904 = vld [vmem:[#allocation2 + $0xa0] sm:$0xff]
        %v905 = vld [vmem:[#allocation2 + $0xa8] sm:$0xff]
        %v906 = vld [vmem:[#allocation2 + $0xb0] sm:$0xff]
        %v907 = vld [vmem:[#allocation2 + $0xb8] sm:$0xff]
        %v908 = vld [vmem:[#allocation2 + $0xc0] sm:$0xff]
        %v909 = vld [vmem:[#allocation2 + $0xc8] sm:$0xff]
        %v910 = vld [vmem:[#allocation2 + $0xd0] sm:$0xff]
        %v911 = vld [vmem:[#allocation2 + $0xd8] sm:$0xff]
        %v912 = vld [vmem:[#allocation2 + $0xe0] sm:$0xff]
        %v913 = vld [vmem:[#allocation2 + $0xe8] sm:$0xff]
        %v914 = vld [vmem:[#allocation2 + $0xf0] sm:$0xff]
        %v915 = vld [vmem:[#allocation2 + $0xf8] sm:$0xff]
        %v916 = vld [vmem:[%s257] sm:$0x1]
        %v918 = vlaneseq
        %v919 = vshrl.u32 %v918, 7
        %v920 = vsub.s32 0, %v919
        %v921 = vrot.slane %v916, %v920
        %v923 = vadd.f32 %v884, %v921
        %v924 = vadd.f32 %v885, %v921
        %v925 = vadd.f32 %v886, %v921
        %v926 = vadd.f32 %v887, %v921
        %v927 = vadd.f32 %v888, %v921
        %v928 = vadd.f32 %v889, %v921
        %v929 = vadd.f32 %v890, %v921
        %v930 = vadd.f32 %v891, %v921
        %v931 = vadd.f32 %v892, %v921
        %v932 = vadd.f32 %v893, %v921
        %v933 = vadd.f32 %v894, %v921
        %v934 = vadd.f32 %v895, %v921
        %v935 = vadd.f32 %v896, %v921
        %v936 = vadd.f32 %v897, %v921
        %v937 = vadd.f32 %v898, %v921
        %v938 = vadd.f32 %v899, %v921
        %v939 = vadd.f32 %v900, %v921
        %v940 = vadd.f32 %v901, %v921
        %v941 = vadd.f32 %v902, %v921
        %v942 = vadd.f32 %v903, %v921
        %v943 = vadd.f32 %v904, %v921
        %v944 = vadd.f32 %v905, %v921
        %v945 = vadd.f32 %v906, %v921
        %v946 = vadd.f32 %v907, %v921
        %v947 = vadd.f32 %v908, %v921
        %v948 = vadd.f32 %v909, %v921
        %v949 = vadd.f32 %v910, %v921
        %v950 = vadd.f32 %v911, %v921
        %v951 = vadd.f32 %v912, %v921
        %v952 = vadd.f32 %v913, %v921
        %v953 = vadd.f32 %v914, %v921
        %v954 = vadd.f32 %v915, %v921
        %v955 = vmax.f32 %v923, 0.0
        %v956 = vmax.f32 %v924, 0.0
        %v957 = vmax.f32 %v925, 0.0
        %v958 = vmax.f32 %v926, 0.0
        %v959 = vmax.f32 %v927, 0.0
        %v960 = vmax.f32 %v928, 0.0
        %v961 = vmax.f32 %v929, 0.0
        %v962 = vmax.f32 %v930, 0.0
        %v963 = vmax.f32 %v931, 0.0
        %v964 = vmax.f32 %v932, 0.0
        %v965 = vmax.f32 %v933, 0.0
        %v966 = vmax.f32 %v934, 0.0
        %v967 = vmax.f32 %v935, 0.0
        %v968 = vmax.f32 %v936, 0.0
        %v969 = vmax.f32 %v937, 0.0
        %v970 = vmax.f32 %v938, 0.0
        %v971 = vmax.f32 %v939, 0.0
        %v972 = vmax.f32 %v940, 0.0
        %v973 = vmax.f32 %v941, 0.0
        %v974 = vmax.f32 %v942, 0.0
        %v975 = vmax.f32 %v943, 0.0
        %v976 = vmax.f32 %v944, 0.0
        %v977 = vmax.f32 %v945, 0.0
        %v978 = vmax.f32 %v946, 0.0
        %v979 = vmax.f32 %v947, 0.0
        %v980 = vmax.f32 %v948, 0.0
        %v981 = vmax.f32 %v949, 0.0
        %v982 = vmax.f32 %v950, 0.0
        %v983 = vmax.f32 %v951, 0.0
        %v984 = vmax.f32 %v952, 0.0
        %v985 = vmax.f32 %v953, 0.0
        %v986 = vmax.f32 %v954, 0.0
        %987 = vst [vmem:[%s265] sm:$0xff] %v955
        %988 = vst [vmem:[%s265 + $0x8] sm:$0xff] %v956
        %989 = vst [vmem:[%s265 + $0x10] sm:$0xff] %v957
        %990 = vst [vmem:[%s265 + $0x18] sm:$0xff] %v958
        %991 = vst [vmem:[%s265 + $0x20] sm:$0xff] %v959
        %992 = vst [vmem:[%s265 + $0x28] sm:$0xff] %v960
        %993 = vst [vmem:[%s265 + $0x30] sm:$0xff] %v961
        %994 = vst [vmem:[%s265 + $0x38] sm:$0xff] %v962
        %995 = vst [vmem:[%s265 + $0x40] sm:$0xff] %v963
        %996 = vst [vmem:[%s265 + $0x48] sm:$0xff] %v964
        %997 = vst [vmem:[%s265 + $0x50] sm:$0xff] %v965
        %998 = vst [vmem:[%s265 + $0x58] sm:$0xff] %v966
        %999 = vst [vmem:[%s265 + $0x60] sm:$0xff] %v967
        %1000 = vst [vmem:[%s265 + $0x68] sm:$0xff] %v968
        %1001 = vst [vmem:[%s265 + $0x70] sm:$0xff] %v969
        %1002 = vst [vmem:[%s265 + $0x78] sm:$0xff] %v970
        %1003 = vst [vmem:[%s265 + $0x80] sm:$0xff] %v971
        %1004 = vst [vmem:[%s265 + $0x88] sm:$0xff] %v972
        %1005 = vst [vmem:[%s265 + $0x90] sm:$0xff] %v973
        %1006 = vst [vmem:[%s265 + $0x98] sm:$0xff] %v974
        %1007 = vst [vmem:[%s265 + $0xa0] sm:$0xff] %v975
        %1008 = vst [vmem:[%s265 + $0xa8] sm:$0xff] %v976
        %1009 = vst [vmem:[%s265 + $0xb0] sm:$0xff] %v977
        %1010 = vst [vmem:[%s265 + $0xb8] sm:$0xff] %v978
        %1011 = vst [vmem:[%s265 + $0xc0] sm:$0xff] %v979
        %1012 = vst [vmem:[%s265 + $0xc8] sm:$0xff] %v980
        %1013 = vst [vmem:[%s265 + $0xd0] sm:$0xff] %v981
        %1014 = vst [vmem:[%s265 + $0xd8] sm:$0xff] %v982
        %1015 = vst [vmem:[%s265 + $0xe0] sm:$0xff] %v983
        %1016 = vst [vmem:[%s265 + $0xe8] sm:$0xff] %v984
        %1017 = vst [vmem:[%s265 + $0xf0] sm:$0xff] %v985
        %1018 = vst [vmem:[%s265 + $0xf8] sm:$0xff] %v986
      $region40: #{_lambda_.17} parent=31 // pred_fallthru
        _
      %s1019 = smul.u32 32, %s19
      %p1020 = scmp.lt.s32.totalorder %s1019, 255
      %s1021 = scalar_select %p1020, %s1019, 255
      %p1022 = scmp.lt.s32.totalorder %s20, 0
      %s1023 = scalar_select %p1022, %s20, 0
      %s1024 = sadd.s32 %s1023, %s1021
      %s1025 = smul.addr %s1024, 8
      %s1026 = scalar_lea.vmem %s3, %s1025
      // Predicated region
      $region41: #{_lambda_.17} parent=31 // pred_check
        %p1027 = pneg %p135
      $region42: #{_lambda_.17} parent=31 // pred_check_branch
        %1029 = sbr.rel (%p1027) target = $region44
      $region43: #{_lambda_.17} parent=31 // pred_region
        %s1030 = smul.u32 32, %s19
      $region44: #{_lambda_.17} parent=31 // pred_fallthru
        _
    $region32: #{_lambda_.17} parent=5 // pred_fallthru
      _
    %p1031 = scmp.le.s32.totalorder 2, %s9
    // Predicated region
    $region45: #{_lambda_.17} parent=5 // pred_check
      %p1032 = pneg %p1031
    $region46: #{_lambda_.17} parent=5 // pred_check_branch
      %1034 = sbr.rel (%p1032) target = $region48
    $region47: #{_lambda_.17} parent=5 // pred_region
      %s1035 = ssub.s32 %s9, 2
      // Predicated region
      $region49: #{_lambda_.17} parent=47 // pred_check
        %p1036 = pneg %p141
      $region50: #{_lambda_.17} parent=47 // pred_check_branch
        %1038 = sbr.rel (%p1036) target = $region52
      $region51: #{_lambda_.17} parent=47 // pred_region
        %s1039 = smul.u32 32, %s22
        %p1040 = scmp.lt.s32.totalorder %s1039, 255
        %s1041 = scalar_select %p1040, %s1039, 255
        %p1042 = scmp.lt.s32.totalorder %s23, 0
        %s1043 = scalar_select %p1042, %s23, 0
        %s1044 = sadd.s32 %s1043, %s1041
        %s1045 = smul.addr %s1044, 8
        %s1046 = scalar_lea.vmem %s3, %s1045
      $region52: #{_lambda_.17} parent=47 // pred_fallthru
        _
    $region48: #{_lambda_.17} parent=5 // pred_fallthru
      _
  $region6: #{_lambda_.17} parent=0 // loop_footer
    %s13 = sadd.s32 1, %s9
  $region7: #{_lambda_.17} parent=0 // loop_footer_branch
    %8 = sbr.rel target = $region3
  $region8: #{_lambda_.17} parent=0 // loop_exit
    _

// kernel: _lambda_.18
$region0: #{_lambda_.18}
  #allocation0 [shape = 'u32[]', space=smem, size = 0x4, offset = 0x4, fixed_abs, tag = 'smem constant byte address 0x4 - core index']
  #allocation1 [shape = 'u32[144,128]{1,0:T(1,128)}', space=vmem, size = 0x12000, scoped, tag = 'internal scratch']
  #allocation2 [shape = 'f32[256,128]{1,0:T(8,128)}', space=vmem, size = 0x20000, scoped, tag = 'scratch operand']
  %s0 = inlined_call_operand.vmem [shape: bf16[2048,128], index: 0, kind: input, shape index: {}]
  %s1 = inlined_call_operand.vmem [shape: bf16[128,128], index: 1, kind: input, shape index: {}]
  %s2 = inlined_call_operand.vmem [shape: f32[1,128], index: 2, kind: input, shape index: {}]
  %s3 = inlined_call_operand.vmem [shape: f32[2048,128], index: 3, kind: output, shape index: {}]
  %s4 = sld [smem:[#allocation0]]
  $region53: #{_lambda_.18} parent=0
    _
  %s6 = ssub.s32 1, %s4
  %s7 = scalar_select 0, %s6, %s4
  loop: start=0, step=1, limit=10
  $region2: #{_lambda_.18} parent=0 // loop_pre_header
    _
  $region3: #{_lambda_.18} parent=0 // loop_header
    %s9 = sphi 0, %s13
    %p10 = scmp.ge.s32.totalorder %s9, 10
    %s16 = sphi 0, %s35
    %s17 = sphi 0, %s31
    %s18 = sphi 0, %s27
    %s19 = sphi 0, %s16
    %s20 = sphi 0, %s17
    %s21 = sphi 0, %s18
    %s22 = sphi 0, %s19
    %s23 = sphi 0, %s20
    %s24 = sphi 0, %s21
    %s40 = sphi 0, %s42
    %s43 = sphi 0, %s40
    %s44 = sphi 0, %s43
    %s60 = sphi 0, %s44
    %s68 = sphi 0, %s70
    %s71 = sphi 0, %s68
    %s72 = sphi 0, %s71
    %s88 = sphi 0, %s72
    %s94 = sphi 0, %s96
    %s97 = sphi 0, %s94
    %s98 = sphi 0, %s97
    %s114 = sphi 0, %s98
    %s122 = sphi 0, %s124
    %s125 = sphi 0, %s122
    %s126 = sphi 0, %s125
    %s142 = sphi 0, %s126
  $region4: #{_lambda_.18} parent=0 // loop_header_branch
    %12 = sbr.rel (%p10) target = $region8
  $region5: #{_lambda_.18} parent=0 // loop_body
    %s14 = ssub.s32 %s9, 1
    %s15 = ssub.s32 %s9, 2
    %s25 = sadd.s32 1, %s18
    %p26 = scmp.ge.s32.totalorder %s25, 1
    %s27 = scalar_select %p26, 0, %s25
    %s28 = sadd.s32 1, %s17
    %s29 = scalar_select %p26, %s28, %s17
    %p30 = scmp.ge.s32.totalorder %s29, 1
    %s31 = scalar_select %p30, 0, %s29
    %s32 = sadd.s32 1, %s16
    %s33 = scalar_select %p30, %s32, %s16
    %p34 = scmp.ge.s32.totalorder %s33, 8
    %s35 = scalar_select %p34, 0, %s33
    %s36 = ssub.s32 %s16, %s35
    %s37 = ssub.s32 %s18, %s27
    %s38 = sor.u32 %s36, %s37
    %p39 = scmp.eq.s32.totalorder %s38, 0
    %s41 = sadd.s32 %s40, 1
    %s42 = scalar_select %p39, %s40, %s41
    %p45 = pneg %p39
    %p46 = scmp.eq.s32.totalorder %s9, 7
    %p47 = por %p45, %p46
    %p48 = scmp.ne.s32.totalorder %s40, %s43
    %p49 = scmp.eq.s32.totalorder %s9, 0
    %p50 = por %p48, %p49
    %p51 = scmp.ne.s32.totalorder %s40, %s43
    %p52 = scmp.eq.s32.totalorder %s14, 7
    %p53 = por %p51, %p52
    %p54 = scmp.ne.s32.totalorder %s43, %s44
    %p55 = scmp.eq.s32.totalorder %s14, 0
    %p56 = por %p54, %p55
    %p57 = scmp.ne.s32.totalorder %s43, %s44
    %p58 = scmp.eq.s32.totalorder %s15, 7
    %p59 = por %p57, %p58
    %p61 = scmp.ne.s32.totalorder %s44, %s60
    %p62 = scmp.eq.s32.totalorder %s15, 0
    %p63 = por %p61, %p62
    %s64 = ssub.s32 %s18, %s27
    %s65 = ssub.s32 %s17, %s31
    %s66 = sor.u32 %s64, %s65
    %p67 = scmp.eq.s32.totalorder %s66, 0
    %s69 = sadd.s32 %s68, 1
    %s70 = scalar_select %p67, %s68, %s69
    %p73 = pneg %p67
    %p74 = scmp.eq.s32.totalorder %s9, 7
    %p75 = por %p73, %p74
    %p76 = scmp.ne.s32.totalorder %s68, %s71
    %p77 = scmp.eq.s32.totalorder %s9, 0
    %p78 = por %p76, %p77
    %p79 = scmp.ne.s32.totalorder %s68, %s71
    %p80 = scmp.eq.s32.totalorder %s14, 7
    %p81 = por %p79, %p80
    %p82 = scmp.ne.s32.totalorder %s71, %s72
    %p83 = scmp.eq.s32.totalorder %s14, 0
    %p84 = por %p82, %p83
    %p85 = scmp.ne.s32.totalorder %s71, %s72
    %p86 = scmp.eq.s32.totalorder %s15, 7
    %p87 = por %p85, %p86
    %p89 = scmp.ne.s32.totalorder %s72, %s88
    %p90 = scmp.eq.s32.totalorder %s15, 0
    %p91 = por %p89, %p90
    %s92 = ssub.s32 %s17, %s31
    %p93 = scmp.eq.s32.totalorder %s92, 0
    %s95 = sadd.s32 %s94, 1
    %s96 = scalar_select %p93, %s94, %s95
    %p99 = pneg %p93
    %p100 = scmp.eq.s32.totalorder %s9, 7
    %p101 = por %p99, %p100
    %p102 = scmp.ne.s32.totalorder %s94, %s97
    %p103 = scmp.eq.s32.totalorder %s9, 0
    %p104 = por %p102, %p103
    %p105 = scmp.ne.s32.totalorder %s94, %s97
    %p106 = scmp.eq.s32.totalorder %s14, 7
    %p107 = por %p105, %p106
    %p108 = scmp.ne.s32.totalorder %s97, %s98
    %p109 = scmp.eq.s32.totalorder %s14, 0
    %p110 = por %p108, %p109
    %p111 = scmp.ne.s32.totalorder %s97, %s98
    %p112 = scmp.eq.s32.totalorder %s15, 7
    %p113 = por %p111, %p112
    %p115 = scmp.ne.s32.totalorder %s98, %s114
    %p116 = scmp.eq.s32.totalorder %s15, 0
    %p117 = por %p115, %p116
    %s118 = ssub.s32 %s16, %s35
    %s119 = ssub.s32 %s17, %s31
    %s120 = sor.u32 %s118, %s119
    %p121 = scmp.eq.s32.totalorder %s120, 0
    %s123 = sadd.s32 %s122, 1
    %s124 = scalar_select %p121, %s122, %s123
    %p127 = pneg %p121
    %p128 = scmp.eq.s32.totalorder %s9, 7
    %p129 = por %p127, %p128
    %p130 = scmp.ne.s32.totalorder %s122, %s125
    %p131 = scmp.eq.s32.totalorder %s9, 0
    %p132 = por %p130, %p131
    %p133 = scmp.ne.s32.totalorder %s122, %s125
    %p134 = scmp.eq.s32.totalorder %s14, 7
    %p135 = por %p133, %p134
    %p136 = scmp.ne.s32.totalorder %s125, %s126
    %p137 = scmp.eq.s32.totalorder %s14, 0
    %p138 = por %p136, %p137
    %p139 = scmp.ne.s32.totalorder %s125, %s126
    %p140 = scmp.eq.s32.totalorder %s15, 7
    %p141 = por %p139, %p140
    %p143 = scmp.ne.s32.totalorder %s126, %s142
    %p144 = scmp.eq.s32.totalorder %s15, 0
    %p145 = por %p143, %p144
    %p146 = scmp.le.s32.totalorder 1, %s9
    %p147 = scmp.lt.s32.totalorder %s9, 9
    %p148 = pnand %p146, %p147
    %p149 = pneg %p148
    // Predicated region
    $region9: #{_lambda_.18} parent=5 // pred_check
      _
    $region10: #{_lambda_.18} parent=5 // pred_check_branch
      %151 = sbr.rel (%p148) target = $region12
    $region11: #{_lambda_.18} parent=5 // pred_region
      %s152 = ssub.s32 %s9, 1
      // Predicated region
      $region13: #{_lambda_.18} parent=11 // pred_check
        %p153 = pneg %p84
      $region14: #{_lambda_.18} parent=11 // pred_check_branch
        %155 = sbr.rel (%p153) target = $region16
      $region15: #{_lambda_.18} parent=11 // pred_region
        %s156 = smul.u32 16, %s21
        %p157 = scmp.lt.s32.totalorder %s156, 15
        %s158 = scalar_select %p157, %s156, 15
        %p159 = scmp.lt.s32.totalorder %s20, 0
        %s160 = scalar_select %p159, %s20, 0
        %s161 = sadd.s32 %s160, %s158
        %s162 = smul.addr %s161, 4
        %s163 = scalar_lea.vmem %s1, %s162
        %s164 = smul.u32 16, %s21
      $region16: #{_lambda_.18} parent=11 // pred_fallthru
        _
      // Predicated region
      $region17: #{_lambda_.18} parent=11 // pred_check
        %p165 = pneg %p110
      $region18: #{_lambda_.18} parent=11 // pred_check_branch
        %167 = sbr.rel (%p165) target = $region20
      $region19: #{_lambda_.18} parent=11 // pred_region
        %p168 = scmp.lt.s32.totalorder %s20, 0
        %s169 = scalar_select %p168, %s20, 0
        %s170 = scalar_lea.vmem %s2, %s169
      $region20: #{_lambda_.18} parent=11 // pred_fallthru
        _
    $region12: #{_lambda_.18} parent=5 // pred_fallthru
      _
    %p171 = scmp.lt.s32.totalorder %s9, 8
    // Predicated region
    $region21: #{_lambda_.18} parent=5 // pred_check
      %p172 = pneg %p171
    $region22: #{_lambda_.18} parent=5 // pred_check_branch
      %174 = sbr.rel (%p172) target = $region24
    $region23: #{_lambda_.18} parent=5 // pred_region
      // Predicated region
      $region25: #{_lambda_.18} parent=23 // pred_check
        %p175 = pneg %p50
      $region26: #{_lambda_.18} parent=23 // pred_check_branch
        %177 = sbr.rel (%p175) target = $region28
      $region27: #{_lambda_.18} parent=23 // pred_region
        %s178 = smul.u32 32, %s16
        %p179 = scmp.lt.s32.totalorder %s178, 255
        %s180 = scalar_select %p179, %s178, 255
        %p181 = scmp.lt.s32.totalorder %s18, 0
        %s182 = scalar_select %p181, %s18, 0
        %s183 = sadd.s32 %s182, %s180
        %s184 = smul.addr %s183, 4
        %s185 = scalar_lea.vmem %s0, %s184
        %s186 = smul.u32 32, %s16
      $region28: #{_lambda_.18} parent=23 // pred_fallthru
        _
    $region24: #{_lambda_.18} parent=5 // pred_fallthru
      _
    %p187 = scmp.le.s32.totalorder 1, %s9
    %p188 = scmp.lt.s32.totalorder %s9, 9
    %p189 = pnand %p187, %p188
    %p190 = pneg %p189
    // Predicated region
    $region29: #{_lambda_.18} parent=5 // pred_check
      _
    $region30: #{_lambda_.18} parent=5 // pred_check_branch
      %192 = sbr.rel (%p189) target = $region32
    $region31: #{_lambda_.18} parent=5 // pred_region
      %s193 = ssub.s32 %s9, 1
      %s194 = smul.u32 32, %s19
      %p195 = scmp.lt.s32.totalorder %s194, 255
      %s196 = scalar_select %p195, %s194, 255
      %p197 = scmp.lt.s32.totalorder %s21, 0
      %s198 = scalar_select %p197, %s21, 0
      %s199 = sadd.s32 %s198, %s196
      %s200 = smul.addr %s199, 4
      %s201 = scalar_lea.vmem %s0, %s200
      %p202 = pneg %p56
      %p203 = pneg %p53
      %s204 = smul.u32 16, %s21
      %p205 = scmp.lt.s32.totalorder %s204, 15
      %s206 = scalar_select %p205, %s204, 15
      %p207 = scmp.lt.s32.totalorder %s20, 0
      %s208 = scalar_select %p207, %s20, 0
      %s209 = sadd.s32 %s208, %s206
      %s210 = smul.addr %s209, 4
      %s211 = scalar_lea.vmem %s1, %s210
      %p212 = pneg %p84
      %p213 = pneg %p81
      %p214 = scmp.lt.s32.totalorder %s20, 0
      %s215 = scalar_select %p214, %s20, 0
      %s216 = scalar_lea.vmem %s2, %s215
      %p217 = pneg %p110
      %p218 = pneg %p107
      %p219 = pneg %p138
      %p220 = pneg %p135
      %s221 = smul.u32 32, %s19
      %p222 = scmp.lt.s32.totalorder %s221, 255
      %s223 = scalar_select %p222, %s221, 255
      %p224 = scmp.lt.s32.totalorder %s20, 0
      %s225 = scalar_select %p224, %s20, 0
      %s226 = sadd.s32 %s225, %s223
      %s227 = smul.addr %s226, 8
      %s228 = scalar_lea.vmem %s3, %s227
      %s229 = smul.u32 32, %s19
      %p230 = scmp.lt.s32.totalorder %s229, 255
      %s231 = scalar_select %p230, %s229, 255
      %p232 = scmp.lt.s32.totalorder %s21, 0
      %s233 = scalar_select %p232, %s21, 0
      %s234 = sadd.s32 %s233, %s231
      %s235 = smul.addr %s234, 4
      %s236 = scalar_lea.vmem %s0, %s235
      %s237 = smul.u32 32, %s19
      %s238 = smul.u32 16, %s21
      %p239 = scmp.lt.s32.totalorder %s238, 15
      %s240 = scalar_select %p239, %s238, 15
      %p241 = scmp.lt.s32.totalorder %s20, 0
      %s242 = scalar_select %p241, %s20, 0
      %s243 = sadd.s32 %s242, %s240
      %s244 = smul.addr %s243, 4
      %s245 = scalar_lea.vmem %s1, %s244
      %s246 = smul.u32 16, %s21
      %p247 = scmp.lt.s32.totalorder %s20, 0
      %s248 = scalar_select %p247, %s20, 0
      %s249 = scalar_lea.vmem %s2, %s248
      %s250 = smul.u32 32, %s19
      %p251 = scmp.lt.s32.totalorder %s250, 255
      %s252 = scalar_select %p251, %s250, 255
      %p253 = scmp.lt.s32.totalorder %s20, 0
      %s254 = scalar_select %p253, %s20, 0
      %s255 = sadd.s32 %s254, %s252
      %s256 = smul.addr %s255, 8
      %s257 = scalar_lea.vmem %s3, %s256
      %s258 = smul.u32 32, %s19
      %p260 = scmp.eq.s32.totalorder %s21, 0
      // Predicated region
      $region33: #{_lambda_.18} parent=31 // pred_check
        %p261 = pneg %p260
      $region34: #{_lambda_.18} parent=31 // pred_check_branch
        %263 = sbr.rel (%p261) target = $region36
      $region35: #{_lambda_.18} parent=31 // pred_region
        %264 = vst [vmem:[#allocation2] sm:$0xff] 0.0
        %265 = vst [vmem:[#allocation2 + $0x8] sm:$0xff] 0.0
        %266 = vst [vmem:[#allocation2 + $0x10] sm:$0xff] 0.0
        %267 = vst [vmem:[#allocation2 + $0x18] sm:$0xff] 0.0
        %268 = vst [vmem:[#allocation2 + $0x20] sm:$0xff] 0.0
        %269 = vst [vmem:[#allocation2 + $0x28] sm:$0xff] 0.0
        %270 = vst [vmem:[#allocation2 + $0x30] sm:$0xff] 0.0
        %271 = vst [vmem:[#allocation2 + $0x38] sm:$0xff] 0.0
        %272 = vst [vmem:[#allocation2 + $0x40] sm:$0xff] 0.0
        %273 = vst [vmem:[#allocation2 + $0x48] sm:$0xff] 0.0
        %274 = vst [vmem:[#allocation2 + $0x50] sm:$0xff] 0.0
        %275 = vst [vmem:[#allocation2 + $0x58] sm:$0xff] 0.0
        %276 = vst [vmem:[#allocation2 + $0x60] sm:$0xff] 0.0
        %277 = vst [vmem:[#allocation2 + $0x68] sm:$0xff] 0.0
        %278 = vst [vmem:[#allocation2 + $0x70] sm:$0xff] 0.0
        %279 = vst [vmem:[#allocation2 + $0x78] sm:$0xff] 0.0
        %280 = vst [vmem:[#allocation2 + $0x80] sm:$0xff] 0.0
        %281 = vst [vmem:[#allocation2 + $0x88] sm:$0xff] 0.0
        %282 = vst [vmem:[#allocation2 + $0x90] sm:$0xff] 0.0
        %283 = vst [vmem:[#allocation2 + $0x98] sm:$0xff] 0.0
        %284 = vst [vmem:[#allocation2 + $0xa0] sm:$0xff] 0.0
        %285 = vst [vmem:[#allocation2 + $0xa8] sm:$0xff] 0.0
        %286 = vst [vmem:[#allocation2 + $0xb0] sm:$0xff] 0.0
        %287 = vst [vmem:[#allocation2 + $0xb8] sm:$0xff] 0.0
        %288 = vst [vmem:[#allocation2 + $0xc0] sm:$0xff] 0.0
        %289 = vst [vmem:[#allocation2 + $0xc8] sm:$0xff] 0.0
        %290 = vst [vmem:[#allocation2 + $0xd0] sm:$0xff] 0.0
        %291 = vst [vmem:[#allocation2 + $0xd8] sm:$0xff] 0.0
        %292 = vst [vmem:[#allocation2 + $0xe0] sm:$0xff] 0.0
        %293 = vst [vmem:[#allocation2 + $0xe8] sm:$0xff] 0.0
        %294 = vst [vmem:[#allocation2 + $0xf0] sm:$0xff] 0.0
        %295 = vst [vmem:[#allocation2 + $0xf8] sm:$0xff] 0.0
      $region36: #{_lambda_.18} parent=31 // pred_fallthru
        _
      %v296 = vld [vmem:[#allocation2] sm:$0xff]
      %v297 = vld [vmem:[#allocation2 + $0x8] sm:$0xff]
      %v298 = vld [vmem:[#allocation2 + $0x10] sm:$0xff]
      %v299 = vld [vmem:[#allocation2 + $0x18] sm:$0xff]
      %v300 = vld [vmem:[#allocation2 + $0x20] sm:$0xff]
      %v301 = vld [vmem:[#allocation2 + $0x28] sm:$0xff]
      %v302 = vld [vmem:[#allocation2 + $0x30] sm:$0xff]
      %v303 = vld [vmem:[#allocation2 + $0x38] sm:$0xff]
      %v304 = vld [vmem:[#allocation2 + $0x40] sm:$0xff]
      %v305 = vld [vmem:[#allocation2 + $0x48] sm:$0xff]
      %v306 = vld [vmem:[#allocation2 + $0x50] sm:$0xff]
      %v307 = vld [vmem:[#allocation2 + $0x58] sm:$0xff]
      %v308 = vld [vmem:[#allocation2 + $0x60] sm:$0xff]
      %v309 = vld [vmem:[#allocation2 + $0x68] sm:$0xff]
      %v310 = vld [vmem:[#allocation2 + $0x70] sm:$0xff]
      %v311 = vld [vmem:[#allocation2 + $0x78] sm:$0xff]
      %v312 = vld [vmem:[#allocation2 + $0x80] sm:$0xff]
      %v313 = vld [vmem:[#allocation2 + $0x88] sm:$0xff]
      %v314 = vld [vmem:[#allocation2 + $0x90] sm:$0xff]
      %v315 = vld [vmem:[#allocation2 + $0x98] sm:$0xff]
      %v316 = vld [vmem:[#allocation2 + $0xa0] sm:$0xff]
      %v317 = vld [vmem:[#allocation2 + $0xa8] sm:$0xff]
      %v318 = vld [vmem:[#allocation2 + $0xb0] sm:$0xff]
      %v319 = vld [vmem:[#allocation2 + $0xb8] sm:$0xff]
      %v320 = vld [vmem:[#allocation2 + $0xc0] sm:$0xff]
      %v321 = vld [vmem:[#allocation2 + $0xc8] sm:$0xff]
      %v322 = vld [vmem:[#allocation2 + $0xd0] sm:$0xff]
      %v323 = vld [vmem:[#allocation2 + $0xd8] sm:$0xff]
      %v324 = vld [vmem:[#allocation2 + $0xe0] sm:$0xff]
      %v325 = vld [vmem:[#allocation2 + $0xe8] sm:$0xff]
      %v326 = vld [vmem:[#allocation2 + $0xf0] sm:$0xff]
      %v327 = vld [vmem:[#allocation2 + $0xf8] sm:$0xff]
      %v328 = vld [vmem:[%s236] sm:$0xf]
      %v329 = vld [vmem:[%s236 + $0x4] sm:$0xf]
      %v330 = vld [vmem:[%s236 + $0x8] sm:$0xf]
      %v331 = vld [vmem:[%s236 + $0xc] sm:$0xf]
      %v332 = vld [vmem:[%s236 + $0x10] sm:$0xf]
      %v333 = vld [vmem:[%s236 + $0x14] sm:$0xf]
      %v334 = vld [vmem:[%s236 + $0x18] sm:$0xf]
      %v335 = vld [vmem:[%s236 + $0x1c] sm:$0xf]
      %v336 = vld [vmem:[%s236 + $0x20] sm:$0xf]
      %v337 = vld [vmem:[%s236 + $0x24] sm:$0xf]
      %v338 = vld [vmem:[%s236 + $0x28] sm:$0xf]
      %v339 = vld [vmem:[%s236 + $0x2c] sm:$0xf]
      %v340 = vld [vmem:[%s236 + $0x30] sm:$0xf]
      %v341 = vld [vmem:[%s236 + $0x34] sm:$0xf]
      %v342 = vld [vmem:[%s236 + $0x38] sm:$0xf]
      %v343 = vld [vmem:[%s236 + $0x3c] sm:$0xf]
      %v344 = vld [vmem:[%s236 + $0x40] sm:$0xf]
      %v345 = vld [vmem:[%s236 + $0x44] sm:$0xf]
      %v346 = vld [vmem:[%s236 + $0x48] sm:$0xf]
      %v347 = vld [vmem:[%s236 + $0x4c] sm:$0xf]
      %v348 = vld [vmem:[%s236 + $0x50] sm:$0xf]
      %v349 = vld [vmem:[%s236 + $0x54] sm:$0xf]
      %v350 = vld [vmem:[%s236 + $0x58] sm:$0xf]
      %v351 = vld [vmem:[%s236 + $0x5c] sm:$0xf]
      %v352 = vld [vmem:[%s236 + $0x60] sm:$0xf]
      %v353 = vld [vmem:[%s236 + $0x64] sm:$0xf]
      %v354 = vld [vmem:[%s236 + $0x68] sm:$0xf]
      %v355 = vld [vmem:[%s236 + $0x6c] sm:$0xf]
      %v356 = vld [vmem:[%s236 + $0x70] sm:$0xf]
      %v357 = vld [vmem:[%s236 + $0x74] sm:$0xf]
      %v358 = vld [vmem:[%s236 + $0x78] sm:$0xf]
      %v359 = vld [vmem:[%s236 + $0x7c] sm:$0xf]
      %v360 = vld [vmem:[%s245] sm:$0xf]
      %v361 = vld [vmem:[%s245 + $0x4] sm:$0xf]
      %v362 = vld [vmem:[%s245 + $0x8] sm:$0xf]
      %v363 = vld [vmem:[%s245 + $0xc] sm:$0xf]
      %v364 = vld [vmem:[%s245 + $0x10] sm:$0xf]
      %v365 = vld [vmem:[%s245 + $0x14] sm:$0xf]
      %v366 = vld [vmem:[%s245 + $0x18] sm:$0xf]
      %v367 = vld [vmem:[%s245 + $0x1c] sm:$0xf]
      %v368 = vld [vmem:[%s245 + $0x20] sm:$0xf]
      %v369 = vld [vmem:[%s245 + $0x24] sm:$0xf]
      %v370 = vld [vmem:[%s245 + $0x28] sm:$0xf]
      %v371 = vld [vmem:[%s245 + $0x2c] sm:$0xf]
      %v372 = vld [vmem:[%s245 + $0x30] sm:$0xf]
      %v373 = vld [vmem:[%s245 + $0x34] sm:$0xf]
      %v374 = vld [vmem:[%s245 + $0x38] sm:$0xf]
      %v375 = vld [vmem:[%s245 + $0x3c] sm:$0xf]
      %v408 = vunpack.c.l.b16 %v328
      %v409 = vunpack.c.l.b16 %v329
      %v410 = vunpack.c.l.b16 %v330
      %v411 = vunpack.c.l.b16 %v331
      %v412 = vunpack.c.l.b16 %v332
      %v413 = vunpack.c.l.b16 %v333
      %v414 = vunpack.c.l.b16 %v334
      %v415 = vunpack.c.l.b16 %v335
      %v416 = vunpack.c.l.b16 %v336
      %v417 = vunpack.c.l.b16 %v337
      %v418 = vunpack.c.l.b16 %v338
      %v419 = vunpack.c.l.b16 %v339
      %v420 = vunpack.c.l.b16 %v340
      %v421 = vunpack.c.l.b16 %v341
      %v422 = vunpack.c.l.b16 %v342
      %v423 = vunpack.c.l.b16 %v343
      %v424 = vunpack.c.l.b16 %v344
      %v425 = vunpack.c.l.b16 %v345
      %v426 = vunpack.c.l.b16 %v346
      %v427 = vunpack.c.l.b16 %v347
      %v428 = vunpack.c.l.b16 %v348
      %v429 = vunpack.c.l.b16 %v349
      %v430 = vunpack.c.l.b16 %v350
      %v431 = vunpack.c.l.b16 %v351
      %v432 = vunpack.c.l.b16 %v352
      %v433 = vunpack.c.l.b16 %v353
      %v434 = vunpack.c.l.b16 %v354
      %v435 = vunpack.c.l.b16 %v355
      %v436 = vunpack.c.l.b16 %v356
      %v437 = vunpack.c.l.b16 %v357
      %v438 = vunpack.c.l.b16 %v358
      %v439 = vunpack.c.l.b16 %v359
      %v440 = vpack.c.b16 %v409, %v408
      %v441 = vpack.c.b16 %v411, %v410
      %v442 = vpack.c.b16 %v413, %v412
      %v443 = vpack.c.b16 %v415, %v414
      %v444 = vpack.c.b16 %v417, %v416
      %v445 = vpack.c.b16 %v419, %v418
      %v446 = vpack.c.b16 %v421, %v420
      %v447 = vpack.c.b16 %v423, %v422
      %v448 = vpack.c.b16 %v425, %v424
      %v449 = vpack.c.b16 %v427, %v426
      %v450 = vpack.c.b16 %v429, %v428
      %v451 = vpack.c.b16 %v431, %v430
      %v452 = vpack.c.b16 %v433, %v432
      %v453 = vpack.c.b16 %v435, %v434
      %v454 = vpack.c.b16 %v437, %v436
      %v455 = vpack.c.b16 %v439, %v438
      %v488 = vunpack.c.l.b16 %v360
      %v489 = vunpack.c.l.b16 %v361
      %v490 = vunpack.c.l.b16 %v362
      %v491 = vunpack.c.l.b16 %v363
      %v492 = vunpack.c.l.b16 %v364
      %v493 = vunpack.c.l.b16 %v365
      %v494 = vunpack.c.l.b16 %v366
      %v495 = vunpack.c.l.b16 %v367
      %v496 = vunpack.c.l.b16 %v368
      %v497 = vunpack.c.l.b16 %v369
      %v498 = vunpack.c.l.b16 %v370
      %v499 = vunpack.c.l.b16 %v371
      %v500 = vunpack.c.l.b16 %v372
      %v501 = vunpack.c.l.b16 %v373
      %v502 = vunpack.c.l.b16 %v374
      %v503 = vunpack.c.l.b16 %v375
      %v504 = vpack.c.b16 %v489, %v488
      %v505 = vpack.c.b16 %v491, %v490
      %v506 = vpack.c.b16 %v493, %v492
      %v507 = vpack.c.b16 %v495, %v494
      %v508 = vpack.c.b16 %v497, %v496
      %v509 = vpack.c.b16 %v499, %v498
      %v510 = vpack.c.b16 %v501, %v500
      %v511 = vpack.c.b16 %v503, %v502
      %520 = vmatprep.subr.bf16.mxu0 0
      %521 = vmatpush1.bf16.msra.mxu0 %v504
      %522 = vmatprep.subr.bf16.mxu0 0
      %523 = vmatpush1.bf16.msra.mxu0 %v505
      %524 = vmatprep.subr.bf16.mxu0 0
      %525 = vmatpush1.bf16.msra.mxu0 %v506
      %526 = vmatprep.subr.bf16.mxu0 0
      %527 = vmatpush1.bf16.msra.mxu0 %v507
      %528 = vmatprep.subr.bf16.mxu0 0
      %529 = vmatpush1.bf16.msra.mxu0 %v508
      %530 = vmatprep.subr.bf16.mxu0 0
      %531 = vmatpush1.bf16.msra.mxu0 %v509
      %532 = vmatprep.subr.bf16.mxu0 0
      %533 = vmatpush1.bf16.msra.mxu0 %v510
      %534 = vmatprep.subr.bf16.mxu0 0
      %535 = vmatpush1.bf16.msra.mxu0 %v511
      %536 = vmatprep.subr.bf16.mxu0 0
      %537 = vmatpush1.bf16.msra.mxu0 0
      %538 = vmatprep.subr.bf16.mxu0 0
      %539 = vmatpush1.bf16.msra.mxu0 0
      %540 = vmatprep.subr.bf16.mxu0 0
      %541 = vmatpush1.bf16.msra.mxu0 0
      %542 = vmatprep.subr.bf16.mxu0 0
      %543 = vmatpush1.bf16.msra.mxu0 0
      %544 = vmatprep.subr.bf16.mxu0 0
      %545 = vmatpush1.bf16.msra.mxu0 0
      %546 = vmatprep.subr.bf16.mxu0 0
      %547 = vmatpush1.bf16.msra.mxu0 0
      %548 = vmatprep.subr.bf16.mxu0 0
      %549 = vmatpush1.bf16.msra.mxu0 0
      %550 = vmatprep.subr.bf16.mxu0 0
      %551 = vmatpush1.bf16.msra.mxu0 0
      %552 = vmatprep.mubr.bf16.mxu0 0
      %553 = vmatmul.mubr.bf16.gmra.mrb[0].mxu0 %v440
      %v554 = vpop.f32.mrb[0].mxu0
      %v555 = vadd.f32 0.0, %v554
      %v556 = vpop.f32.mrb[0].mxu0
      %v557 = vpop.f32.mrb[0].mxu0
      %v558 = vadd.f32 0.0, %v557
      %v559 = vpop.f32.mrb[0].mxu0
      %560 = vmatprep.mubr.bf16.mxu0 0
      %561 = vmatmul.mubr.bf16.gmra.mrb[0].mxu0 %v441
      %v562 = vpop.f32.mrb[0].mxu0
      %v563 = vadd.f32 0.0, %v562
      %v564 = vpop.f32.mrb[0].mxu0
      %v565 = vpop.f32.mrb[0].mxu0
      %v566 = vadd.f32 0.0, %v565
      %v567 = vpop.f32.mrb[0].mxu0
      %568 = vmatprep.mubr.bf16.mxu0 0
      %569 = vmatmul.mubr.bf16.gmra.mrb[0].mxu0 %v442
      %v570 = vpop.f32.mrb[0].mxu0
      %v571 = vadd.f32 0.0, %v570
      %v572 = vpop.f32.mrb[0].mxu0
      %v573 = vpop.f32.mrb[0].mxu0
      %v574 = vadd.f32 0.0, %v573
      %v575 = vpop.f32.mrb[0].mxu0
      %576 = vmatprep.mubr.bf16.mxu0 0
      %577 = vmatmul.mubr.bf16.gmra.mrb[0].mxu0 %v443
      %v578 = vpop.f32.mrb[0].mxu0
      %v579 = vadd.f32 0.0, %v578
      %v580 = vpop.f32.mrb[0].mxu0
      %v581 = vpop.f32.mrb[0].mxu0
      %v582 = vadd.f32 0.0, %v581
      %v583 = vpop.f32.mrb[0].mxu0
      %584 = vmatprep.mubr.bf16.mxu0 0
      %585 = vmatmul.mubr.bf16.gmra.mrb[0].mxu0 %v444
      %v586 = vpop.f32.mrb[0].mxu0
      %v587 = vadd.f32 0.0, %v586
      %v588 = vpop.f32.mrb[0].mxu0
      %v589 = vpop.f32.mrb[0].mxu0
      %v590 = vadd.f32 0.0, %v589
      %v591 = vpop.f32.mrb[0].mxu0
      %592 = vmatprep.mubr.bf16.mxu0 0
      %593 = vmatmul.mubr.bf16.gmra.mrb[0].mxu0 %v445
      %v594 = vpop.f32.mrb[0].mxu0
      %v595 = vadd.f32 0.0, %v594
      %v596 = vpop.f32.mrb[0].mxu0
      %v597 = vpop.f32.mrb[0].mxu0
      %v598 = vadd.f32 0.0, %v597
      %v599 = vpop.f32.mrb[0].mxu0
      %600 = vmatprep.mubr.bf16.mxu0 0
      %601 = vmatmul.mubr.bf16.gmra.mrb[0].mxu0 %v446
      %v602 = vpop.f32.mrb[0].mxu0
      %v603 = vadd.f32 0.0, %v602
      %v604 = vpop.f32.mrb[0].mxu0
      %v605 = vpop.f32.mrb[0].mxu0
      %v606 = vadd.f32 0.0, %v605
      %v607 = vpop.f32.mrb[0].mxu0
      %608 = vmatprep.mubr.bf16.mxu0 0
      %609 = vmatmul.mubr.bf16.gmra.mrb[0].mxu0 %v447
      %v610 = vpop.f32.mrb[0].mxu0
      %v611 = vadd.f32 0.0, %v610
      %v612 = vpop.f32.mrb[0].mxu0
      %v613 = vpop.f32.mrb[0].mxu0
      %v614 = vadd.f32 0.0, %v613
      %v615 = vpop.f32.mrb[0].mxu0
      %616 = vmatprep.mubr.bf16.mxu0 0
      %617 = vmatmul.mubr.bf16.gmra.mrb[0].mxu0 %v448
      %v618 = vpop.f32.mrb[0].mxu0
      %v619 = vadd.f32 0.0, %v618
      %v620 = vpop.f32.mrb[0].mxu0
      %v621 = vpop.f32.mrb[0].mxu0
      %v622 = vadd.f32 0.0, %v621
      %v623 = vpop.f32.mrb[0].mxu0
      %624 = vmatprep.mubr.bf16.mxu0 0
      %625 = vmatmul.mubr.bf16.gmra.mrb[0].mxu0 %v449
      %v626 = vpop.f32.mrb[0].mxu0
      %v627 = vadd.f32 0.0, %v626
      %v628 = vpop.f32.mrb[0].mxu0
      %v629 = vpop.f32.mrb[0].mxu0
      %v630 = vadd.f32 0.0, %v629
      %v631 = vpop.f32.mrb[0].mxu0
      %632 = vmatprep.mubr.bf16.mxu0 0
      %633 = vmatmul.mubr.bf16.gmra.mrb[0].mxu0 %v450
      %v634 = vpop.f32.mrb[0].mxu0
      %v635 = vadd.f32 0.0, %v634
      %v636 = vpop.f32.mrb[0].mxu0
      %v637 = vpop.f32.mrb[0].mxu0
      %v638 = vadd.f32 0.0, %v637
      %v639 = vpop.f32.mrb[0].mxu0
      %640 = vmatprep.mubr.bf16.mxu0 0
      %641 = vmatmul.mubr.bf16.gmra.mrb[0].mxu0 %v451
      %v642 = vpop.f32.mrb[0].mxu0
      %v643 = vadd.f32 0.0, %v642
      %v644 = vpop.f32.mrb[0].mxu0
      %v645 = vpop.f32.mrb[0].mxu0
      %v646 = vadd.f32 0.0, %v645
      %v647 = vpop.f32.mrb[0].mxu0
      %648 = vmatprep.mubr.bf16.mxu0 0
      %649 = vmatmul.mubr.bf16.gmra.mrb[0].mxu0 %v452
      %v650 = vpop.f32.mrb[0].mxu0
      %v651 = vadd.f32 0.0, %v650
      %v652 = vpop.f32.mrb[0].mxu0
      %v653 = vpop.f32.mrb[0].mxu0
      %v654 = vadd.f32 0.0, %v653
      %v655 = vpop.f32.mrb[0].mxu0
      %656 = vmatprep.mubr.bf16.mxu0 0
      %657 = vmatmul.mubr.bf16.gmra.mrb[0].mxu0 %v453
      %v658 = vpop.f32.mrb[0].mxu0
      %v659 = vadd.f32 0.0, %v658
      %v660 = vpop.f32.mrb[0].mxu0
      %v661 = vpop.f32.mrb[0].mxu0
      %v662 = vadd.f32 0.0, %v661
      %v663 = vpop.f32.mrb[0].mxu0
      %664 = vmatprep.mubr.bf16.mxu0 0
      %665 = vmatmul.mubr.bf16.gmra.mrb[0].mxu0 %v454
      %v666 = vpop.f32.mrb[0].mxu0
      %v667 = vadd.f32 0.0, %v666
      %v668 = vpop.f32.mrb[0].mxu0
      %v669 = vpop.f32.mrb[0].mxu0
      %v670 = vadd.f32 0.0, %v669
      %v671 = vpop.f32.mrb[0].mxu0
      %672 = vmatprep.mubr.bf16.mxu0 0
      %673 = vmatmul.mubr.bf16.gmra.mrb[0].mxu0 %v455
      %v674 = vpop.f32.mrb[0].mxu0
      %v675 = vadd.f32 0.0, %v674
      %v676 = vpop.f32.mrb[0].mxu0
      %v677 = vpop.f32.mrb[0].mxu0
      %v678 = vadd.f32 0.0, %v677
      %v679 = vpop.f32.mrb[0].mxu0
      %680 = vdwg.mxu0
      %v681 = vadd.f32 %v296, %v555
      %v682 = vadd.f32 %v297, %v558
      %v683 = vadd.f32 %v298, %v563
      %v684 = vadd.f32 %v299, %v566
      %v685 = vadd.f32 %v300, %v571
      %v686 = vadd.f32 %v301, %v574
      %v687 = vadd.f32 %v302, %v579
      %v688 = vadd.f32 %v303, %v582
      %v689 = vadd.f32 %v304, %v587
      %v690 = vadd.f32 %v305, %v590
      %v691 = vadd.f32 %v306, %v595
      %v692 = vadd.f32 %v307, %v598
      %v693 = vadd.f32 %v308, %v603
      %v694 = vadd.f32 %v309, %v606
      %v695 = vadd.f32 %v310, %v611
      %v696 = vadd.f32 %v311, %v614
      %v697 = vadd.f32 %v312, %v619
      %v698 = vadd.f32 %v313, %v622
      %v699 = vadd.f32 %v314, %v627
      %v700 = vadd.f32 %v315, %v630
      %v701 = vadd.f32 %v316, %v635
      %v702 = vadd.f32 %v317, %v638
      %v703 = vadd.f32 %v318, %v643
      %v704 = vadd.f32 %v319, %v646
      %v705 = vadd.f32 %v320, %v651
      %v706 = vadd.f32 %v321, %v654
      %v707 = vadd.f32 %v322, %v659
      %v708 = vadd.f32 %v323, %v662
      %v709 = vadd.f32 %v324, %v667
      %v710 = vadd.f32 %v325, %v670
      %v711 = vadd.f32 %v326, %v675
      %v712 = vadd.f32 %v327, %v678
      %713 = vst [vmem:[#allocation2] sm:$0xff] %v681
      %714 = vst [vmem:[#allocation2 + $0x8] sm:$0xff] %v682
      %715 = vst [vmem:[#allocation2 + $0x10] sm:$0xff] %v683
      %716 = vst [vmem:[#allocation2 + $0x18] sm:$0xff] %v684
      %717 = vst [vmem:[#allocation2 + $0x20] sm:$0xff] %v685
      %718 = vst [vmem:[#allocation2 + $0x28] sm:$0xff] %v686
      %719 = vst [vmem:[#allocation2 + $0x30] sm:$0xff] %v687
      %720 = vst [vmem:[#allocation2 + $0x38] sm:$0xff] %v688
      %721 = vst [vmem:[#allocation2 + $0x40] sm:$0xff] %v689
      %722 = vst [vmem:[#allocation2 + $0x48] sm:$0xff] %v690
      %723 = vst [vmem:[#allocation2 + $0x50] sm:$0xff] %v691
      %724 = vst [vmem:[#allocation2 + $0x58] sm:$0xff] %v692
      %725 = vst [vmem:[#allocation2 + $0x60] sm:$0xff] %v693
      %726 = vst [vmem:[#allocation2 + $0x68] sm:$0xff] %v694
      %727 = vst [vmem:[#allocation2 + $0x70] sm:$0xff] %v695
      %728 = vst [vmem:[#allocation2 + $0x78] sm:$0xff] %v696
      %729 = vst [vmem:[#allocation2 + $0x80] sm:$0xff] %v697
      %730 = vst [vmem:[#allocation2 + $0x88] sm:$0xff] %v698
      %731 = vst [vmem:[#allocation2 + $0x90] sm:$0xff] %v699
      %732 = vst [vmem:[#allocation2 + $0x98] sm:$0xff] %v700
      %733 = vst [vmem:[#allocation2 + $0xa0] sm:$0xff] %v701
      %734 = vst [vmem:[#allocation2 + $0xa8] sm:$0xff] %v702
      %735 = vst [vmem:[#allocation2 + $0xb0] sm:$0xff] %v703
      %736 = vst [vmem:[#allocation2 + $0xb8] sm:$0xff] %v704
      %737 = vst [vmem:[#allocation2 + $0xc0] sm:$0xff] %v705
      %738 = vst [vmem:[#allocation2 + $0xc8] sm:$0xff] %v706
      %739 = vst [vmem:[#allocation2 + $0xd0] sm:$0xff] %v707
      %740 = vst [vmem:[#allocation2 + $0xd8] sm:$0xff] %v708
      %741 = vst [vmem:[#allocation2 + $0xe0] sm:$0xff] %v709
      %742 = vst [vmem:[#allocation2 + $0xe8] sm:$0xff] %v710
      %743 = vst [vmem:[#allocation2 + $0xf0] sm:$0xff] %v711
      %744 = vst [vmem:[#allocation2 + $0xf8] sm:$0xff] %v712
      // Predicated region
      $region37: #{_lambda_.18} parent=31 // pred_check
        %p745 = pneg %p260
      $region38: #{_lambda_.18} parent=31 // pred_check_branch
        %747 = sbr.rel (%p745) target = $region40
      $region39: #{_lambda_.18} parent=31 // pred_region
        %v748 = vld [vmem:[#allocation2] sm:$0xff]
        %v749 = vld [vmem:[#allocation2 + $0x8] sm:$0xff]
        %v750 = vld [vmem:[#allocation2 + $0x10] sm:$0xff]
        %v751 = vld [vmem:[#allocation2 + $0x18] sm:$0xff]
        %v752 = vld [vmem:[#allocation2 + $0x20] sm:$0xff]
        %v753 = vld [vmem:[#allocation2 + $0x28] sm:$0xff]
        %v754 = vld [vmem:[#allocation2 + $0x30] sm:$0xff]
        %v755 = vld [vmem:[#allocation2 + $0x38] sm:$0xff]
        %v756 = vld [vmem:[#allocation2 + $0x40] sm:$0xff]
        %v757 = vld [vmem:[#allocation2 + $0x48] sm:$0xff]
        %v758 = vld [vmem:[#allocation2 + $0x50] sm:$0xff]
        %v759 = vld [vmem:[#allocation2 + $0x58] sm:$0xff]
        %v760 = vld [vmem:[#allocation2 + $0x60] sm:$0xff]
        %v761 = vld [vmem:[#allocation2 + $0x68] sm:$0xff]
        %v762 = vld [vmem:[#allocation2 + $0x70] sm:$0xff]
        %v763 = vld [vmem:[#allocation2 + $0x78] sm:$0xff]
        %v764 = vld [vmem:[#allocation2 + $0x80] sm:$0xff]
        %v765 = vld [vmem:[#allocation2 + $0x88] sm:$0xff]
        %v766 = vld [vmem:[#allocation2 + $0x90] sm:$0xff]
        %v767 = vld [vmem:[#allocation2 + $0x98] sm:$0xff]
        %v768 = vld [vmem:[#allocation2 + $0xa0] sm:$0xff]
        %v769 = vld [vmem:[#allocation2 + $0xa8] sm:$0xff]
        %v770 = vld [vmem:[#allocation2 + $0xb0] sm:$0xff]
        %v771 = vld [vmem:[#allocation2 + $0xb8] sm:$0xff]
        %v772 = vld [vmem:[#allocation2 + $0xc0] sm:$0xff]
        %v773 = vld [vmem:[#allocation2 + $0xc8] sm:$0xff]
        %v774 = vld [vmem:[#allocation2 + $0xd0] sm:$0xff]
        %v775 = vld [vmem:[#allocation2 + $0xd8] sm:$0xff]
        %v776 = vld [vmem:[#allocation2 + $0xe0] sm:$0xff]
        %v777 = vld [vmem:[#allocation2 + $0xe8] sm:$0xff]
        %v778 = vld [vmem:[#allocation2 + $0xf0] sm:$0xff]
        %v779 = vld [vmem:[#allocation2 + $0xf8] sm:$0xff]
        %v780 = vld [vmem:[%s249] sm:$0x1]
        %v782 = vlaneseq
        %v783 = vshrl.u32 %v782, 7
        %v784 = vsub.s32 0, %v783
        %v785 = vrot.slane %v780, %v784
        %v787 = vadd.f32 %v748, %v785
        %v788 = vadd.f32 %v749, %v785
        %v789 = vadd.f32 %v750, %v785
        %v790 = vadd.f32 %v751, %v785
        %v791 = vadd.f32 %v752, %v785
        %v792 = vadd.f32 %v753, %v785
        %v793 = vadd.f32 %v754, %v785
        %v794 = vadd.f32 %v755, %v785
        %v795 = vadd.f32 %v756, %v785
        %v796 = vadd.f32 %v757, %v785
        %v797 = vadd.f32 %v758, %v785
        %v798 = vadd.f32 %v759, %v785
        %v799 = vadd.f32 %v760, %v785
        %v800 = vadd.f32 %v761, %v785
        %v801 = vadd.f32 %v762, %v785
        %v802 = vadd.f32 %v763, %v785
        %v803 = vadd.f32 %v764, %v785
        %v804 = vadd.f32 %v765, %v785
        %v805 = vadd.f32 %v766, %v785
        %v806 = vadd.f32 %v767, %v785
        %v807 = vadd.f32 %v768, %v785
        %v808 = vadd.f32 %v769, %v785
        %v809 = vadd.f32 %v770, %v785
        %v810 = vadd.f32 %v771, %v785
        %v811 = vadd.f32 %v772, %v785
        %v812 = vadd.f32 %v773, %v785
        %v813 = vadd.f32 %v774, %v785
        %v814 = vadd.f32 %v775, %v785
        %v815 = vadd.f32 %v776, %v785
        %v816 = vadd.f32 %v777, %v785
        %v817 = vadd.f32 %v778, %v785
        %v818 = vadd.f32 %v779, %v785
        %v819 = vmax.f32 %v787, 0.0
        %v820 = vmax.f32 %v788, 0.0
        %v821 = vmax.f32 %v789, 0.0
        %v822 = vmax.f32 %v790, 0.0
        %v823 = vmax.f32 %v791, 0.0
        %v824 = vmax.f32 %v792, 0.0
        %v825 = vmax.f32 %v793, 0.0
        %v826 = vmax.f32 %v794, 0.0
        %v827 = vmax.f32 %v795, 0.0
        %v828 = vmax.f32 %v796, 0.0
        %v829 = vmax.f32 %v797, 0.0
        %v830 = vmax.f32 %v798, 0.0
        %v831 = vmax.f32 %v799, 0.0
        %v832 = vmax.f32 %v800, 0.0
        %v833 = vmax.f32 %v801, 0.0
        %v834 = vmax.f32 %v802, 0.0
        %v835 = vmax.f32 %v803, 0.0
        %v836 = vmax.f32 %v804, 0.0
        %v837 = vmax.f32 %v805, 0.0
        %v838 = vmax.f32 %v806, 0.0
        %v839 = vmax.f32 %v807, 0.0
        %v840 = vmax.f32 %v808, 0.0
        %v841 = vmax.f32 %v809, 0.0
        %v842 = vmax.f32 %v810, 0.0
        %v843 = vmax.f32 %v811, 0.0
        %v844 = vmax.f32 %v812, 0.0
        %v845 = vmax.f32 %v813, 0.0
        %v846 = vmax.f32 %v814, 0.0
        %v847 = vmax.f32 %v815, 0.0
        %v848 = vmax.f32 %v816, 0.0
        %v849 = vmax.f32 %v817, 0.0
        %v850 = vmax.f32 %v818, 0.0
        %851 = vst [vmem:[%s257] sm:$0xff] %v819
        %852 = vst [vmem:[%s257 + $0x8] sm:$0xff] %v820
        %853 = vst [vmem:[%s257 + $0x10] sm:$0xff] %v821
        %854 = vst [vmem:[%s257 + $0x18] sm:$0xff] %v822
        %855 = vst [vmem:[%s257 + $0x20] sm:$0xff] %v823
        %856 = vst [vmem:[%s257 + $0x28] sm:$0xff] %v824
        %857 = vst [vmem:[%s257 + $0x30] sm:$0xff] %v825
        %858 = vst [vmem:[%s257 + $0x38] sm:$0xff] %v826
        %859 = vst [vmem:[%s257 + $0x40] sm:$0xff] %v827
        %860 = vst [vmem:[%s257 + $0x48] sm:$0xff] %v828
        %861 = vst [vmem:[%s257 + $0x50] sm:$0xff] %v829
        %862 = vst [vmem:[%s257 + $0x58] sm:$0xff] %v830
        %863 = vst [vmem:[%s257 + $0x60] sm:$0xff] %v831
        %864 = vst [vmem:[%s257 + $0x68] sm:$0xff] %v832
        %865 = vst [vmem:[%s257 + $0x70] sm:$0xff] %v833
        %866 = vst [vmem:[%s257 + $0x78] sm:$0xff] %v834
        %867 = vst [vmem:[%s257 + $0x80] sm:$0xff] %v835
        %868 = vst [vmem:[%s257 + $0x88] sm:$0xff] %v836
        %869 = vst [vmem:[%s257 + $0x90] sm:$0xff] %v837
        %870 = vst [vmem:[%s257 + $0x98] sm:$0xff] %v838
        %871 = vst [vmem:[%s257 + $0xa0] sm:$0xff] %v839
        %872 = vst [vmem:[%s257 + $0xa8] sm:$0xff] %v840
        %873 = vst [vmem:[%s257 + $0xb0] sm:$0xff] %v841
        %874 = vst [vmem:[%s257 + $0xb8] sm:$0xff] %v842
        %875 = vst [vmem:[%s257 + $0xc0] sm:$0xff] %v843
        %876 = vst [vmem:[%s257 + $0xc8] sm:$0xff] %v844
        %877 = vst [vmem:[%s257 + $0xd0] sm:$0xff] %v845
        %878 = vst [vmem:[%s257 + $0xd8] sm:$0xff] %v846
        %879 = vst [vmem:[%s257 + $0xe0] sm:$0xff] %v847
        %880 = vst [vmem:[%s257 + $0xe8] sm:$0xff] %v848
        %881 = vst [vmem:[%s257 + $0xf0] sm:$0xff] %v849
        %882 = vst [vmem:[%s257 + $0xf8] sm:$0xff] %v850
      $region40: #{_lambda_.18} parent=31 // pred_fallthru
        _
      %s883 = smul.u32 32, %s19
      %p884 = scmp.lt.s32.totalorder %s883, 255
      %s885 = scalar_select %p884, %s883, 255
      %p886 = scmp.lt.s32.totalorder %s20, 0
      %s887 = scalar_select %p886, %s20, 0
      %s888 = sadd.s32 %s887, %s885
      %s889 = smul.addr %s888, 8
      %s890 = scalar_lea.vmem %s3, %s889
      // Predicated region
      $region41: #{_lambda_.18} parent=31 // pred_check
        %p891 = pneg %p135
      $region42: #{_lambda_.18} parent=31 // pred_check_branch
        %893 = sbr.rel (%p891) target = $region44
      $region43: #{_lambda_.18} parent=31 // pred_region
        %s894 = smul.u32 32, %s19
      $region44: #{_lambda_.18} parent=31 // pred_fallthru
        _
    $region32: #{_lambda_.18} parent=5 // pred_fallthru
      _
    %p895 = scmp.le.s32.totalorder 2, %s9
    // Predicated region
    $region45: #{_lambda_.18} parent=5 // pred_check
      %p896 = pneg %p895
    $region46: #{_lambda_.18} parent=5 // pred_check_branch
      %898 = sbr.rel (%p896) target = $region48
    $region47: #{_lambda_.18} parent=5 // pred_region
      %s899 = ssub.s32 %s9, 2
      // Predicated region
      $region49: #{_lambda_.18} parent=47 // pred_check
        %p900 = pneg %p141
      $region50: #{_lambda_.18} parent=47 // pred_check_branch
        %902 = sbr.rel (%p900) target = $region52
      $region51: #{_lambda_.18} parent=47 // pred_region
        %s903 = smul.u32 32, %s22
        %p904 = scmp.lt.s32.totalorder %s903, 255
        %s905 = scalar_select %p904, %s903, 255
        %p906 = scmp.lt.s32.totalorder %s23, 0
        %s907 = scalar_select %p906, %s23, 0
        %s908 = sadd.s32 %s907, %s905
        %s909 = smul.addr %s908, 8
        %s910 = scalar_lea.vmem %s3, %s909
      $region52: #{_lambda_.18} parent=47 // pred_fallthru
        _
    $region48: #{_lambda_.18} parent=5 // pred_fallthru
      _
  $region6: #{_lambda_.18} parent=0 // loop_footer
    %s13 = sadd.s32 1, %s9
  $region7: #{_lambda_.18} parent=0 // loop_footer_branch
    %8 = sbr.rel target = $region3
  $region8: #{_lambda_.18} parent=0 // loop_exit
    _

// kernel: _lambda_.19
$region0: #{_lambda_.19}
  #allocation0 [shape = 'u32[]', space=smem, size = 0x4, offset = 0x4, fixed_abs, tag = 'smem constant byte address 0x4 - core index']
  #allocation1 [shape = 'u32[144,128]{1,0:T(1,128)}', space=vmem, size = 0x12000, scoped, tag = 'internal scratch']
  #allocation2 [shape = 'f32[256,128]{1,0:T(8,128)}', space=vmem, size = 0x20000, scoped, tag = 'scratch operand']
  %s0 = inlined_call_operand.vmem [shape: bf16[512,128], index: 0, kind: input, shape index: {}]
  %s1 = inlined_call_operand.vmem [shape: bf16[128,128], index: 1, kind: input, shape index: {}]
  %s2 = inlined_call_operand.vmem [shape: f32[1,128], index: 2, kind: input, shape index: {}]
  %s3 = inlined_call_operand.vmem [shape: f32[512,128], index: 3, kind: output, shape index: {}]
  %s4 = sld [smem:[#allocation0]]
  $region53: #{_lambda_.19} parent=0
    _
  %s6 = ssub.s32 1, %s4
  %s7 = scalar_select 0, %s6, %s4
  loop: start=0, step=1, limit=4
  $region2: #{_lambda_.19} parent=0 // loop_pre_header
    _
  $region3: #{_lambda_.19} parent=0 // loop_header
    %s9 = sphi 0, %s13
    %p10 = scmp.ge.s32.totalorder %s9, 4
    %s16 = sphi 0, %s35
    %s17 = sphi 0, %s31
    %s18 = sphi 0, %s27
    %s19 = sphi 0, %s16
    %s20 = sphi 0, %s17
    %s21 = sphi 0, %s18
    %s22 = sphi 0, %s19
    %s23 = sphi 0, %s20
    %s24 = sphi 0, %s21
    %s40 = sphi 0, %s42
    %s43 = sphi 0, %s40
    %s44 = sphi 0, %s43
    %s60 = sphi 0, %s44
    %s68 = sphi 0, %s70
    %s71 = sphi 0, %s68
    %s72 = sphi 0, %s71
    %s88 = sphi 0, %s72
    %s94 = sphi 0, %s96
    %s97 = sphi 0, %s94
    %s98 = sphi 0, %s97
    %s114 = sphi 0, %s98
    %s122 = sphi 0, %s124
    %s125 = sphi 0, %s122
    %s126 = sphi 0, %s125
    %s142 = sphi 0, %s126
  $region4: #{_lambda_.19} parent=0 // loop_header_branch
    %12 = sbr.rel (%p10) target = $region8
  $region5: #{_lambda_.19} parent=0 // loop_body
    %s14 = ssub.s32 %s9, 1
    %s15 = ssub.s32 %s9, 2
    %s25 = sadd.s32 1, %s18
    %p26 = scmp.ge.s32.totalorder %s25, 1
    %s27 = scalar_select %p26, 0, %s25
    %s28 = sadd.s32 1, %s17
    %s29 = scalar_select %p26, %s28, %s17
    %p30 = scmp.ge.s32.totalorder %s29, 1
    %s31 = scalar_select %p30, 0, %s29
    %s32 = sadd.s32 1, %s16
    %s33 = scalar_select %p30, %s32, %s16
    %p34 = scmp.ge.s32.totalorder %s33, 2
    %s35 = scalar_select %p34, 0, %s33
    %s36 = ssub.s32 %s16, %s35
    %s37 = ssub.s32 %s18, %s27
    %s38 = sor.u32 %s36, %s37
    %p39 = scmp.eq.s32.totalorder %s38, 0
    %s41 = sadd.s32 %s40, 1
    %s42 = scalar_select %p39, %s40, %s41
    %p45 = pneg %p39
    %p46 = scmp.eq.s32.totalorder %s9, 1
    %p47 = por %p45, %p46
    %p48 = scmp.ne.s32.totalorder %s40, %s43
    %p49 = scmp.eq.s32.totalorder %s9, 0
    %p50 = por %p48, %p49
    %p51 = scmp.ne.s32.totalorder %s40, %s43
    %p52 = scmp.eq.s32.totalorder %s14, 1
    %p53 = por %p51, %p52
    %p54 = scmp.ne.s32.totalorder %s43, %s44
    %p55 = scmp.eq.s32.totalorder %s14, 0
    %p56 = por %p54, %p55
    %p57 = scmp.ne.s32.totalorder %s43, %s44
    %p58 = scmp.eq.s32.totalorder %s15, 1
    %p59 = por %p57, %p58
    %p61 = scmp.ne.s32.totalorder %s44, %s60
    %p62 = scmp.eq.s32.totalorder %s15, 0
    %p63 = por %p61, %p62
    %s64 = ssub.s32 %s18, %s27
    %s65 = ssub.s32 %s17, %s31
    %s66 = sor.u32 %s64, %s65
    %p67 = scmp.eq.s32.totalorder %s66, 0
    %s69 = sadd.s32 %s68, 1
    %s70 = scalar_select %p67, %s68, %s69
    %p73 = pneg %p67
    %p74 = scmp.eq.s32.totalorder %s9, 1
    %p75 = por %p73, %p74
    %p76 = scmp.ne.s32.totalorder %s68, %s71
    %p77 = scmp.eq.s32.totalorder %s9, 0
    %p78 = por %p76, %p77
    %p79 = scmp.ne.s32.totalorder %s68, %s71
    %p80 = scmp.eq.s32.totalorder %s14, 1
    %p81 = por %p79, %p80
    %p82 = scmp.ne.s32.totalorder %s71, %s72
    %p83 = scmp.eq.s32.totalorder %s14, 0
    %p84 = por %p82, %p83
    %p85 = scmp.ne.s32.totalorder %s71, %s72
    %p86 = scmp.eq.s32.totalorder %s15, 1
    %p87 = por %p85, %p86
    %p89 = scmp.ne.s32.totalorder %s72, %s88
    %p90 = scmp.eq.s32.totalorder %s15, 0
    %p91 = por %p89, %p90
    %s92 = ssub.s32 %s17, %s31
    %p93 = scmp.eq.s32.totalorder %s92, 0
    %s95 = sadd.s32 %s94, 1
    %s96 = scalar_select %p93, %s94, %s95
    %p99 = pneg %p93
    %p100 = scmp.eq.s32.totalorder %s9, 1
    %p101 = por %p99, %p100
    %p102 = scmp.ne.s32.totalorder %s94, %s97
    %p103 = scmp.eq.s32.totalorder %s9, 0
    %p104 = por %p102, %p103
    %p105 = scmp.ne.s32.totalorder %s94, %s97
    %p106 = scmp.eq.s32.totalorder %s14, 1
    %p107 = por %p105, %p106
    %p108 = scmp.ne.s32.totalorder %s97, %s98
    %p109 = scmp.eq.s32.totalorder %s14, 0
    %p110 = por %p108, %p109
    %p111 = scmp.ne.s32.totalorder %s97, %s98
    %p112 = scmp.eq.s32.totalorder %s15, 1
    %p113 = por %p111, %p112
    %p115 = scmp.ne.s32.totalorder %s98, %s114
    %p116 = scmp.eq.s32.totalorder %s15, 0
    %p117 = por %p115, %p116
    %s118 = ssub.s32 %s16, %s35
    %s119 = ssub.s32 %s17, %s31
    %s120 = sor.u32 %s118, %s119
    %p121 = scmp.eq.s32.totalorder %s120, 0
    %s123 = sadd.s32 %s122, 1
    %s124 = scalar_select %p121, %s122, %s123
    %p127 = pneg %p121
    %p128 = scmp.eq.s32.totalorder %s9, 1
    %p129 = por %p127, %p128
    %p130 = scmp.ne.s32.totalorder %s122, %s125
    %p131 = scmp.eq.s32.totalorder %s9, 0
    %p132 = por %p130, %p131
    %p133 = scmp.ne.s32.totalorder %s122, %s125
    %p134 = scmp.eq.s32.totalorder %s14, 1
    %p135 = por %p133, %p134
    %p136 = scmp.ne.s32.totalorder %s125, %s126
    %p137 = scmp.eq.s32.totalorder %s14, 0
    %p138 = por %p136, %p137
    %p139 = scmp.ne.s32.totalorder %s125, %s126
    %p140 = scmp.eq.s32.totalorder %s15, 1
    %p141 = por %p139, %p140
    %p143 = scmp.ne.s32.totalorder %s126, %s142
    %p144 = scmp.eq.s32.totalorder %s15, 0
    %p145 = por %p143, %p144
    %p146 = scmp.le.s32.totalorder 1, %s9
    %p147 = scmp.lt.s32.totalorder %s9, 3
    %p148 = pnand %p146, %p147
    %p149 = pneg %p148
    // Predicated region
    $region9: #{_lambda_.19} parent=5 // pred_check
      _
    $region10: #{_lambda_.19} parent=5 // pred_check_branch
      %151 = sbr.rel (%p148) target = $region12
    $region11: #{_lambda_.19} parent=5 // pred_region
      %s152 = ssub.s32 %s9, 1
      // Predicated region
      $region13: #{_lambda_.19} parent=11 // pred_check
        %p153 = pneg %p84
      $region14: #{_lambda_.19} parent=11 // pred_check_branch
        %155 = sbr.rel (%p153) target = $region16
      $region15: #{_lambda_.19} parent=11 // pred_region
        %s156 = smul.u32 16, %s21
        %p157 = scmp.lt.s32.totalorder %s156, 15
        %s158 = scalar_select %p157, %s156, 15
        %p159 = scmp.lt.s32.totalorder %s20, 0
        %s160 = scalar_select %p159, %s20, 0
        %s161 = sadd.s32 %s160, %s158
        %s162 = smul.addr %s161, 4
        %s163 = scalar_lea.vmem %s1, %s162
        %s164 = smul.u32 16, %s21
      $region16: #{_lambda_.19} parent=11 // pred_fallthru
        _
      // Predicated region
      $region17: #{_lambda_.19} parent=11 // pred_check
        %p165 = pneg %p110
      $region18: #{_lambda_.19} parent=11 // pred_check_branch
        %167 = sbr.rel (%p165) target = $region20
      $region19: #{_lambda_.19} parent=11 // pred_region
        %p168 = scmp.lt.s32.totalorder %s20, 0
        %s169 = scalar_select %p168, %s20, 0
        %s170 = scalar_lea.vmem %s2, %s169
      $region20: #{_lambda_.19} parent=11 // pred_fallthru
        _
    $region12: #{_lambda_.19} parent=5 // pred_fallthru
      _
    %p171 = scmp.lt.s32.totalorder %s9, 2
    // Predicated region
    $region21: #{_lambda_.19} parent=5 // pred_check
      %p172 = pneg %p171
    $region22: #{_lambda_.19} parent=5 // pred_check_branch
      %174 = sbr.rel (%p172) target = $region24
    $region23: #{_lambda_.19} parent=5 // pred_region
      // Predicated region
      $region25: #{_lambda_.19} parent=23 // pred_check
        %p175 = pneg %p50
      $region26: #{_lambda_.19} parent=23 // pred_check_branch
        %177 = sbr.rel (%p175) target = $region28
      $region27: #{_lambda_.19} parent=23 // pred_region
        %s178 = smul.u32 32, %s16
        %p179 = scmp.lt.s32.totalorder %s178, 63
        %s180 = scalar_select %p179, %s178, 63
        %p181 = scmp.lt.s32.totalorder %s18, 0
        %s182 = scalar_select %p181, %s18, 0
        %s183 = sadd.s32 %s182, %s180
        %s184 = smul.addr %s183, 4
        %s185 = scalar_lea.vmem %s0, %s184
        %s186 = smul.u32 32, %s16
      $region28: #{_lambda_.19} parent=23 // pred_fallthru
        _
    $region24: #{_lambda_.19} parent=5 // pred_fallthru
      _
    %p187 = scmp.le.s32.totalorder 1, %s9
    %p188 = scmp.lt.s32.totalorder %s9, 3
    %p189 = pnand %p187, %p188
    %p190 = pneg %p189
    // Predicated region
    $region29: #{_lambda_.19} parent=5 // pred_check
      _
    $region30: #{_lambda_.19} parent=5 // pred_check_branch
      %192 = sbr.rel (%p189) target = $region32
    $region31: #{_lambda_.19} parent=5 // pred_region
      %s193 = ssub.s32 %s9, 1
      %s194 = smul.u32 32, %s19
      %p195 = scmp.lt.s32.totalorder %s194, 63
      %s196 = scalar_select %p195, %s194, 63
      %p197 = scmp.lt.s32.totalorder %s21, 0
      %s198 = scalar_select %p197, %s21, 0
      %s199 = sadd.s32 %s198, %s196
      %s200 = smul.addr %s199, 4
      %s201 = scalar_lea.vmem %s0, %s200
      %p202 = pneg %p56
      %p203 = pneg %p53
      %s204 = smul.u32 16, %s21
      %p205 = scmp.lt.s32.totalorder %s204, 15
      %s206 = scalar_select %p205, %s204, 15
      %p207 = scmp.lt.s32.totalorder %s20, 0
      %s208 = scalar_select %p207, %s20, 0
      %s209 = sadd.s32 %s208, %s206
      %s210 = smul.addr %s209, 4
      %s211 = scalar_lea.vmem %s1, %s210
      %p212 = pneg %p84
      %p213 = pneg %p81
      %p214 = scmp.lt.s32.totalorder %s20, 0
      %s215 = scalar_select %p214, %s20, 0
      %s216 = scalar_lea.vmem %s2, %s215
      %p217 = pneg %p110
      %p218 = pneg %p107
      %p219 = pneg %p138
      %p220 = pneg %p135
      %s221 = smul.u32 32, %s19
      %p222 = scmp.lt.s32.totalorder %s221, 63
      %s223 = scalar_select %p222, %s221, 63
      %p224 = scmp.lt.s32.totalorder %s20, 0
      %s225 = scalar_select %p224, %s20, 0
      %s226 = sadd.s32 %s225, %s223
      %s227 = smul.addr %s226, 8
      %s228 = scalar_lea.vmem %s3, %s227
      %s229 = smul.u32 32, %s19
      %p230 = scmp.lt.s32.totalorder %s229, 63
      %s231 = scalar_select %p230, %s229, 63
      %p232 = scmp.lt.s32.totalorder %s21, 0
      %s233 = scalar_select %p232, %s21, 0
      %s234 = sadd.s32 %s233, %s231
      %s235 = smul.addr %s234, 4
      %s236 = scalar_lea.vmem %s0, %s235
      %s237 = smul.u32 32, %s19
      %s238 = smul.u32 16, %s21
      %p239 = scmp.lt.s32.totalorder %s238, 15
      %s240 = scalar_select %p239, %s238, 15
      %p241 = scmp.lt.s32.totalorder %s20, 0
      %s242 = scalar_select %p241, %s20, 0
      %s243 = sadd.s32 %s242, %s240
      %s244 = smul.addr %s243, 4
      %s245 = scalar_lea.vmem %s1, %s244
      %s246 = smul.u32 16, %s21
      %p247 = scmp.lt.s32.totalorder %s20, 0
      %s248 = scalar_select %p247, %s20, 0
      %s249 = scalar_lea.vmem %s2, %s248
      %s250 = smul.u32 32, %s19
      %p251 = scmp.lt.s32.totalorder %s250, 63
      %s252 = scalar_select %p251, %s250, 63
      %p253 = scmp.lt.s32.totalorder %s20, 0
      %s254 = scalar_select %p253, %s20, 0
      %s255 = sadd.s32 %s254, %s252
      %s256 = smul.addr %s255, 8
      %s257 = scalar_lea.vmem %s3, %s256
      %s258 = smul.u32 32, %s19
      %p260 = scmp.eq.s32.totalorder %s21, 0
      // Predicated region
      $region33: #{_lambda_.19} parent=31 // pred_check
        %p261 = pneg %p260
      $region34: #{_lambda_.19} parent=31 // pred_check_branch
        %263 = sbr.rel (%p261) target = $region36
      $region35: #{_lambda_.19} parent=31 // pred_region
        %264 = vst [vmem:[#allocation2] sm:$0xff] 0.0
        %265 = vst [vmem:[#allocation2 + $0x8] sm:$0xff] 0.0
        %266 = vst [vmem:[#allocation2 + $0x10] sm:$0xff] 0.0
        %267 = vst [vmem:[#allocation2 + $0x18] sm:$0xff] 0.0
        %268 = vst [vmem:[#allocation2 + $0x20] sm:$0xff] 0.0
        %269 = vst [vmem:[#allocation2 + $0x28] sm:$0xff] 0.0
        %270 = vst [vmem:[#allocation2 + $0x30] sm:$0xff] 0.0
        %271 = vst [vmem:[#allocation2 + $0x38] sm:$0xff] 0.0
        %272 = vst [vmem:[#allocation2 + $0x40] sm:$0xff] 0.0
        %273 = vst [vmem:[#allocation2 + $0x48] sm:$0xff] 0.0
        %274 = vst [vmem:[#allocation2 + $0x50] sm:$0xff] 0.0
        %275 = vst [vmem:[#allocation2 + $0x58] sm:$0xff] 0.0
        %276 = vst [vmem:[#allocation2 + $0x60] sm:$0xff] 0.0
        %277 = vst [vmem:[#allocation2 + $0x68] sm:$0xff] 0.0
        %278 = vst [vmem:[#allocation2 + $0x70] sm:$0xff] 0.0
        %279 = vst [vmem:[#allocation2 + $0x78] sm:$0xff] 0.0
        %280 = vst [vmem:[#allocation2 + $0x80] sm:$0xff] 0.0
        %281 = vst [vmem:[#allocation2 + $0x88] sm:$0xff] 0.0
        %282 = vst [vmem:[#allocation2 + $0x90] sm:$0xff] 0.0
        %283 = vst [vmem:[#allocation2 + $0x98] sm:$0xff] 0.0
        %284 = vst [vmem:[#allocation2 + $0xa0] sm:$0xff] 0.0
        %285 = vst [vmem:[#allocation2 + $0xa8] sm:$0xff] 0.0
        %286 = vst [vmem:[#allocation2 + $0xb0] sm:$0xff] 0.0
        %287 = vst [vmem:[#allocation2 + $0xb8] sm:$0xff] 0.0
        %288 = vst [vmem:[#allocation2 + $0xc0] sm:$0xff] 0.0
        %289 = vst [vmem:[#allocation2 + $0xc8] sm:$0xff] 0.0
        %290 = vst [vmem:[#allocation2 + $0xd0] sm:$0xff] 0.0
        %291 = vst [vmem:[#allocation2 + $0xd8] sm:$0xff] 0.0
        %292 = vst [vmem:[#allocation2 + $0xe0] sm:$0xff] 0.0
        %293 = vst [vmem:[#allocation2 + $0xe8] sm:$0xff] 0.0
        %294 = vst [vmem:[#allocation2 + $0xf0] sm:$0xff] 0.0
        %295 = vst [vmem:[#allocation2 + $0xf8] sm:$0xff] 0.0
      $region36: #{_lambda_.19} parent=31 // pred_fallthru
        _
      %v296 = vld [vmem:[#allocation2] sm:$0xff]
      %v297 = vld [vmem:[#allocation2 + $0x8] sm:$0xff]
      %v298 = vld [vmem:[#allocation2 + $0x10] sm:$0xff]
      %v299 = vld [vmem:[#allocation2 + $0x18] sm:$0xff]
      %v300 = vld [vmem:[#allocation2 + $0x20] sm:$0xff]
      %v301 = vld [vmem:[#allocation2 + $0x28] sm:$0xff]
      %v302 = vld [vmem:[#allocation2 + $0x30] sm:$0xff]
      %v303 = vld [vmem:[#allocation2 + $0x38] sm:$0xff]
      %v304 = vld [vmem:[#allocation2 + $0x40] sm:$0xff]
      %v305 = vld [vmem:[#allocation2 + $0x48] sm:$0xff]
      %v306 = vld [vmem:[#allocation2 + $0x50] sm:$0xff]
      %v307 = vld [vmem:[#allocation2 + $0x58] sm:$0xff]
      %v308 = vld [vmem:[#allocation2 + $0x60] sm:$0xff]
      %v309 = vld [vmem:[#allocation2 + $0x68] sm:$0xff]
      %v310 = vld [vmem:[#allocation2 + $0x70] sm:$0xff]
      %v311 = vld [vmem:[#allocation2 + $0x78] sm:$0xff]
      %v312 = vld [vmem:[#allocation2 + $0x80] sm:$0xff]
      %v313 = vld [vmem:[#allocation2 + $0x88] sm:$0xff]
      %v314 = vld [vmem:[#allocation2 + $0x90] sm:$0xff]
      %v315 = vld [vmem:[#allocation2 + $0x98] sm:$0xff]
      %v316 = vld [vmem:[#allocation2 + $0xa0] sm:$0xff]
      %v317 = vld [vmem:[#allocation2 + $0xa8] sm:$0xff]
      %v318 = vld [vmem:[#allocation2 + $0xb0] sm:$0xff]
      %v319 = vld [vmem:[#allocation2 + $0xb8] sm:$0xff]
      %v320 = vld [vmem:[#allocation2 + $0xc0] sm:$0xff]
      %v321 = vld [vmem:[#allocation2 + $0xc8] sm:$0xff]
      %v322 = vld [vmem:[#allocation2 + $0xd0] sm:$0xff]
      %v323 = vld [vmem:[#allocation2 + $0xd8] sm:$0xff]
      %v324 = vld [vmem:[#allocation2 + $0xe0] sm:$0xff]
      %v325 = vld [vmem:[#allocation2 + $0xe8] sm:$0xff]
      %v326 = vld [vmem:[#allocation2 + $0xf0] sm:$0xff]
      %v327 = vld [vmem:[#allocation2 + $0xf8] sm:$0xff]
      %v328 = vld [vmem:[%s236] sm:$0xf]
      %v329 = vld [vmem:[%s236 + $0x4] sm:$0xf]
      %v330 = vld [vmem:[%s236 + $0x8] sm:$0xf]
      %v331 = vld [vmem:[%s236 + $0xc] sm:$0xf]
      %v332 = vld [vmem:[%s236 + $0x10] sm:$0xf]
      %v333 = vld [vmem:[%s236 + $0x14] sm:$0xf]
      %v334 = vld [vmem:[%s236 + $0x18] sm:$0xf]
      %v335 = vld [vmem:[%s236 + $0x1c] sm:$0xf]
      %v336 = vld [vmem:[%s236 + $0x20] sm:$0xf]
      %v337 = vld [vmem:[%s236 + $0x24] sm:$0xf]
      %v338 = vld [vmem:[%s236 + $0x28] sm:$0xf]
      %v339 = vld [vmem:[%s236 + $0x2c] sm:$0xf]
      %v340 = vld [vmem:[%s236 + $0x30] sm:$0xf]
      %v341 = vld [vmem:[%s236 + $0x34] sm:$0xf]
      %v342 = vld [vmem:[%s236 + $0x38] sm:$0xf]
      %v343 = vld [vmem:[%s236 + $0x3c] sm:$0xf]
      %v344 = vld [vmem:[%s236 + $0x40] sm:$0xf]
      %v345 = vld [vmem:[%s236 + $0x44] sm:$0xf]
      %v346 = vld [vmem:[%s236 + $0x48] sm:$0xf]
      %v347 = vld [vmem:[%s236 + $0x4c] sm:$0xf]
      %v348 = vld [vmem:[%s236 + $0x50] sm:$0xf]
      %v349 = vld [vmem:[%s236 + $0x54] sm:$0xf]
      %v350 = vld [vmem:[%s236 + $0x58] sm:$0xf]
      %v351 = vld [vmem:[%s236 + $0x5c] sm:$0xf]
      %v352 = vld [vmem:[%s236 + $0x60] sm:$0xf]
      %v353 = vld [vmem:[%s236 + $0x64] sm:$0xf]
      %v354 = vld [vmem:[%s236 + $0x68] sm:$0xf]
      %v355 = vld [vmem:[%s236 + $0x6c] sm:$0xf]
      %v356 = vld [vmem:[%s236 + $0x70] sm:$0xf]
      %v357 = vld [vmem:[%s236 + $0x74] sm:$0xf]
      %v358 = vld [vmem:[%s236 + $0x78] sm:$0xf]
      %v359 = vld [vmem:[%s236 + $0x7c] sm:$0xf]
      %v360 = vld [vmem:[%s245] sm:$0xf]
      %v361 = vld [vmem:[%s245 + $0x4] sm:$0xf]
      %v362 = vld [vmem:[%s245 + $0x8] sm:$0xf]
      %v363 = vld [vmem:[%s245 + $0xc] sm:$0xf]
      %v364 = vld [vmem:[%s245 + $0x10] sm:$0xf]
      %v365 = vld [vmem:[%s245 + $0x14] sm:$0xf]
      %v366 = vld [vmem:[%s245 + $0x18] sm:$0xf]
      %v367 = vld [vmem:[%s245 + $0x1c] sm:$0xf]
      %v368 = vld [vmem:[%s245 + $0x20] sm:$0xf]
      %v369 = vld [vmem:[%s245 + $0x24] sm:$0xf]
      %v370 = vld [vmem:[%s245 + $0x28] sm:$0xf]
      %v371 = vld [vmem:[%s245 + $0x2c] sm:$0xf]
      %v372 = vld [vmem:[%s245 + $0x30] sm:$0xf]
      %v373 = vld [vmem:[%s245 + $0x34] sm:$0xf]
      %v374 = vld [vmem:[%s245 + $0x38] sm:$0xf]
      %v375 = vld [vmem:[%s245 + $0x3c] sm:$0xf]
      %v408 = vunpack.c.l.b16 %v328
      %v409 = vunpack.c.l.b16 %v329
      %v410 = vunpack.c.l.b16 %v330
      %v411 = vunpack.c.l.b16 %v331
      %v412 = vunpack.c.l.b16 %v332
      %v413 = vunpack.c.l.b16 %v333
      %v414 = vunpack.c.l.b16 %v334
      %v415 = vunpack.c.l.b16 %v335
      %v416 = vunpack.c.l.b16 %v336
      %v417 = vunpack.c.l.b16 %v337
      %v418 = vunpack.c.l.b16 %v338
      %v419 = vunpack.c.l.b16 %v339
      %v420 = vunpack.c.l.b16 %v340
      %v421 = vunpack.c.l.b16 %v341
      %v422 = vunpack.c.l.b16 %v342
      %v423 = vunpack.c.l.b16 %v343
      %v424 = vunpack.c.l.b16 %v344
      %v425 = vunpack.c.l.b16 %v345
      %v426 = vunpack.c.l.b16 %v346
      %v427 = vunpack.c.l.b16 %v347
      %v428 = vunpack.c.l.b16 %v348
      %v429 = vunpack.c.l.b16 %v349
      %v430 = vunpack.c.l.b16 %v350
      %v431 = vunpack.c.l.b16 %v351
      %v432 = vunpack.c.l.b16 %v352
      %v433 = vunpack.c.l.b16 %v353
      %v434 = vunpack.c.l.b16 %v354
      %v435 = vunpack.c.l.b16 %v355
      %v436 = vunpack.c.l.b16 %v356
      %v437 = vunpack.c.l.b16 %v357
      %v438 = vunpack.c.l.b16 %v358
      %v439 = vunpack.c.l.b16 %v359
      %v440 = vpack.c.b16 %v409, %v408
      %v441 = vpack.c.b16 %v411, %v410
      %v442 = vpack.c.b16 %v413, %v412
      %v443 = vpack.c.b16 %v415, %v414
      %v444 = vpack.c.b16 %v417, %v416
      %v445 = vpack.c.b16 %v419, %v418
      %v446 = vpack.c.b16 %v421, %v420
      %v447 = vpack.c.b16 %v423, %v422
      %v448 = vpack.c.b16 %v425, %v424
      %v449 = vpack.c.b16 %v427, %v426
      %v450 = vpack.c.b16 %v429, %v428
      %v451 = vpack.c.b16 %v431, %v430
      %v452 = vpack.c.b16 %v433, %v432
      %v453 = vpack.c.b16 %v435, %v434
      %v454 = vpack.c.b16 %v437, %v436
      %v455 = vpack.c.b16 %v439, %v438
      %v488 = vunpack.c.l.b16 %v360
      %v489 = vunpack.c.l.b16 %v361
      %v490 = vunpack.c.l.b16 %v362
      %v491 = vunpack.c.l.b16 %v363
      %v492 = vunpack.c.l.b16 %v364
      %v493 = vunpack.c.l.b16 %v365
      %v494 = vunpack.c.l.b16 %v366
      %v495 = vunpack.c.l.b16 %v367
      %v496 = vunpack.c.l.b16 %v368
      %v497 = vunpack.c.l.b16 %v369
      %v498 = vunpack.c.l.b16 %v370
      %v499 = vunpack.c.l.b16 %v371
      %v500 = vunpack.c.l.b16 %v372
      %v501 = vunpack.c.l.b16 %v373
      %v502 = vunpack.c.l.b16 %v374
      %v503 = vunpack.c.l.b16 %v375
      %v504 = vpack.c.b16 %v489, %v488
      %v505 = vpack.c.b16 %v491, %v490
      %v506 = vpack.c.b16 %v493, %v492
      %v507 = vpack.c.b16 %v495, %v494
      %v508 = vpack.c.b16 %v497, %v496
      %v509 = vpack.c.b16 %v499, %v498
      %v510 = vpack.c.b16 %v501, %v500
      %v511 = vpack.c.b16 %v503, %v502
      %520 = vmatprep.subr.bf16.mxu0 0
      %521 = vmatpush1.bf16.msra.mxu0 %v504
      %522 = vmatprep.subr.bf16.mxu0 0
      %523 = vmatpush1.bf16.msra.mxu0 %v505
      %524 = vmatprep.subr.bf16.mxu0 0
      %525 = vmatpush1.bf16.msra.mxu0 %v506
      %526 = vmatprep.subr.bf16.mxu0 0
      %527 = vmatpush1.bf16.msra.mxu0 %v507
      %528 = vmatprep.subr.bf16.mxu0 0
      %529 = vmatpush1.bf16.msra.mxu0 %v508
      %530 = vmatprep.subr.bf16.mxu0 0
      %531 = vmatpush1.bf16.msra.mxu0 %v509
      %532 = vmatprep.subr.bf16.mxu0 0
      %533 = vmatpush1.bf16.msra.mxu0 %v510
      %534 = vmatprep.subr.bf16.mxu0 0
      %535 = vmatpush1.bf16.msra.mxu0 %v511
      %536 = vmatprep.subr.bf16.mxu0 0
      %537 = vmatpush1.bf16.msra.mxu0 0
      %538 = vmatprep.subr.bf16.mxu0 0
      %539 = vmatpush1.bf16.msra.mxu0 0
      %540 = vmatprep.subr.bf16.mxu0 0
      %541 = vmatpush1.bf16.msra.mxu0 0
      %542 = vmatprep.subr.bf16.mxu0 0
      %543 = vmatpush1.bf16.msra.mxu0 0
      %544 = vmatprep.subr.bf16.mxu0 0
      %545 = vmatpush1.bf16.msra.mxu0 0
      %546 = vmatprep.subr.bf16.mxu0 0
      %547 = vmatpush1.bf16.msra.mxu0 0
      %548 = vmatprep.subr.bf16.mxu0 0
      %549 = vmatpush1.bf16.msra.mxu0 0
      %550 = vmatprep.subr.bf16.mxu0 0
      %551 = vmatpush1.bf16.msra.mxu0 0
      %552 = vmatprep.mubr.bf16.mxu0 0
      %553 = vmatmul.mubr.bf16.gmra.mrb[0].mxu0 %v440
      %v554 = vpop.f32.mrb[0].mxu0
      %v555 = vadd.f32 0.0, %v554
      %v556 = vpop.f32.mrb[0].mxu0
      %v557 = vpop.f32.mrb[0].mxu0
      %v558 = vadd.f32 0.0, %v557
      %v559 = vpop.f32.mrb[0].mxu0
      %560 = vmatprep.mubr.bf16.mxu0 0
      %561 = vmatmul.mubr.bf16.gmra.mrb[0].mxu0 %v441
      %v562 = vpop.f32.mrb[0].mxu0
      %v563 = vadd.f32 0.0, %v562
      %v564 = vpop.f32.mrb[0].mxu0
      %v565 = vpop.f32.mrb[0].mxu0
      %v566 = vadd.f32 0.0, %v565
      %v567 = vpop.f32.mrb[0].mxu0
      %568 = vmatprep.mubr.bf16.mxu0 0
      %569 = vmatmul.mubr.bf16.gmra.mrb[0].mxu0 %v442
      %v570 = vpop.f32.mrb[0].mxu0
      %v571 = vadd.f32 0.0, %v570
      %v572 = vpop.f32.mrb[0].mxu0
      %v573 = vpop.f32.mrb[0].mxu0
      %v574 = vadd.f32 0.0, %v573
      %v575 = vpop.f32.mrb[0].mxu0
      %576 = vmatprep.mubr.bf16.mxu0 0
      %577 = vmatmul.mubr.bf16.gmra.mrb[0].mxu0 %v443
      %v578 = vpop.f32.mrb[0].mxu0
      %v579 = vadd.f32 0.0, %v578
      %v580 = vpop.f32.mrb[0].mxu0
      %v581 = vpop.f32.mrb[0].mxu0
      %v582 = vadd.f32 0.0, %v581
      %v583 = vpop.f32.mrb[0].mxu0
      %584 = vmatprep.mubr.bf16.mxu0 0
      %585 = vmatmul.mubr.bf16.gmra.mrb[0].mxu0 %v444
      %v586 = vpop.f32.mrb[0].mxu0
      %v587 = vadd.f32 0.0, %v586
      %v588 = vpop.f32.mrb[0].mxu0
      %v589 = vpop.f32.mrb[0].mxu0
      %v590 = vadd.f32 0.0, %v589
      %v591 = vpop.f32.mrb[0].mxu0
      %592 = vmatprep.mubr.bf16.mxu0 0
      %593 = vmatmul.mubr.bf16.gmra.mrb[0].mxu0 %v445
      %v594 = vpop.f32.mrb[0].mxu0
      %v595 = vadd.f32 0.0, %v594
      %v596 = vpop.f32.mrb[0].mxu0
      %v597 = vpop.f32.mrb[0].mxu0
      %v598 = vadd.f32 0.0, %v597
      %v599 = vpop.f32.mrb[0].mxu0
      %600 = vmatprep.mubr.bf16.mxu0 0
      %601 = vmatmul.mubr.bf16.gmra.mrb[0].mxu0 %v446
      %v602 = vpop.f32.mrb[0].mxu0
      %v603 = vadd.f32 0.0, %v602
      %v604 = vpop.f32.mrb[0].mxu0
      %v605 = vpop.f32.mrb[0].mxu0
      %v606 = vadd.f32 0.0, %v605
      %v607 = vpop.f32.mrb[0].mxu0
      %608 = vmatprep.mubr.bf16.mxu0 0
      %609 = vmatmul.mubr.bf16.gmra.mrb[0].mxu0 %v447
      %v610 = vpop.f32.mrb[0].mxu0
      %v611 = vadd.f32 0.0, %v610
      %v612 = vpop.f32.mrb[0].mxu0
      %v613 = vpop.f32.mrb[0].mxu0
      %v614 = vadd.f32 0.0, %v613
      %v615 = vpop.f32.mrb[0].mxu0
      %616 = vmatprep.mubr.bf16.mxu0 0
      %617 = vmatmul.mubr.bf16.gmra.mrb[0].mxu0 %v448
      %v618 = vpop.f32.mrb[0].mxu0
      %v619 = vadd.f32 0.0, %v618
      %v620 = vpop.f32.mrb[0].mxu0
      %v621 = vpop.f32.mrb[0].mxu0
      %v622 = vadd.f32 0.0, %v621
      %v623 = vpop.f32.mrb[0].mxu0
      %624 = vmatprep.mubr.bf16.mxu0 0
      %625 = vmatmul.mubr.bf16.gmra.mrb[0].mxu0 %v449
      %v626 = vpop.f32.mrb[0].mxu0
      %v627 = vadd.f32 0.0, %v626
      %v628 = vpop.f32.mrb[0].mxu0
      %v629 = vpop.f32.mrb[0].mxu0
      %v630 = vadd.f32 0.0, %v629
      %v631 = vpop.f32.mrb[0].mxu0
      %632 = vmatprep.mubr.bf16.mxu0 0
      %633 = vmatmul.mubr.bf16.gmra.mrb[0].mxu0 %v450
      %v634 = vpop.f32.mrb[0].mxu0
      %v635 = vadd.f32 0.0, %v634
      %v636 = vpop.f32.mrb[0].mxu0
      %v637 = vpop.f32.mrb[0].mxu0
      %v638 = vadd.f32 0.0, %v637
      %v639 = vpop.f32.mrb[0].mxu0
      %640 = vmatprep.mubr.bf16.mxu0 0
      %641 = vmatmul.mubr.bf16.gmra.mrb[0].mxu0 %v451
      %v642 = vpop.f32.mrb[0].mxu0
      %v643 = vadd.f32 0.0, %v642
      %v644 = vpop.f32.mrb[0].mxu0
      %v645 = vpop.f32.mrb[0].mxu0
      %v646 = vadd.f32 0.0, %v645
      %v647 = vpop.f32.mrb[0].mxu0
      %648 = vmatprep.mubr.bf16.mxu0 0
      %649 = vmatmul.mubr.bf16.gmra.mrb[0].mxu0 %v452
      %v650 = vpop.f32.mrb[0].mxu0
      %v651 = vadd.f32 0.0, %v650
      %v652 = vpop.f32.mrb[0].mxu0
      %v653 = vpop.f32.mrb[0].mxu0
      %v654 = vadd.f32 0.0, %v653
      %v655 = vpop.f32.mrb[0].mxu0
      %656 = vmatprep.mubr.bf16.mxu0 0
      %657 = vmatmul.mubr.bf16.gmra.mrb[0].mxu0 %v453
      %v658 = vpop.f32.mrb[0].mxu0
      %v659 = vadd.f32 0.0, %v658
      %v660 = vpop.f32.mrb[0].mxu0
      %v661 = vpop.f32.mrb[0].mxu0
      %v662 = vadd.f32 0.0, %v661
      %v663 = vpop.f32.mrb[0].mxu0
      %664 = vmatprep.mubr.bf16.mxu0 0
      %665 = vmatmul.mubr.bf16.gmra.mrb[0].mxu0 %v454
      %v666 = vpop.f32.mrb[0].mxu0
      %v667 = vadd.f32 0.0, %v666
      %v668 = vpop.f32.mrb[0].mxu0
      %v669 = vpop.f32.mrb[0].mxu0
      %v670 = vadd.f32 0.0, %v669
      %v671 = vpop.f32.mrb[0].mxu0
      %672 = vmatprep.mubr.bf16.mxu0 0
      %673 = vmatmul.mubr.bf16.gmra.mrb[0].mxu0 %v455
      %v674 = vpop.f32.mrb[0].mxu0
      %v675 = vadd.f32 0.0, %v674
      %v676 = vpop.f32.mrb[0].mxu0
      %v677 = vpop.f32.mrb[0].mxu0
      %v678 = vadd.f32 0.0, %v677
      %v679 = vpop.f32.mrb[0].mxu0
      %680 = vdwg.mxu0
      %v681 = vadd.f32 %v296, %v555
      %v682 = vadd.f32 %v297, %v558
      %v683 = vadd.f32 %v298, %v563
      %v684 = vadd.f32 %v299, %v566
      %v685 = vadd.f32 %v300, %v571
      %v686 = vadd.f32 %v301, %v574
      %v687 = vadd.f32 %v302, %v579
      %v688 = vadd.f32 %v303, %v582
      %v689 = vadd.f32 %v304, %v587
      %v690 = vadd.f32 %v305, %v590
      %v691 = vadd.f32 %v306, %v595
      %v692 = vadd.f32 %v307, %v598
      %v693 = vadd.f32 %v308, %v603
      %v694 = vadd.f32 %v309, %v606
      %v695 = vadd.f32 %v310, %v611
      %v696 = vadd.f32 %v311, %v614
      %v697 = vadd.f32 %v312, %v619
      %v698 = vadd.f32 %v313, %v622
      %v699 = vadd.f32 %v314, %v627
      %v700 = vadd.f32 %v315, %v630
      %v701 = vadd.f32 %v316, %v635
      %v702 = vadd.f32 %v317, %v638
      %v703 = vadd.f32 %v318, %v643
      %v704 = vadd.f32 %v319, %v646
      %v705 = vadd.f32 %v320, %v651
      %v706 = vadd.f32 %v321, %v654
      %v707 = vadd.f32 %v322, %v659
      %v708 = vadd.f32 %v323, %v662
      %v709 = vadd.f32 %v324, %v667
      %v710 = vadd.f32 %v325, %v670
      %v711 = vadd.f32 %v326, %v675
      %v712 = vadd.f32 %v327, %v678
      %713 = vst [vmem:[#allocation2] sm:$0xff] %v681
      %714 = vst [vmem:[#allocation2 + $0x8] sm:$0xff] %v682
      %715 = vst [vmem:[#allocation2 + $0x10] sm:$0xff] %v683
      %716 = vst [vmem:[#allocation2 + $0x18] sm:$0xff] %v684
      %717 = vst [vmem:[#allocation2 + $0x20] sm:$0xff] %v685
      %718 = vst [vmem:[#allocation2 + $0x28] sm:$0xff] %v686
      %719 = vst [vmem:[#allocation2 + $0x30] sm:$0xff] %v687
      %720 = vst [vmem:[#allocation2 + $0x38] sm:$0xff] %v688
      %721 = vst [vmem:[#allocation2 + $0x40] sm:$0xff] %v689
      %722 = vst [vmem:[#allocation2 + $0x48] sm:$0xff] %v690
      %723 = vst [vmem:[#allocation2 + $0x50] sm:$0xff] %v691
      %724 = vst [vmem:[#allocation2 + $0x58] sm:$0xff] %v692
      %725 = vst [vmem:[#allocation2 + $0x60] sm:$0xff] %v693
      %726 = vst [vmem:[#allocation2 + $0x68] sm:$0xff] %v694
      %727 = vst [vmem:[#allocation2 + $0x70] sm:$0xff] %v695
      %728 = vst [vmem:[#allocation2 + $0x78] sm:$0xff] %v696
      %729 = vst [vmem:[#allocation2 + $0x80] sm:$0xff] %v697
      %730 = vst [vmem:[#allocation2 + $0x88] sm:$0xff] %v698
      %731 = vst [vmem:[#allocation2 + $0x90] sm:$0xff] %v699
      %732 = vst [vmem:[#allocation2 + $0x98] sm:$0xff] %v700
      %733 = vst [vmem:[#allocation2 + $0xa0] sm:$0xff] %v701
      %734 = vst [vmem:[#allocation2 + $0xa8] sm:$0xff] %v702
      %735 = vst [vmem:[#allocation2 + $0xb0] sm:$0xff] %v703
      %736 = vst [vmem:[#allocation2 + $0xb8] sm:$0xff] %v704
      %737 = vst [vmem:[#allocation2 + $0xc0] sm:$0xff] %v705
      %738 = vst [vmem:[#allocation2 + $0xc8] sm:$0xff] %v706
      %739 = vst [vmem:[#allocation2 + $0xd0] sm:$0xff] %v707
      %740 = vst [vmem:[#allocation2 + $0xd8] sm:$0xff] %v708
      %741 = vst [vmem:[#allocation2 + $0xe0] sm:$0xff] %v709
      %742 = vst [vmem:[#allocation2 + $0xe8] sm:$0xff] %v710
      %743 = vst [vmem:[#allocation2 + $0xf0] sm:$0xff] %v711
      %744 = vst [vmem:[#allocation2 + $0xf8] sm:$0xff] %v712
      // Predicated region
      $region37: #{_lambda_.19} parent=31 // pred_check
        %p745 = pneg %p260
      $region38: #{_lambda_.19} parent=31 // pred_check_branch
        %747 = sbr.rel (%p745) target = $region40
      $region39: #{_lambda_.19} parent=31 // pred_region
        %v748 = vld [vmem:[#allocation2] sm:$0xff]
        %v749 = vld [vmem:[#allocation2 + $0x8] sm:$0xff]
        %v750 = vld [vmem:[#allocation2 + $0x10] sm:$0xff]
        %v751 = vld [vmem:[#allocation2 + $0x18] sm:$0xff]
        %v752 = vld [vmem:[#allocation2 + $0x20] sm:$0xff]
        %v753 = vld [vmem:[#allocation2 + $0x28] sm:$0xff]
        %v754 = vld [vmem:[#allocation2 + $0x30] sm:$0xff]
        %v755 = vld [vmem:[#allocation2 + $0x38] sm:$0xff]
        %v756 = vld [vmem:[#allocation2 + $0x40] sm:$0xff]
        %v757 = vld [vmem:[#allocation2 + $0x48] sm:$0xff]
        %v758 = vld [vmem:[#allocation2 + $0x50] sm:$0xff]
        %v759 = vld [vmem:[#allocation2 + $0x58] sm:$0xff]
        %v760 = vld [vmem:[#allocation2 + $0x60] sm:$0xff]
        %v761 = vld [vmem:[#allocation2 + $0x68] sm:$0xff]
        %v762 = vld [vmem:[#allocation2 + $0x70] sm:$0xff]
        %v763 = vld [vmem:[#allocation2 + $0x78] sm:$0xff]
        %v764 = vld [vmem:[#allocation2 + $0x80] sm:$0xff]
        %v765 = vld [vmem:[#allocation2 + $0x88] sm:$0xff]
        %v766 = vld [vmem:[#allocation2 + $0x90] sm:$0xff]
        %v767 = vld [vmem:[#allocation2 + $0x98] sm:$0xff]
        %v768 = vld [vmem:[#allocation2 + $0xa0] sm:$0xff]
        %v769 = vld [vmem:[#allocation2 + $0xa8] sm:$0xff]
        %v770 = vld [vmem:[#allocation2 + $0xb0] sm:$0xff]
        %v771 = vld [vmem:[#allocation2 + $0xb8] sm:$0xff]
        %v772 = vld [vmem:[#allocation2 + $0xc0] sm:$0xff]
        %v773 = vld [vmem:[#allocation2 + $0xc8] sm:$0xff]
        %v774 = vld [vmem:[#allocation2 + $0xd0] sm:$0xff]
        %v775 = vld [vmem:[#allocation2 + $0xd8] sm:$0xff]
        %v776 = vld [vmem:[#allocation2 + $0xe0] sm:$0xff]
        %v777 = vld [vmem:[#allocation2 + $0xe8] sm:$0xff]
        %v778 = vld [vmem:[#allocation2 + $0xf0] sm:$0xff]
        %v779 = vld [vmem:[#allocation2 + $0xf8] sm:$0xff]
        %v780 = vld [vmem:[%s249] sm:$0x1]
        %v782 = vlaneseq
        %v783 = vshrl.u32 %v782, 7
        %v784 = vsub.s32 0, %v783
        %v785 = vrot.slane %v780, %v784
        %v787 = vadd.f32 %v748, %v785
        %v788 = vadd.f32 %v749, %v785
        %v789 = vadd.f32 %v750, %v785
        %v790 = vadd.f32 %v751, %v785
        %v791 = vadd.f32 %v752, %v785
        %v792 = vadd.f32 %v753, %v785
        %v793 = vadd.f32 %v754, %v785
        %v794 = vadd.f32 %v755, %v785
        %v795 = vadd.f32 %v756, %v785
        %v796 = vadd.f32 %v757, %v785
        %v797 = vadd.f32 %v758, %v785
        %v798 = vadd.f32 %v759, %v785
        %v799 = vadd.f32 %v760, %v785
        %v800 = vadd.f32 %v761, %v785
        %v801 = vadd.f32 %v762, %v785
        %v802 = vadd.f32 %v763, %v785
        %v803 = vadd.f32 %v764, %v785
        %v804 = vadd.f32 %v765, %v785
        %v805 = vadd.f32 %v766, %v785
        %v806 = vadd.f32 %v767, %v785
        %v807 = vadd.f32 %v768, %v785
        %v808 = vadd.f32 %v769, %v785
        %v809 = vadd.f32 %v770, %v785
        %v810 = vadd.f32 %v771, %v785
        %v811 = vadd.f32 %v772, %v785
        %v812 = vadd.f32 %v773, %v785
        %v813 = vadd.f32 %v774, %v785
        %v814 = vadd.f32 %v775, %v785
        %v815 = vadd.f32 %v776, %v785
        %v816 = vadd.f32 %v777, %v785
        %v817 = vadd.f32 %v778, %v785
        %v818 = vadd.f32 %v779, %v785
        %v819 = vmax.f32 %v787, 0.0
        %v820 = vmax.f32 %v788, 0.0
        %v821 = vmax.f32 %v789, 0.0
        %v822 = vmax.f32 %v790, 0.0
        %v823 = vmax.f32 %v791, 0.0
        %v824 = vmax.f32 %v792, 0.0
        %v825 = vmax.f32 %v793, 0.0
        %v826 = vmax.f32 %v794, 0.0
        %v827 = vmax.f32 %v795, 0.0
        %v828 = vmax.f32 %v796, 0.0
        %v829 = vmax.f32 %v797, 0.0
        %v830 = vmax.f32 %v798, 0.0
        %v831 = vmax.f32 %v799, 0.0
        %v832 = vmax.f32 %v800, 0.0
        %v833 = vmax.f32 %v801, 0.0
        %v834 = vmax.f32 %v802, 0.0
        %v835 = vmax.f32 %v803, 0.0
        %v836 = vmax.f32 %v804, 0.0
        %v837 = vmax.f32 %v805, 0.0
        %v838 = vmax.f32 %v806, 0.0
        %v839 = vmax.f32 %v807, 0.0
        %v840 = vmax.f32 %v808, 0.0
        %v841 = vmax.f32 %v809, 0.0
        %v842 = vmax.f32 %v810, 0.0
        %v843 = vmax.f32 %v811, 0.0
        %v844 = vmax.f32 %v812, 0.0
        %v845 = vmax.f32 %v813, 0.0
        %v846 = vmax.f32 %v814, 0.0
        %v847 = vmax.f32 %v815, 0.0
        %v848 = vmax.f32 %v816, 0.0
        %v849 = vmax.f32 %v817, 0.0
        %v850 = vmax.f32 %v818, 0.0
        %851 = vst [vmem:[%s257] sm:$0xff] %v819
        %852 = vst [vmem:[%s257 + $0x8] sm:$0xff] %v820
        %853 = vst [vmem:[%s257 + $0x10] sm:$0xff] %v821
        %854 = vst [vmem:[%s257 + $0x18] sm:$0xff] %v822
        %855 = vst [vmem:[%s257 + $0x20] sm:$0xff] %v823
        %856 = vst [vmem:[%s257 + $0x28] sm:$0xff] %v824
        %857 = vst [vmem:[%s257 + $0x30] sm:$0xff] %v825
        %858 = vst [vmem:[%s257 + $0x38] sm:$0xff] %v826
        %859 = vst [vmem:[%s257 + $0x40] sm:$0xff] %v827
        %860 = vst [vmem:[%s257 + $0x48] sm:$0xff] %v828
        %861 = vst [vmem:[%s257 + $0x50] sm:$0xff] %v829
        %862 = vst [vmem:[%s257 + $0x58] sm:$0xff] %v830
        %863 = vst [vmem:[%s257 + $0x60] sm:$0xff] %v831
        %864 = vst [vmem:[%s257 + $0x68] sm:$0xff] %v832
        %865 = vst [vmem:[%s257 + $0x70] sm:$0xff] %v833
        %866 = vst [vmem:[%s257 + $0x78] sm:$0xff] %v834
        %867 = vst [vmem:[%s257 + $0x80] sm:$0xff] %v835
        %868 = vst [vmem:[%s257 + $0x88] sm:$0xff] %v836
        %869 = vst [vmem:[%s257 + $0x90] sm:$0xff] %v837
        %870 = vst [vmem:[%s257 + $0x98] sm:$0xff] %v838
        %871 = vst [vmem:[%s257 + $0xa0] sm:$0xff] %v839
        %872 = vst [vmem:[%s257 + $0xa8] sm:$0xff] %v840
        %873 = vst [vmem:[%s257 + $0xb0] sm:$0xff] %v841
        %874 = vst [vmem:[%s257 + $0xb8] sm:$0xff] %v842
        %875 = vst [vmem:[%s257 + $0xc0] sm:$0xff] %v843
        %876 = vst [vmem:[%s257 + $0xc8] sm:$0xff] %v844
        %877 = vst [vmem:[%s257 + $0xd0] sm:$0xff] %v845
        %878 = vst [vmem:[%s257 + $0xd8] sm:$0xff] %v846
        %879 = vst [vmem:[%s257 + $0xe0] sm:$0xff] %v847
        %880 = vst [vmem:[%s257 + $0xe8] sm:$0xff] %v848
        %881 = vst [vmem:[%s257 + $0xf0] sm:$0xff] %v849
        %882 = vst [vmem:[%s257 + $0xf8] sm:$0xff] %v850
      $region40: #{_lambda_.19} parent=31 // pred_fallthru
        _
      %s883 = smul.u32 32, %s19
      %p884 = scmp.lt.s32.totalorder %s883, 63
      %s885 = scalar_select %p884, %s883, 63
      %p886 = scmp.lt.s32.totalorder %s20, 0
      %s887 = scalar_select %p886, %s20, 0
      %s888 = sadd.s32 %s887, %s885
      %s889 = smul.addr %s888, 8
      %s890 = scalar_lea.vmem %s3, %s889
      // Predicated region
      $region41: #{_lambda_.19} parent=31 // pred_check
        %p891 = pneg %p135
      $region42: #{_lambda_.19} parent=31 // pred_check_branch
        %893 = sbr.rel (%p891) target = $region44
      $region43: #{_lambda_.19} parent=31 // pred_region
        %s894 = smul.u32 32, %s19
      $region44: #{_lambda_.19} parent=31 // pred_fallthru
        _
    $region32: #{_lambda_.19} parent=5 // pred_fallthru
      _
    %p895 = scmp.le.s32.totalorder 2, %s9
    // Predicated region
    $region45: #{_lambda_.19} parent=5 // pred_check
      %p896 = pneg %p895
    $region46: #{_lambda_.19} parent=5 // pred_check_branch
      %898 = sbr.rel (%p896) target = $region48
    $region47: #{_lambda_.19} parent=5 // pred_region
      %s899 = ssub.s32 %s9, 2
      // Predicated region
      $region49: #{_lambda_.19} parent=47 // pred_check
        %p900 = pneg %p141
      $region50: #{_lambda_.19} parent=47 // pred_check_branch
        %902 = sbr.rel (%p900) target = $region52
      $region51: #{_lambda_.19} parent=47 // pred_region
        %s903 = smul.u32 32, %s22
        %p904 = scmp.lt.s32.totalorder %s903, 63
        %s905 = scalar_select %p904, %s903, 63
        %p906 = scmp.lt.s32.totalorder %s23, 0
        %s907 = scalar_select %p906, %s23, 0
        %s908 = sadd.s32 %s907, %s905
        %s909 = smul.addr %s908, 8
        %s910 = scalar_lea.vmem %s3, %s909
      $region52: #{_lambda_.19} parent=47 // pred_fallthru
        _
    $region48: #{_lambda_.19} parent=5 // pred_fallthru
      _
  $region6: #{_lambda_.19} parent=0 // loop_footer
    %s13 = sadd.s32 1, %s9
  $region7: #{_lambda_.19} parent=0 // loop_footer_branch
    %8 = sbr.rel target = $region3
  $region8: #{_lambda_.19} parent=0 // loop_exit
    _

// kernel: _lambda_.21
$region0: #{_lambda_.21}
  #allocation0 [shape = 'u32[]', space=smem, size = 0x4, offset = 0x4, fixed_abs, tag = 'smem constant byte address 0x4 - core index']
  #allocation1 [shape = 'u32[144,128]{1,0:T(1,128)}', space=vmem, size = 0x12000, scoped, tag = 'internal scratch']
  #allocation2 [shape = 'f32[128,128]{1,0:T(8,128)}', space=vmem, size = 0x10000, scoped, tag = 'scratch operand']
  %s0 = inlined_call_operand.vmem [shape: bf16[128,256], index: 0, kind: input, shape index: {}]
  %s1 = inlined_call_operand.vmem [shape: bf16[256,128], index: 1, kind: input, shape index: {}]
  %s2 = inlined_call_operand.vmem [shape: f32[1,128], index: 2, kind: input, shape index: {}]
  %s3 = inlined_call_operand.vmem [shape: f32[128,128], index: 3, kind: output, shape index: {}]
  %s4 = sld [smem:[#allocation0]]
  $region30: #{_lambda_.21} parent=0
    _
  %s6 = ssub.s32 1, %s4
  %s7 = scalar_select 0, %s6, %s4
  // Predicated region
  $region2: #{_lambda_.21} parent=0 // pred_check
    _
  $region3: #{_lambda_.21} parent=0 // pred_check_branch
    %9 = sbr.rel (0) target = $region5
  $region4: #{_lambda_.21} parent=0 // pred_region
    _
  $region5: #{_lambda_.21} parent=0 // pred_fallthru
    _
  // Predicated region
  $region6: #{_lambda_.21} parent=0 // pred_check
    _
  $region7: #{_lambda_.21} parent=0 // pred_check_branch
    %11 = sbr.rel (0) target = $region9
  $region8: #{_lambda_.21} parent=0 // pred_region
    _
  $region9: #{_lambda_.21} parent=0 // pred_fallthru
    _
  // Predicated region
  $region10: #{_lambda_.21} parent=0 // pred_check
    _
  $region11: #{_lambda_.21} parent=0 // pred_check_branch
    %13 = sbr.rel (0) target = $region13
  $region12: #{_lambda_.21} parent=0 // pred_region
    _
  $region13: #{_lambda_.21} parent=0 // pred_fallthru
    _
  %p15 = scmp.eq.s32.totalorder 0, 0
  // Predicated region
  $region14: #{_lambda_.21} parent=0 // pred_check
    %p16 = pneg %p15
  $region15: #{_lambda_.21} parent=0 // pred_check_branch
    %18 = sbr.rel (%p16) target = $region17
  $region16: #{_lambda_.21} parent=0 // pred_region
    %19 = vst [vmem:[#allocation2] sm:$0xff] 0.0
    %20 = vst [vmem:[#allocation2 + $0x8] sm:$0xff] 0.0
    %21 = vst [vmem:[#allocation2 + $0x10] sm:$0xff] 0.0
    %22 = vst [vmem:[#allocation2 + $0x18] sm:$0xff] 0.0
    %23 = vst [vmem:[#allocation2 + $0x20] sm:$0xff] 0.0
    %24 = vst [vmem:[#allocation2 + $0x28] sm:$0xff] 0.0
    %25 = vst [vmem:[#allocation2 + $0x30] sm:$0xff] 0.0
    %26 = vst [vmem:[#allocation2 + $0x38] sm:$0xff] 0.0
    %27 = vst [vmem:[#allocation2 + $0x40] sm:$0xff] 0.0
    %28 = vst [vmem:[#allocation2 + $0x48] sm:$0xff] 0.0
    %29 = vst [vmem:[#allocation2 + $0x50] sm:$0xff] 0.0
    %30 = vst [vmem:[#allocation2 + $0x58] sm:$0xff] 0.0
    %31 = vst [vmem:[#allocation2 + $0x60] sm:$0xff] 0.0
    %32 = vst [vmem:[#allocation2 + $0x68] sm:$0xff] 0.0
    %33 = vst [vmem:[#allocation2 + $0x70] sm:$0xff] 0.0
    %34 = vst [vmem:[#allocation2 + $0x78] sm:$0xff] 0.0
  $region17: #{_lambda_.21} parent=0 // pred_fallthru
    _
  %v35 = vld [vmem:[#allocation2] sm:$0xff]
  %v36 = vld [vmem:[#allocation2 + $0x8] sm:$0xff]
  %v37 = vld [vmem:[#allocation2 + $0x10] sm:$0xff]
  %v38 = vld [vmem:[#allocation2 + $0x18] sm:$0xff]
  %v39 = vld [vmem:[#allocation2 + $0x20] sm:$0xff]
  %v40 = vld [vmem:[#allocation2 + $0x28] sm:$0xff]
  %v41 = vld [vmem:[#allocation2 + $0x30] sm:$0xff]
  %v42 = vld [vmem:[#allocation2 + $0x38] sm:$0xff]
  %v43 = vld [vmem:[#allocation2 + $0x40] sm:$0xff]
  %v44 = vld [vmem:[#allocation2 + $0x48] sm:$0xff]
  %v45 = vld [vmem:[#allocation2 + $0x50] sm:$0xff]
  %v46 = vld [vmem:[#allocation2 + $0x58] sm:$0xff]
  %v47 = vld [vmem:[#allocation2 + $0x60] sm:$0xff]
  %v48 = vld [vmem:[#allocation2 + $0x68] sm:$0xff]
  %v49 = vld [vmem:[#allocation2 + $0x70] sm:$0xff]
  %v50 = vld [vmem:[#allocation2 + $0x78] sm:$0xff]
  %v51 = vld [vmem:[%s0] sm:$0xff]
  %v52 = vld [vmem:[%s0 + $0x8] sm:$0xff]
  %v53 = vld [vmem:[%s0 + $0x10] sm:$0xff]
  %v54 = vld [vmem:[%s0 + $0x18] sm:$0xff]
  %v55 = vld [vmem:[%s0 + $0x20] sm:$0xff]
  %v56 = vld [vmem:[%s0 + $0x28] sm:$0xff]
  %v57 = vld [vmem:[%s0 + $0x30] sm:$0xff]
  %v58 = vld [vmem:[%s0 + $0x38] sm:$0xff]
  %v59 = vld [vmem:[%s0 + $0x40] sm:$0xff]
  %v60 = vld [vmem:[%s0 + $0x48] sm:$0xff]
  %v61 = vld [vmem:[%s0 + $0x50] sm:$0xff]
  %v62 = vld [vmem:[%s0 + $0x58] sm:$0xff]
  %v63 = vld [vmem:[%s0 + $0x60] sm:$0xff]
  %v64 = vld [vmem:[%s0 + $0x68] sm:$0xff]
  %v65 = vld [vmem:[%s0 + $0x70] sm:$0xff]
  %v66 = vld [vmem:[%s0 + $0x78] sm:$0xff]
  %v67 = vld [vmem:[%s1] sm:$0xf]
  %v68 = vld [vmem:[%s1 + $0x4] sm:$0xf]
  %v69 = vld [vmem:[%s1 + $0x8] sm:$0xf]
  %v70 = vld [vmem:[%s1 + $0xc] sm:$0xf]
  %v71 = vld [vmem:[%s1 + $0x10] sm:$0xf]
  %v72 = vld [vmem:[%s1 + $0x14] sm:$0xf]
  %v73 = vld [vmem:[%s1 + $0x18] sm:$0xf]
  %v74 = vld [vmem:[%s1 + $0x1c] sm:$0xf]
  %v75 = vld [vmem:[%s1 + $0x20] sm:$0xf]
  %v76 = vld [vmem:[%s1 + $0x24] sm:$0xf]
  %v77 = vld [vmem:[%s1 + $0x28] sm:$0xf]
  %v78 = vld [vmem:[%s1 + $0x2c] sm:$0xf]
  %v79 = vld [vmem:[%s1 + $0x30] sm:$0xf]
  %v80 = vld [vmem:[%s1 + $0x34] sm:$0xf]
  %v81 = vld [vmem:[%s1 + $0x38] sm:$0xf]
  %v82 = vld [vmem:[%s1 + $0x3c] sm:$0xf]
  %v83 = vld [vmem:[%s1 + $0x40] sm:$0xf]
  %v84 = vld [vmem:[%s1 + $0x44] sm:$0xf]
  %v85 = vld [vmem:[%s1 + $0x48] sm:$0xf]
  %v86 = vld [vmem:[%s1 + $0x4c] sm:$0xf]
  %v87 = vld [vmem:[%s1 + $0x50] sm:$0xf]
  %v88 = vld [vmem:[%s1 + $0x54] sm:$0xf]
  %v89 = vld [vmem:[%s1 + $0x58] sm:$0xf]
  %v90 = vld [vmem:[%s1 + $0x5c] sm:$0xf]
  %v91 = vld [vmem:[%s1 + $0x60] sm:$0xf]
  %v92 = vld [vmem:[%s1 + $0x64] sm:$0xf]
  %v93 = vld [vmem:[%s1 + $0x68] sm:$0xf]
  %v94 = vld [vmem:[%s1 + $0x6c] sm:$0xf]
  %v95 = vld [vmem:[%s1 + $0x70] sm:$0xf]
  %v96 = vld [vmem:[%s1 + $0x74] sm:$0xf]
  %v97 = vld [vmem:[%s1 + $0x78] sm:$0xf]
  %v98 = vld [vmem:[%s1 + $0x7c] sm:$0xf]
  %v115 = vunpack.c.l.b16 %v51
  %v116 = vunpack.c.h.b16 %v51
  %v117 = vunpack.c.l.b16 %v52
  %v118 = vunpack.c.h.b16 %v52
  %v119 = vunpack.c.l.b16 %v53
  %v120 = vunpack.c.h.b16 %v53
  %v121 = vunpack.c.l.b16 %v54
  %v122 = vunpack.c.h.b16 %v54
  %v123 = vunpack.c.l.b16 %v55
  %v124 = vunpack.c.h.b16 %v55
  %v125 = vunpack.c.l.b16 %v56
  %v126 = vunpack.c.h.b16 %v56
  %v127 = vunpack.c.l.b16 %v57
  %v128 = vunpack.c.h.b16 %v57
  %v129 = vunpack.c.l.b16 %v58
  %v130 = vunpack.c.h.b16 %v58
  %v131 = vunpack.c.l.b16 %v59
  %v132 = vunpack.c.h.b16 %v59
  %v133 = vunpack.c.l.b16 %v60
  %v134 = vunpack.c.h.b16 %v60
  %v135 = vunpack.c.l.b16 %v61
  %v136 = vunpack.c.h.b16 %v61
  %v137 = vunpack.c.l.b16 %v62
  %v138 = vunpack.c.h.b16 %v62
  %v139 = vunpack.c.l.b16 %v63
  %v140 = vunpack.c.h.b16 %v63
  %v141 = vunpack.c.l.b16 %v64
  %v142 = vunpack.c.h.b16 %v64
  %v143 = vunpack.c.l.b16 %v65
  %v144 = vunpack.c.h.b16 %v65
  %v145 = vunpack.c.l.b16 %v66
  %v146 = vunpack.c.h.b16 %v66
  %v147 = vpack.c.b16 %v117, %v115
  %v148 = vpack.c.b16 %v118, %v116
  %v149 = vpack.c.b16 %v121, %v119
  %v150 = vpack.c.b16 %v122, %v120
  %v151 = vpack.c.b16 %v125, %v123
  %v152 = vpack.c.b16 %v126, %v124
  %v153 = vpack.c.b16 %v129, %v127
  %v154 = vpack.c.b16 %v130, %v128
  %v155 = vpack.c.b16 %v133, %v131
  %v156 = vpack.c.b16 %v134, %v132
  %v157 = vpack.c.b16 %v137, %v135
  %v158 = vpack.c.b16 %v138, %v136
  %v159 = vpack.c.b16 %v141, %v139
  %v160 = vpack.c.b16 %v142, %v140
  %v161 = vpack.c.b16 %v145, %v143
  %v162 = vpack.c.b16 %v146, %v144
  %v211 = vunpack.c.l.b16 %v67
  %v212 = vunpack.c.l.b16 %v68
  %v213 = vunpack.c.l.b16 %v69
  %v214 = vunpack.c.l.b16 %v70
  %v215 = vunpack.c.l.b16 %v71
  %v216 = vunpack.c.l.b16 %v72
  %v217 = vunpack.c.l.b16 %v73
  %v218 = vunpack.c.l.b16 %v74
  %v219 = vunpack.c.l.b16 %v75
  %v220 = vunpack.c.l.b16 %v76
  %v221 = vunpack.c.l.b16 %v77
  %v222 = vunpack.c.l.b16 %v78
  %v223 = vunpack.c.l.b16 %v79
  %v224 = vunpack.c.l.b16 %v80
  %v225 = vunpack.c.l.b16 %v81
  %v226 = vunpack.c.l.b16 %v82
  %v227 = vunpack.c.l.b16 %v83
  %v228 = vunpack.c.l.b16 %v84
  %v229 = vunpack.c.l.b16 %v85
  %v230 = vunpack.c.l.b16 %v86
  %v231 = vunpack.c.l.b16 %v87
  %v232 = vunpack.c.l.b16 %v88
  %v233 = vunpack.c.l.b16 %v89
  %v234 = vunpack.c.l.b16 %v90
  %v235 = vunpack.c.l.b16 %v91
  %v236 = vunpack.c.l.b16 %v92
  %v237 = vunpack.c.l.b16 %v93
  %v238 = vunpack.c.l.b16 %v94
  %v239 = vunpack.c.l.b16 %v95
  %v240 = vunpack.c.l.b16 %v96
  %v241 = vunpack.c.l.b16 %v97
  %v242 = vunpack.c.l.b16 %v98
  %v243 = vpack.c.b16 %v212, %v211
  %v244 = vpack.c.b16 %v214, %v213
  %v245 = vpack.c.b16 %v216, %v215
  %v246 = vpack.c.b16 %v218, %v217
  %v247 = vpack.c.b16 %v220, %v219
  %v248 = vpack.c.b16 %v222, %v221
  %v249 = vpack.c.b16 %v224, %v223
  %v250 = vpack.c.b16 %v226, %v225
  %v251 = vpack.c.b16 %v228, %v227
  %v252 = vpack.c.b16 %v230, %v229
  %v253 = vpack.c.b16 %v232, %v231
  %v254 = vpack.c.b16 %v234, %v233
  %v255 = vpack.c.b16 %v236, %v235
  %v256 = vpack.c.b16 %v238, %v237
  %v257 = vpack.c.b16 %v240, %v239
  %v258 = vpack.c.b16 %v242, %v241
  %275 = vmatprep.subr.bf16.mxu0 0
  %276 = vmatpush1.bf16.msra.mxu0 %v243
  %277 = vmatprep.subr.bf16.mxu0 0
  %278 = vmatpush1.bf16.msra.mxu0 %v244
  %279 = vmatprep.subr.bf16.mxu0 0
  %280 = vmatpush1.bf16.msra.mxu0 %v245
  %281 = vmatprep.subr.bf16.mxu0 0
  %282 = vmatpush1.bf16.msra.mxu0 %v246
  %283 = vmatprep.subr.bf16.mxu0 0
  %284 = vmatpush1.bf16.msra.mxu0 %v247
  %285 = vmatprep.subr.bf16.mxu0 0
  %286 = vmatpush1.bf16.msra.mxu0 %v248
  %287 = vmatprep.subr.bf16.mxu0 0
  %288 = vmatpush1.bf16.msra.mxu0 %v249
  %289 = vmatprep.subr.bf16.mxu0 0
  %290 = vmatpush1.bf16.msra.mxu0 %v250
  %291 = vmatprep.subr.bf16.mxu0 0
  %292 = vmatpush1.bf16.msra.mxu0 %v251
  %293 = vmatprep.subr.bf16.mxu0 0
  %294 = vmatpush1.bf16.msra.mxu0 %v252
  %295 = vmatprep.subr.bf16.mxu0 0
  %296 = vmatpush1.bf16.msra.mxu0 %v253
  %297 = vmatprep.subr.bf16.mxu0 0
  %298 = vmatpush1.bf16.msra.mxu0 %v254
  %299 = vmatprep.subr.bf16.mxu0 0
  %300 = vmatpush1.bf16.msra.mxu0 %v255
  %301 = vmatprep.subr.bf16.mxu0 0
  %302 = vmatpush1.bf16.msra.mxu0 %v256
  %303 = vmatprep.subr.bf16.mxu0 0
  %304 = vmatpush1.bf16.msra.mxu0 %v257
  %305 = vmatprep.subr.bf16.mxu0 0
  %306 = vmatpush1.bf16.msra.mxu0 %v258
  %307 = vmatprep.mubr.bf16.mxu0 %v148
  %308 = vmatmul.mubr.bf16.gmra.mrb[0].mxu0 %v147
  %v309 = vpop.f32.mrb[0].mxu0
  %v310 = vadd.f32 0.0, %v309
  %v311 = vpop.f32.mrb[0].mxu0
  %v312 = vpop.f32.mrb[0].mxu0
  %v313 = vadd.f32 0.0, %v312
  %v314 = vpop.f32.mrb[0].mxu0
  %315 = vmatprep.mubr.bf16.mxu0 %v150
  %316 = vmatmul.mubr.bf16.gmra.mrb[0].mxu0 %v149
  %v317 = vpop.f32.mrb[0].mxu0
  %v318 = vadd.f32 0.0, %v317
  %v319 = vpop.f32.mrb[0].mxu0
  %v320 = vpop.f32.mrb[0].mxu0
  %v321 = vadd.f32 0.0, %v320
  %v322 = vpop.f32.mrb[0].mxu0
  %323 = vmatprep.mubr.bf16.mxu0 %v152
  %324 = vmatmul.mubr.bf16.gmra.mrb[0].mxu0 %v151
  %v325 = vpop.f32.mrb[0].mxu0
  %v326 = vadd.f32 0.0, %v325
  %v327 = vpop.f32.mrb[0].mxu0
  %v328 = vpop.f32.mrb[0].mxu0
  %v329 = vadd.f32 0.0, %v328
  %v330 = vpop.f32.mrb[0].mxu0
  %331 = vmatprep.mubr.bf16.mxu0 %v154
  %332 = vmatmul.mubr.bf16.gmra.mrb[0].mxu0 %v153
  %v333 = vpop.f32.mrb[0].mxu0
  %v334 = vadd.f32 0.0, %v333
  %v335 = vpop.f32.mrb[0].mxu0
  %v336 = vpop.f32.mrb[0].mxu0
  %v337 = vadd.f32 0.0, %v336
  %v338 = vpop.f32.mrb[0].mxu0
  %339 = vmatprep.mubr.bf16.mxu0 %v156
  %340 = vmatmul.mubr.bf16.gmra.mrb[0].mxu0 %v155
  %v341 = vpop.f32.mrb[0].mxu0
  %v342 = vadd.f32 0.0, %v341
  %v343 = vpop.f32.mrb[0].mxu0
  %v344 = vpop.f32.mrb[0].mxu0
  %v345 = vadd.f32 0.0, %v344
  %v346 = vpop.f32.mrb[0].mxu0
  %347 = vmatprep.mubr.bf16.mxu0 %v158
  %348 = vmatmul.mubr.bf16.gmra.mrb[0].mxu0 %v157
  %v349 = vpop.f32.mrb[0].mxu0
  %v350 = vadd.f32 0.0, %v349
  %v351 = vpop.f32.mrb[0].mxu0
  %v352 = vpop.f32.mrb[0].mxu0
  %v353 = vadd.f32 0.0, %v352
  %v354 = vpop.f32.mrb[0].mxu0
  %355 = vmatprep.mubr.bf16.mxu0 %v160
  %356 = vmatmul.mubr.bf16.gmra.mrb[0].mxu0 %v159
  %v357 = vpop.f32.mrb[0].mxu0
  %v358 = vadd.f32 0.0, %v357
  %v359 = vpop.f32.mrb[0].mxu0
  %v360 = vpop.f32.mrb[0].mxu0
  %v361 = vadd.f32 0.0, %v360
  %v362 = vpop.f32.mrb[0].mxu0
  %363 = vmatprep.mubr.bf16.mxu0 %v162
  %364 = vmatmul.mubr.bf16.gmra.mrb[0].mxu0 %v161
  %v365 = vpop.f32.mrb[0].mxu0
  %v366 = vadd.f32 0.0, %v365
  %v367 = vpop.f32.mrb[0].mxu0
  %v368 = vpop.f32.mrb[0].mxu0
  %v369 = vadd.f32 0.0, %v368
  %v370 = vpop.f32.mrb[0].mxu0
  %371 = vdwg.mxu0
  %v372 = vadd.f32 %v35, %v310
  %v373 = vadd.f32 %v36, %v313
  %v374 = vadd.f32 %v37, %v318
  %v375 = vadd.f32 %v38, %v321
  %v376 = vadd.f32 %v39, %v326
  %v377 = vadd.f32 %v40, %v329
  %v378 = vadd.f32 %v41, %v334
  %v379 = vadd.f32 %v42, %v337
  %v380 = vadd.f32 %v43, %v342
  %v381 = vadd.f32 %v44, %v345
  %v382 = vadd.f32 %v45, %v350
  %v383 = vadd.f32 %v46, %v353
  %v384 = vadd.f32 %v47, %v358
  %v385 = vadd.f32 %v48, %v361
  %v386 = vadd.f32 %v49, %v366
  %v387 = vadd.f32 %v50, %v369
  %388 = vst [vmem:[#allocation2] sm:$0xff] %v372
  %389 = vst [vmem:[#allocation2 + $0x8] sm:$0xff] %v373
  %390 = vst [vmem:[#allocation2 + $0x10] sm:$0xff] %v374
  %391 = vst [vmem:[#allocation2 + $0x18] sm:$0xff] %v375
  %392 = vst [vmem:[#allocation2 + $0x20] sm:$0xff] %v376
  %393 = vst [vmem:[#allocation2 + $0x28] sm:$0xff] %v377
  %394 = vst [vmem:[#allocation2 + $0x30] sm:$0xff] %v378
  %395 = vst [vmem:[#allocation2 + $0x38] sm:$0xff] %v379
  %396 = vst [vmem:[#allocation2 + $0x40] sm:$0xff] %v380
  %397 = vst [vmem:[#allocation2 + $0x48] sm:$0xff] %v381
  %398 = vst [vmem:[#allocation2 + $0x50] sm:$0xff] %v382
  %399 = vst [vmem:[#allocation2 + $0x58] sm:$0xff] %v383
  %400 = vst [vmem:[#allocation2 + $0x60] sm:$0xff] %v384
  %401 = vst [vmem:[#allocation2 + $0x68] sm:$0xff] %v385
  %402 = vst [vmem:[#allocation2 + $0x70] sm:$0xff] %v386
  %403 = vst [vmem:[#allocation2 + $0x78] sm:$0xff] %v387
  // Predicated region
  $region18: #{_lambda_.21} parent=0 // pred_check
    %p404 = pneg %p15
  $region19: #{_lambda_.21} parent=0 // pred_check_branch
    %406 = sbr.rel (%p404) target = $region21
  $region20: #{_lambda_.21} parent=0 // pred_region
    %v407 = vld [vmem:[#allocation2] sm:$0xff]
    %v408 = vld [vmem:[#allocation2 + $0x8] sm:$0xff]
    %v409 = vld [vmem:[#allocation2 + $0x10] sm:$0xff]
    %v410 = vld [vmem:[#allocation2 + $0x18] sm:$0xff]
    %v411 = vld [vmem:[#allocation2 + $0x20] sm:$0xff]
    %v412 = vld [vmem:[#allocation2 + $0x28] sm:$0xff]
    %v413 = vld [vmem:[#allocation2 + $0x30] sm:$0xff]
    %v414 = vld [vmem:[#allocation2 + $0x38] sm:$0xff]
    %v415 = vld [vmem:[#allocation2 + $0x40] sm:$0xff]
    %v416 = vld [vmem:[#allocation2 + $0x48] sm:$0xff]
    %v417 = vld [vmem:[#allocation2 + $0x50] sm:$0xff]
    %v418 = vld [vmem:[#allocation2 + $0x58] sm:$0xff]
    %v419 = vld [vmem:[#allocation2 + $0x60] sm:$0xff]
    %v420 = vld [vmem:[#allocation2 + $0x68] sm:$0xff]
    %v421 = vld [vmem:[#allocation2 + $0x70] sm:$0xff]
    %v422 = vld [vmem:[#allocation2 + $0x78] sm:$0xff]
    %v423 = vld [vmem:[%s2] sm:$0x1]
    %v425 = vlaneseq
    %v426 = vshrl.u32 %v425, 7
    %v427 = vsub.s32 0, %v426
    %v428 = vrot.slane %v423, %v427
    %v430 = vadd.f32 %v407, %v428
    %v431 = vadd.f32 %v408, %v428
    %v432 = vadd.f32 %v409, %v428
    %v433 = vadd.f32 %v410, %v428
    %v434 = vadd.f32 %v411, %v428
    %v435 = vadd.f32 %v412, %v428
    %v436 = vadd.f32 %v413, %v428
    %v437 = vadd.f32 %v414, %v428
    %v438 = vadd.f32 %v415, %v428
    %v439 = vadd.f32 %v416, %v428
    %v440 = vadd.f32 %v417, %v428
    %v441 = vadd.f32 %v418, %v428
    %v442 = vadd.f32 %v419, %v428
    %v443 = vadd.f32 %v420, %v428
    %v444 = vadd.f32 %v421, %v428
    %v445 = vadd.f32 %v422, %v428
    %v446 = vmax.f32 %v430, 0.0
    %v447 = vmax.f32 %v431, 0.0
    %v448 = vmax.f32 %v432, 0.0
    %v449 = vmax.f32 %v433, 0.0
    %v450 = vmax.f32 %v434, 0.0
    %v451 = vmax.f32 %v435, 0.0
    %v452 = vmax.f32 %v436, 0.0
    %v453 = vmax.f32 %v437, 0.0
    %v454 = vmax.f32 %v438, 0.0
    %v455 = vmax.f32 %v439, 0.0
    %v456 = vmax.f32 %v440, 0.0
    %v457 = vmax.f32 %v441, 0.0
    %v458 = vmax.f32 %v442, 0.0
    %v459 = vmax.f32 %v443, 0.0
    %v460 = vmax.f32 %v444, 0.0
    %v461 = vmax.f32 %v445, 0.0
    %462 = vst [vmem:[%s3] sm:$0xff] %v446
    %463 = vst [vmem:[%s3 + $0x8] sm:$0xff] %v447
    %464 = vst [vmem:[%s3 + $0x10] sm:$0xff] %v448
    %465 = vst [vmem:[%s3 + $0x18] sm:$0xff] %v449
    %466 = vst [vmem:[%s3 + $0x20] sm:$0xff] %v450
    %467 = vst [vmem:[%s3 + $0x28] sm:$0xff] %v451
    %468 = vst [vmem:[%s3 + $0x30] sm:$0xff] %v452
    %469 = vst [vmem:[%s3 + $0x38] sm:$0xff] %v453
    %470 = vst [vmem:[%s3 + $0x40] sm:$0xff] %v454
    %471 = vst [vmem:[%s3 + $0x48] sm:$0xff] %v455
    %472 = vst [vmem:[%s3 + $0x50] sm:$0xff] %v456
    %473 = vst [vmem:[%s3 + $0x58] sm:$0xff] %v457
    %474 = vst [vmem:[%s3 + $0x60] sm:$0xff] %v458
    %475 = vst [vmem:[%s3 + $0x68] sm:$0xff] %v459
    %476 = vst [vmem:[%s3 + $0x70] sm:$0xff] %v460
    %477 = vst [vmem:[%s3 + $0x78] sm:$0xff] %v461
  $region21: #{_lambda_.21} parent=0 // pred_fallthru
    _
  // Predicated region
  $region22: #{_lambda_.21} parent=0 // pred_check
    _
  $region23: #{_lambda_.21} parent=0 // pred_check_branch
    %479 = sbr.rel (0) target = $region25
  $region24: #{_lambda_.21} parent=0 // pred_region
    _
  $region25: #{_lambda_.21} parent=0 // pred_fallthru
    _
  // Predicated region
  $region26: #{_lambda_.21} parent=0 // pred_check
    _
  $region27: #{_lambda_.21} parent=0 // pred_check_branch
    %481 = sbr.rel (0) target = $region29
  $region28: #{_lambda_.21} parent=0 // pred_region
    _
  $region29: #{_lambda_.21} parent=0 // pred_fallthru
    _

// kernel: _lambda_.20
$region0: #{_lambda_.20}
  #allocation0 [shape = 'u32[]', space=smem, size = 0x4, offset = 0x4, fixed_abs, tag = 'smem constant byte address 0x4 - core index']
  #allocation1 [shape = 'u32[144,128]{1,0:T(1,128)}', space=vmem, size = 0x12000, scoped, tag = 'internal scratch']
  #allocation2 [shape = 'f32[128,128]{1,0:T(8,128)}', space=vmem, size = 0x10000, scoped, tag = 'scratch operand']
  %s0 = inlined_call_operand.vmem [shape: bf16[128,128], index: 0, kind: input, shape index: {}]
  %s1 = inlined_call_operand.vmem [shape: bf16[128,128], index: 1, kind: input, shape index: {}]
  %s2 = inlined_call_operand.vmem [shape: f32[1,128], index: 2, kind: input, shape index: {}]
  %s3 = inlined_call_operand.vmem [shape: f32[128,128], index: 3, kind: output, shape index: {}]
  %s4 = sld [smem:[#allocation0]]
  $region30: #{_lambda_.20} parent=0
    _
  %s6 = ssub.s32 1, %s4
  %s7 = scalar_select 0, %s6, %s4
  // Predicated region
  $region2: #{_lambda_.20} parent=0 // pred_check
    _
  $region3: #{_lambda_.20} parent=0 // pred_check_branch
    %9 = sbr.rel (0) target = $region5
  $region4: #{_lambda_.20} parent=0 // pred_region
    _
  $region5: #{_lambda_.20} parent=0 // pred_fallthru
    _
  // Predicated region
  $region6: #{_lambda_.20} parent=0 // pred_check
    _
  $region7: #{_lambda_.20} parent=0 // pred_check_branch
    %11 = sbr.rel (0) target = $region9
  $region8: #{_lambda_.20} parent=0 // pred_region
    _
  $region9: #{_lambda_.20} parent=0 // pred_fallthru
    _
  // Predicated region
  $region10: #{_lambda_.20} parent=0 // pred_check
    _
  $region11: #{_lambda_.20} parent=0 // pred_check_branch
    %13 = sbr.rel (0) target = $region13
  $region12: #{_lambda_.20} parent=0 // pred_region
    _
  $region13: #{_lambda_.20} parent=0 // pred_fallthru
    _
  %p15 = scmp.eq.s32.totalorder 0, 0
  // Predicated region
  $region14: #{_lambda_.20} parent=0 // pred_check
    %p16 = pneg %p15
  $region15: #{_lambda_.20} parent=0 // pred_check_branch
    %18 = sbr.rel (%p16) target = $region17
  $region16: #{_lambda_.20} parent=0 // pred_region
    %19 = vst [vmem:[#allocation2] sm:$0xff] 0.0
    %20 = vst [vmem:[#allocation2 + $0x8] sm:$0xff] 0.0
    %21 = vst [vmem:[#allocation2 + $0x10] sm:$0xff] 0.0
    %22 = vst [vmem:[#allocation2 + $0x18] sm:$0xff] 0.0
    %23 = vst [vmem:[#allocation2 + $0x20] sm:$0xff] 0.0
    %24 = vst [vmem:[#allocation2 + $0x28] sm:$0xff] 0.0
    %25 = vst [vmem:[#allocation2 + $0x30] sm:$0xff] 0.0
    %26 = vst [vmem:[#allocation2 + $0x38] sm:$0xff] 0.0
    %27 = vst [vmem:[#allocation2 + $0x40] sm:$0xff] 0.0
    %28 = vst [vmem:[#allocation2 + $0x48] sm:$0xff] 0.0
    %29 = vst [vmem:[#allocation2 + $0x50] sm:$0xff] 0.0
    %30 = vst [vmem:[#allocation2 + $0x58] sm:$0xff] 0.0
    %31 = vst [vmem:[#allocation2 + $0x60] sm:$0xff] 0.0
    %32 = vst [vmem:[#allocation2 + $0x68] sm:$0xff] 0.0
    %33 = vst [vmem:[#allocation2 + $0x70] sm:$0xff] 0.0
    %34 = vst [vmem:[#allocation2 + $0x78] sm:$0xff] 0.0
  $region17: #{_lambda_.20} parent=0 // pred_fallthru
    _
  %v35 = vld [vmem:[#allocation2] sm:$0xff]
  %v36 = vld [vmem:[#allocation2 + $0x8] sm:$0xff]
  %v37 = vld [vmem:[#allocation2 + $0x10] sm:$0xff]
  %v38 = vld [vmem:[#allocation2 + $0x18] sm:$0xff]
  %v39 = vld [vmem:[#allocation2 + $0x20] sm:$0xff]
  %v40 = vld [vmem:[#allocation2 + $0x28] sm:$0xff]
  %v41 = vld [vmem:[#allocation2 + $0x30] sm:$0xff]
  %v42 = vld [vmem:[#allocation2 + $0x38] sm:$0xff]
  %v43 = vld [vmem:[#allocation2 + $0x40] sm:$0xff]
  %v44 = vld [vmem:[#allocation2 + $0x48] sm:$0xff]
  %v45 = vld [vmem:[#allocation2 + $0x50] sm:$0xff]
  %v46 = vld [vmem:[#allocation2 + $0x58] sm:$0xff]
  %v47 = vld [vmem:[#allocation2 + $0x60] sm:$0xff]
  %v48 = vld [vmem:[#allocation2 + $0x68] sm:$0xff]
  %v49 = vld [vmem:[#allocation2 + $0x70] sm:$0xff]
  %v50 = vld [vmem:[#allocation2 + $0x78] sm:$0xff]
  %v51 = vld [vmem:[%s0] sm:$0xf]
  %v52 = vld [vmem:[%s0 + $0x4] sm:$0xf]
  %v53 = vld [vmem:[%s0 + $0x8] sm:$0xf]
  %v54 = vld [vmem:[%s0 + $0xc] sm:$0xf]
  %v55 = vld [vmem:[%s0 + $0x10] sm:$0xf]
  %v56 = vld [vmem:[%s0 + $0x14] sm:$0xf]
  %v57 = vld [vmem:[%s0 + $0x18] sm:$0xf]
  %v58 = vld [vmem:[%s0 + $0x1c] sm:$0xf]
  %v59 = vld [vmem:[%s0 + $0x20] sm:$0xf]
  %v60 = vld [vmem:[%s0 + $0x24] sm:$0xf]
  %v61 = vld [vmem:[%s0 + $0x28] sm:$0xf]
  %v62 = vld [vmem:[%s0 + $0x2c] sm:$0xf]
  %v63 = vld [vmem:[%s0 + $0x30] sm:$0xf]
  %v64 = vld [vmem:[%s0 + $0x34] sm:$0xf]
  %v65 = vld [vmem:[%s0 + $0x38] sm:$0xf]
  %v66 = vld [vmem:[%s0 + $0x3c] sm:$0xf]
  %v67 = vld [vmem:[%s1] sm:$0xf]
  %v68 = vld [vmem:[%s1 + $0x4] sm:$0xf]
  %v69 = vld [vmem:[%s1 + $0x8] sm:$0xf]
  %v70 = vld [vmem:[%s1 + $0xc] sm:$0xf]
  %v71 = vld [vmem:[%s1 + $0x10] sm:$0xf]
  %v72 = vld [vmem:[%s1 + $0x14] sm:$0xf]
  %v73 = vld [vmem:[%s1 + $0x18] sm:$0xf]
  %v74 = vld [vmem:[%s1 + $0x1c] sm:$0xf]
  %v75 = vld [vmem:[%s1 + $0x20] sm:$0xf]
  %v76 = vld [vmem:[%s1 + $0x24] sm:$0xf]
  %v77 = vld [vmem:[%s1 + $0x28] sm:$0xf]
  %v78 = vld [vmem:[%s1 + $0x2c] sm:$0xf]
  %v79 = vld [vmem:[%s1 + $0x30] sm:$0xf]
  %v80 = vld [vmem:[%s1 + $0x34] sm:$0xf]
  %v81 = vld [vmem:[%s1 + $0x38] sm:$0xf]
  %v82 = vld [vmem:[%s1 + $0x3c] sm:$0xf]
  %v99 = vunpack.c.l.b16 %v51
  %v100 = vunpack.c.l.b16 %v52
  %v101 = vunpack.c.l.b16 %v53
  %v102 = vunpack.c.l.b16 %v54
  %v103 = vunpack.c.l.b16 %v55
  %v104 = vunpack.c.l.b16 %v56
  %v105 = vunpack.c.l.b16 %v57
  %v106 = vunpack.c.l.b16 %v58
  %v107 = vunpack.c.l.b16 %v59
  %v108 = vunpack.c.l.b16 %v60
  %v109 = vunpack.c.l.b16 %v61
  %v110 = vunpack.c.l.b16 %v62
  %v111 = vunpack.c.l.b16 %v63
  %v112 = vunpack.c.l.b16 %v64
  %v113 = vunpack.c.l.b16 %v65
  %v114 = vunpack.c.l.b16 %v66
  %v115 = vpack.c.b16 %v100, %v99
  %v116 = vpack.c.b16 %v102, %v101
  %v117 = vpack.c.b16 %v104, %v103
  %v118 = vpack.c.b16 %v106, %v105
  %v119 = vpack.c.b16 %v108, %v107
  %v120 = vpack.c.b16 %v110, %v109
  %v121 = vpack.c.b16 %v112, %v111
  %v122 = vpack.c.b16 %v114, %v113
  %v147 = vunpack.c.l.b16 %v67
  %v148 = vunpack.c.l.b16 %v68
  %v149 = vunpack.c.l.b16 %v69
  %v150 = vunpack.c.l.b16 %v70
  %v151 = vunpack.c.l.b16 %v71
  %v152 = vunpack.c.l.b16 %v72
  %v153 = vunpack.c.l.b16 %v73
  %v154 = vunpack.c.l.b16 %v74
  %v155 = vunpack.c.l.b16 %v75
  %v156 = vunpack.c.l.b16 %v76
  %v157 = vunpack.c.l.b16 %v77
  %v158 = vunpack.c.l.b16 %v78
  %v159 = vunpack.c.l.b16 %v79
  %v160 = vunpack.c.l.b16 %v80
  %v161 = vunpack.c.l.b16 %v81
  %v162 = vunpack.c.l.b16 %v82
  %v163 = vpack.c.b16 %v148, %v147
  %v164 = vpack.c.b16 %v150, %v149
  %v165 = vpack.c.b16 %v152, %v151
  %v166 = vpack.c.b16 %v154, %v153
  %v167 = vpack.c.b16 %v156, %v155
  %v168 = vpack.c.b16 %v158, %v157
  %v169 = vpack.c.b16 %v160, %v159
  %v170 = vpack.c.b16 %v162, %v161
  %179 = vmatprep.subr.bf16.mxu0 0
  %180 = vmatpush1.bf16.msra.mxu0 %v163
  %181 = vmatprep.subr.bf16.mxu0 0
  %182 = vmatpush1.bf16.msra.mxu0 %v164
  %183 = vmatprep.subr.bf16.mxu0 0
  %184 = vmatpush1.bf16.msra.mxu0 %v165
  %185 = vmatprep.subr.bf16.mxu0 0
  %186 = vmatpush1.bf16.msra.mxu0 %v166
  %187 = vmatprep.subr.bf16.mxu0 0
  %188 = vmatpush1.bf16.msra.mxu0 %v167
  %189 = vmatprep.subr.bf16.mxu0 0
  %190 = vmatpush1.bf16.msra.mxu0 %v168
  %191 = vmatprep.subr.bf16.mxu0 0
  %192 = vmatpush1.bf16.msra.mxu0 %v169
  %193 = vmatprep.subr.bf16.mxu0 0
  %194 = vmatpush1.bf16.msra.mxu0 %v170
  %195 = vmatprep.subr.bf16.mxu0 0
  %196 = vmatpush1.bf16.msra.mxu0 0
  %197 = vmatprep.subr.bf16.mxu0 0
  %198 = vmatpush1.bf16.msra.mxu0 0
  %199 = vmatprep.subr.bf16.mxu0 0
  %200 = vmatpush1.bf16.msra.mxu0 0
  %201 = vmatprep.subr.bf16.mxu0 0
  %202 = vmatpush1.bf16.msra.mxu0 0
  %203 = vmatprep.subr.bf16.mxu0 0
  %204 = vmatpush1.bf16.msra.mxu0 0
  %205 = vmatprep.subr.bf16.mxu0 0
  %206 = vmatpush1.bf16.msra.mxu0 0
  %207 = vmatprep.subr.bf16.mxu0 0
  %208 = vmatpush1.bf16.msra.mxu0 0
  %209 = vmatprep.subr.bf16.mxu0 0
  %210 = vmatpush1.bf16.msra.mxu0 0
  %211 = vmatprep.mubr.bf16.mxu0 0
  %212 = vmatmul.mubr.bf16.gmra.mrb[0].mxu0 %v115
  %v213 = vpop.f32.mrb[0].mxu0
  %v214 = vadd.f32 0.0, %v213
  %v215 = vpop.f32.mrb[0].mxu0
  %v216 = vpop.f32.mrb[0].mxu0
  %v217 = vadd.f32 0.0, %v216
  %v218 = vpop.f32.mrb[0].mxu0
  %219 = vmatprep.mubr.bf16.mxu0 0
  %220 = vmatmul.mubr.bf16.gmra.mrb[0].mxu0 %v116
  %v221 = vpop.f32.mrb[0].mxu0
  %v222 = vadd.f32 0.0, %v221
  %v223 = vpop.f32.mrb[0].mxu0
  %v224 = vpop.f32.mrb[0].mxu0
  %v225 = vadd.f32 0.0, %v224
  %v226 = vpop.f32.mrb[0].mxu0
  %227 = vmatprep.mubr.bf16.mxu0 0
  %228 = vmatmul.mubr.bf16.gmra.mrb[0].mxu0 %v117
  %v229 = vpop.f32.mrb[0].mxu0
  %v230 = vadd.f32 0.0, %v229
  %v231 = vpop.f32.mrb[0].mxu0
  %v232 = vpop.f32.mrb[0].mxu0
  %v233 = vadd.f32 0.0, %v232
  %v234 = vpop.f32.mrb[0].mxu0
  %235 = vmatprep.mubr.bf16.mxu0 0
  %236 = vmatmul.mubr.bf16.gmra.mrb[0].mxu0 %v118
  %v237 = vpop.f32.mrb[0].mxu0
  %v238 = vadd.f32 0.0, %v237
  %v239 = vpop.f32.mrb[0].mxu0
  %v240 = vpop.f32.mrb[0].mxu0
  %v241 = vadd.f32 0.0, %v240
  %v242 = vpop.f32.mrb[0].mxu0
  %243 = vmatprep.mubr.bf16.mxu0 0
  %244 = vmatmul.mubr.bf16.gmra.mrb[0].mxu0 %v119
  %v245 = vpop.f32.mrb[0].mxu0
  %v246 = vadd.f32 0.0, %v245
  %v247 = vpop.f32.mrb[0].mxu0
  %v248 = vpop.f32.mrb[0].mxu0
  %v249 = vadd.f32 0.0, %v248
  %v250 = vpop.f32.mrb[0].mxu0
  %251 = vmatprep.mubr.bf16.mxu0 0
  %252 = vmatmul.mubr.bf16.gmra.mrb[0].mxu0 %v120
  %v253 = vpop.f32.mrb[0].mxu0
  %v254 = vadd.f32 0.0, %v253
  %v255 = vpop.f32.mrb[0].mxu0
  %v256 = vpop.f32.mrb[0].mxu0
  %v257 = vadd.f32 0.0, %v256
  %v258 = vpop.f32.mrb[0].mxu0
  %259 = vmatprep.mubr.bf16.mxu0 0
  %260 = vmatmul.mubr.bf16.gmra.mrb[0].mxu0 %v121
  %v261 = vpop.f32.mrb[0].mxu0
  %v262 = vadd.f32 0.0, %v261
  %v263 = vpop.f32.mrb[0].mxu0
  %v264 = vpop.f32.mrb[0].mxu0
  %v265 = vadd.f32 0.0, %v264
  %v266 = vpop.f32.mrb[0].mxu0
  %267 = vmatprep.mubr.bf16.mxu0 0
  %268 = vmatmul.mubr.bf16.gmra.mrb[0].mxu0 %v122
  %v269 = vpop.f32.mrb[0].mxu0
  %v270 = vadd.f32 0.0, %v269
  %v271 = vpop.f32.mrb[0].mxu0
  %v272 = vpop.f32.mrb[0].mxu0
  %v273 = vadd.f32 0.0, %v272
  %v274 = vpop.f32.mrb[0].mxu0
  %275 = vdwg.mxu0
  %v276 = vadd.f32 %v35, %v214
  %v277 = vadd.f32 %v36, %v217
  %v278 = vadd.f32 %v37, %v222
  %v279 = vadd.f32 %v38, %v225
  %v280 = vadd.f32 %v39, %v230
  %v281 = vadd.f32 %v40, %v233
  %v282 = vadd.f32 %v41, %v238
  %v283 = vadd.f32 %v42, %v241
  %v284 = vadd.f32 %v43, %v246
  %v285 = vadd.f32 %v44, %v249
  %v286 = vadd.f32 %v45, %v254
  %v287 = vadd.f32 %v46, %v257
  %v288 = vadd.f32 %v47, %v262
  %v289 = vadd.f32 %v48, %v265
  %v290 = vadd.f32 %v49, %v270
  %v291 = vadd.f32 %v50, %v273
  %292 = vst [vmem:[#allocation2] sm:$0xff] %v276
  %293 = vst [vmem:[#allocation2 + $0x8] sm:$0xff] %v277
  %294 = vst [vmem:[#allocation2 + $0x10] sm:$0xff] %v278
  %295 = vst [vmem:[#allocation2 + $0x18] sm:$0xff] %v279
  %296 = vst [vmem:[#allocation2 + $0x20] sm:$0xff] %v280
  %297 = vst [vmem:[#allocation2 + $0x28] sm:$0xff] %v281
  %298 = vst [vmem:[#allocation2 + $0x30] sm:$0xff] %v282
  %299 = vst [vmem:[#allocation2 + $0x38] sm:$0xff] %v283
  %300 = vst [vmem:[#allocation2 + $0x40] sm:$0xff] %v284
  %301 = vst [vmem:[#allocation2 + $0x48] sm:$0xff] %v285
  %302 = vst [vmem:[#allocation2 + $0x50] sm:$0xff] %v286
  %303 = vst [vmem:[#allocation2 + $0x58] sm:$0xff] %v287
  %304 = vst [vmem:[#allocation2 + $0x60] sm:$0xff] %v288
  %305 = vst [vmem:[#allocation2 + $0x68] sm:$0xff] %v289
  %306 = vst [vmem:[#allocation2 + $0x70] sm:$0xff] %v290
  %307 = vst [vmem:[#allocation2 + $0x78] sm:$0xff] %v291
  // Predicated region
  $region18: #{_lambda_.20} parent=0 // pred_check
    %p308 = pneg %p15
  $region19: #{_lambda_.20} parent=0 // pred_check_branch
    %310 = sbr.rel (%p308) target = $region21
  $region20: #{_lambda_.20} parent=0 // pred_region
    %v311 = vld [vmem:[#allocation2] sm:$0xff]
    %v312 = vld [vmem:[#allocation2 + $0x8] sm:$0xff]
    %v313 = vld [vmem:[#allocation2 + $0x10] sm:$0xff]
    %v314 = vld [vmem:[#allocation2 + $0x18] sm:$0xff]
    %v315 = vld [vmem:[#allocation2 + $0x20] sm:$0xff]
    %v316 = vld [vmem:[#allocation2 + $0x28] sm:$0xff]
    %v317 = vld [vmem:[#allocation2 + $0x30] sm:$0xff]
    %v318 = vld [vmem:[#allocation2 + $0x38] sm:$0xff]
    %v319 = vld [vmem:[#allocation2 + $0x40] sm:$0xff]
    %v320 = vld [vmem:[#allocation2 + $0x48] sm:$0xff]
    %v321 = vld [vmem:[#allocation2 + $0x50] sm:$0xff]
    %v322 = vld [vmem:[#allocation2 + $0x58] sm:$0xff]
    %v323 = vld [vmem:[#allocation2 + $0x60] sm:$0xff]
    %v324 = vld [vmem:[#allocation2 + $0x68] sm:$0xff]
    %v325 = vld [vmem:[#allocation2 + $0x70] sm:$0xff]
    %v326 = vld [vmem:[#allocation2 + $0x78] sm:$0xff]
    %v327 = vld [vmem:[%s2] sm:$0x1]
    %v329 = vlaneseq
    %v330 = vshrl.u32 %v329, 7
    %v331 = vsub.s32 0, %v330
    %v332 = vrot.slane %v327, %v331
    %v334 = vadd.f32 %v311, %v332
    %v335 = vadd.f32 %v312, %v332
    %v336 = vadd.f32 %v313, %v332
    %v337 = vadd.f32 %v314, %v332
    %v338 = vadd.f32 %v315, %v332
    %v339 = vadd.f32 %v316, %v332
    %v340 = vadd.f32 %v317, %v332
    %v341 = vadd.f32 %v318, %v332
    %v342 = vadd.f32 %v319, %v332
    %v343 = vadd.f32 %v320, %v332
    %v344 = vadd.f32 %v321, %v332
    %v345 = vadd.f32 %v322, %v332
    %v346 = vadd.f32 %v323, %v332
    %v347 = vadd.f32 %v324, %v332
    %v348 = vadd.f32 %v325, %v332
    %v349 = vadd.f32 %v326, %v332
    %350 = vst [vmem:[%s3] sm:$0xff] %v334
    %351 = vst [vmem:[%s3 + $0x8] sm:$0xff] %v335
    %352 = vst [vmem:[%s3 + $0x10] sm:$0xff] %v336
    %353 = vst [vmem:[%s3 + $0x18] sm:$0xff] %v337
    %354 = vst [vmem:[%s3 + $0x20] sm:$0xff] %v338
    %355 = vst [vmem:[%s3 + $0x28] sm:$0xff] %v339
    %356 = vst [vmem:[%s3 + $0x30] sm:$0xff] %v340
    %357 = vst [vmem:[%s3 + $0x38] sm:$0xff] %v341
    %358 = vst [vmem:[%s3 + $0x40] sm:$0xff] %v342
    %359 = vst [vmem:[%s3 + $0x48] sm:$0xff] %v343
    %360 = vst [vmem:[%s3 + $0x50] sm:$0xff] %v344
    %361 = vst [vmem:[%s3 + $0x58] sm:$0xff] %v345
    %362 = vst [vmem:[%s3 + $0x60] sm:$0xff] %v346
    %363 = vst [vmem:[%s3 + $0x68] sm:$0xff] %v347
    %364 = vst [vmem:[%s3 + $0x70] sm:$0xff] %v348
    %365 = vst [vmem:[%s3 + $0x78] sm:$0xff] %v349
  $region21: #{_lambda_.20} parent=0 // pred_fallthru
    _
  // Predicated region
  $region22: #{_lambda_.20} parent=0 // pred_check
    _
  $region23: #{_lambda_.20} parent=0 // pred_check_branch
    %367 = sbr.rel (0) target = $region25
  $region24: #{_lambda_.20} parent=0 // pred_region
    _
  $region25: #{_lambda_.20} parent=0 // pred_fallthru
    _
  // Predicated region
  $region26: #{_lambda_.20} parent=0 // pred_check
    _
  $region27: #{_lambda_.20} parent=0 // pred_check_branch
    %369 = sbr.rel (0) target = $region29
  $region28: #{_lambda_.20} parent=0 // pred_region
    _
  $region29: #{_lambda_.20} parent=0 // pred_fallthru
    _

// kernel: _lambda_.22
$region0: #{_lambda_.22}
  #allocation0 [shape = 'u32[]', space=smem, size = 0x4, offset = 0x4, fixed_abs, tag = 'smem constant byte address 0x4 - core index']
  #allocation1 [shape = 'u32[144,128]{1,0:T(1,128)}', space=vmem, size = 0x12000, scoped, tag = 'internal scratch']
  #allocation2 [shape = 'f32[128,128]{1,0:T(8,128)}', space=vmem, size = 0x10000, scoped, tag = 'scratch operand']
  %s0 = inlined_call_operand.vmem [shape: bf16[128,384], index: 0, kind: input, shape index: {}]
  %s1 = inlined_call_operand.vmem [shape: bf16[384,128], index: 1, kind: input, shape index: {}]
  %s2 = inlined_call_operand.vmem [shape: f32[1,128], index: 2, kind: input, shape index: {}]
  %s3 = inlined_call_operand.vmem [shape: f32[128,128], index: 3, kind: input, shape index: {}]
  %s4 = inlined_call_operand.vmem [shape: f32[128,128], index: 4, kind: output, shape index: {}]
  %s5 = sld [smem:[#allocation0]]
  $region98: #{_lambda_.22} parent=0
    _
  %s7 = ssub.s32 1, %s5
  %s8 = scalar_select 0, %s7, %s5
  $region1: #{_lambda_.22} parent=0
    #allocation3 [shape = 'u8[65536]{0}', space=vmem, size = 0x10000, scoped, tag = 'input window, operand 0']
    loop: start=0, step=1, limit=5
    $region2: #{_lambda_.22} parent=1 // loop_pre_header
      _
    $region3: #{_lambda_.22} parent=1 // loop_header
      %s10 = sphi 0, %s14
      %p11 = scmp.ge.s32.totalorder %s10, 5
      %s17 = sphi 0, %s36
      %s18 = sphi 0, %s32
      %s19 = sphi 0, %s28
      %s20 = sphi 0, %s17
      %s21 = sphi 0, %s18
      %s22 = sphi 0, %s19
      %s23 = sphi 0, %s20
      %s24 = sphi 0, %s21
      %s25 = sphi 0, %s22
      %s41 = sphi 0, %s43
      %s44 = sphi 0, %s41
      %s45 = sphi 0, %s44
      %s61 = sphi 0, %s45
      %s69 = sphi 0, %s71
      %s72 = sphi 0, %s69
      %s73 = sphi 0, %s72
      %s89 = sphi 0, %s73
      %s95 = sphi 0, %s97
      %s98 = sphi 0, %s95
      %s99 = sphi 0, %s98
      %s115 = sphi 0, %s99
      %s123 = sphi 0, %s125
      %s126 = sphi 0, %s123
      %s127 = sphi 0, %s126
      %s143 = sphi 0, %s127
      %s151 = sphi 0, %s153
      %s154 = sphi 0, %s151
      %s155 = sphi 0, %s154
      %s171 = sphi 0, %s155
    $region4: #{_lambda_.22} parent=1 // loop_header_branch
      %13 = sbr.rel (%p11) target = $region8
    $region5: #{_lambda_.22} parent=1 // loop_body
      %s15 = ssub.s32 %s10, 1
      %s16 = ssub.s32 %s10, 2
      %s26 = sadd.s32 1, %s19
      %p27 = scmp.ge.s32.totalorder %s26, 3
      %s28 = scalar_select %p27, 0, %s26
      %s29 = sadd.s32 1, %s18
      %s30 = scalar_select %p27, %s29, %s18
      %p31 = scmp.ge.s32.totalorder %s30, 1
      %s32 = scalar_select %p31, 0, %s30
      %s33 = sadd.s32 1, %s17
      %s34 = scalar_select %p31, %s33, %s17
      %p35 = scmp.ge.s32.totalorder %s34, 1
      %s36 = scalar_select %p35, 0, %s34
      %s37 = ssub.s32 %s17, %s36
      %s38 = ssub.s32 %s19, %s28
      %s39 = sor.u32 %s37, %s38
      %p40 = scmp.eq.s32.totalorder %s39, 0
      %s42 = sadd.s32 %s41, 1
      %s43 = scalar_select %p40, %s41, %s42
      %p46 = pneg %p40
      %p47 = scmp.eq.s32.totalorder %s10, 2
      %p48 = por %p46, %p47
      %p49 = scmp.ne.s32.totalorder %s41, %s44
      %p50 = scmp.eq.s32.totalorder %s10, 0
      %p51 = por %p49, %p50
      %p52 = scmp.ne.s32.totalorder %s41, %s44
      %p53 = scmp.eq.s32.totalorder %s15, 2
      %p54 = por %p52, %p53
      %p55 = scmp.ne.s32.totalorder %s44, %s45
      %p56 = scmp.eq.s32.totalorder %s15, 0
      %p57 = por %p55, %p56
      %p58 = scmp.ne.s32.totalorder %s44, %s45
      %p59 = scmp.eq.s32.totalorder %s16, 2
      %p60 = por %p58, %p59
      %p62 = scmp.ne.s32.totalorder %s45, %s61
      %p63 = scmp.eq.s32.totalorder %s16, 0
      %p64 = por %p62, %p63
      %s65 = ssub.s32 %s19, %s28
      %s66 = ssub.s32 %s18, %s32
      %s67 = sor.u32 %s65, %s66
      %p68 = scmp.eq.s32.totalorder %s67, 0
      %s70 = sadd.s32 %s69, 1
      %s71 = scalar_select %p68, %s69, %s70
      %p74 = pneg %p68
      %p75 = scmp.eq.s32.totalorder %s10, 2
      %p76 = por %p74, %p75
      %p77 = scmp.ne.s32.totalorder %s69, %s72
      %p78 = scmp.eq.s32.totalorder %s10, 0
      %p79 = por %p77, %p78
      %p80 = scmp.ne.s32.totalorder %s69, %s72
      %p81 = scmp.eq.s32.totalorder %s15, 2
      %p82 = por %p80, %p81
      %p83 = scmp.ne.s32.totalorder %s72, %s73
      %p84 = scmp.eq.s32.totalorder %s15, 0
      %p85 = por %p83, %p84
      %p86 = scmp.ne.s32.totalorder %s72, %s73
      %p87 = scmp.eq.s32.totalorder %s16, 2
      %p88 = por %p86, %p87
      %p90 = scmp.ne.s32.totalorder %s73, %s89
      %p91 = scmp.eq.s32.totalorder %s16, 0
      %p92 = por %p90, %p91
      %s93 = ssub.s32 %s18, %s32
      %p94 = scmp.eq.s32.totalorder %s93, 0
      %s96 = sadd.s32 %s95, 1
      %s97 = scalar_select %p94, %s95, %s96
      %p100 = pneg %p94
      %p101 = scmp.eq.s32.totalorder %s10, 2
      %p102 = por %p100, %p101
      %p103 = scmp.ne.s32.totalorder %s95, %s98
      %p104 = scmp.eq.s32.totalorder %s10, 0
      %p105 = por %p103, %p104
      %p106 = scmp.ne.s32.totalorder %s95, %s98
      %p107 = scmp.eq.s32.totalorder %s15, 2
      %p108 = por %p106, %p107
      %p109 = scmp.ne.s32.totalorder %s98, %s99
      %p110 = scmp.eq.s32.totalorder %s15, 0
      %p111 = por %p109, %p110
      %p112 = scmp.ne.s32.totalorder %s98, %s99
      %p113 = scmp.eq.s32.totalorder %s16, 2
      %p114 = por %p112, %p113
      %p116 = scmp.ne.s32.totalorder %s99, %s115
      %p117 = scmp.eq.s32.totalorder %s16, 0
      %p118 = por %p116, %p117
      %s119 = ssub.s32 %s17, %s36
      %s120 = ssub.s32 %s18, %s32
      %s121 = sor.u32 %s119, %s120
      %p122 = scmp.eq.s32.totalorder %s121, 0
      %s124 = sadd.s32 %s123, 1
      %s125 = scalar_select %p122, %s123, %s124
      %p128 = pneg %p122
      %p129 = scmp.eq.s32.totalorder %s10, 2
      %p130 = por %p128, %p129
      %p131 = scmp.ne.s32.totalorder %s123, %s126
      %p132 = scmp.eq.s32.totalorder %s10, 0
      %p133 = por %p131, %p132
      %p134 = scmp.ne.s32.totalorder %s123, %s126
      %p135 = scmp.eq.s32.totalorder %s15, 2
      %p136 = por %p134, %p135
      %p137 = scmp.ne.s32.totalorder %s126, %s127
      %p138 = scmp.eq.s32.totalorder %s15, 0
      %p139 = por %p137, %p138
      %p140 = scmp.ne.s32.totalorder %s126, %s127
      %p141 = scmp.eq.s32.totalorder %s16, 2
      %p142 = por %p140, %p141
      %p144 = scmp.ne.s32.totalorder %s127, %s143
      %p145 = scmp.eq.s32.totalorder %s16, 0
      %p146 = por %p144, %p145
      %s147 = ssub.s32 %s17, %s36
      %s148 = ssub.s32 %s18, %s32
      %s149 = sor.u32 %s147, %s148
      %p150 = scmp.eq.s32.totalorder %s149, 0
      %s152 = sadd.s32 %s151, 1
      %s153 = scalar_select %p150, %s151, %s152
      %p156 = pneg %p150
      %p157 = scmp.eq.s32.totalorder %s10, 2
      %p158 = por %p156, %p157
      %p159 = scmp.ne.s32.totalorder %s151, %s154
      %p160 = scmp.eq.s32.totalorder %s10, 0
      %p161 = por %p159, %p160
      %p162 = scmp.ne.s32.totalorder %s151, %s154
      %p163 = scmp.eq.s32.totalorder %s15, 2
      %p164 = por %p162, %p163
      %p165 = scmp.ne.s32.totalorder %s154, %s155
      %p166 = scmp.eq.s32.totalorder %s15, 0
      %p167 = por %p165, %p166
      %p168 = scmp.ne.s32.totalorder %s154, %s155
      %p169 = scmp.eq.s32.totalorder %s16, 2
      %p170 = por %p168, %p169
      %p172 = scmp.ne.s32.totalorder %s155, %s171
      %p173 = scmp.eq.s32.totalorder %s16, 0
      %p174 = por %p172, %p173
      %p175 = scmp.le.s32.totalorder 1, %s10
      %p176 = scmp.lt.s32.totalorder %s10, 4
      %p177 = pnand %p175, %p176
      %p178 = pneg %p177
      // Predicated region
      $region9: #{_lambda_.22} parent=5 // pred_check
        _
      $region10: #{_lambda_.22} parent=5 // pred_check_branch
        %180 = sbr.rel (%p177) target = $region12
      $region11: #{_lambda_.22} parent=5 // pred_region
        %s181 = ssub.s32 %s10, 1
        // Predicated region
        $region13: #{_lambda_.22} parent=11 // pred_check
          %p182 = pneg %p111
        $region14: #{_lambda_.22} parent=11 // pred_check_branch
          %184 = sbr.rel (%p182) target = $region16
        $region15: #{_lambda_.22} parent=11 // pred_region
          %p185 = scmp.lt.s32.totalorder %s21, 0
          %s186 = scalar_select %p185, %s21, 0
          %s187 = scalar_lea.vmem %s2, %s186
        $region16: #{_lambda_.22} parent=11 // pred_fallthru
          _
        // Predicated region
        $region17: #{_lambda_.22} parent=11 // pred_check
          %p188 = pneg %p139
        $region18: #{_lambda_.22} parent=11 // pred_check_branch
          %190 = sbr.rel (%p188) target = $region20
        $region19: #{_lambda_.22} parent=11 // pred_region
          %s191 = smul.u32 16, %s20
          %p192 = scmp.lt.s32.totalorder %s191, 15
          %s193 = scalar_select %p192, %s191, 15
          %p194 = scmp.lt.s32.totalorder %s21, 0
          %s195 = scalar_select %p194, %s21, 0
          %s196 = sadd.s32 %s195, %s193
          %s197 = smul.addr %s196, 8
          %s198 = scalar_lea.vmem %s3, %s197
          %s199 = smul.u32 16, %s20
        $region20: #{_lambda_.22} parent=11 // pred_fallthru
          _
      $region12: #{_lambda_.22} parent=5 // pred_fallthru
        _
      %p200 = scmp.lt.s32.totalorder %s10, 3
      // Predicated region
      $region21: #{_lambda_.22} parent=5 // pred_check
        %p201 = pneg %p200
      $region22: #{_lambda_.22} parent=5 // pred_check_branch
        %203 = sbr.rel (%p201) target = $region24
      $region23: #{_lambda_.22} parent=5 // pred_region
        // Predicated region
        $region25: #{_lambda_.22} parent=23 // pred_check
          %p204 = pneg %p51
        $region26: #{_lambda_.22} parent=23 // pred_check_branch
          %206 = sbr.rel (%p204) target = $region28
        $region27: #{_lambda_.22} parent=23 // pred_region
          %s207 = sand.u32 %s41, 1
          %s208 = sand.u32 %s41, 1
          %s209 = smul.addr %s208, 64
          %s210 = scalar_lea.vmem [#allocation3], %s209
          %s211 = smul.u32 16, %s17
          %s212 = smul.addr %s211, 3
          %s213 = sadd.s32 %s19, %s212
          %s214 = smul.addr %s213, 4
          %s215 = scalar_lea.vmem %s0, %s214
          // Predicated region
          $region29: #{_lambda_.22} parent=27 // pred_check
            _
          $region30: #{_lambda_.22} parent=27 // pred_check_branch
            %217 = sbr.rel (0) target = $region32
          $region31: #{_lambda_.22} parent=27 // pred_region
            // Predicated region
            $region33: #{_lambda_.22} parent=31 // pred_check
              _
            $region34: #{_lambda_.22} parent=31 // pred_check_branch
              %219 = sbr.rel target = $region36
            $region35: #{_lambda_.22} parent=31 // pred_region
              // Predicated region
              $region48: #{_lambda_.22} parent=35 // pred_check
                _
              $region49: #{_lambda_.22} parent=35 // pred_check_branch
                %264 = sbr.rel (0) target = $region51
              $region50: #{_lambda_.22} parent=35 // pred_region
                loop: start=0, step=1, limit=1
                $region52: #{_lambda_.22} parent=50 // loop_pre_header
                  _
                $region53: #{_lambda_.22} parent=50 // loop_header
                  %s266 = sphi 0, %s270
                  %p267 = scmp.ge.s32.totalorder %s266, 1
                  %s271 = sphi %s215, %s215
                  %s272 = sphi %s210, %s210
                $region54: #{_lambda_.22} parent=50 // loop_header_branch
                  %269 = sbr.rel (%p267) target = $region58
                $region55: #{_lambda_.22} parent=50 // loop_body
                  _
                $region56: #{_lambda_.22} parent=50 // loop_footer
                  %s270 = sadd.s32 1, %s266
                $region57: #{_lambda_.22} parent=50 // loop_footer_branch
                  %265 = sbr.rel target = $region53
                $region58: #{_lambda_.22} parent=50 // loop_exit
                  _
                loop: start=0, step=1, limit=1
                $region59: #{_lambda_.22} parent=50 // loop_pre_header
                  _
                $region60: #{_lambda_.22} parent=50 // loop_header
                  %s275 = sphi 0, %s279
                  %p276 = scmp.ge.s32.totalorder %s275, 1
                  %s280 = sphi %s215, %s215
                  %s281 = sphi %s210, %s210
                $region61: #{_lambda_.22} parent=50 // loop_header_branch
                  %278 = sbr.rel (%p276) target = $region65
                $region62: #{_lambda_.22} parent=50 // loop_body
                  %v282 = vld [vmem:[%s280] sm:$0xf]
                  %283 = vst [vmem:[%s281] sm:$0xf] %v282
                  %v284 = vld [vmem:[%s280 + $0xc] sm:$0xf]
                  %285 = vst [vmem:[%s281 + $0x4] sm:$0xf] %v284
                  %v286 = vld [vmem:[%s280 + $0x18] sm:$0xf]
                  %287 = vst [vmem:[%s281 + $0x8] sm:$0xf] %v286
                  %v288 = vld [vmem:[%s280 + $0x24] sm:$0xf]
                  %289 = vst [vmem:[%s281 + $0xc] sm:$0xf] %v288
                  %v290 = vld [vmem:[%s280 + $0x30] sm:$0xf]
                  %291 = vst [vmem:[%s281 + $0x10] sm:$0xf] %v290
                  %v292 = vld [vmem:[%s280 + $0x3c] sm:$0xf]
                  %293 = vst [vmem:[%s281 + $0x14] sm:$0xf] %v292
                  %v294 = vld [vmem:[%s280 + $0x48] sm:$0xf]
                  %295 = vst [vmem:[%s281 + $0x18] sm:$0xf] %v294
                  %v296 = vld [vmem:[%s280 + $0x54] sm:$0xf]
                  %297 = vst [vmem:[%s281 + $0x1c] sm:$0xf] %v296
                  %v298 = vld [vmem:[%s280 + $0x60] sm:$0xf]
                  %299 = vst [vmem:[%s281 + $0x20] sm:$0xf] %v298
                  %v300 = vld [vmem:[%s280 + $0x6c] sm:$0xf]
                  %301 = vst [vmem:[%s281 + $0x24] sm:$0xf] %v300
                  %v302 = vld [vmem:[%s280 + $0x78] sm:$0xf]
                  %303 = vst [vmem:[%s281 + $0x28] sm:$0xf] %v302
                  %v304 = vld [vmem:[%s280 + $0x84] sm:$0xf]
                  %305 = vst [vmem:[%s281 + $0x2c] sm:$0xf] %v304
                  %v306 = vld [vmem:[%s280 + $0x90] sm:$0xf]
                  %307 = vst [vmem:[%s281 + $0x30] sm:$0xf] %v306
                  %v308 = vld [vmem:[%s280 + $0x9c] sm:$0xf]
                  %309 = vst [vmem:[%s281 + $0x34] sm:$0xf] %v308
                  %v310 = vld [vmem:[%s280 + $0xa8] sm:$0xf]
                  %311 = vst [vmem:[%s281 + $0x38] sm:$0xf] %v310
                  %v312 = vld [vmem:[%s280 + $0xb4] sm:$0xf]
                  %313 = vst [vmem:[%s281 + $0x3c] sm:$0xf] %v312
                $region63: #{_lambda_.22} parent=50 // loop_footer
                  %s279 = sadd.s32 1, %s275
                $region64: #{_lambda_.22} parent=50 // loop_footer_branch
                  %274 = sbr.rel target = $region60
                $region65: #{_lambda_.22} parent=50 // loop_exit
                  _
              $region51: #{_lambda_.22} parent=35 // pred_fallthru
                _
            $region36: #{_lambda_.22} parent=31 // pred_fallthru
              _
            // Predicated region
            $region37: #{_lambda_.22} parent=31 // pred_check
              _
            $region38: #{_lambda_.22} parent=31 // pred_check_branch
              %221 = sbr.rel (0) target = $region40
            $region39: #{_lambda_.22} parent=31 // pred_region
              loop: start=0, step=1, limit=1
              $region41: #{_lambda_.22} parent=39 // loop_pre_header
                _
              $region42: #{_lambda_.22} parent=39 // loop_header
                %s224 = sphi 0, %s228
                %p225 = scmp.ge.s32.totalorder %s224, 1
                %s229 = sphi %s215, %s215
                %s230 = sphi %s210, %s210
              $region43: #{_lambda_.22} parent=39 // loop_header_branch
                %227 = sbr.rel (%p225) target = $region47
              $region44: #{_lambda_.22} parent=39 // loop_body
                %v231 = vld [vmem:[%s229] sm:$0xf]
                %232 = vst [vmem:[%s230] sm:$0xf] %v231
                %v233 = vld [vmem:[%s229 + $0xc] sm:$0xf]
                %234 = vst [vmem:[%s230 + $0x4] sm:$0xf] %v233
                %v235 = vld [vmem:[%s229 + $0x18] sm:$0xf]
                %236 = vst [vmem:[%s230 + $0x8] sm:$0xf] %v235
                %v237 = vld [vmem:[%s229 + $0x24] sm:$0xf]
                %238 = vst [vmem:[%s230 + $0xc] sm:$0xf] %v237
                %v239 = vld [vmem:[%s229 + $0x30] sm:$0xf]
                %240 = vst [vmem:[%s230 + $0x10] sm:$0xf] %v239
                %v241 = vld [vmem:[%s229 + $0x3c] sm:$0xf]
                %242 = vst [vmem:[%s230 + $0x14] sm:$0xf] %v241
                %v243 = vld [vmem:[%s229 + $0x48] sm:$0xf]
                %244 = vst [vmem:[%s230 + $0x18] sm:$0xf] %v243
                %v245 = vld [vmem:[%s229 + $0x54] sm:$0xf]
                %246 = vst [vmem:[%s230 + $0x1c] sm:$0xf] %v245
                %v247 = vld [vmem:[%s229 + $0x60] sm:$0xf]
                %248 = vst [vmem:[%s230 + $0x20] sm:$0xf] %v247
                %v249 = vld [vmem:[%s229 + $0x6c] sm:$0xf]
                %250 = vst [vmem:[%s230 + $0x24] sm:$0xf] %v249
                %v251 = vld [vmem:[%s229 + $0x78] sm:$0xf]
                %252 = vst [vmem:[%s230 + $0x28] sm:$0xf] %v251
                %v253 = vld [vmem:[%s229 + $0x84] sm:$0xf]
                %254 = vst [vmem:[%s230 + $0x2c] sm:$0xf] %v253
                %v255 = vld [vmem:[%s229 + $0x90] sm:$0xf]
                %256 = vst [vmem:[%s230 + $0x30] sm:$0xf] %v255
                %v257 = vld [vmem:[%s229 + $0x9c] sm:$0xf]
                %258 = vst [vmem:[%s230 + $0x34] sm:$0xf] %v257
                %v259 = vld [vmem:[%s229 + $0xa8] sm:$0xf]
                %260 = vst [vmem:[%s230 + $0x38] sm:$0xf] %v259
                %v261 = vld [vmem:[%s229 + $0xb4] sm:$0xf]
                %262 = vst [vmem:[%s230 + $0x3c] sm:$0xf] %v261
              $region45: #{_lambda_.22} parent=39 // loop_footer
                %s228 = sadd.s32 1, %s224
              $region46: #{_lambda_.22} parent=39 // loop_footer_branch
                %223 = sbr.rel target = $region42
              $region47: #{_lambda_.22} parent=39 // loop_exit
                _
            $region40: #{_lambda_.22} parent=31 // pred_fallthru
              _
          $region32: #{_lambda_.22} parent=27 // pred_fallthru
            _
          %314 = vnop
        $region28: #{_lambda_.22} parent=23 // pred_fallthru
          _
        // Predicated region
        $region66: #{_lambda_.22} parent=23 // pred_check
          %p315 = pneg %p79
        $region67: #{_lambda_.22} parent=23 // pred_check_branch
          %317 = sbr.rel (%p315) target = $region69
        $region68: #{_lambda_.22} parent=23 // pred_region
          %s318 = smul.u32 16, %s19
          %p319 = scmp.lt.s32.totalorder %s318, 47
          %s320 = scalar_select %p319, %s318, 47
          %p321 = scmp.lt.s32.totalorder %s18, 0
          %s322 = scalar_select %p321, %s18, 0
          %s323 = sadd.s32 %s322, %s320
          %s324 = smul.addr %s323, 4
          %s325 = scalar_lea.vmem %s1, %s324
          %s326 = smul.u32 16, %s19
        $region69: #{_lambda_.22} parent=23 // pred_fallthru
          _
      $region24: #{_lambda_.22} parent=5 // pred_fallthru
        _
      %p327 = scmp.le.s32.totalorder 1, %s10
      %p328 = scmp.lt.s32.totalorder %s10, 4
      %p329 = pnand %p327, %p328
      %p330 = pneg %p329
      // Predicated region
      $region70: #{_lambda_.22} parent=5 // pred_check
        _
      $region71: #{_lambda_.22} parent=5 // pred_check_branch
        %332 = sbr.rel (%p329) target = $region73
      $region72: #{_lambda_.22} parent=5 // pred_region
        %s333 = ssub.s32 %s10, 1
        %s334 = sand.u32 %s44, 1
        %s335 = sand.u32 %s44, 1
        %s336 = smul.addr %s335, 64
        %s337 = scalar_lea.vmem [#allocation3], %s336
        // Predicated region
        $region74: #{_lambda_.22} parent=72 // pred_check
          %p338 = pneg %p57
        $region75: #{_lambda_.22} parent=72 // pred_check_branch
          %340 = sbr.rel (%p338) target = $region77
        $region76: #{_lambda_.22} parent=72 // pred_region
          _
        $region77: #{_lambda_.22} parent=72 // pred_fallthru
          _
        %s341 = sand.u32 %s44, 1
        %s342 = sand.u32 %s44, 1
        %s343 = smul.addr %s342, 64
        %s344 = scalar_lea.vmem [#allocation3], %s343
        %p345 = pneg %p57
        %p346 = pneg %p54
        %s347 = smul.u32 16, %s22
        %p348 = scmp.lt.s32.totalorder %s347, 47
        %s349 = scalar_select %p348, %s347, 47
        %p350 = scmp.lt.s32.totalorder %s21, 0
        %s351 = scalar_select %p350, %s21, 0
        %s352 = sadd.s32 %s351, %s349
        %s353 = smul.addr %s352, 4
        %s354 = scalar_lea.vmem %s1, %s353
        %p355 = pneg %p85
        %p356 = pneg %p82
        %p357 = scmp.lt.s32.totalorder %s21, 0
        %s358 = scalar_select %p357, %s21, 0
        %s359 = scalar_lea.vmem %s2, %s358
        %p360 = pneg %p111
        %p361 = pneg %p108
        %s362 = smul.u32 16, %s20
        %p363 = scmp.lt.s32.totalorder %s362, 15
        %s364 = scalar_select %p363, %s362, 15
        %p365 = scmp.lt.s32.totalorder %s21, 0
        %s366 = scalar_select %p365, %s21, 0
        %s367 = sadd.s32 %s366, %s364
        %s368 = smul.addr %s367, 8
        %s369 = scalar_lea.vmem %s3, %s368
        %p370 = pneg %p139
        %p371 = pneg %p136
        %p372 = pneg %p167
        %p373 = pneg %p164
        %s374 = smul.u32 16, %s20
        %p375 = scmp.lt.s32.totalorder %s374, 15
        %s376 = scalar_select %p375, %s374, 15
        %p377 = scmp.lt.s32.totalorder %s21, 0
        %s378 = scalar_select %p377, %s21, 0
        %s379 = sadd.s32 %s378, %s376
        %s380 = smul.addr %s379, 8
        %s381 = scalar_lea.vmem %s4, %s380
        %s382 = smul.u32 16, %s20
        %s383 = smul.u32 16, %s22
        %p384 = scmp.lt.s32.totalorder %s383, 47
        %s385 = scalar_select %p384, %s383, 47
        %p386 = scmp.lt.s32.totalorder %s21, 0
        %s387 = scalar_select %p386, %s21, 0
        %s388 = sadd.s32 %s387, %s385
        %s389 = smul.addr %s388, 4
        %s390 = scalar_lea.vmem %s1, %s389
        %s391 = smul.u32 16, %s22
        %p392 = scmp.lt.s32.totalorder %s21, 0
        %s393 = scalar_select %p392, %s21, 0
        %s394 = scalar_lea.vmem %s2, %s393
        %s395 = smul.u32 16, %s20
        %p396 = scmp.lt.s32.totalorder %s395, 15
        %s397 = scalar_select %p396, %s395, 15
        %p398 = scmp.lt.s32.totalorder %s21, 0
        %s399 = scalar_select %p398, %s21, 0
        %s400 = sadd.s32 %s399, %s397
        %s401 = smul.addr %s400, 8
        %s402 = scalar_lea.vmem %s3, %s401
        %s403 = smul.u32 16, %s20
        %s404 = smul.u32 16, %s20
        %p405 = scmp.lt.s32.totalorder %s404, 15
        %s406 = scalar_select %p405, %s404, 15
        %p407 = scmp.lt.s32.totalorder %s21, 0
        %s408 = scalar_select %p407, %s21, 0
        %s409 = sadd.s32 %s408, %s406
        %s410 = smul.addr %s409, 8
        %s411 = scalar_lea.vmem %s4, %s410
        %s412 = smul.u32 16, %s20
        %p414 = scmp.eq.s32.totalorder %s22, 0
        // Predicated region
        $region78: #{_lambda_.22} parent=72 // pred_check
          %p415 = pneg %p414
        $region79: #{_lambda_.22} parent=72 // pred_check_branch
          %417 = sbr.rel (%p415) target = $region81
        $region80: #{_lambda_.22} parent=72 // pred_region
          %418 = vst [vmem:[#allocation2] sm:$0xff] 0.0
          %419 = vst [vmem:[#allocation2 + $0x8] sm:$0xff] 0.0
          %420 = vst [vmem:[#allocation2 + $0x10] sm:$0xff] 0.0
          %421 = vst [vmem:[#allocation2 + $0x18] sm:$0xff] 0.0
          %422 = vst [vmem:[#allocation2 + $0x20] sm:$0xff] 0.0
          %423 = vst [vmem:[#allocation2 + $0x28] sm:$0xff] 0.0
          %424 = vst [vmem:[#allocation2 + $0x30] sm:$0xff] 0.0
          %425 = vst [vmem:[#allocation2 + $0x38] sm:$0xff] 0.0
          %426 = vst [vmem:[#allocation2 + $0x40] sm:$0xff] 0.0
          %427 = vst [vmem:[#allocation2 + $0x48] sm:$0xff] 0.0
          %428 = vst [vmem:[#allocation2 + $0x50] sm:$0xff] 0.0
          %429 = vst [vmem:[#allocation2 + $0x58] sm:$0xff] 0.0
          %430 = vst [vmem:[#allocation2 + $0x60] sm:$0xff] 0.0
          %431 = vst [vmem:[#allocation2 + $0x68] sm:$0xff] 0.0
          %432 = vst [vmem:[#allocation2 + $0x70] sm:$0xff] 0.0
          %433 = vst [vmem:[#allocation2 + $0x78] sm:$0xff] 0.0
        $region81: #{_lambda_.22} parent=72 // pred_fallthru
          _
        %v434 = vld [vmem:[#allocation2] sm:$0xff]
        %v435 = vld [vmem:[#allocation2 + $0x8] sm:$0xff]
        %v436 = vld [vmem:[#allocation2 + $0x10] sm:$0xff]
        %v437 = vld [vmem:[#allocation2 + $0x18] sm:$0xff]
        %v438 = vld [vmem:[#allocation2 + $0x20] sm:$0xff]
        %v439 = vld [vmem:[#allocation2 + $0x28] sm:$0xff]
        %v440 = vld [vmem:[#allocation2 + $0x30] sm:$0xff]
        %v441 = vld [vmem:[#allocation2 + $0x38] sm:$0xff]
        %v442 = vld [vmem:[#allocation2 + $0x40] sm:$0xff]
        %v443 = vld [vmem:[#allocation2 + $0x48] sm:$0xff]
        %v444 = vld [vmem:[#allocation2 + $0x50] sm:$0xff]
        %v445 = vld [vmem:[#allocation2 + $0x58] sm:$0xff]
        %v446 = vld [vmem:[#allocation2 + $0x60] sm:$0xff]
        %v447 = vld [vmem:[#allocation2 + $0x68] sm:$0xff]
        %v448 = vld [vmem:[#allocation2 + $0x70] sm:$0xff]
        %v449 = vld [vmem:[#allocation2 + $0x78] sm:$0xff]
        %v450 = vld [vmem:[%s337] sm:$0xf]
        %v451 = vld [vmem:[%s337 + $0x4] sm:$0xf]
        %v452 = vld [vmem:[%s337 + $0x8] sm:$0xf]
        %v453 = vld [vmem:[%s337 + $0xc] sm:$0xf]
        %v454 = vld [vmem:[%s337 + $0x10] sm:$0xf]
        %v455 = vld [vmem:[%s337 + $0x14] sm:$0xf]
        %v456 = vld [vmem:[%s337 + $0x18] sm:$0xf]
        %v457 = vld [vmem:[%s337 + $0x1c] sm:$0xf]
        %v458 = vld [vmem:[%s337 + $0x20] sm:$0xf]
        %v459 = vld [vmem:[%s337 + $0x24] sm:$0xf]
        %v460 = vld [vmem:[%s337 + $0x28] sm:$0xf]
        %v461 = vld [vmem:[%s337 + $0x2c] sm:$0xf]
        %v462 = vld [vmem:[%s337 + $0x30] sm:$0xf]
        %v463 = vld [vmem:[%s337 + $0x34] sm:$0xf]
        %v464 = vld [vmem:[%s337 + $0x38] sm:$0xf]
        %v465 = vld [vmem:[%s337 + $0x3c] sm:$0xf]
        %v466 = vld [vmem:[%s390] sm:$0xf]
        %v467 = vld [vmem:[%s390 + $0x4] sm:$0xf]
        %v468 = vld [vmem:[%s390 + $0x8] sm:$0xf]
        %v469 = vld [vmem:[%s390 + $0xc] sm:$0xf]
        %v470 = vld [vmem:[%s390 + $0x10] sm:$0xf]
        %v471 = vld [vmem:[%s390 + $0x14] sm:$0xf]
        %v472 = vld [vmem:[%s390 + $0x18] sm:$0xf]
        %v473 = vld [vmem:[%s390 + $0x1c] sm:$0xf]
        %v474 = vld [vmem:[%s390 + $0x20] sm:$0xf]
        %v475 = vld [vmem:[%s390 + $0x24] sm:$0xf]
        %v476 = vld [vmem:[%s390 + $0x28] sm:$0xf]
        %v477 = vld [vmem:[%s390 + $0x2c] sm:$0xf]
        %v478 = vld [vmem:[%s390 + $0x30] sm:$0xf]
        %v479 = vld [vmem:[%s390 + $0x34] sm:$0xf]
        %v480 = vld [vmem:[%s390 + $0x38] sm:$0xf]
        %v481 = vld [vmem:[%s390 + $0x3c] sm:$0xf]
        %v498 = vunpack.c.l.b16 %v450
        %v499 = vunpack.c.l.b16 %v451
        %v500 = vunpack.c.l.b16 %v452
        %v501 = vunpack.c.l.b16 %v453
        %v502 = vunpack.c.l.b16 %v454
        %v503 = vunpack.c.l.b16 %v455
        %v504 = vunpack.c.l.b16 %v456
        %v505 = vunpack.c.l.b16 %v457
        %v506 = vunpack.c.l.b16 %v458
        %v507 = vunpack.c.l.b16 %v459
        %v508 = vunpack.c.l.b16 %v460
        %v509 = vunpack.c.l.b16 %v461
        %v510 = vunpack.c.l.b16 %v462
        %v511 = vunpack.c.l.b16 %v463
        %v512 = vunpack.c.l.b16 %v464
        %v513 = vunpack.c.l.b16 %v465
        %v514 = vpack.c.b16 %v499, %v498
        %v515 = vpack.c.b16 %v501, %v500
        %v516 = vpack.c.b16 %v503, %v502
        %v517 = vpack.c.b16 %v505, %v504
        %v518 = vpack.c.b16 %v507, %v506
        %v519 = vpack.c.b16 %v509, %v508
        %v520 = vpack.c.b16 %v511, %v510
        %v521 = vpack.c.b16 %v513, %v512
        %v546 = vunpack.c.l.b16 %v466
        %v547 = vunpack.c.l.b16 %v467
        %v548 = vunpack.c.l.b16 %v468
        %v549 = vunpack.c.l.b16 %v469
        %v550 = vunpack.c.l.b16 %v470
        %v551 = vunpack.c.l.b16 %v471
        %v552 = vunpack.c.l.b16 %v472
        %v553 = vunpack.c.l.b16 %v473
        %v554 = vunpack.c.l.b16 %v474
        %v555 = vunpack.c.l.b16 %v475
        %v556 = vunpack.c.l.b16 %v476
        %v557 = vunpack.c.l.b16 %v477
        %v558 = vunpack.c.l.b16 %v478
        %v559 = vunpack.c.l.b16 %v479
        %v560 = vunpack.c.l.b16 %v480
        %v561 = vunpack.c.l.b16 %v481
        %v562 = vpack.c.b16 %v547, %v546
        %v563 = vpack.c.b16 %v549, %v548
        %v564 = vpack.c.b16 %v551, %v550
        %v565 = vpack.c.b16 %v553, %v552
        %v566 = vpack.c.b16 %v555, %v554
        %v567 = vpack.c.b16 %v557, %v556
        %v568 = vpack.c.b16 %v559, %v558
        %v569 = vpack.c.b16 %v561, %v560
        %578 = vmatprep.subr.bf16.mxu0 0
        %579 = vmatpush1.bf16.msra.mxu0 %v562
        %580 = vmatprep.subr.bf16.mxu0 0
        %581 = vmatpush1.bf16.msra.mxu0 %v563
        %582 = vmatprep.subr.bf16.mxu0 0
        %583 = vmatpush1.bf16.msra.mxu0 %v564
        %584 = vmatprep.subr.bf16.mxu0 0
        %585 = vmatpush1.bf16.msra.mxu0 %v565
        %586 = vmatprep.subr.bf16.mxu0 0
        %587 = vmatpush1.bf16.msra.mxu0 %v566
        %588 = vmatprep.subr.bf16.mxu0 0
        %589 = vmatpush1.bf16.msra.mxu0 %v567
        %590 = vmatprep.subr.bf16.mxu0 0
        %591 = vmatpush1.bf16.msra.mxu0 %v568
        %592 = vmatprep.subr.bf16.mxu0 0
        %593 = vmatpush1.bf16.msra.mxu0 %v569
        %594 = vmatprep.subr.bf16.mxu0 0
        %595 = vmatpush1.bf16.msra.mxu0 0
        %596 = vmatprep.subr.bf16.mxu0 0
        %597 = vmatpush1.bf16.msra.mxu0 0
        %598 = vmatprep.subr.bf16.mxu0 0
        %599 = vmatpush1.bf16.msra.mxu0 0
        %600 = vmatprep.subr.bf16.mxu0 0
        %601 = vmatpush1.bf16.msra.mxu0 0
        %602 = vmatprep.subr.bf16.mxu0 0
        %603 = vmatpush1.bf16.msra.mxu0 0
        %604 = vmatprep.subr.bf16.mxu0 0
        %605 = vmatpush1.bf16.msra.mxu0 0
        %606 = vmatprep.subr.bf16.mxu0 0
        %607 = vmatpush1.bf16.msra.mxu0 0
        %608 = vmatprep.subr.bf16.mxu0 0
        %609 = vmatpush1.bf16.msra.mxu0 0
        %610 = vmatprep.mubr.bf16.mxu0 0
        %611 = vmatmul.mubr.bf16.gmra.mrb[0].mxu0 %v514
        %v612 = vpop.f32.mrb[0].mxu0
        %v613 = vadd.f32 0.0, %v612
        %v614 = vpop.f32.mrb[0].mxu0
        %v615 = vpop.f32.mrb[0].mxu0
        %v616 = vadd.f32 0.0, %v615
        %v617 = vpop.f32.mrb[0].mxu0
        %618 = vmatprep.mubr.bf16.mxu0 0
        %619 = vmatmul.mubr.bf16.gmra.mrb[0].mxu0 %v515
        %v620 = vpop.f32.mrb[0].mxu0
        %v621 = vadd.f32 0.0, %v620
        %v622 = vpop.f32.mrb[0].mxu0
        %v623 = vpop.f32.mrb[0].mxu0
        %v624 = vadd.f32 0.0, %v623
        %v625 = vpop.f32.mrb[0].mxu0
        %626 = vmatprep.mubr.bf16.mxu0 0
        %627 = vmatmul.mubr.bf16.gmra.mrb[0].mxu0 %v516
        %v628 = vpop.f32.mrb[0].mxu0
        %v629 = vadd.f32 0.0, %v628
        %v630 = vpop.f32.mrb[0].mxu0
        %v631 = vpop.f32.mrb[0].mxu0
        %v632 = vadd.f32 0.0, %v631
        %v633 = vpop.f32.mrb[0].mxu0
        %634 = vmatprep.mubr.bf16.mxu0 0
        %635 = vmatmul.mubr.bf16.gmra.mrb[0].mxu0 %v517
        %v636 = vpop.f32.mrb[0].mxu0
        %v637 = vadd.f32 0.0, %v636
        %v638 = vpop.f32.mrb[0].mxu0
        %v639 = vpop.f32.mrb[0].mxu0
        %v640 = vadd.f32 0.0, %v639
        %v641 = vpop.f32.mrb[0].mxu0
        %642 = vmatprep.mubr.bf16.mxu0 0
        %643 = vmatmul.mubr.bf16.gmra.mrb[0].mxu0 %v518
        %v644 = vpop.f32.mrb[0].mxu0
        %v645 = vadd.f32 0.0, %v644
        %v646 = vpop.f32.mrb[0].mxu0
        %v647 = vpop.f32.mrb[0].mxu0
        %v648 = vadd.f32 0.0, %v647
        %v649 = vpop.f32.mrb[0].mxu0
        %650 = vmatprep.mubr.bf16.mxu0 0
        %651 = vmatmul.mubr.bf16.gmra.mrb[0].mxu0 %v519
        %v652 = vpop.f32.mrb[0].mxu0
        %v653 = vadd.f32 0.0, %v652
        %v654 = vpop.f32.mrb[0].mxu0
        %v655 = vpop.f32.mrb[0].mxu0
        %v656 = vadd.f32 0.0, %v655
        %v657 = vpop.f32.mrb[0].mxu0
        %658 = vmatprep.mubr.bf16.mxu0 0
        %659 = vmatmul.mubr.bf16.gmra.mrb[0].mxu0 %v520
        %v660 = vpop.f32.mrb[0].mxu0
        %v661 = vadd.f32 0.0, %v660
        %v662 = vpop.f32.mrb[0].mxu0
        %v663 = vpop.f32.mrb[0].mxu0
        %v664 = vadd.f32 0.0, %v663
        %v665 = vpop.f32.mrb[0].mxu0
        %666 = vmatprep.mubr.bf16.mxu0 0
        %667 = vmatmul.mubr.bf16.gmra.mrb[0].mxu0 %v521
        %v668 = vpop.f32.mrb[0].mxu0
        %v669 = vadd.f32 0.0, %v668
        %v670 = vpop.f32.mrb[0].mxu0
        %v671 = vpop.f32.mrb[0].mxu0
        %v672 = vadd.f32 0.0, %v671
        %v673 = vpop.f32.mrb[0].mxu0
        %674 = vdwg.mxu0
        %v675 = vadd.f32 %v434, %v613
        %v676 = vadd.f32 %v435, %v616
        %v677 = vadd.f32 %v436, %v621
        %v678 = vadd.f32 %v437, %v624
        %v679 = vadd.f32 %v438, %v629
        %v680 = vadd.f32 %v439, %v632
        %v681 = vadd.f32 %v440, %v637
        %v682 = vadd.f32 %v441, %v640
        %v683 = vadd.f32 %v442, %v645
        %v684 = vadd.f32 %v443, %v648
        %v685 = vadd.f32 %v444, %v653
        %v686 = vadd.f32 %v445, %v656
        %v687 = vadd.f32 %v446, %v661
        %v688 = vadd.f32 %v447, %v664
        %v689 = vadd.f32 %v448, %v669
        %v690 = vadd.f32 %v449, %v672
        %691 = vst [vmem:[#allocation2] sm:$0xff] %v675
        %692 = vst [vmem:[#allocation2 + $0x8] sm:$0xff] %v676
        %693 = vst [vmem:[#allocation2 + $0x10] sm:$0xff] %v677
        %694 = vst [vmem:[#allocation2 + $0x18] sm:$0xff] %v678
        %695 = vst [vmem:[#allocation2 + $0x20] sm:$0xff] %v679
        %696 = vst [vmem:[#allocation2 + $0x28] sm:$0xff] %v680
        %697 = vst [vmem:[#allocation2 + $0x30] sm:$0xff] %v681
        %698 = vst [vmem:[#allocation2 + $0x38] sm:$0xff] %v682
        %699 = vst [vmem:[#allocation2 + $0x40] sm:$0xff] %v683
        %700 = vst [vmem:[#allocation2 + $0x48] sm:$0xff] %v684
        %701 = vst [vmem:[#allocation2 + $0x50] sm:$0xff] %v685
        %702 = vst [vmem:[#allocation2 + $0x58] sm:$0xff] %v686
        %703 = vst [vmem:[#allocation2 + $0x60] sm:$0xff] %v687
        %704 = vst [vmem:[#allocation2 + $0x68] sm:$0xff] %v688
        %705 = vst [vmem:[#allocation2 + $0x70] sm:$0xff] %v689
        %706 = vst [vmem:[#allocation2 + $0x78] sm:$0xff] %v690
        %p707 = scmp.eq.s32.totalorder %s22, 2
        // Predicated region
        $region82: #{_lambda_.22} parent=72 // pred_check
          %p708 = pneg %p707
        $region83: #{_lambda_.22} parent=72 // pred_check_branch
          %710 = sbr.rel (%p708) target = $region85
        $region84: #{_lambda_.22} parent=72 // pred_region
          %v711 = vld [vmem:[#allocation2] sm:$0xff]
          %v712 = vld [vmem:[#allocation2 + $0x8] sm:$0xff]
          %v713 = vld [vmem:[#allocation2 + $0x10] sm:$0xff]
          %v714 = vld [vmem:[#allocation2 + $0x18] sm:$0xff]
          %v715 = vld [vmem:[#allocation2 + $0x20] sm:$0xff]
          %v716 = vld [vmem:[#allocation2 + $0x28] sm:$0xff]
          %v717 = vld [vmem:[#allocation2 + $0x30] sm:$0xff]
          %v718 = vld [vmem:[#allocation2 + $0x38] sm:$0xff]
          %v719 = vld [vmem:[#allocation2 + $0x40] sm:$0xff]
          %v720 = vld [vmem:[#allocation2 + $0x48] sm:$0xff]
          %v721 = vld [vmem:[#allocation2 + $0x50] sm:$0xff]
          %v722 = vld [vmem:[#allocation2 + $0x58] sm:$0xff]
          %v723 = vld [vmem:[#allocation2 + $0x60] sm:$0xff]
          %v724 = vld [vmem:[#allocation2 + $0x68] sm:$0xff]
          %v725 = vld [vmem:[#allocation2 + $0x70] sm:$0xff]
          %v726 = vld [vmem:[#allocation2 + $0x78] sm:$0xff]
          %v727 = vld [vmem:[%s394] sm:$0x1]
          %v729 = vlaneseq
          %v730 = vshrl.u32 %v729, 7
          %v731 = vsub.s32 0, %v730
          %v732 = vrot.slane %v727, %v731
          %v734 = vadd.f32 %v711, %v732
          %v735 = vadd.f32 %v712, %v732
          %v736 = vadd.f32 %v713, %v732
          %v737 = vadd.f32 %v714, %v732
          %v738 = vadd.f32 %v715, %v732
          %v739 = vadd.f32 %v716, %v732
          %v740 = vadd.f32 %v717, %v732
          %v741 = vadd.f32 %v718, %v732
          %v742 = vadd.f32 %v719, %v732
          %v743 = vadd.f32 %v720, %v732
          %v744 = vadd.f32 %v721, %v732
          %v745 = vadd.f32 %v722, %v732
          %v746 = vadd.f32 %v723, %v732
          %v747 = vadd.f32 %v724, %v732
          %v748 = vadd.f32 %v725, %v732
          %v749 = vadd.f32 %v726, %v732
          %v750 = vld [vmem:[%s402] sm:$0xff]
          %v751 = vld [vmem:[%s402 + $0x8] sm:$0xff]
          %v752 = vld [vmem:[%s402 + $0x10] sm:$0xff]
          %v753 = vld [vmem:[%s402 + $0x18] sm:$0xff]
          %v754 = vld [vmem:[%s402 + $0x20] sm:$0xff]
          %v755 = vld [vmem:[%s402 + $0x28] sm:$0xff]
          %v756 = vld [vmem:[%s402 + $0x30] sm:$0xff]
          %v757 = vld [vmem:[%s402 + $0x38] sm:$0xff]
          %v758 = vld [vmem:[%s402 + $0x40] sm:$0xff]
          %v759 = vld [vmem:[%s402 + $0x48] sm:$0xff]
          %v760 = vld [vmem:[%s402 + $0x50] sm:$0xff]
          %v761 = vld [vmem:[%s402 + $0x58] sm:$0xff]
          %v762 = vld [vmem:[%s402 + $0x60] sm:$0xff]
          %v763 = vld [vmem:[%s402 + $0x68] sm:$0xff]
          %v764 = vld [vmem:[%s402 + $0x70] sm:$0xff]
          %v765 = vld [vmem:[%s402 + $0x78] sm:$0xff]
          %v766 = vadd.f32 %v734, %v750
          %v767 = vadd.f32 %v735, %v751
          %v768 = vadd.f32 %v736, %v752
          %v769 = vadd.f32 %v737, %v753
          %v770 = vadd.f32 %v738, %v754
          %v771 = vadd.f32 %v739, %v755
          %v772 = vadd.f32 %v740, %v756
          %v773 = vadd.f32 %v741, %v757
          %v774 = vadd.f32 %v742, %v758
          %v775 = vadd.f32 %v743, %v759
          %v776 = vadd.f32 %v744, %v760
          %v777 = vadd.f32 %v745, %v761
          %v778 = vadd.f32 %v746, %v762
          %v779 = vadd.f32 %v747, %v763
          %v780 = vadd.f32 %v748, %v764
          %v781 = vadd.f32 %v749, %v765
          %v782 = vmax.f32 %v766, 0.0
          %v783 = vmax.f32 %v767, 0.0
          %v784 = vmax.f32 %v768, 0.0
          %v785 = vmax.f32 %v769, 0.0
          %v786 = vmax.f32 %v770, 0.0
          %v787 = vmax.f32 %v771, 0.0
          %v788 = vmax.f32 %v772, 0.0
          %v789 = vmax.f32 %v773, 0.0
          %v790 = vmax.f32 %v774, 0.0
          %v791 = vmax.f32 %v775, 0.0
          %v792 = vmax.f32 %v776, 0.0
          %v793 = vmax.f32 %v777, 0.0
          %v794 = vmax.f32 %v778, 0.0
          %v795 = vmax.f32 %v779, 0.0
          %v796 = vmax.f32 %v780, 0.0
          %v797 = vmax.f32 %v781, 0.0
          %798 = vst [vmem:[%s411] sm:$0xff] %v782
          %799 = vst [vmem:[%s411 + $0x8] sm:$0xff] %v783
          %800 = vst [vmem:[%s411 + $0x10] sm:$0xff] %v784
          %801 = vst [vmem:[%s411 + $0x18] sm:$0xff] %v785
          %802 = vst [vmem:[%s411 + $0x20] sm:$0xff] %v786
          %803 = vst [vmem:[%s411 + $0x28] sm:$0xff] %v787
          %804 = vst [vmem:[%s411 + $0x30] sm:$0xff] %v788
          %805 = vst [vmem:[%s411 + $0x38] sm:$0xff] %v789
          %806 = vst [vmem:[%s411 + $0x40] sm:$0xff] %v790
          %807 = vst [vmem:[%s411 + $0x48] sm:$0xff] %v791
          %808 = vst [vmem:[%s411 + $0x50] sm:$0xff] %v792
          %809 = vst [vmem:[%s411 + $0x58] sm:$0xff] %v793
          %810 = vst [vmem:[%s411 + $0x60] sm:$0xff] %v794
          %811 = vst [vmem:[%s411 + $0x68] sm:$0xff] %v795
          %812 = vst [vmem:[%s411 + $0x70] sm:$0xff] %v796
          %813 = vst [vmem:[%s411 + $0x78] sm:$0xff] %v797
        $region85: #{_lambda_.22} parent=72 // pred_fallthru
          _
        %s814 = smul.u32 16, %s20
        %p815 = scmp.lt.s32.totalorder %s814, 15
        %s816 = scalar_select %p815, %s814, 15
        %p817 = scmp.lt.s32.totalorder %s21, 0
        %s818 = scalar_select %p817, %s21, 0
        %s819 = sadd.s32 %s818, %s816
        %s820 = smul.addr %s819, 8
        %s821 = scalar_lea.vmem %s4, %s820
        // Predicated region
        $region86: #{_lambda_.22} parent=72 // pred_check
          %p822 = pneg %p164
        $region87: #{_lambda_.22} parent=72 // pred_check_branch
          %824 = sbr.rel (%p822) target = $region89
        $region88: #{_lambda_.22} parent=72 // pred_region
          %s825 = smul.u32 16, %s20
        $region89: #{_lambda_.22} parent=72 // pred_fallthru
          _
        // Predicated region
        $region90: #{_lambda_.22} parent=72 // pred_check
          %p826 = pneg %p164
        $region91: #{_lambda_.22} parent=72 // pred_check_branch
          %828 = sbr.rel (%p826) target = $region93
        $region92: #{_lambda_.22} parent=72 // pred_region
          %s829 = smul.u32 16, %s20
          %p830 = scmp.lt.s32.totalorder %s829, 15
          %s831 = scalar_select %p830, %s829, 15
          %p832 = scmp.lt.s32.totalorder %s21, 0
          %s833 = scalar_select %p832, %s21, 0
          %s834 = sadd.s32 %s833, %s831
          %s835 = smul.addr %s834, 8
          %s836 = scalar_lea.vmem %s4, %s835
        $region93: #{_lambda_.22} parent=72 // pred_fallthru
          _
      $region73: #{_lambda_.22} parent=5 // pred_fallthru
        _
      %p837 = scmp.le.s32.totalorder 2, %s10
      // Predicated region
      $region94: #{_lambda_.22} parent=5 // pred_check
        %p838 = pneg %p837
      $region95: #{_lambda_.22} parent=5 // pred_check_branch
        %840 = sbr.rel (%p838) target = $region97
      $region96: #{_lambda_.22} parent=5 // pred_region
        %s841 = ssub.s32 %s10, 2
      $region97: #{_lambda_.22} parent=5 // pred_fallthru
        _
    $region6: #{_lambda_.22} parent=1 // loop_footer
      %s14 = sadd.s32 1, %s10
    $region7: #{_lambda_.22} parent=1 // loop_footer_branch
      %9 = sbr.rel target = $region3
    $region8: #{_lambda_.22} parent=1 // loop_exit
      _

// kernel: _lambda_.24
$region0: #{_lambda_.24}
  #allocation0 [shape = 'u32[]', space=smem, size = 0x4, offset = 0x4, fixed_abs, tag = 'smem constant byte address 0x4 - core index']
  #allocation1 [shape = 'u32[144,128]{1,0:T(1,128)}', space=vmem, size = 0x12000, scoped, tag = 'internal scratch']
  #allocation2 [shape = 'f32[32,128]{1,0:T(8,128)}', space=vmem, size = 0x4000, scoped, tag = 'scratch operand']
  %s0 = inlined_call_operand.vmem [shape: bf16[32,384], index: 0, kind: input, shape index: {}]
  %s1 = inlined_call_operand.vmem [shape: bf16[384,128], index: 1, kind: input, shape index: {}]
  %s2 = inlined_call_operand.vmem [shape: f32[1,128], index: 2, kind: input, shape index: {}]
  %s3 = inlined_call_operand.vmem [shape: f32[32,128], index: 3, kind: output, shape index: {}]
  %s4 = sld [smem:[#allocation0]]
  $region94: #{_lambda_.24} parent=0
    _
  %s6 = ssub.s32 1, %s4
  %s7 = scalar_select 0, %s6, %s4
  $region1: #{_lambda_.24} parent=0
    #allocation3 [shape = 'u8[16384]{0}', space=vmem, size = 0x4000, scoped, tag = 'input window, operand 0']
    loop: start=0, step=1, limit=5
    $region2: #{_lambda_.24} parent=1 // loop_pre_header
      _
    $region3: #{_lambda_.24} parent=1 // loop_header
      %s9 = sphi 0, %s13
      %p10 = scmp.ge.s32.totalorder %s9, 5
      %s16 = sphi 0, %s35
      %s17 = sphi 0, %s31
      %s18 = sphi 0, %s27
      %s19 = sphi 0, %s16
      %s20 = sphi 0, %s17
      %s21 = sphi 0, %s18
      %s22 = sphi 0, %s19
      %s23 = sphi 0, %s20
      %s24 = sphi 0, %s21
      %s40 = sphi 0, %s42
      %s43 = sphi 0, %s40
      %s44 = sphi 0, %s43
      %s60 = sphi 0, %s44
      %s68 = sphi 0, %s70
      %s71 = sphi 0, %s68
      %s72 = sphi 0, %s71
      %s88 = sphi 0, %s72
      %s94 = sphi 0, %s96
      %s97 = sphi 0, %s94
      %s98 = sphi 0, %s97
      %s114 = sphi 0, %s98
      %s122 = sphi 0, %s124
      %s125 = sphi 0, %s122
      %s126 = sphi 0, %s125
      %s142 = sphi 0, %s126
    $region4: #{_lambda_.24} parent=1 // loop_header_branch
      %12 = sbr.rel (%p10) target = $region8
    $region5: #{_lambda_.24} parent=1 // loop_body
      %s14 = ssub.s32 %s9, 1
      %s15 = ssub.s32 %s9, 2
      %s25 = sadd.s32 1, %s18
      %p26 = scmp.ge.s32.totalorder %s25, 3
      %s27 = scalar_select %p26, 0, %s25
      %s28 = sadd.s32 1, %s17
      %s29 = scalar_select %p26, %s28, %s17
      %p30 = scmp.ge.s32.totalorder %s29, 1
      %s31 = scalar_select %p30, 0, %s29
      %s32 = sadd.s32 1, %s16
      %s33 = scalar_select %p30, %s32, %s16
      %p34 = scmp.ge.s32.totalorder %s33, 1
      %s35 = scalar_select %p34, 0, %s33
      %s36 = ssub.s32 %s16, %s35
      %s37 = ssub.s32 %s18, %s27
      %s38 = sor.u32 %s36, %s37
      %p39 = scmp.eq.s32.totalorder %s38, 0
      %s41 = sadd.s32 %s40, 1
      %s42 = scalar_select %p39, %s40, %s41
      %p45 = pneg %p39
      %p46 = scmp.eq.s32.totalorder %s9, 2
      %p47 = por %p45, %p46
      %p48 = scmp.ne.s32.totalorder %s40, %s43
      %p49 = scmp.eq.s32.totalorder %s9, 0
      %p50 = por %p48, %p49
      %p51 = scmp.ne.s32.totalorder %s40, %s43
      %p52 = scmp.eq.s32.totalorder %s14, 2
      %p53 = por %p51, %p52
      %p54 = scmp.ne.s32.totalorder %s43, %s44
      %p55 = scmp.eq.s32.totalorder %s14, 0
      %p56 = por %p54, %p55
      %p57 = scmp.ne.s32.totalorder %s43, %s44
      %p58 = scmp.eq.s32.totalorder %s15, 2
      %p59 = por %p57, %p58
      %p61 = scmp.ne.s32.totalorder %s44, %s60
      %p62 = scmp.eq.s32.totalorder %s15, 0
      %p63 = por %p61, %p62
      %s64 = ssub.s32 %s18, %s27
      %s65 = ssub.s32 %s17, %s31
      %s66 = sor.u32 %s64, %s65
      %p67 = scmp.eq.s32.totalorder %s66, 0
      %s69 = sadd.s32 %s68, 1
      %s70 = scalar_select %p67, %s68, %s69
      %p73 = pneg %p67
      %p74 = scmp.eq.s32.totalorder %s9, 2
      %p75 = por %p73, %p74
      %p76 = scmp.ne.s32.totalorder %s68, %s71
      %p77 = scmp.eq.s32.totalorder %s9, 0
      %p78 = por %p76, %p77
      %p79 = scmp.ne.s32.totalorder %s68, %s71
      %p80 = scmp.eq.s32.totalorder %s14, 2
      %p81 = por %p79, %p80
      %p82 = scmp.ne.s32.totalorder %s71, %s72
      %p83 = scmp.eq.s32.totalorder %s14, 0
      %p84 = por %p82, %p83
      %p85 = scmp.ne.s32.totalorder %s71, %s72
      %p86 = scmp.eq.s32.totalorder %s15, 2
      %p87 = por %p85, %p86
      %p89 = scmp.ne.s32.totalorder %s72, %s88
      %p90 = scmp.eq.s32.totalorder %s15, 0
      %p91 = por %p89, %p90
      %s92 = ssub.s32 %s17, %s31
      %p93 = scmp.eq.s32.totalorder %s92, 0
      %s95 = sadd.s32 %s94, 1
      %s96 = scalar_select %p93, %s94, %s95
      %p99 = pneg %p93
      %p100 = scmp.eq.s32.totalorder %s9, 2
      %p101 = por %p99, %p100
      %p102 = scmp.ne.s32.totalorder %s94, %s97
      %p103 = scmp.eq.s32.totalorder %s9, 0
      %p104 = por %p102, %p103
      %p105 = scmp.ne.s32.totalorder %s94, %s97
      %p106 = scmp.eq.s32.totalorder %s14, 2
      %p107 = por %p105, %p106
      %p108 = scmp.ne.s32.totalorder %s97, %s98
      %p109 = scmp.eq.s32.totalorder %s14, 0
      %p110 = por %p108, %p109
      %p111 = scmp.ne.s32.totalorder %s97, %s98
      %p112 = scmp.eq.s32.totalorder %s15, 2
      %p113 = por %p111, %p112
      %p115 = scmp.ne.s32.totalorder %s98, %s114
      %p116 = scmp.eq.s32.totalorder %s15, 0
      %p117 = por %p115, %p116
      %s118 = ssub.s32 %s16, %s35
      %s119 = ssub.s32 %s17, %s31
      %s120 = sor.u32 %s118, %s119
      %p121 = scmp.eq.s32.totalorder %s120, 0
      %s123 = sadd.s32 %s122, 1
      %s124 = scalar_select %p121, %s122, %s123
      %p127 = pneg %p121
      %p128 = scmp.eq.s32.totalorder %s9, 2
      %p129 = por %p127, %p128
      %p130 = scmp.ne.s32.totalorder %s122, %s125
      %p131 = scmp.eq.s32.totalorder %s9, 0
      %p132 = por %p130, %p131
      %p133 = scmp.ne.s32.totalorder %s122, %s125
      %p134 = scmp.eq.s32.totalorder %s14, 2
      %p135 = por %p133, %p134
      %p136 = scmp.ne.s32.totalorder %s125, %s126
      %p137 = scmp.eq.s32.totalorder %s14, 0
      %p138 = por %p136, %p137
      %p139 = scmp.ne.s32.totalorder %s125, %s126
      %p140 = scmp.eq.s32.totalorder %s15, 2
      %p141 = por %p139, %p140
      %p143 = scmp.ne.s32.totalorder %s126, %s142
      %p144 = scmp.eq.s32.totalorder %s15, 0
      %p145 = por %p143, %p144
      %p146 = scmp.le.s32.totalorder 1, %s9
      %p147 = scmp.lt.s32.totalorder %s9, 4
      %p148 = pnand %p146, %p147
      %p149 = pneg %p148
      // Predicated region
      $region9: #{_lambda_.24} parent=5 // pred_check
        _
      $region10: #{_lambda_.24} parent=5 // pred_check_branch
        %151 = sbr.rel (%p148) target = $region12
      $region11: #{_lambda_.24} parent=5 // pred_region
        %s152 = ssub.s32 %s9, 1
        // Predicated region
        $region13: #{_lambda_.24} parent=11 // pred_check
          %p153 = pneg %p110
        $region14: #{_lambda_.24} parent=11 // pred_check_branch
          %155 = sbr.rel (%p153) target = $region16
        $region15: #{_lambda_.24} parent=11 // pred_region
          %p156 = scmp.lt.s32.totalorder %s20, 0
          %s157 = scalar_select %p156, %s20, 0
          %s158 = scalar_lea.vmem %s2, %s157
        $region16: #{_lambda_.24} parent=11 // pred_fallthru
          _
      $region12: #{_lambda_.24} parent=5 // pred_fallthru
        _
      %p159 = scmp.lt.s32.totalorder %s9, 3
      // Predicated region
      $region17: #{_lambda_.24} parent=5 // pred_check
        %p160 = pneg %p159
      $region18: #{_lambda_.24} parent=5 // pred_check_branch
        %162 = sbr.rel (%p160) target = $region20
      $region19: #{_lambda_.24} parent=5 // pred_region
        // Predicated region
        $region21: #{_lambda_.24} parent=19 // pred_check
          %p163 = pneg %p50
        $region22: #{_lambda_.24} parent=19 // pred_check_branch
          %165 = sbr.rel (%p163) target = $region24
        $region23: #{_lambda_.24} parent=19 // pred_region
          %s166 = sand.u32 %s40, 1
          %s167 = sand.u32 %s40, 1
          %s168 = smul.addr %s167, 16
          %s169 = scalar_lea.vmem [#allocation3], %s168
          %s170 = smul.u32 4, %s16
          %s171 = smul.addr %s170, 3
          %s172 = sadd.s32 %s18, %s171
          %s173 = smul.addr %s172, 4
          %s174 = scalar_lea.vmem %s0, %s173
          // Predicated region
          $region25: #{_lambda_.24} parent=23 // pred_check
            _
          $region26: #{_lambda_.24} parent=23 // pred_check_branch
            %176 = sbr.rel (0) target = $region28
          $region27: #{_lambda_.24} parent=23 // pred_region
            // Predicated region
            $region29: #{_lambda_.24} parent=27 // pred_check
              _
            $region30: #{_lambda_.24} parent=27 // pred_check_branch
              %178 = sbr.rel target = $region32
            $region31: #{_lambda_.24} parent=27 // pred_region
              // Predicated region
              $region44: #{_lambda_.24} parent=31 // pred_check
                _
              $region45: #{_lambda_.24} parent=31 // pred_check_branch
                %199 = sbr.rel (0) target = $region47
              $region46: #{_lambda_.24} parent=31 // pred_region
                loop: start=0, step=1, limit=1
                $region48: #{_lambda_.24} parent=46 // loop_pre_header
                  _
                $region49: #{_lambda_.24} parent=46 // loop_header
                  %s201 = sphi 0, %s205
                  %p202 = scmp.ge.s32.totalorder %s201, 1
                  %s206 = sphi %s174, %s174
                  %s207 = sphi %s169, %s169
                $region50: #{_lambda_.24} parent=46 // loop_header_branch
                  %204 = sbr.rel (%p202) target = $region54
                $region51: #{_lambda_.24} parent=46 // loop_body
                  _
                $region52: #{_lambda_.24} parent=46 // loop_footer
                  %s205 = sadd.s32 1, %s201
                $region53: #{_lambda_.24} parent=46 // loop_footer_branch
                  %200 = sbr.rel target = $region49
                $region54: #{_lambda_.24} parent=46 // loop_exit
                  _
                loop: start=0, step=1, limit=1
                $region55: #{_lambda_.24} parent=46 // loop_pre_header
                  _
                $region56: #{_lambda_.24} parent=46 // loop_header
                  %s210 = sphi 0, %s214
                  %p211 = scmp.ge.s32.totalorder %s210, 1
                  %s215 = sphi %s174, %s174
                  %s216 = sphi %s169, %s169
                $region57: #{_lambda_.24} parent=46 // loop_header_branch
                  %213 = sbr.rel (%p211) target = $region61
                $region58: #{_lambda_.24} parent=46 // loop_body
                  %v217 = vld [vmem:[%s215] sm:$0xf]
                  %218 = vst [vmem:[%s216] sm:$0xf] %v217
                  %v219 = vld [vmem:[%s215 + $0xc] sm:$0xf]
                  %220 = vst [vmem:[%s216 + $0x4] sm:$0xf] %v219
                  %v221 = vld [vmem:[%s215 + $0x18] sm:$0xf]
                  %222 = vst [vmem:[%s216 + $0x8] sm:$0xf] %v221
                  %v223 = vld [vmem:[%s215 + $0x24] sm:$0xf]
                  %224 = vst [vmem:[%s216 + $0xc] sm:$0xf] %v223
                $region59: #{_lambda_.24} parent=46 // loop_footer
                  %s214 = sadd.s32 1, %s210
                $region60: #{_lambda_.24} parent=46 // loop_footer_branch
                  %209 = sbr.rel target = $region56
                $region61: #{_lambda_.24} parent=46 // loop_exit
                  _
              $region47: #{_lambda_.24} parent=31 // pred_fallthru
                _
            $region32: #{_lambda_.24} parent=27 // pred_fallthru
              _
            // Predicated region
            $region33: #{_lambda_.24} parent=27 // pred_check
              _
            $region34: #{_lambda_.24} parent=27 // pred_check_branch
              %180 = sbr.rel (0) target = $region36
            $region35: #{_lambda_.24} parent=27 // pred_region
              loop: start=0, step=1, limit=1
              $region37: #{_lambda_.24} parent=35 // loop_pre_header
                _
              $region38: #{_lambda_.24} parent=35 // loop_header
                %s183 = sphi 0, %s187
                %p184 = scmp.ge.s32.totalorder %s183, 1
                %s188 = sphi %s174, %s174
                %s189 = sphi %s169, %s169
              $region39: #{_lambda_.24} parent=35 // loop_header_branch
                %186 = sbr.rel (%p184) target = $region43
              $region40: #{_lambda_.24} parent=35 // loop_body
                %v190 = vld [vmem:[%s188] sm:$0xf]
                %191 = vst [vmem:[%s189] sm:$0xf] %v190
                %v192 = vld [vmem:[%s188 + $0xc] sm:$0xf]
                %193 = vst [vmem:[%s189 + $0x4] sm:$0xf] %v192
                %v194 = vld [vmem:[%s188 + $0x18] sm:$0xf]
                %195 = vst [vmem:[%s189 + $0x8] sm:$0xf] %v194
                %v196 = vld [vmem:[%s188 + $0x24] sm:$0xf]
                %197 = vst [vmem:[%s189 + $0xc] sm:$0xf] %v196
              $region41: #{_lambda_.24} parent=35 // loop_footer
                %s187 = sadd.s32 1, %s183
              $region42: #{_lambda_.24} parent=35 // loop_footer_branch
                %182 = sbr.rel target = $region38
              $region43: #{_lambda_.24} parent=35 // loop_exit
                _
            $region36: #{_lambda_.24} parent=27 // pred_fallthru
              _
          $region28: #{_lambda_.24} parent=23 // pred_fallthru
            _
          %225 = vnop
        $region24: #{_lambda_.24} parent=19 // pred_fallthru
          _
        // Predicated region
        $region62: #{_lambda_.24} parent=19 // pred_check
          %p226 = pneg %p78
        $region63: #{_lambda_.24} parent=19 // pred_check_branch
          %228 = sbr.rel (%p226) target = $region65
        $region64: #{_lambda_.24} parent=19 // pred_region
          %s229 = smul.u32 16, %s18
          %p230 = scmp.lt.s32.totalorder %s229, 47
          %s231 = scalar_select %p230, %s229, 47
          %p232 = scmp.lt.s32.totalorder %s17, 0
          %s233 = scalar_select %p232, %s17, 0
          %s234 = sadd.s32 %s233, %s231
          %s235 = smul.addr %s234, 4
          %s236 = scalar_lea.vmem %s1, %s235
          %s237 = smul.u32 16, %s18
        $region65: #{_lambda_.24} parent=19 // pred_fallthru
          _
      $region20: #{_lambda_.24} parent=5 // pred_fallthru
        _
      %p238 = scmp.le.s32.totalorder 1, %s9
      %p239 = scmp.lt.s32.totalorder %s9, 4
      %p240 = pnand %p238, %p239
      %p241 = pneg %p240
      // Predicated region
      $region66: #{_lambda_.24} parent=5 // pred_check
        _
      $region67: #{_lambda_.24} parent=5 // pred_check_branch
        %243 = sbr.rel (%p240) target = $region69
      $region68: #{_lambda_.24} parent=5 // pred_region
        %s244 = ssub.s32 %s9, 1
        %s245 = sand.u32 %s43, 1
        %s246 = sand.u32 %s43, 1
        %s247 = smul.addr %s246, 16
        %s248 = scalar_lea.vmem [#allocation3], %s247
        // Predicated region
        $region70: #{_lambda_.24} parent=68 // pred_check
          %p249 = pneg %p56
        $region71: #{_lambda_.24} parent=68 // pred_check_branch
          %251 = sbr.rel (%p249) target = $region73
        $region72: #{_lambda_.24} parent=68 // pred_region
          _
        $region73: #{_lambda_.24} parent=68 // pred_fallthru
          _
        %s252 = sand.u32 %s43, 1
        %s253 = sand.u32 %s43, 1
        %s254 = smul.addr %s253, 16
        %s255 = scalar_lea.vmem [#allocation3], %s254
        %p256 = pneg %p56
        %p257 = pneg %p53
        %s258 = smul.u32 16, %s21
        %p259 = scmp.lt.s32.totalorder %s258, 47
        %s260 = scalar_select %p259, %s258, 47
        %p261 = scmp.lt.s32.totalorder %s20, 0
        %s262 = scalar_select %p261, %s20, 0
        %s263 = sadd.s32 %s262, %s260
        %s264 = smul.addr %s263, 4
        %s265 = scalar_lea.vmem %s1, %s264
        %p266 = pneg %p84
        %p267 = pneg %p81
        %p268 = scmp.lt.s32.totalorder %s20, 0
        %s269 = scalar_select %p268, %s20, 0
        %s270 = scalar_lea.vmem %s2, %s269
        %p271 = pneg %p110
        %p272 = pneg %p107
        %p273 = pneg %p138
        %p274 = pneg %p135
        %s275 = smul.u32 4, %s19
        %p276 = scmp.lt.s32.totalorder %s275, 3
        %s277 = scalar_select %p276, %s275, 3
        %p278 = scmp.lt.s32.totalorder %s20, 0
        %s279 = scalar_select %p278, %s20, 0
        %s280 = sadd.s32 %s279, %s277
        %s281 = smul.addr %s280, 8
        %s282 = scalar_lea.vmem %s3, %s281
        %s283 = smul.u32 4, %s19
        %s284 = smul.u32 16, %s21
        %p285 = scmp.lt.s32.totalorder %s284, 47
        %s286 = scalar_select %p285, %s284, 47
        %p287 = scmp.lt.s32.totalorder %s20, 0
        %s288 = scalar_select %p287, %s20, 0
        %s289 = sadd.s32 %s288, %s286
        %s290 = smul.addr %s289, 4
        %s291 = scalar_lea.vmem %s1, %s290
        %s292 = smul.u32 16, %s21
        %p293 = scmp.lt.s32.totalorder %s20, 0
        %s294 = scalar_select %p293, %s20, 0
        %s295 = scalar_lea.vmem %s2, %s294
        %s296 = smul.u32 4, %s19
        %p297 = scmp.lt.s32.totalorder %s296, 3
        %s298 = scalar_select %p297, %s296, 3
        %p299 = scmp.lt.s32.totalorder %s20, 0
        %s300 = scalar_select %p299, %s20, 0
        %s301 = sadd.s32 %s300, %s298
        %s302 = smul.addr %s301, 8
        %s303 = scalar_lea.vmem %s3, %s302
        %s304 = smul.u32 4, %s19
        %p306 = scmp.eq.s32.totalorder %s21, 0
        // Predicated region
        $region74: #{_lambda_.24} parent=68 // pred_check
          %p307 = pneg %p306
        $region75: #{_lambda_.24} parent=68 // pred_check_branch
          %309 = sbr.rel (%p307) target = $region77
        $region76: #{_lambda_.24} parent=68 // pred_region
          %310 = vst [vmem:[#allocation2] sm:$0xff] 0.0
          %311 = vst [vmem:[#allocation2 + $0x8] sm:$0xff] 0.0
          %312 = vst [vmem:[#allocation2 + $0x10] sm:$0xff] 0.0
          %313 = vst [vmem:[#allocation2 + $0x18] sm:$0xff] 0.0
        $region77: #{_lambda_.24} parent=68 // pred_fallthru
          _
        %v314 = vld [vmem:[#allocation2] sm:$0xff]
        %v315 = vld [vmem:[#allocation2 + $0x8] sm:$0xff]
        %v316 = vld [vmem:[#allocation2 + $0x10] sm:$0xff]
        %v317 = vld [vmem:[#allocation2 + $0x18] sm:$0xff]
        %v318 = vld [vmem:[%s248] sm:$0xf]
        %v319 = vld [vmem:[%s248 + $0x4] sm:$0xf]
        %v320 = vld [vmem:[%s248 + $0x8] sm:$0xf]
        %v321 = vld [vmem:[%s248 + $0xc] sm:$0xf]
        %v322 = vld [vmem:[%s291] sm:$0xf]
        %v323 = vld [vmem:[%s291 + $0x4] sm:$0xf]
        %v324 = vld [vmem:[%s291 + $0x8] sm:$0xf]
        %v325 = vld [vmem:[%s291 + $0xc] sm:$0xf]
        %v326 = vld [vmem:[%s291 + $0x10] sm:$0xf]
        %v327 = vld [vmem:[%s291 + $0x14] sm:$0xf]
        %v328 = vld [vmem:[%s291 + $0x18] sm:$0xf]
        %v329 = vld [vmem:[%s291 + $0x1c] sm:$0xf]
        %v330 = vld [vmem:[%s291 + $0x20] sm:$0xf]
        %v331 = vld [vmem:[%s291 + $0x24] sm:$0xf]
        %v332 = vld [vmem:[%s291 + $0x28] sm:$0xf]
        %v333 = vld [vmem:[%s291 + $0x2c] sm:$0xf]
        %v334 = vld [vmem:[%s291 + $0x30] sm:$0xf]
        %v335 = vld [vmem:[%s291 + $0x34] sm:$0xf]
        %v336 = vld [vmem:[%s291 + $0x38] sm:$0xf]
        %v337 = vld [vmem:[%s291 + $0x3c] sm:$0xf]
        %v342 = vunpack.c.l.b16 %v318
        %v343 = vunpack.c.l.b16 %v319
        %v344 = vunpack.c.l.b16 %v320
        %v345 = vunpack.c.l.b16 %v321
        %v346 = vpack.c.b16 %v343, %v342
        %v347 = vpack.c.b16 %v345, %v344
        %v366 = vunpack.c.l.b16 %v322
        %v367 = vunpack.c.l.b16 %v323
        %v368 = vunpack.c.l.b16 %v324
        %v369 = vunpack.c.l.b16 %v325
        %v370 = vunpack.c.l.b16 %v326
        %v371 = vunpack.c.l.b16 %v327
        %v372 = vunpack.c.l.b16 %v328
        %v373 = vunpack.c.l.b16 %v329
        %v374 = vunpack.c.l.b16 %v330
        %v375 = vunpack.c.l.b16 %v331
        %v376 = vunpack.c.l.b16 %v332
        %v377 = vunpack.c.l.b16 %v333
        %v378 = vunpack.c.l.b16 %v334
        %v379 = vunpack.c.l.b16 %v335
        %v380 = vunpack.c.l.b16 %v336
        %v381 = vunpack.c.l.b16 %v337
        %v382 = vpack.c.b16 %v367, %v366
        %v383 = vpack.c.b16 %v369, %v368
        %v384 = vpack.c.b16 %v371, %v370
        %v385 = vpack.c.b16 %v373, %v372
        %v386 = vpack.c.b16 %v375, %v374
        %v387 = vpack.c.b16 %v377, %v376
        %v388 = vpack.c.b16 %v379, %v378
        %v389 = vpack.c.b16 %v381, %v380
        %398 = vmatprep.subr.bf16.mxu0 0
        %399 = vmatpush1.bf16.msra.mxu0 %v382
        %400 = vmatprep.subr.bf16.mxu0 0
        %401 = vmatpush1.bf16.msra.mxu0 %v383
        %402 = vmatprep.subr.bf16.mxu0 0
        %403 = vmatpush1.bf16.msra.mxu0 %v384
        %404 = vmatprep.subr.bf16.mxu0 0
        %405 = vmatpush1.bf16.msra.mxu0 %v385
        %406 = vmatprep.subr.bf16.mxu0 0
        %407 = vmatpush1.bf16.msra.mxu0 %v386
        %408 = vmatprep.subr.bf16.mxu0 0
        %409 = vmatpush1.bf16.msra.mxu0 %v387
        %410 = vmatprep.subr.bf16.mxu0 0
        %411 = vmatpush1.bf16.msra.mxu0 %v388
        %412 = vmatprep.subr.bf16.mxu0 0
        %413 = vmatpush1.bf16.msra.mxu0 %v389
        %414 = vmatprep.subr.bf16.mxu0 0
        %415 = vmatpush1.bf16.msra.mxu0 0
        %416 = vmatprep.subr.bf16.mxu0 0
        %417 = vmatpush1.bf16.msra.mxu0 0
        %418 = vmatprep.subr.bf16.mxu0 0
        %419 = vmatpush1.bf16.msra.mxu0 0
        %420 = vmatprep.subr.bf16.mxu0 0
        %421 = vmatpush1.bf16.msra.mxu0 0
        %422 = vmatprep.subr.bf16.mxu0 0
        %423 = vmatpush1.bf16.msra.mxu0 0
        %424 = vmatprep.subr.bf16.mxu0 0
        %425 = vmatpush1.bf16.msra.mxu0 0
        %426 = vmatprep.subr.bf16.mxu0 0
        %427 = vmatpush1.bf16.msra.mxu0 0
        %428 = vmatprep.subr.bf16.mxu0 0
        %429 = vmatpush1.bf16.msra.mxu0 0
        %430 = vmatprep.mubr.bf16.mxu0 0
        %431 = vmatmul.mubr.bf16.gmra.mrb[0].mxu0 %v346
        %v432 = vpop.f32.mrb[0].mxu0
        %v433 = vadd.f32 0.0, %v432
        %v434 = vpop.f32.mrb[0].mxu0
        %v435 = vpop.f32.mrb[0].mxu0
        %v436 = vadd.f32 0.0, %v435
        %v437 = vpop.f32.mrb[0].mxu0
        %438 = vmatprep.mubr.bf16.mxu0 0
        %439 = vmatmul.mubr.bf16.gmra.mrb[0].mxu0 %v347
        %v440 = vpop.f32.mrb[0].mxu0
        %v441 = vadd.f32 0.0, %v440
        %v442 = vpop.f32.mrb[0].mxu0
        %v443 = vpop.f32.mrb[0].mxu0
        %v444 = vadd.f32 0.0, %v443
        %v445 = vpop.f32.mrb[0].mxu0
        %446 = vdwg.mxu0
        %v447 = vadd.f32 %v314, %v433
        %v448 = vadd.f32 %v315, %v436
        %v449 = vadd.f32 %v316, %v441
        %v450 = vadd.f32 %v317, %v444
        %451 = vst [vmem:[#allocation2] sm:$0xff] %v447
        %452 = vst [vmem:[#allocation2 + $0x8] sm:$0xff] %v448
        %453 = vst [vmem:[#allocation2 + $0x10] sm:$0xff] %v449
        %454 = vst [vmem:[#allocation2 + $0x18] sm:$0xff] %v450
        %p455 = scmp.eq.s32.totalorder %s21, 2
        // Predicated region
        $region78: #{_lambda_.24} parent=68 // pred_check
          %p456 = pneg %p455
        $region79: #{_lambda_.24} parent=68 // pred_check_branch
          %458 = sbr.rel (%p456) target = $region81
        $region80: #{_lambda_.24} parent=68 // pred_region
          %v459 = vld [vmem:[#allocation2] sm:$0xff]
          %v460 = vld [vmem:[#allocation2 + $0x8] sm:$0xff]
          %v461 = vld [vmem:[#allocation2 + $0x10] sm:$0xff]
          %v462 = vld [vmem:[#allocation2 + $0x18] sm:$0xff]
          %v463 = vld [vmem:[%s295] sm:$0x1]
          %v465 = vlaneseq
          %v466 = vshrl.u32 %v465, 7
          %v467 = vsub.s32 0, %v466
          %v468 = vrot.slane %v463, %v467
          %v470 = vadd.f32 %v459, %v468
          %v471 = vadd.f32 %v460, %v468
          %v472 = vadd.f32 %v461, %v468
          %v473 = vadd.f32 %v462, %v468
          %v474 = vmax.f32 %v470, 0.0
          %v475 = vmax.f32 %v471, 0.0
          %v476 = vmax.f32 %v472, 0.0
          %v477 = vmax.f32 %v473, 0.0
          %478 = vst [vmem:[%s303] sm:$0xff] %v474
          %479 = vst [vmem:[%s303 + $0x8] sm:$0xff] %v475
          %480 = vst [vmem:[%s303 + $0x10] sm:$0xff] %v476
          %481 = vst [vmem:[%s303 + $0x18] sm:$0xff] %v477
        $region81: #{_lambda_.24} parent=68 // pred_fallthru
          _
        %s482 = smul.u32 4, %s19
        %p483 = scmp.lt.s32.totalorder %s482, 3
        %s484 = scalar_select %p483, %s482, 3
        %p485 = scmp.lt.s32.totalorder %s20, 0
        %s486 = scalar_select %p485, %s20, 0
        %s487 = sadd.s32 %s486, %s484
        %s488 = smul.addr %s487, 8
        %s489 = scalar_lea.vmem %s3, %s488
        // Predicated region
        $region82: #{_lambda_.24} parent=68 // pred_check
          %p490 = pneg %p135
        $region83: #{_lambda_.24} parent=68 // pred_check_branch
          %492 = sbr.rel (%p490) target = $region85
        $region84: #{_lambda_.24} parent=68 // pred_region
          %s493 = smul.u32 4, %s19
        $region85: #{_lambda_.24} parent=68 // pred_fallthru
          _
        // Predicated region
        $region86: #{_lambda_.24} parent=68 // pred_check
          %p494 = pneg %p135
        $region87: #{_lambda_.24} parent=68 // pred_check_branch
          %496 = sbr.rel (%p494) target = $region89
        $region88: #{_lambda_.24} parent=68 // pred_region
          %s497 = smul.u32 4, %s19
          %p498 = scmp.lt.s32.totalorder %s497, 3
          %s499 = scalar_select %p498, %s497, 3
          %p500 = scmp.lt.s32.totalorder %s20, 0
          %s501 = scalar_select %p500, %s20, 0
          %s502 = sadd.s32 %s501, %s499
          %s503 = smul.addr %s502, 8
          %s504 = scalar_lea.vmem %s3, %s503
        $region89: #{_lambda_.24} parent=68 // pred_fallthru
          _
      $region69: #{_lambda_.24} parent=5 // pred_fallthru
        _
      %p505 = scmp.le.s32.totalorder 2, %s9
      // Predicated region
      $region90: #{_lambda_.24} parent=5 // pred_check
        %p506 = pneg %p505
      $region91: #{_lambda_.24} parent=5 // pred_check_branch
        %508 = sbr.rel (%p506) target = $region93
      $region92: #{_lambda_.24} parent=5 // pred_region
        %s509 = ssub.s32 %s9, 2
      $region93: #{_lambda_.24} parent=5 // pred_fallthru
        _
    $region6: #{_lambda_.24} parent=1 // loop_footer
      %s13 = sadd.s32 1, %s9
    $region7: #{_lambda_.24} parent=1 // loop_footer_branch
      %8 = sbr.rel target = $region3
    $region8: #{_lambda_.24} parent=1 // loop_exit
      _

// kernel: _lambda_.23
$region0: #{_lambda_.23}
  #allocation0 [shape = 'u32[]', space=smem, size = 0x4, offset = 0x4, fixed_abs, tag = 'smem constant byte address 0x4 - core index']
  #allocation1 [shape = 'u32[144,128]{1,0:T(1,128)}', space=vmem, size = 0x12000, scoped, tag = 'internal scratch']
  #allocation2 [shape = 'f32[32,128]{1,0:T(8,128)}', space=vmem, size = 0x4000, scoped, tag = 'scratch operand']
  %s0 = inlined_call_operand.vmem [shape: bf16[32,128], index: 0, kind: input, shape index: {}]
  %s1 = inlined_call_operand.vmem [shape: bf16[128,128], index: 1, kind: input, shape index: {}]
  %s2 = inlined_call_operand.vmem [shape: f32[1,128], index: 2, kind: input, shape index: {}]
  %s3 = inlined_call_operand.vmem [shape: f32[32,128], index: 3, kind: output, shape index: {}]
  %s4 = sld [smem:[#allocation0]]
  $region30: #{_lambda_.23} parent=0
    _
  %s6 = ssub.s32 1, %s4
  %s7 = scalar_select 0, %s6, %s4
  // Predicated region
  $region2: #{_lambda_.23} parent=0 // pred_check
    _
  $region3: #{_lambda_.23} parent=0 // pred_check_branch
    %9 = sbr.rel (0) target = $region5
  $region4: #{_lambda_.23} parent=0 // pred_region
    _
  $region5: #{_lambda_.23} parent=0 // pred_fallthru
    _
  // Predicated region
  $region6: #{_lambda_.23} parent=0 // pred_check
    _
  $region7: #{_lambda_.23} parent=0 // pred_check_branch
    %11 = sbr.rel (0) target = $region9
  $region8: #{_lambda_.23} parent=0 // pred_region
    _
  $region9: #{_lambda_.23} parent=0 // pred_fallthru
    _
  // Predicated region
  $region10: #{_lambda_.23} parent=0 // pred_check
    _
  $region11: #{_lambda_.23} parent=0 // pred_check_branch
    %13 = sbr.rel (0) target = $region13
  $region12: #{_lambda_.23} parent=0 // pred_region
    _
  $region13: #{_lambda_.23} parent=0 // pred_fallthru
    _
  %p15 = scmp.eq.s32.totalorder 0, 0
  // Predicated region
  $region14: #{_lambda_.23} parent=0 // pred_check
    %p16 = pneg %p15
  $region15: #{_lambda_.23} parent=0 // pred_check_branch
    %18 = sbr.rel (%p16) target = $region17
  $region16: #{_lambda_.23} parent=0 // pred_region
    %19 = vst [vmem:[#allocation2] sm:$0xff] 0.0
    %20 = vst [vmem:[#allocation2 + $0x8] sm:$0xff] 0.0
    %21 = vst [vmem:[#allocation2 + $0x10] sm:$0xff] 0.0
    %22 = vst [vmem:[#allocation2 + $0x18] sm:$0xff] 0.0
  $region17: #{_lambda_.23} parent=0 // pred_fallthru
    _
  %v23 = vld [vmem:[#allocation2] sm:$0xff]
  %v24 = vld [vmem:[#allocation2 + $0x8] sm:$0xff]
  %v25 = vld [vmem:[#allocation2 + $0x10] sm:$0xff]
  %v26 = vld [vmem:[#allocation2 + $0x18] sm:$0xff]
  %v27 = vld [vmem:[%s0] sm:$0xf]
  %v28 = vld [vmem:[%s0 + $0x4] sm:$0xf]
  %v29 = vld [vmem:[%s0 + $0x8] sm:$0xf]
  %v30 = vld [vmem:[%s0 + $0xc] sm:$0xf]
  %v31 = vld [vmem:[%s1] sm:$0xf]
  %v32 = vld [vmem:[%s1 + $0x4] sm:$0xf]
  %v33 = vld [vmem:[%s1 + $0x8] sm:$0xf]
  %v34 = vld [vmem:[%s1 + $0xc] sm:$0xf]
  %v35 = vld [vmem:[%s1 + $0x10] sm:$0xf]
  %v36 = vld [vmem:[%s1 + $0x14] sm:$0xf]
  %v37 = vld [vmem:[%s1 + $0x18] sm:$0xf]
  %v38 = vld [vmem:[%s1 + $0x1c] sm:$0xf]
  %v39 = vld [vmem:[%s1 + $0x20] sm:$0xf]
  %v40 = vld [vmem:[%s1 + $0x24] sm:$0xf]
  %v41 = vld [vmem:[%s1 + $0x28] sm:$0xf]
  %v42 = vld [vmem:[%s1 + $0x2c] sm:$0xf]
  %v43 = vld [vmem:[%s1 + $0x30] sm:$0xf]
  %v44 = vld [vmem:[%s1 + $0x34] sm:$0xf]
  %v45 = vld [vmem:[%s1 + $0x38] sm:$0xf]
  %v46 = vld [vmem:[%s1 + $0x3c] sm:$0xf]
  %v51 = vunpack.c.l.b16 %v27
  %v52 = vunpack.c.l.b16 %v28
  %v53 = vunpack.c.l.b16 %v29
  %v54 = vunpack.c.l.b16 %v30
  %v55 = vpack.c.b16 %v52, %v51
  %v56 = vpack.c.b16 %v54, %v53
  %v75 = vunpack.c.l.b16 %v31
  %v76 = vunpack.c.l.b16 %v32
  %v77 = vunpack.c.l.b16 %v33
  %v78 = vunpack.c.l.b16 %v34
  %v79 = vunpack.c.l.b16 %v35
  %v80 = vunpack.c.l.b16 %v36
  %v81 = vunpack.c.l.b16 %v37
  %v82 = vunpack.c.l.b16 %v38
  %v83 = vunpack.c.l.b16 %v39
  %v84 = vunpack.c.l.b16 %v40
  %v85 = vunpack.c.l.b16 %v41
  %v86 = vunpack.c.l.b16 %v42
  %v87 = vunpack.c.l.b16 %v43
  %v88 = vunpack.c.l.b16 %v44
  %v89 = vunpack.c.l.b16 %v45
  %v90 = vunpack.c.l.b16 %v46
  %v91 = vpack.c.b16 %v76, %v75
  %v92 = vpack.c.b16 %v78, %v77
  %v93 = vpack.c.b16 %v80, %v79
  %v94 = vpack.c.b16 %v82, %v81
  %v95 = vpack.c.b16 %v84, %v83
  %v96 = vpack.c.b16 %v86, %v85
  %v97 = vpack.c.b16 %v88, %v87
  %v98 = vpack.c.b16 %v90, %v89
  %107 = vmatprep.subr.bf16.mxu0 0
  %108 = vmatpush1.bf16.msra.mxu0 %v91
  %109 = vmatprep.subr.bf16.mxu0 0
  %110 = vmatpush1.bf16.msra.mxu0 %v92
  %111 = vmatprep.subr.bf16.mxu0 0
  %112 = vmatpush1.bf16.msra.mxu0 %v93
  %113 = vmatprep.subr.bf16.mxu0 0
  %114 = vmatpush1.bf16.msra.mxu0 %v94
  %115 = vmatprep.subr.bf16.mxu0 0
  %116 = vmatpush1.bf16.msra.mxu0 %v95
  %117 = vmatprep.subr.bf16.mxu0 0
  %118 = vmatpush1.bf16.msra.mxu0 %v96
  %119 = vmatprep.subr.bf16.mxu0 0
  %120 = vmatpush1.bf16.msra.mxu0 %v97
  %121 = vmatprep.subr.bf16.mxu0 0
  %122 = vmatpush1.bf16.msra.mxu0 %v98
  %123 = vmatprep.subr.bf16.mxu0 0
  %124 = vmatpush1.bf16.msra.mxu0 0
  %125 = vmatprep.subr.bf16.mxu0 0
  %126 = vmatpush1.bf16.msra.mxu0 0
  %127 = vmatprep.subr.bf16.mxu0 0
  %128 = vmatpush1.bf16.msra.mxu0 0
  %129 = vmatprep.subr.bf16.mxu0 0
  %130 = vmatpush1.bf16.msra.mxu0 0
  %131 = vmatprep.subr.bf16.mxu0 0
  %132 = vmatpush1.bf16.msra.mxu0 0
  %133 = vmatprep.subr.bf16.mxu0 0
  %134 = vmatpush1.bf16.msra.mxu0 0
  %135 = vmatprep.subr.bf16.mxu0 0
  %136 = vmatpush1.bf16.msra.mxu0 0
  %137 = vmatprep.subr.bf16.mxu0 0
  %138 = vmatpush1.bf16.msra.mxu0 0
  %139 = vmatprep.mubr.bf16.mxu0 0
  %140 = vmatmul.mubr.bf16.gmra.mrb[0].mxu0 %v55
  %v141 = vpop.f32.mrb[0].mxu0
  %v142 = vadd.f32 0.0, %v141
  %v143 = vpop.f32.mrb[0].mxu0
  %v144 = vpop.f32.mrb[0].mxu0
  %v145 = vadd.f32 0.0, %v144
  %v146 = vpop.f32.mrb[0].mxu0
  %147 = vmatprep.mubr.bf16.mxu0 0
  %148 = vmatmul.mubr.bf16.gmra.mrb[0].mxu0 %v56
  %v149 = vpop.f32.mrb[0].mxu0
  %v150 = vadd.f32 0.0, %v149
  %v151 = vpop.f32.mrb[0].mxu0
  %v152 = vpop.f32.mrb[0].mxu0
  %v153 = vadd.f32 0.0, %v152
  %v154 = vpop.f32.mrb[0].mxu0
  %155 = vdwg.mxu0
  %v156 = vadd.f32 %v23, %v142
  %v157 = vadd.f32 %v24, %v145
  %v158 = vadd.f32 %v25, %v150
  %v159 = vadd.f32 %v26, %v153
  %160 = vst [vmem:[#allocation2] sm:$0xff] %v156
  %161 = vst [vmem:[#allocation2 + $0x8] sm:$0xff] %v157
  %162 = vst [vmem:[#allocation2 + $0x10] sm:$0xff] %v158
  %163 = vst [vmem:[#allocation2 + $0x18] sm:$0xff] %v159
  // Predicated region
  $region18: #{_lambda_.23} parent=0 // pred_check
    %p164 = pneg %p15
  $region19: #{_lambda_.23} parent=0 // pred_check_branch
    %166 = sbr.rel (%p164) target = $region21
  $region20: #{_lambda_.23} parent=0 // pred_region
    %v167 = vld [vmem:[#allocation2] sm:$0xff]
    %v168 = vld [vmem:[#allocation2 + $0x8] sm:$0xff]
    %v169 = vld [vmem:[#allocation2 + $0x10] sm:$0xff]
    %v170 = vld [vmem:[#allocation2 + $0x18] sm:$0xff]
    %v171 = vld [vmem:[%s2] sm:$0x1]
    %v173 = vlaneseq
    %v174 = vshrl.u32 %v173, 7
    %v175 = vsub.s32 0, %v174
    %v176 = vrot.slane %v171, %v175
    %v178 = vadd.f32 %v167, %v176
    %v179 = vadd.f32 %v168, %v176
    %v180 = vadd.f32 %v169, %v176
    %v181 = vadd.f32 %v170, %v176
    %182 = vst [vmem:[%s3] sm:$0xff] %v178
    %183 = vst [vmem:[%s3 + $0x8] sm:$0xff] %v179
    %184 = vst [vmem:[%s3 + $0x10] sm:$0xff] %v180
    %185 = vst [vmem:[%s3 + $0x18] sm:$0xff] %v181
  $region21: #{_lambda_.23} parent=0 // pred_fallthru
    _
  // Predicated region
  $region22: #{_lambda_.23} parent=0 // pred_check
    _
  $region23: #{_lambda_.23} parent=0 // pred_check_branch
    %187 = sbr.rel (0) target = $region25
  $region24: #{_lambda_.23} parent=0 // pred_region
    _
  $region25: #{_lambda_.23} parent=0 // pred_fallthru
    _
  // Predicated region
  $region26: #{_lambda_.23} parent=0 // pred_check
    _
  $region27: #{_lambda_.23} parent=0 // pred_check_branch
    %189 = sbr.rel (0) target = $region29
  $region28: #{_lambda_.23} parent=0 // pred_region
    _
  $region29: #{_lambda_.23} parent=0 // pred_fallthru
    _

// kernel: _lambda_.25
$region0: #{_lambda_.25}
  #allocation0 [shape = 'u32[]', space=smem, size = 0x4, offset = 0x4, fixed_abs, tag = 'smem constant byte address 0x4 - core index']
  #allocation1 [shape = 'u32[144,128]{1,0:T(1,128)}', space=vmem, size = 0x12000, scoped, tag = 'internal scratch']
  #allocation2 [shape = 'f32[32,128]{1,0:T(8,128)}', space=vmem, size = 0x4000, scoped, tag = 'scratch operand']
  %s0 = inlined_call_operand.vmem [shape: bf16[32,384], index: 0, kind: input, shape index: {}]
  %s1 = inlined_call_operand.vmem [shape: bf16[384,128], index: 1, kind: input, shape index: {}]
  %s2 = inlined_call_operand.vmem [shape: f32[1,128], index: 2, kind: input, shape index: {}]
  %s3 = inlined_call_operand.vmem [shape: f32[32,128], index: 3, kind: input, shape index: {}]
  %s4 = inlined_call_operand.vmem [shape: f32[32,128], index: 4, kind: output, shape index: {}]
  %s5 = sld [smem:[#allocation0]]
  $region98: #{_lambda_.25} parent=0
    _
  %s7 = ssub.s32 1, %s5
  %s8 = scalar_select 0, %s7, %s5
  $region1: #{_lambda_.25} parent=0
    #allocation3 [shape = 'u8[16384]{0}', space=vmem, size = 0x4000, scoped, tag = 'input window, operand 0']
    loop: start=0, step=1, limit=5
    $region2: #{_lambda_.25} parent=1 // loop_pre_header
      _
    $region3: #{_lambda_.25} parent=1 // loop_header
      %s10 = sphi 0, %s14
      %p11 = scmp.ge.s32.totalorder %s10, 5
      %s17 = sphi 0, %s36
      %s18 = sphi 0, %s32
      %s19 = sphi 0, %s28
      %s20 = sphi 0, %s17
      %s21 = sphi 0, %s18
      %s22 = sphi 0, %s19
      %s23 = sphi 0, %s20
      %s24 = sphi 0, %s21
      %s25 = sphi 0, %s22
      %s41 = sphi 0, %s43
      %s44 = sphi 0, %s41
      %s45 = sphi 0, %s44
      %s61 = sphi 0, %s45
      %s69 = sphi 0, %s71
      %s72 = sphi 0, %s69
      %s73 = sphi 0, %s72
      %s89 = sphi 0, %s73
      %s95 = sphi 0, %s97
      %s98 = sphi 0, %s95
      %s99 = sphi 0, %s98
      %s115 = sphi 0, %s99
      %s123 = sphi 0, %s125
      %s126 = sphi 0, %s123
      %s127 = sphi 0, %s126
      %s143 = sphi 0, %s127
      %s151 = sphi 0, %s153
      %s154 = sphi 0, %s151
      %s155 = sphi 0, %s154
      %s171 = sphi 0, %s155
    $region4: #{_lambda_.25} parent=1 // loop_header_branch
      %13 = sbr.rel (%p11) target = $region8
    $region5: #{_lambda_.25} parent=1 // loop_body
      %s15 = ssub.s32 %s10, 1
      %s16 = ssub.s32 %s10, 2
      %s26 = sadd.s32 1, %s19
      %p27 = scmp.ge.s32.totalorder %s26, 3
      %s28 = scalar_select %p27, 0, %s26
      %s29 = sadd.s32 1, %s18
      %s30 = scalar_select %p27, %s29, %s18
      %p31 = scmp.ge.s32.totalorder %s30, 1
      %s32 = scalar_select %p31, 0, %s30
      %s33 = sadd.s32 1, %s17
      %s34 = scalar_select %p31, %s33, %s17
      %p35 = scmp.ge.s32.totalorder %s34, 1
      %s36 = scalar_select %p35, 0, %s34
      %s37 = ssub.s32 %s17, %s36
      %s38 = ssub.s32 %s19, %s28
      %s39 = sor.u32 %s37, %s38
      %p40 = scmp.eq.s32.totalorder %s39, 0
      %s42 = sadd.s32 %s41, 1
      %s43 = scalar_select %p40, %s41, %s42
      %p46 = pneg %p40
      %p47 = scmp.eq.s32.totalorder %s10, 2
      %p48 = por %p46, %p47
      %p49 = scmp.ne.s32.totalorder %s41, %s44
      %p50 = scmp.eq.s32.totalorder %s10, 0
      %p51 = por %p49, %p50
      %p52 = scmp.ne.s32.totalorder %s41, %s44
      %p53 = scmp.eq.s32.totalorder %s15, 2
      %p54 = por %p52, %p53
      %p55 = scmp.ne.s32.totalorder %s44, %s45
      %p56 = scmp.eq.s32.totalorder %s15, 0
      %p57 = por %p55, %p56
      %p58 = scmp.ne.s32.totalorder %s44, %s45
      %p59 = scmp.eq.s32.totalorder %s16, 2
      %p60 = por %p58, %p59
      %p62 = scmp.ne.s32.totalorder %s45, %s61
      %p63 = scmp.eq.s32.totalorder %s16, 0
      %p64 = por %p62, %p63
      %s65 = ssub.s32 %s19, %s28
      %s66 = ssub.s32 %s18, %s32
      %s67 = sor.u32 %s65, %s66
      %p68 = scmp.eq.s32.totalorder %s67, 0
      %s70 = sadd.s32 %s69, 1
      %s71 = scalar_select %p68, %s69, %s70
      %p74 = pneg %p68
      %p75 = scmp.eq.s32.totalorder %s10, 2
      %p76 = por %p74, %p75
      %p77 = scmp.ne.s32.totalorder %s69, %s72
      %p78 = scmp.eq.s32.totalorder %s10, 0
      %p79 = por %p77, %p78
      %p80 = scmp.ne.s32.totalorder %s69, %s72
      %p81 = scmp.eq.s32.totalorder %s15, 2
      %p82 = por %p80, %p81
      %p83 = scmp.ne.s32.totalorder %s72, %s73
      %p84 = scmp.eq.s32.totalorder %s15, 0
      %p85 = por %p83, %p84
      %p86 = scmp.ne.s32.totalorder %s72, %s73
      %p87 = scmp.eq.s32.totalorder %s16, 2
      %p88 = por %p86, %p87
      %p90 = scmp.ne.s32.totalorder %s73, %s89
      %p91 = scmp.eq.s32.totalorder %s16, 0
      %p92 = por %p90, %p91
      %s93 = ssub.s32 %s18, %s32
      %p94 = scmp.eq.s32.totalorder %s93, 0
      %s96 = sadd.s32 %s95, 1
      %s97 = scalar_select %p94, %s95, %s96
      %p100 = pneg %p94
      %p101 = scmp.eq.s32.totalorder %s10, 2
      %p102 = por %p100, %p101
      %p103 = scmp.ne.s32.totalorder %s95, %s98
      %p104 = scmp.eq.s32.totalorder %s10, 0
      %p105 = por %p103, %p104
      %p106 = scmp.ne.s32.totalorder %s95, %s98
      %p107 = scmp.eq.s32.totalorder %s15, 2
      %p108 = por %p106, %p107
      %p109 = scmp.ne.s32.totalorder %s98, %s99
      %p110 = scmp.eq.s32.totalorder %s15, 0
      %p111 = por %p109, %p110
      %p112 = scmp.ne.s32.totalorder %s98, %s99
      %p113 = scmp.eq.s32.totalorder %s16, 2
      %p114 = por %p112, %p113
      %p116 = scmp.ne.s32.totalorder %s99, %s115
      %p117 = scmp.eq.s32.totalorder %s16, 0
      %p118 = por %p116, %p117
      %s119 = ssub.s32 %s17, %s36
      %s120 = ssub.s32 %s18, %s32
      %s121 = sor.u32 %s119, %s120
      %p122 = scmp.eq.s32.totalorder %s121, 0
      %s124 = sadd.s32 %s123, 1
      %s125 = scalar_select %p122, %s123, %s124
      %p128 = pneg %p122
      %p129 = scmp.eq.s32.totalorder %s10, 2
      %p130 = por %p128, %p129
      %p131 = scmp.ne.s32.totalorder %s123, %s126
      %p132 = scmp.eq.s32.totalorder %s10, 0
      %p133 = por %p131, %p132
      %p134 = scmp.ne.s32.totalorder %s123, %s126
      %p135 = scmp.eq.s32.totalorder %s15, 2
      %p136 = por %p134, %p135
      %p137 = scmp.ne.s32.totalorder %s126, %s127
      %p138 = scmp.eq.s32.totalorder %s15, 0
      %p139 = por %p137, %p138
      %p140 = scmp.ne.s32.totalorder %s126, %s127
      %p141 = scmp.eq.s32.totalorder %s16, 2
      %p142 = por %p140, %p141
      %p144 = scmp.ne.s32.totalorder %s127, %s143
      %p145 = scmp.eq.s32.totalorder %s16, 0
      %p146 = por %p144, %p145
      %s147 = ssub.s32 %s17, %s36
      %s148 = ssub.s32 %s18, %s32
      %s149 = sor.u32 %s147, %s148
      %p150 = scmp.eq.s32.totalorder %s149, 0
      %s152 = sadd.s32 %s151, 1
      %s153 = scalar_select %p150, %s151, %s152
      %p156 = pneg %p150
      %p157 = scmp.eq.s32.totalorder %s10, 2
      %p158 = por %p156, %p157
      %p159 = scmp.ne.s32.totalorder %s151, %s154
      %p160 = scmp.eq.s32.totalorder %s10, 0
      %p161 = por %p159, %p160
      %p162 = scmp.ne.s32.totalorder %s151, %s154
      %p163 = scmp.eq.s32.totalorder %s15, 2
      %p164 = por %p162, %p163
      %p165 = scmp.ne.s32.totalorder %s154, %s155
      %p166 = scmp.eq.s32.totalorder %s15, 0
      %p167 = por %p165, %p166
      %p168 = scmp.ne.s32.totalorder %s154, %s155
      %p169 = scmp.eq.s32.totalorder %s16, 2
      %p170 = por %p168, %p169
      %p172 = scmp.ne.s32.totalorder %s155, %s171
      %p173 = scmp.eq.s32.totalorder %s16, 0
      %p174 = por %p172, %p173
      %p175 = scmp.le.s32.totalorder 1, %s10
      %p176 = scmp.lt.s32.totalorder %s10, 4
      %p177 = pnand %p175, %p176
      %p178 = pneg %p177
      // Predicated region
      $region9: #{_lambda_.25} parent=5 // pred_check
        _
      $region10: #{_lambda_.25} parent=5 // pred_check_branch
        %180 = sbr.rel (%p177) target = $region12
      $region11: #{_lambda_.25} parent=5 // pred_region
        %s181 = ssub.s32 %s10, 1
        // Predicated region
        $region13: #{_lambda_.25} parent=11 // pred_check
          %p182 = pneg %p111
        $region14: #{_lambda_.25} parent=11 // pred_check_branch
          %184 = sbr.rel (%p182) target = $region16
        $region15: #{_lambda_.25} parent=11 // pred_region
          %p185 = scmp.lt.s32.totalorder %s21, 0
          %s186 = scalar_select %p185, %s21, 0
          %s187 = scalar_lea.vmem %s2, %s186
        $region16: #{_lambda_.25} parent=11 // pred_fallthru
          _
        // Predicated region
        $region17: #{_lambda_.25} parent=11 // pred_check
          %p188 = pneg %p139
        $region18: #{_lambda_.25} parent=11 // pred_check_branch
          %190 = sbr.rel (%p188) target = $region20
        $region19: #{_lambda_.25} parent=11 // pred_region
          %s191 = smul.u32 4, %s20
          %p192 = scmp.lt.s32.totalorder %s191, 3
          %s193 = scalar_select %p192, %s191, 3
          %p194 = scmp.lt.s32.totalorder %s21, 0
          %s195 = scalar_select %p194, %s21, 0
          %s196 = sadd.s32 %s195, %s193
          %s197 = smul.addr %s196, 8
          %s198 = scalar_lea.vmem %s3, %s197
          %s199 = smul.u32 4, %s20
        $region20: #{_lambda_.25} parent=11 // pred_fallthru
          _
      $region12: #{_lambda_.25} parent=5 // pred_fallthru
        _
      %p200 = scmp.lt.s32.totalorder %s10, 3
      // Predicated region
      $region21: #{_lambda_.25} parent=5 // pred_check
        %p201 = pneg %p200
      $region22: #{_lambda_.25} parent=5 // pred_check_branch
        %203 = sbr.rel (%p201) target = $region24
      $region23: #{_lambda_.25} parent=5 // pred_region
        // Predicated region
        $region25: #{_lambda_.25} parent=23 // pred_check
          %p204 = pneg %p51
        $region26: #{_lambda_.25} parent=23 // pred_check_branch
          %206 = sbr.rel (%p204) target = $region28
        $region27: #{_lambda_.25} parent=23 // pred_region
          %s207 = sand.u32 %s41, 1
          %s208 = sand.u32 %s41, 1
          %s209 = smul.addr %s208, 16
          %s210 = scalar_lea.vmem [#allocation3], %s209
          %s211 = smul.u32 4, %s17
          %s212 = smul.addr %s211, 3
          %s213 = sadd.s32 %s19, %s212
          %s214 = smul.addr %s213, 4
          %s215 = scalar_lea.vmem %s0, %s214
          // Predicated region
          $region29: #{_lambda_.25} parent=27 // pred_check
            _
          $region30: #{_lambda_.25} parent=27 // pred_check_branch
            %217 = sbr.rel (0) target = $region32
          $region31: #{_lambda_.25} parent=27 // pred_region
            // Predicated region
            $region33: #{_lambda_.25} parent=31 // pred_check
              _
            $region34: #{_lambda_.25} parent=31 // pred_check_branch
              %219 = sbr.rel target = $region36
            $region35: #{_lambda_.25} parent=31 // pred_region
              // Predicated region
              $region48: #{_lambda_.25} parent=35 // pred_check
                _
              $region49: #{_lambda_.25} parent=35 // pred_check_branch
                %240 = sbr.rel (0) target = $region51
              $region50: #{_lambda_.25} parent=35 // pred_region
                loop: start=0, step=1, limit=1
                $region52: #{_lambda_.25} parent=50 // loop_pre_header
                  _
                $region53: #{_lambda_.25} parent=50 // loop_header
                  %s242 = sphi 0, %s246
                  %p243 = scmp.ge.s32.totalorder %s242, 1
                  %s247 = sphi %s215, %s215
                  %s248 = sphi %s210, %s210
                $region54: #{_lambda_.25} parent=50 // loop_header_branch
                  %245 = sbr.rel (%p243) target = $region58
                $region55: #{_lambda_.25} parent=50 // loop_body
                  _
                $region56: #{_lambda_.25} parent=50 // loop_footer
                  %s246 = sadd.s32 1, %s242
                $region57: #{_lambda_.25} parent=50 // loop_footer_branch
                  %241 = sbr.rel target = $region53
                $region58: #{_lambda_.25} parent=50 // loop_exit
                  _
                loop: start=0, step=1, limit=1
                $region59: #{_lambda_.25} parent=50 // loop_pre_header
                  _
                $region60: #{_lambda_.25} parent=50 // loop_header
                  %s251 = sphi 0, %s255
                  %p252 = scmp.ge.s32.totalorder %s251, 1
                  %s256 = sphi %s215, %s215
                  %s257 = sphi %s210, %s210
                $region61: #{_lambda_.25} parent=50 // loop_header_branch
                  %254 = sbr.rel (%p252) target = $region65
                $region62: #{_lambda_.25} parent=50 // loop_body
                  %v258 = vld [vmem:[%s256] sm:$0xf]
                  %259 = vst [vmem:[%s257] sm:$0xf] %v258
                  %v260 = vld [vmem:[%s256 + $0xc] sm:$0xf]
                  %261 = vst [vmem:[%s257 + $0x4] sm:$0xf] %v260
                  %v262 = vld [vmem:[%s256 + $0x18] sm:$0xf]
                  %263 = vst [vmem:[%s257 + $0x8] sm:$0xf] %v262
                  %v264 = vld [vmem:[%s256 + $0x24] sm:$0xf]
                  %265 = vst [vmem:[%s257 + $0xc] sm:$0xf] %v264
                $region63: #{_lambda_.25} parent=50 // loop_footer
                  %s255 = sadd.s32 1, %s251
                $region64: #{_lambda_.25} parent=50 // loop_footer_branch
                  %250 = sbr.rel target = $region60
                $region65: #{_lambda_.25} parent=50 // loop_exit
                  _
              $region51: #{_lambda_.25} parent=35 // pred_fallthru
                _
            $region36: #{_lambda_.25} parent=31 // pred_fallthru
              _
            // Predicated region
            $region37: #{_lambda_.25} parent=31 // pred_check
              _
            $region38: #{_lambda_.25} parent=31 // pred_check_branch
              %221 = sbr.rel (0) target = $region40
            $region39: #{_lambda_.25} parent=31 // pred_region
              loop: start=0, step=1, limit=1
              $region41: #{_lambda_.25} parent=39 // loop_pre_header
                _
              $region42: #{_lambda_.25} parent=39 // loop_header
                %s224 = sphi 0, %s228
                %p225 = scmp.ge.s32.totalorder %s224, 1
                %s229 = sphi %s215, %s215
                %s230 = sphi %s210, %s210
              $region43: #{_lambda_.25} parent=39 // loop_header_branch
                %227 = sbr.rel (%p225) target = $region47
              $region44: #{_lambda_.25} parent=39 // loop_body
                %v231 = vld [vmem:[%s229] sm:$0xf]
                %232 = vst [vmem:[%s230] sm:$0xf] %v231
                %v233 = vld [vmem:[%s229 + $0xc] sm:$0xf]
                %234 = vst [vmem:[%s230 + $0x4] sm:$0xf] %v233
                %v235 = vld [vmem:[%s229 + $0x18] sm:$0xf]
                %236 = vst [vmem:[%s230 + $0x8] sm:$0xf] %v235
                %v237 = vld [vmem:[%s229 + $0x24] sm:$0xf]
                %238 = vst [vmem:[%s230 + $0xc] sm:$0xf] %v237
              $region45: #{_lambda_.25} parent=39 // loop_footer
                %s228 = sadd.s32 1, %s224
              $region46: #{_lambda_.25} parent=39 // loop_footer_branch
                %223 = sbr.rel target = $region42
              $region47: #{_lambda_.25} parent=39 // loop_exit
                _
            $region40: #{_lambda_.25} parent=31 // pred_fallthru
              _
          $region32: #{_lambda_.25} parent=27 // pred_fallthru
            _
          %266 = vnop
        $region28: #{_lambda_.25} parent=23 // pred_fallthru
          _
        // Predicated region
        $region66: #{_lambda_.25} parent=23 // pred_check
          %p267 = pneg %p79
        $region67: #{_lambda_.25} parent=23 // pred_check_branch
          %269 = sbr.rel (%p267) target = $region69
        $region68: #{_lambda_.25} parent=23 // pred_region
          %s270 = smul.u32 16, %s19
          %p271 = scmp.lt.s32.totalorder %s270, 47
          %s272 = scalar_select %p271, %s270, 47
          %p273 = scmp.lt.s32.totalorder %s18, 0
          %s274 = scalar_select %p273, %s18, 0
          %s275 = sadd.s32 %s274, %s272
          %s276 = smul.addr %s275, 4
          %s277 = scalar_lea.vmem %s1, %s276
          %s278 = smul.u32 16, %s19
        $region69: #{_lambda_.25} parent=23 // pred_fallthru
          _
      $region24: #{_lambda_.25} parent=5 // pred_fallthru
        _
      %p279 = scmp.le.s32.totalorder 1, %s10
      %p280 = scmp.lt.s32.totalorder %s10, 4
      %p281 = pnand %p279, %p280
      %p282 = pneg %p281
      // Predicated region
      $region70: #{_lambda_.25} parent=5 // pred_check
        _
      $region71: #{_lambda_.25} parent=5 // pred_check_branch
        %284 = sbr.rel (%p281) target = $region73
      $region72: #{_lambda_.25} parent=5 // pred_region
        %s285 = ssub.s32 %s10, 1
        %s286 = sand.u32 %s44, 1
        %s287 = sand.u32 %s44, 1
        %s288 = smul.addr %s287, 16
        %s289 = scalar_lea.vmem [#allocation3], %s288
        // Predicated region
        $region74: #{_lambda_.25} parent=72 // pred_check
          %p290 = pneg %p57
        $region75: #{_lambda_.25} parent=72 // pred_check_branch
          %292 = sbr.rel (%p290) target = $region77
        $region76: #{_lambda_.25} parent=72 // pred_region
          _
        $region77: #{_lambda_.25} parent=72 // pred_fallthru
          _
        %s293 = sand.u32 %s44, 1
        %s294 = sand.u32 %s44, 1
        %s295 = smul.addr %s294, 16
        %s296 = scalar_lea.vmem [#allocation3], %s295
        %p297 = pneg %p57
        %p298 = pneg %p54
        %s299 = smul.u32 16, %s22
        %p300 = scmp.lt.s32.totalorder %s299, 47
        %s301 = scalar_select %p300, %s299, 47
        %p302 = scmp.lt.s32.totalorder %s21, 0
        %s303 = scalar_select %p302, %s21, 0
        %s304 = sadd.s32 %s303, %s301
        %s305 = smul.addr %s304, 4
        %s306 = scalar_lea.vmem %s1, %s305
        %p307 = pneg %p85
        %p308 = pneg %p82
        %p309 = scmp.lt.s32.totalorder %s21, 0
        %s310 = scalar_select %p309, %s21, 0
        %s311 = scalar_lea.vmem %s2, %s310
        %p312 = pneg %p111
        %p313 = pneg %p108
        %s314 = smul.u32 4, %s20
        %p315 = scmp.lt.s32.totalorder %s314, 3
        %s316 = scalar_select %p315, %s314, 3
        %p317 = scmp.lt.s32.totalorder %s21, 0
        %s318 = scalar_select %p317, %s21, 0
        %s319 = sadd.s32 %s318, %s316
        %s320 = smul.addr %s319, 8
        %s321 = scalar_lea.vmem %s3, %s320
        %p322 = pneg %p139
        %p323 = pneg %p136
        %p324 = pneg %p167
        %p325 = pneg %p164
        %s326 = smul.u32 4, %s20
        %p327 = scmp.lt.s32.totalorder %s326, 3
        %s328 = scalar_select %p327, %s326, 3
        %p329 = scmp.lt.s32.totalorder %s21, 0
        %s330 = scalar_select %p329, %s21, 0
        %s331 = sadd.s32 %s330, %s328
        %s332 = smul.addr %s331, 8
        %s333 = scalar_lea.vmem %s4, %s332
        %s334 = smul.u32 4, %s20
        %s335 = smul.u32 16, %s22
        %p336 = scmp.lt.s32.totalorder %s335, 47
        %s337 = scalar_select %p336, %s335, 47
        %p338 = scmp.lt.s32.totalorder %s21, 0
        %s339 = scalar_select %p338, %s21, 0
        %s340 = sadd.s32 %s339, %s337
        %s341 = smul.addr %s340, 4
        %s342 = scalar_lea.vmem %s1, %s341
        %s343 = smul.u32 16, %s22
        %p344 = scmp.lt.s32.totalorder %s21, 0
        %s345 = scalar_select %p344, %s21, 0
        %s346 = scalar_lea.vmem %s2, %s345
        %s347 = smul.u32 4, %s20
        %p348 = scmp.lt.s32.totalorder %s347, 3
        %s349 = scalar_select %p348, %s347, 3
        %p350 = scmp.lt.s32.totalorder %s21, 0
        %s351 = scalar_select %p350, %s21, 0
        %s352 = sadd.s32 %s351, %s349
        %s353 = smul.addr %s352, 8
        %s354 = scalar_lea.vmem %s3, %s353
        %s355 = smul.u32 4, %s20
        %s356 = smul.u32 4, %s20
        %p357 = scmp.lt.s32.totalorder %s356, 3
        %s358 = scalar_select %p357, %s356, 3
        %p359 = scmp.lt.s32.totalorder %s21, 0
        %s360 = scalar_select %p359, %s21, 0
        %s361 = sadd.s32 %s360, %s358
        %s362 = smul.addr %s361, 8
        %s363 = scalar_lea.vmem %s4, %s362
        %s364 = smul.u32 4, %s20
        %p366 = scmp.eq.s32.totalorder %s22, 0
        // Predicated region
        $region78: #{_lambda_.25} parent=72 // pred_check
          %p367 = pneg %p366
        $region79: #{_lambda_.25} parent=72 // pred_check_branch
          %369 = sbr.rel (%p367) target = $region81
        $region80: #{_lambda_.25} parent=72 // pred_region
          %370 = vst [vmem:[#allocation2] sm:$0xff] 0.0
          %371 = vst [vmem:[#allocation2 + $0x8] sm:$0xff] 0.0
          %372 = vst [vmem:[#allocation2 + $0x10] sm:$0xff] 0.0
          %373 = vst [vmem:[#allocation2 + $0x18] sm:$0xff] 0.0
        $region81: #{_lambda_.25} parent=72 // pred_fallthru
          _
        %v374 = vld [vmem:[#allocation2] sm:$0xff]
        %v375 = vld [vmem:[#allocation2 + $0x8] sm:$0xff]
        %v376 = vld [vmem:[#allocation2 + $0x10] sm:$0xff]
        %v377 = vld [vmem:[#allocation2 + $0x18] sm:$0xff]
        %v378 = vld [vmem:[%s289] sm:$0xf]
        %v379 = vld [vmem:[%s289 + $0x4] sm:$0xf]
        %v380 = vld [vmem:[%s289 + $0x8] sm:$0xf]
        %v381 = vld [vmem:[%s289 + $0xc] sm:$0xf]
        %v382 = vld [vmem:[%s342] sm:$0xf]
        %v383 = vld [vmem:[%s342 + $0x4] sm:$0xf]
        %v384 = vld [vmem:[%s342 + $0x8] sm:$0xf]
        %v385 = vld [vmem:[%s342 + $0xc] sm:$0xf]
        %v386 = vld [vmem:[%s342 + $0x10] sm:$0xf]
        %v387 = vld [vmem:[%s342 + $0x14] sm:$0xf]
        %v388 = vld [vmem:[%s342 + $0x18] sm:$0xf]
        %v389 = vld [vmem:[%s342 + $0x1c] sm:$0xf]
        %v390 = vld [vmem:[%s342 + $0x20] sm:$0xf]
        %v391 = vld [vmem:[%s342 + $0x24] sm:$0xf]
        %v392 = vld [vmem:[%s342 + $0x28] sm:$0xf]
        %v393 = vld [vmem:[%s342 + $0x2c] sm:$0xf]
        %v394 = vld [vmem:[%s342 + $0x30] sm:$0xf]
        %v395 = vld [vmem:[%s342 + $0x34] sm:$0xf]
        %v396 = vld [vmem:[%s342 + $0x38] sm:$0xf]
        %v397 = vld [vmem:[%s342 + $0x3c] sm:$0xf]
        %v402 = vunpack.c.l.b16 %v378
        %v403 = vunpack.c.l.b16 %v379
        %v404 = vunpack.c.l.b16 %v380
        %v405 = vunpack.c.l.b16 %v381
        %v406 = vpack.c.b16 %v403, %v402
        %v407 = vpack.c.b16 %v405, %v404
        %v426 = vunpack.c.l.b16 %v382
        %v427 = vunpack.c.l.b16 %v383
        %v428 = vunpack.c.l.b16 %v384
        %v429 = vunpack.c.l.b16 %v385
        %v430 = vunpack.c.l.b16 %v386
        %v431 = vunpack.c.l.b16 %v387
        %v432 = vunpack.c.l.b16 %v388
        %v433 = vunpack.c.l.b16 %v389
        %v434 = vunpack.c.l.b16 %v390
        %v435 = vunpack.c.l.b16 %v391
        %v436 = vunpack.c.l.b16 %v392
        %v437 = vunpack.c.l.b16 %v393
        %v438 = vunpack.c.l.b16 %v394
        %v439 = vunpack.c.l.b16 %v395
        %v440 = vunpack.c.l.b16 %v396
        %v441 = vunpack.c.l.b16 %v397
        %v442 = vpack.c.b16 %v427, %v426
        %v443 = vpack.c.b16 %v429, %v428
        %v444 = vpack.c.b16 %v431, %v430
        %v445 = vpack.c.b16 %v433, %v432
        %v446 = vpack.c.b16 %v435, %v434
        %v447 = vpack.c.b16 %v437, %v436
        %v448 = vpack.c.b16 %v439, %v438
        %v449 = vpack.c.b16 %v441, %v440
        %458 = vmatprep.subr.bf16.mxu0 0
        %459 = vmatpush1.bf16.msra.mxu0 %v442
        %460 = vmatprep.subr.bf16.mxu0 0
        %461 = vmatpush1.bf16.msra.mxu0 %v443
        %462 = vmatprep.subr.bf16.mxu0 0
        %463 = vmatpush1.bf16.msra.mxu0 %v444
        %464 = vmatprep.subr.bf16.mxu0 0
        %465 = vmatpush1.bf16.msra.mxu0 %v445
        %466 = vmatprep.subr.bf16.mxu0 0
        %467 = vmatpush1.bf16.msra.mxu0 %v446
        %468 = vmatprep.subr.bf16.mxu0 0
        %469 = vmatpush1.bf16.msra.mxu0 %v447
        %470 = vmatprep.subr.bf16.mxu0 0
        %471 = vmatpush1.bf16.msra.mxu0 %v448
        %472 = vmatprep.subr.bf16.mxu0 0
        %473 = vmatpush1.bf16.msra.mxu0 %v449
        %474 = vmatprep.subr.bf16.mxu0 0
        %475 = vmatpush1.bf16.msra.mxu0 0
        %476 = vmatprep.subr.bf16.mxu0 0
        %477 = vmatpush1.bf16.msra.mxu0 0
        %478 = vmatprep.subr.bf16.mxu0 0
        %479 = vmatpush1.bf16.msra.mxu0 0
        %480 = vmatprep.subr.bf16.mxu0 0
        %481 = vmatpush1.bf16.msra.mxu0 0
        %482 = vmatprep.subr.bf16.mxu0 0
        %483 = vmatpush1.bf16.msra.mxu0 0
        %484 = vmatprep.subr.bf16.mxu0 0
        %485 = vmatpush1.bf16.msra.mxu0 0
        %486 = vmatprep.subr.bf16.mxu0 0
        %487 = vmatpush1.bf16.msra.mxu0 0
        %488 = vmatprep.subr.bf16.mxu0 0
        %489 = vmatpush1.bf16.msra.mxu0 0
        %490 = vmatprep.mubr.bf16.mxu0 0
        %491 = vmatmul.mubr.bf16.gmra.mrb[0].mxu0 %v406
        %v492 = vpop.f32.mrb[0].mxu0
        %v493 = vadd.f32 0.0, %v492
        %v494 = vpop.f32.mrb[0].mxu0
        %v495 = vpop.f32.mrb[0].mxu0
        %v496 = vadd.f32 0.0, %v495
        %v497 = vpop.f32.mrb[0].mxu0
        %498 = vmatprep.mubr.bf16.mxu0 0
        %499 = vmatmul.mubr.bf16.gmra.mrb[0].mxu0 %v407
        %v500 = vpop.f32.mrb[0].mxu0
        %v501 = vadd.f32 0.0, %v500
        %v502 = vpop.f32.mrb[0].mxu0
        %v503 = vpop.f32.mrb[0].mxu0
        %v504 = vadd.f32 0.0, %v503
        %v505 = vpop.f32.mrb[0].mxu0
        %506 = vdwg.mxu0
        %v507 = vadd.f32 %v374, %v493
        %v508 = vadd.f32 %v375, %v496
        %v509 = vadd.f32 %v376, %v501
        %v510 = vadd.f32 %v377, %v504
        %511 = vst [vmem:[#allocation2] sm:$0xff] %v507
        %512 = vst [vmem:[#allocation2 + $0x8] sm:$0xff] %v508
        %513 = vst [vmem:[#allocation2 + $0x10] sm:$0xff] %v509
        %514 = vst [vmem:[#allocation2 + $0x18] sm:$0xff] %v510
        %p515 = scmp.eq.s32.totalorder %s22, 2
        // Predicated region
        $region82: #{_lambda_.25} parent=72 // pred_check
          %p516 = pneg %p515
        $region83: #{_lambda_.25} parent=72 // pred_check_branch
          %518 = sbr.rel (%p516) target = $region85
        $region84: #{_lambda_.25} parent=72 // pred_region
          %v519 = vld [vmem:[#allocation2] sm:$0xff]
          %v520 = vld [vmem:[#allocation2 + $0x8] sm:$0xff]
          %v521 = vld [vmem:[#allocation2 + $0x10] sm:$0xff]
          %v522 = vld [vmem:[#allocation2 + $0x18] sm:$0xff]
          %v523 = vld [vmem:[%s346] sm:$0x1]
          %v525 = vlaneseq
          %v526 = vshrl.u32 %v525, 7
          %v527 = vsub.s32 0, %v526
          %v528 = vrot.slane %v523, %v527
          %v530 = vadd.f32 %v519, %v528
          %v531 = vadd.f32 %v520, %v528
          %v532 = vadd.f32 %v521, %v528
          %v533 = vadd.f32 %v522, %v528
          %v534 = vld [vmem:[%s354] sm:$0xff]
          %v535 = vld [vmem:[%s354 + $0x8] sm:$0xff]
          %v536 = vld [vmem:[%s354 + $0x10] sm:$0xff]
          %v537 = vld [vmem:[%s354 + $0x18] sm:$0xff]
          %v538 = vadd.f32 %v530, %v534
          %v539 = vadd.f32 %v531, %v535
          %v540 = vadd.f32 %v532, %v536
          %v541 = vadd.f32 %v533, %v537
          %v542 = vmax.f32 %v538, 0.0
          %v543 = vmax.f32 %v539, 0.0
          %v544 = vmax.f32 %v540, 0.0
          %v545 = vmax.f32 %v541, 0.0
          %546 = vst [vmem:[%s363] sm:$0xff] %v542
          %547 = vst [vmem:[%s363 + $0x8] sm:$0xff] %v543
          %548 = vst [vmem:[%s363 + $0x10] sm:$0xff] %v544
          %549 = vst [vmem:[%s363 + $0x18] sm:$0xff] %v545
        $region85: #{_lambda_.25} parent=72 // pred_fallthru
          _
        %s550 = smul.u32 4, %s20
        %p551 = scmp.lt.s32.totalorder %s550, 3
        %s552 = scalar_select %p551, %s550, 3
        %p553 = scmp.lt.s32.totalorder %s21, 0
        %s554 = scalar_select %p553, %s21, 0
        %s555 = sadd.s32 %s554, %s552
        %s556 = smul.addr %s555, 8
        %s557 = scalar_lea.vmem %s4, %s556
        // Predicated region
        $region86: #{_lambda_.25} parent=72 // pred_check
          %p558 = pneg %p164
        $region87: #{_lambda_.25} parent=72 // pred_check_branch
          %560 = sbr.rel (%p558) target = $region89
        $region88: #{_lambda_.25} parent=72 // pred_region
          %s561 = smul.u32 4, %s20
        $region89: #{_lambda_.25} parent=72 // pred_fallthru
          _
        // Predicated region
        $region90: #{_lambda_.25} parent=72 // pred_check
          %p562 = pneg %p164
        $region91: #{_lambda_.25} parent=72 // pred_check_branch
          %564 = sbr.rel (%p562) target = $region93
        $region92: #{_lambda_.25} parent=72 // pred_region
          %s565 = smul.u32 4, %s20
          %p566 = scmp.lt.s32.totalorder %s565, 3
          %s567 = scalar_select %p566, %s565, 3
          %p568 = scmp.lt.s32.totalorder %s21, 0
          %s569 = scalar_select %p568, %s21, 0
          %s570 = sadd.s32 %s569, %s567
          %s571 = smul.addr %s570, 8
          %s572 = scalar_lea.vmem %s4, %s571
        $region93: #{_lambda_.25} parent=72 // pred_fallthru
          _
      $region73: #{_lambda_.25} parent=5 // pred_fallthru
        _
      %p573 = scmp.le.s32.totalorder 2, %s10
      // Predicated region
      $region94: #{_lambda_.25} parent=5 // pred_check
        %p574 = pneg %p573
      $region95: #{_lambda_.25} parent=5 // pred_check_branch
        %576 = sbr.rel (%p574) target = $region97
      $region96: #{_lambda_.25} parent=5 // pred_region
        %s577 = ssub.s32 %s10, 2
      $region97: #{_lambda_.25} parent=5 // pred_fallthru
        _
    $region6: #{_lambda_.25} parent=1 // loop_footer
      %s14 = sadd.s32 1, %s10
    $region7: #{_lambda_.25} parent=1 // loop_footer_branch
      %9 = sbr.rel target = $region3
    $region8: #{_lambda_.25} parent=1 // loop_exit
      _

// kernel: _lambda_.28
$region0: #{_lambda_.28}
  #allocation0 [shape = 'u32[]', space=smem, size = 0x4, offset = 0x4, fixed_abs, tag = 'smem constant byte address 0x4 - core index']
  #allocation1 [shape = 'u32[144,128]{1,0:T(1,128)}', space=vmem, size = 0x12000, scoped, tag = 'internal scratch']
  #allocation2 [shape = 'f32[32,128]{1,0:T(8,128)}', space=vmem, size = 0x4000, scoped, tag = 'scratch operand']
  %s0 = inlined_call_operand.vmem [shape: bf16[32,640], index: 0, kind: input, shape index: {}]
  %s1 = inlined_call_operand.vmem [shape: bf16[640,128], index: 1, kind: input, shape index: {}]
  %s2 = inlined_call_operand.vmem [shape: f32[1,128], index: 2, kind: input, shape index: {}]
  %s3 = inlined_call_operand.vmem [shape: f32[32,128], index: 3, kind: input, shape index: {}]
  %s4 = inlined_call_operand.vmem [shape: f32[32,128], index: 4, kind: output, shape index: {}]
  %s5 = sld [smem:[#allocation0]]
  $region98: #{_lambda_.28} parent=0
    _
  %s7 = ssub.s32 1, %s5
  %s8 = scalar_select 0, %s7, %s5
  $region1: #{_lambda_.28} parent=0
    #allocation3 [shape = 'u8[16384]{0}', space=vmem, size = 0x4000, scoped, tag = 'input window, operand 0']
    loop: start=0, step=1, limit=7
    $region2: #{_lambda_.28} parent=1 // loop_pre_header
      _
    $region3: #{_lambda_.28} parent=1 // loop_header
      %s10 = sphi 0, %s14
      %p11 = scmp.ge.s32.totalorder %s10, 7
      %s17 = sphi 0, %s36
      %s18 = sphi 0, %s32
      %s19 = sphi 0, %s28
      %s20 = sphi 0, %s17
      %s21 = sphi 0, %s18
      %s22 = sphi 0, %s19
      %s23 = sphi 0, %s20
      %s24 = sphi 0, %s21
      %s25 = sphi 0, %s22
      %s41 = sphi 0, %s43
      %s44 = sphi 0, %s41
      %s45 = sphi 0, %s44
      %s61 = sphi 0, %s45
      %s69 = sphi 0, %s71
      %s72 = sphi 0, %s69
      %s73 = sphi 0, %s72
      %s89 = sphi 0, %s73
      %s95 = sphi 0, %s97
      %s98 = sphi 0, %s95
      %s99 = sphi 0, %s98
      %s115 = sphi 0, %s99
      %s123 = sphi 0, %s125
      %s126 = sphi 0, %s123
      %s127 = sphi 0, %s126
      %s143 = sphi 0, %s127
      %s151 = sphi 0, %s153
      %s154 = sphi 0, %s151
      %s155 = sphi 0, %s154
      %s171 = sphi 0, %s155
    $region4: #{_lambda_.28} parent=1 // loop_header_branch
      %13 = sbr.rel (%p11) target = $region8
    $region5: #{_lambda_.28} parent=1 // loop_body
      %s15 = ssub.s32 %s10, 1
      %s16 = ssub.s32 %s10, 2
      %s26 = sadd.s32 1, %s19
      %p27 = scmp.ge.s32.totalorder %s26, 5
      %s28 = scalar_select %p27, 0, %s26
      %s29 = sadd.s32 1, %s18
      %s30 = scalar_select %p27, %s29, %s18
      %p31 = scmp.ge.s32.totalorder %s30, 1
      %s32 = scalar_select %p31, 0, %s30
      %s33 = sadd.s32 1, %s17
      %s34 = scalar_select %p31, %s33, %s17
      %p35 = scmp.ge.s32.totalorder %s34, 1
      %s36 = scalar_select %p35, 0, %s34
      %s37 = ssub.s32 %s17, %s36
      %s38 = ssub.s32 %s19, %s28
      %s39 = sor.u32 %s37, %s38
      %p40 = scmp.eq.s32.totalorder %s39, 0
      %s42 = sadd.s32 %s41, 1
      %s43 = scalar_select %p40, %s41, %s42
      %p46 = pneg %p40
      %p47 = scmp.eq.s32.totalorder %s10, 4
      %p48 = por %p46, %p47
      %p49 = scmp.ne.s32.totalorder %s41, %s44
      %p50 = scmp.eq.s32.totalorder %s10, 0
      %p51 = por %p49, %p50
      %p52 = scmp.ne.s32.totalorder %s41, %s44
      %p53 = scmp.eq.s32.totalorder %s15, 4
      %p54 = por %p52, %p53
      %p55 = scmp.ne.s32.totalorder %s44, %s45
      %p56 = scmp.eq.s32.totalorder %s15, 0
      %p57 = por %p55, %p56
      %p58 = scmp.ne.s32.totalorder %s44, %s45
      %p59 = scmp.eq.s32.totalorder %s16, 4
      %p60 = por %p58, %p59
      %p62 = scmp.ne.s32.totalorder %s45, %s61
      %p63 = scmp.eq.s32.totalorder %s16, 0
      %p64 = por %p62, %p63
      %s65 = ssub.s32 %s19, %s28
      %s66 = ssub.s32 %s18, %s32
      %s67 = sor.u32 %s65, %s66
      %p68 = scmp.eq.s32.totalorder %s67, 0
      %s70 = sadd.s32 %s69, 1
      %s71 = scalar_select %p68, %s69, %s70
      %p74 = pneg %p68
      %p75 = scmp.eq.s32.totalorder %s10, 4
      %p76 = por %p74, %p75
      %p77 = scmp.ne.s32.totalorder %s69, %s72
      %p78 = scmp.eq.s32.totalorder %s10, 0
      %p79 = por %p77, %p78
      %p80 = scmp.ne.s32.totalorder %s69, %s72
      %p81 = scmp.eq.s32.totalorder %s15, 4
      %p82 = por %p80, %p81
      %p83 = scmp.ne.s32.totalorder %s72, %s73
      %p84 = scmp.eq.s32.totalorder %s15, 0
      %p85 = por %p83, %p84
      %p86 = scmp.ne.s32.totalorder %s72, %s73
      %p87 = scmp.eq.s32.totalorder %s16, 4
      %p88 = por %p86, %p87
      %p90 = scmp.ne.s32.totalorder %s73, %s89
      %p91 = scmp.eq.s32.totalorder %s16, 0
      %p92 = por %p90, %p91
      %s93 = ssub.s32 %s18, %s32
      %p94 = scmp.eq.s32.totalorder %s93, 0
      %s96 = sadd.s32 %s95, 1
      %s97 = scalar_select %p94, %s95, %s96
      %p100 = pneg %p94
      %p101 = scmp.eq.s32.totalorder %s10, 4
      %p102 = por %p100, %p101
      %p103 = scmp.ne.s32.totalorder %s95, %s98
      %p104 = scmp.eq.s32.totalorder %s10, 0
      %p105 = por %p103, %p104
      %p106 = scmp.ne.s32.totalorder %s95, %s98
      %p107 = scmp.eq.s32.totalorder %s15, 4
      %p108 = por %p106, %p107
      %p109 = scmp.ne.s32.totalorder %s98, %s99
      %p110 = scmp.eq.s32.totalorder %s15, 0
      %p111 = por %p109, %p110
      %p112 = scmp.ne.s32.totalorder %s98, %s99
      %p113 = scmp.eq.s32.totalorder %s16, 4
      %p114 = por %p112, %p113
      %p116 = scmp.ne.s32.totalorder %s99, %s115
      %p117 = scmp.eq.s32.totalorder %s16, 0
      %p118 = por %p116, %p117
      %s119 = ssub.s32 %s17, %s36
      %s120 = ssub.s32 %s18, %s32
      %s121 = sor.u32 %s119, %s120
      %p122 = scmp.eq.s32.totalorder %s121, 0
      %s124 = sadd.s32 %s123, 1
      %s125 = scalar_select %p122, %s123, %s124
      %p128 = pneg %p122
      %p129 = scmp.eq.s32.totalorder %s10, 4
      %p130 = por %p128, %p129
      %p131 = scmp.ne.s32.totalorder %s123, %s126
      %p132 = scmp.eq.s32.totalorder %s10, 0
      %p133 = por %p131, %p132
      %p134 = scmp.ne.s32.totalorder %s123, %s126
      %p135 = scmp.eq.s32.totalorder %s15, 4
      %p136 = por %p134, %p135
      %p137 = scmp.ne.s32.totalorder %s126, %s127
      %p138 = scmp.eq.s32.totalorder %s15, 0
      %p139 = por %p137, %p138
      %p140 = scmp.ne.s32.totalorder %s126, %s127
      %p141 = scmp.eq.s32.totalorder %s16, 4
      %p142 = por %p140, %p141
      %p144 = scmp.ne.s32.totalorder %s127, %s143
      %p145 = scmp.eq.s32.totalorder %s16, 0
      %p146 = por %p144, %p145
      %s147 = ssub.s32 %s17, %s36
      %s148 = ssub.s32 %s18, %s32
      %s149 = sor.u32 %s147, %s148
      %p150 = scmp.eq.s32.totalorder %s149, 0
      %s152 = sadd.s32 %s151, 1
      %s153 = scalar_select %p150, %s151, %s152
      %p156 = pneg %p150
      %p157 = scmp.eq.s32.totalorder %s10, 4
      %p158 = por %p156, %p157
      %p159 = scmp.ne.s32.totalorder %s151, %s154
      %p160 = scmp.eq.s32.totalorder %s10, 0
      %p161 = por %p159, %p160
      %p162 = scmp.ne.s32.totalorder %s151, %s154
      %p163 = scmp.eq.s32.totalorder %s15, 4
      %p164 = por %p162, %p163
      %p165 = scmp.ne.s32.totalorder %s154, %s155
      %p166 = scmp.eq.s32.totalorder %s15, 0
      %p167 = por %p165, %p166
      %p168 = scmp.ne.s32.totalorder %s154, %s155
      %p169 = scmp.eq.s32.totalorder %s16, 4
      %p170 = por %p168, %p169
      %p172 = scmp.ne.s32.totalorder %s155, %s171
      %p173 = scmp.eq.s32.totalorder %s16, 0
      %p174 = por %p172, %p173
      %p175 = scmp.le.s32.totalorder 1, %s10
      %p176 = scmp.lt.s32.totalorder %s10, 6
      %p177 = pnand %p175, %p176
      %p178 = pneg %p177
      // Predicated region
      $region9: #{_lambda_.28} parent=5 // pred_check
        _
      $region10: #{_lambda_.28} parent=5 // pred_check_branch
        %180 = sbr.rel (%p177) target = $region12
      $region11: #{_lambda_.28} parent=5 // pred_region
        %s181 = ssub.s32 %s10, 1
        // Predicated region
        $region13: #{_lambda_.28} parent=11 // pred_check
          %p182 = pneg %p111
        $region14: #{_lambda_.28} parent=11 // pred_check_branch
          %184 = sbr.rel (%p182) target = $region16
        $region15: #{_lambda_.28} parent=11 // pred_region
          %p185 = scmp.lt.s32.totalorder %s21, 0
          %s186 = scalar_select %p185, %s21, 0
          %s187 = scalar_lea.vmem %s2, %s186
        $region16: #{_lambda_.28} parent=11 // pred_fallthru
          _
        // Predicated region
        $region17: #{_lambda_.28} parent=11 // pred_check
          %p188 = pneg %p139
        $region18: #{_lambda_.28} parent=11 // pred_check_branch
          %190 = sbr.rel (%p188) target = $region20
        $region19: #{_lambda_.28} parent=11 // pred_region
          %s191 = smul.u32 4, %s20
          %p192 = scmp.lt.s32.totalorder %s191, 3
          %s193 = scalar_select %p192, %s191, 3
          %p194 = scmp.lt.s32.totalorder %s21, 0
          %s195 = scalar_select %p194, %s21, 0
          %s196 = sadd.s32 %s195, %s193
          %s197 = smul.addr %s196, 8
          %s198 = scalar_lea.vmem %s3, %s197
          %s199 = smul.u32 4, %s20
        $region20: #{_lambda_.28} parent=11 // pred_fallthru
          _
      $region12: #{_lambda_.28} parent=5 // pred_fallthru
        _
      %p200 = scmp.lt.s32.totalorder %s10, 5
      // Predicated region
      $region21: #{_lambda_.28} parent=5 // pred_check
        %p201 = pneg %p200
      $region22: #{_lambda_.28} parent=5 // pred_check_branch
        %203 = sbr.rel (%p201) target = $region24
      $region23: #{_lambda_.28} parent=5 // pred_region
        // Predicated region
        $region25: #{_lambda_.28} parent=23 // pred_check
          %p204 = pneg %p51
        $region26: #{_lambda_.28} parent=23 // pred_check_branch
          %206 = sbr.rel (%p204) target = $region28
        $region27: #{_lambda_.28} parent=23 // pred_region
          %s207 = sand.u32 %s41, 1
          %s208 = sand.u32 %s41, 1
          %s209 = smul.addr %s208, 16
          %s210 = scalar_lea.vmem [#allocation3], %s209
          %s211 = smul.u32 4, %s17
          %s212 = smul.addr %s211, 5
          %s213 = sadd.s32 %s19, %s212
          %s214 = smul.addr %s213, 4
          %s215 = scalar_lea.vmem %s0, %s214
          // Predicated region
          $region29: #{_lambda_.28} parent=27 // pred_check
            _
          $region30: #{_lambda_.28} parent=27 // pred_check_branch
            %217 = sbr.rel (0) target = $region32
          $region31: #{_lambda_.28} parent=27 // pred_region
            // Predicated region
            $region33: #{_lambda_.28} parent=31 // pred_check
              _
            $region34: #{_lambda_.28} parent=31 // pred_check_branch
              %219 = sbr.rel target = $region36
            $region35: #{_lambda_.28} parent=31 // pred_region
              // Predicated region
              $region48: #{_lambda_.28} parent=35 // pred_check
                _
              $region49: #{_lambda_.28} parent=35 // pred_check_branch
                %240 = sbr.rel (0) target = $region51
              $region50: #{_lambda_.28} parent=35 // pred_region
                loop: start=0, step=1, limit=1
                $region52: #{_lambda_.28} parent=50 // loop_pre_header
                  _
                $region53: #{_lambda_.28} parent=50 // loop_header
                  %s242 = sphi 0, %s246
                  %p243 = scmp.ge.s32.totalorder %s242, 1
                  %s247 = sphi %s215, %s215
                  %s248 = sphi %s210, %s210
                $region54: #{_lambda_.28} parent=50 // loop_header_branch
                  %245 = sbr.rel (%p243) target = $region58
                $region55: #{_lambda_.28} parent=50 // loop_body
                  _
                $region56: #{_lambda_.28} parent=50 // loop_footer
                  %s246 = sadd.s32 1, %s242
                $region57: #{_lambda_.28} parent=50 // loop_footer_branch
                  %241 = sbr.rel target = $region53
                $region58: #{_lambda_.28} parent=50 // loop_exit
                  _
                loop: start=0, step=1, limit=1
                $region59: #{_lambda_.28} parent=50 // loop_pre_header
                  _
                $region60: #{_lambda_.28} parent=50 // loop_header
                  %s251 = sphi 0, %s255
                  %p252 = scmp.ge.s32.totalorder %s251, 1
                  %s256 = sphi %s215, %s215
                  %s257 = sphi %s210, %s210
                $region61: #{_lambda_.28} parent=50 // loop_header_branch
                  %254 = sbr.rel (%p252) target = $region65
                $region62: #{_lambda_.28} parent=50 // loop_body
                  %v258 = vld [vmem:[%s256] sm:$0xf]
                  %259 = vst [vmem:[%s257] sm:$0xf] %v258
                  %v260 = vld [vmem:[%s256 + $0x14] sm:$0xf]
                  %261 = vst [vmem:[%s257 + $0x4] sm:$0xf] %v260
                  %v262 = vld [vmem:[%s256 + $0x28] sm:$0xf]
                  %263 = vst [vmem:[%s257 + $0x8] sm:$0xf] %v262
                  %v264 = vld [vmem:[%s256 + $0x3c] sm:$0xf]
                  %265 = vst [vmem:[%s257 + $0xc] sm:$0xf] %v264
                $region63: #{_lambda_.28} parent=50 // loop_footer
                  %s255 = sadd.s32 1, %s251
                $region64: #{_lambda_.28} parent=50 // loop_footer_branch
                  %250 = sbr.rel target = $region60
                $region65: #{_lambda_.28} parent=50 // loop_exit
                  _
              $region51: #{_lambda_.28} parent=35 // pred_fallthru
                _
            $region36: #{_lambda_.28} parent=31 // pred_fallthru
              _
            // Predicated region
            $region37: #{_lambda_.28} parent=31 // pred_check
              _
            $region38: #{_lambda_.28} parent=31 // pred_check_branch
              %221 = sbr.rel (0) target = $region40
            $region39: #{_lambda_.28} parent=31 // pred_region
              loop: start=0, step=1, limit=1
              $region41: #{_lambda_.28} parent=39 // loop_pre_header
                _
              $region42: #{_lambda_.28} parent=39 // loop_header
                %s224 = sphi 0, %s228
                %p225 = scmp.ge.s32.totalorder %s224, 1
                %s229 = sphi %s215, %s215
                %s230 = sphi %s210, %s210
              $region43: #{_lambda_.28} parent=39 // loop_header_branch
                %227 = sbr.rel (%p225) target = $region47
              $region44: #{_lambda_.28} parent=39 // loop_body
                %v231 = vld [vmem:[%s229] sm:$0xf]
                %232 = vst [vmem:[%s230] sm:$0xf] %v231
                %v233 = vld [vmem:[%s229 + $0x14] sm:$0xf]
                %234 = vst [vmem:[%s230 + $0x4] sm:$0xf] %v233
                %v235 = vld [vmem:[%s229 + $0x28] sm:$0xf]
                %236 = vst [vmem:[%s230 + $0x8] sm:$0xf] %v235
                %v237 = vld [vmem:[%s229 + $0x3c] sm:$0xf]
                %238 = vst [vmem:[%s230 + $0xc] sm:$0xf] %v237
              $region45: #{_lambda_.28} parent=39 // loop_footer
                %s228 = sadd.s32 1, %s224
              $region46: #{_lambda_.28} parent=39 // loop_footer_branch
                %223 = sbr.rel target = $region42
              $region47: #{_lambda_.28} parent=39 // loop_exit
                _
            $region40: #{_lambda_.28} parent=31 // pred_fallthru
              _
          $region32: #{_lambda_.28} parent=27 // pred_fallthru
            _
          %266 = vnop
        $region28: #{_lambda_.28} parent=23 // pred_fallthru
          _
        // Predicated region
        $region66: #{_lambda_.28} parent=23 // pred_check
          %p267 = pneg %p79
        $region67: #{_lambda_.28} parent=23 // pred_check_branch
          %269 = sbr.rel (%p267) target = $region69
        $region68: #{_lambda_.28} parent=23 // pred_region
          %s270 = smul.u32 16, %s19
          %p271 = scmp.lt.s32.totalorder %s270, 79
          %s272 = scalar_select %p271, %s270, 79
          %p273 = scmp.lt.s32.totalorder %s18, 0
          %s274 = scalar_select %p273, %s18, 0
          %s275 = sadd.s32 %s274, %s272
          %s276 = smul.addr %s275, 4
          %s277 = scalar_lea.vmem %s1, %s276
          %s278 = smul.u32 16, %s19
        $region69: #{_lambda_.28} parent=23 // pred_fallthru
          _
      $region24: #{_lambda_.28} parent=5 // pred_fallthru
        _
      %p279 = scmp.le.s32.totalorder 1, %s10
      %p280 = scmp.lt.s32.totalorder %s10, 6
      %p281 = pnand %p279, %p280
      %p282 = pneg %p281
      // Predicated region
      $region70: #{_lambda_.28} parent=5 // pred_check
        _
      $region71: #{_lambda_.28} parent=5 // pred_check_branch
        %284 = sbr.rel (%p281) target = $region73
      $region72: #{_lambda_.28} parent=5 // pred_region
        %s285 = ssub.s32 %s10, 1
        %s286 = sand.u32 %s44, 1
        %s287 = sand.u32 %s44, 1
        %s288 = smul.addr %s287, 16
        %s289 = scalar_lea.vmem [#allocation3], %s288
        // Predicated region
        $region74: #{_lambda_.28} parent=72 // pred_check
          %p290 = pneg %p57
        $region75: #{_lambda_.28} parent=72 // pred_check_branch
          %292 = sbr.rel (%p290) target = $region77
        $region76: #{_lambda_.28} parent=72 // pred_region
          _
        $region77: #{_lambda_.28} parent=72 // pred_fallthru
          _
        %s293 = sand.u32 %s44, 1
        %s294 = sand.u32 %s44, 1
        %s295 = smul.addr %s294, 16
        %s296 = scalar_lea.vmem [#allocation3], %s295
        %p297 = pneg %p57
        %p298 = pneg %p54
        %s299 = smul.u32 16, %s22
        %p300 = scmp.lt.s32.totalorder %s299, 79
        %s301 = scalar_select %p300, %s299, 79
        %p302 = scmp.lt.s32.totalorder %s21, 0
        %s303 = scalar_select %p302, %s21, 0
        %s304 = sadd.s32 %s303, %s301
        %s305 = smul.addr %s304, 4
        %s306 = scalar_lea.vmem %s1, %s305
        %p307 = pneg %p85
        %p308 = pneg %p82
        %p309 = scmp.lt.s32.totalorder %s21, 0
        %s310 = scalar_select %p309, %s21, 0
        %s311 = scalar_lea.vmem %s2, %s310
        %p312 = pneg %p111
        %p313 = pneg %p108
        %s314 = smul.u32 4, %s20
        %p315 = scmp.lt.s32.totalorder %s314, 3
        %s316 = scalar_select %p315, %s314, 3
        %p317 = scmp.lt.s32.totalorder %s21, 0
        %s318 = scalar_select %p317, %s21, 0
        %s319 = sadd.s32 %s318, %s316
        %s320 = smul.addr %s319, 8
        %s321 = scalar_lea.vmem %s3, %s320
        %p322 = pneg %p139
        %p323 = pneg %p136
        %p324 = pneg %p167
        %p325 = pneg %p164
        %s326 = smul.u32 4, %s20
        %p327 = scmp.lt.s32.totalorder %s326, 3
        %s328 = scalar_select %p327, %s326, 3
        %p329 = scmp.lt.s32.totalorder %s21, 0
        %s330 = scalar_select %p329, %s21, 0
        %s331 = sadd.s32 %s330, %s328
        %s332 = smul.addr %s331, 8
        %s333 = scalar_lea.vmem %s4, %s332
        %s334 = smul.u32 4, %s20
        %s335 = smul.u32 16, %s22
        %p336 = scmp.lt.s32.totalorder %s335, 79
        %s337 = scalar_select %p336, %s335, 79
        %p338 = scmp.lt.s32.totalorder %s21, 0
        %s339 = scalar_select %p338, %s21, 0
        %s340 = sadd.s32 %s339, %s337
        %s341 = smul.addr %s340, 4
        %s342 = scalar_lea.vmem %s1, %s341
        %s343 = smul.u32 16, %s22
        %p344 = scmp.lt.s32.totalorder %s21, 0
        %s345 = scalar_select %p344, %s21, 0
        %s346 = scalar_lea.vmem %s2, %s345
        %s347 = smul.u32 4, %s20
        %p348 = scmp.lt.s32.totalorder %s347, 3
        %s349 = scalar_select %p348, %s347, 3
        %p350 = scmp.lt.s32.totalorder %s21, 0
        %s351 = scalar_select %p350, %s21, 0
        %s352 = sadd.s32 %s351, %s349
        %s353 = smul.addr %s352, 8
        %s354 = scalar_lea.vmem %s3, %s353
        %s355 = smul.u32 4, %s20
        %s356 = smul.u32 4, %s20
        %p357 = scmp.lt.s32.totalorder %s356, 3
        %s358 = scalar_select %p357, %s356, 3
        %p359 = scmp.lt.s32.totalorder %s21, 0
        %s360 = scalar_select %p359, %s21, 0
        %s361 = sadd.s32 %s360, %s358
        %s362 = smul.addr %s361, 8
        %s363 = scalar_lea.vmem %s4, %s362
        %s364 = smul.u32 4, %s20
        %p366 = scmp.eq.s32.totalorder %s22, 0
        // Predicated region
        $region78: #{_lambda_.28} parent=72 // pred_check
          %p367 = pneg %p366
        $region79: #{_lambda_.28} parent=72 // pred_check_branch
          %369 = sbr.rel (%p367) target = $region81
        $region80: #{_lambda_.28} parent=72 // pred_region
          %370 = vst [vmem:[#allocation2] sm:$0xff] 0.0
          %371 = vst [vmem:[#allocation2 + $0x8] sm:$0xff] 0.0
          %372 = vst [vmem:[#allocation2 + $0x10] sm:$0xff] 0.0
          %373 = vst [vmem:[#allocation2 + $0x18] sm:$0xff] 0.0
        $region81: #{_lambda_.28} parent=72 // pred_fallthru
          _
        %v374 = vld [vmem:[#allocation2] sm:$0xff]
        %v375 = vld [vmem:[#allocation2 + $0x8] sm:$0xff]
        %v376 = vld [vmem:[#allocation2 + $0x10] sm:$0xff]
        %v377 = vld [vmem:[#allocation2 + $0x18] sm:$0xff]
        %v378 = vld [vmem:[%s289] sm:$0xf]
        %v379 = vld [vmem:[%s289 + $0x4] sm:$0xf]
        %v380 = vld [vmem:[%s289 + $0x8] sm:$0xf]
        %v381 = vld [vmem:[%s289 + $0xc] sm:$0xf]
        %v382 = vld [vmem:[%s342] sm:$0xf]
        %v383 = vld [vmem:[%s342 + $0x4] sm:$0xf]
        %v384 = vld [vmem:[%s342 + $0x8] sm:$0xf]
        %v385 = vld [vmem:[%s342 + $0xc] sm:$0xf]
        %v386 = vld [vmem:[%s342 + $0x10] sm:$0xf]
        %v387 = vld [vmem:[%s342 + $0x14] sm:$0xf]
        %v388 = vld [vmem:[%s342 + $0x18] sm:$0xf]
        %v389 = vld [vmem:[%s342 + $0x1c] sm:$0xf]
        %v390 = vld [vmem:[%s342 + $0x20] sm:$0xf]
        %v391 = vld [vmem:[%s342 + $0x24] sm:$0xf]
        %v392 = vld [vmem:[%s342 + $0x28] sm:$0xf]
        %v393 = vld [vmem:[%s342 + $0x2c] sm:$0xf]
        %v394 = vld [vmem:[%s342 + $0x30] sm:$0xf]
        %v395 = vld [vmem:[%s342 + $0x34] sm:$0xf]
        %v396 = vld [vmem:[%s342 + $0x38] sm:$0xf]
        %v397 = vld [vmem:[%s342 + $0x3c] sm:$0xf]
        %v402 = vunpack.c.l.b16 %v378
        %v403 = vunpack.c.l.b16 %v379
        %v404 = vunpack.c.l.b16 %v380
        %v405 = vunpack.c.l.b16 %v381
        %v406 = vpack.c.b16 %v403, %v402
        %v407 = vpack.c.b16 %v405, %v404
        %v426 = vunpack.c.l.b16 %v382
        %v427 = vunpack.c.l.b16 %v383
        %v428 = vunpack.c.l.b16 %v384
        %v429 = vunpack.c.l.b16 %v385
        %v430 = vunpack.c.l.b16 %v386
        %v431 = vunpack.c.l.b16 %v387
        %v432 = vunpack.c.l.b16 %v388
        %v433 = vunpack.c.l.b16 %v389
        %v434 = vunpack.c.l.b16 %v390
        %v435 = vunpack.c.l.b16 %v391
        %v436 = vunpack.c.l.b16 %v392
        %v437 = vunpack.c.l.b16 %v393
        %v438 = vunpack.c.l.b16 %v394
        %v439 = vunpack.c.l.b16 %v395
        %v440 = vunpack.c.l.b16 %v396
        %v441 = vunpack.c.l.b16 %v397
        %v442 = vpack.c.b16 %v427, %v426
        %v443 = vpack.c.b16 %v429, %v428
        %v444 = vpack.c.b16 %v431, %v430
        %v445 = vpack.c.b16 %v433, %v432
        %v446 = vpack.c.b16 %v435, %v434
        %v447 = vpack.c.b16 %v437, %v436
        %v448 = vpack.c.b16 %v439, %v438
        %v449 = vpack.c.b16 %v441, %v440
        %458 = vmatprep.subr.bf16.mxu0 0
        %459 = vmatpush1.bf16.msra.mxu0 %v442
        %460 = vmatprep.subr.bf16.mxu0 0
        %461 = vmatpush1.bf16.msra.mxu0 %v443
        %462 = vmatprep.subr.bf16.mxu0 0
        %463 = vmatpush1.bf16.msra.mxu0 %v444
        %464 = vmatprep.subr.bf16.mxu0 0
        %465 = vmatpush1.bf16.msra.mxu0 %v445
        %466 = vmatprep.subr.bf16.mxu0 0
        %467 = vmatpush1.bf16.msra.mxu0 %v446
        %468 = vmatprep.subr.bf16.mxu0 0
        %469 = vmatpush1.bf16.msra.mxu0 %v447
        %470 = vmatprep.subr.bf16.mxu0 0
        %471 = vmatpush1.bf16.msra.mxu0 %v448
        %472 = vmatprep.subr.bf16.mxu0 0
        %473 = vmatpush1.bf16.msra.mxu0 %v449
        %474 = vmatprep.subr.bf16.mxu0 0
        %475 = vmatpush1.bf16.msra.mxu0 0
        %476 = vmatprep.subr.bf16.mxu0 0
        %477 = vmatpush1.bf16.msra.mxu0 0
        %478 = vmatprep.subr.bf16.mxu0 0
        %479 = vmatpush1.bf16.msra.mxu0 0
        %480 = vmatprep.subr.bf16.mxu0 0
        %481 = vmatpush1.bf16.msra.mxu0 0
        %482 = vmatprep.subr.bf16.mxu0 0
        %483 = vmatpush1.bf16.msra.mxu0 0
        %484 = vmatprep.subr.bf16.mxu0 0
        %485 = vmatpush1.bf16.msra.mxu0 0
        %486 = vmatprep.subr.bf16.mxu0 0
        %487 = vmatpush1.bf16.msra.mxu0 0
        %488 = vmatprep.subr.bf16.mxu0 0
        %489 = vmatpush1.bf16.msra.mxu0 0
        %490 = vmatprep.mubr.bf16.mxu0 0
        %491 = vmatmul.mubr.bf16.gmra.mrb[0].mxu0 %v406
        %v492 = vpop.f32.mrb[0].mxu0
        %v493 = vadd.f32 0.0, %v492
        %v494 = vpop.f32.mrb[0].mxu0
        %v495 = vpop.f32.mrb[0].mxu0
        %v496 = vadd.f32 0.0, %v495
        %v497 = vpop.f32.mrb[0].mxu0
        %498 = vmatprep.mubr.bf16.mxu0 0
        %499 = vmatmul.mubr.bf16.gmra.mrb[0].mxu0 %v407
        %v500 = vpop.f32.mrb[0].mxu0
        %v501 = vadd.f32 0.0, %v500
        %v502 = vpop.f32.mrb[0].mxu0
        %v503 = vpop.f32.mrb[0].mxu0
        %v504 = vadd.f32 0.0, %v503
        %v505 = vpop.f32.mrb[0].mxu0
        %506 = vdwg.mxu0
        %v507 = vadd.f32 %v374, %v493
        %v508 = vadd.f32 %v375, %v496
        %v509 = vadd.f32 %v376, %v501
        %v510 = vadd.f32 %v377, %v504
        %511 = vst [vmem:[#allocation2] sm:$0xff] %v507
        %512 = vst [vmem:[#allocation2 + $0x8] sm:$0xff] %v508
        %513 = vst [vmem:[#allocation2 + $0x10] sm:$0xff] %v509
        %514 = vst [vmem:[#allocation2 + $0x18] sm:$0xff] %v510
        %p515 = scmp.eq.s32.totalorder %s22, 4
        // Predicated region
        $region82: #{_lambda_.28} parent=72 // pred_check
          %p516 = pneg %p515
        $region83: #{_lambda_.28} parent=72 // pred_check_branch
          %518 = sbr.rel (%p516) target = $region85
        $region84: #{_lambda_.28} parent=72 // pred_region
          %v519 = vld [vmem:[#allocation2] sm:$0xff]
          %v520 = vld [vmem:[#allocation2 + $0x8] sm:$0xff]
          %v521 = vld [vmem:[#allocation2 + $0x10] sm:$0xff]
          %v522 = vld [vmem:[#allocation2 + $0x18] sm:$0xff]
          %v523 = vld [vmem:[%s346] sm:$0x1]
          %v525 = vlaneseq
          %v526 = vshrl.u32 %v525, 7
          %v527 = vsub.s32 0, %v526
          %v528 = vrot.slane %v523, %v527
          %v530 = vadd.f32 %v519, %v528
          %v531 = vadd.f32 %v520, %v528
          %v532 = vadd.f32 %v521, %v528
          %v533 = vadd.f32 %v522, %v528
          %v534 = vld [vmem:[%s354] sm:$0xff]
          %v535 = vld [vmem:[%s354 + $0x8] sm:$0xff]
          %v536 = vld [vmem:[%s354 + $0x10] sm:$0xff]
          %v537 = vld [vmem:[%s354 + $0x18] sm:$0xff]
          %v538 = vadd.f32 %v530, %v534
          %v539 = vadd.f32 %v531, %v535
          %v540 = vadd.f32 %v532, %v536
          %v541 = vadd.f32 %v533, %v537
          %v542 = vmax.f32 %v538, 0.0
          %v543 = vmax.f32 %v539, 0.0
          %v544 = vmax.f32 %v540, 0.0
          %v545 = vmax.f32 %v541, 0.0
          %546 = vst [vmem:[%s363] sm:$0xff] %v542
          %547 = vst [vmem:[%s363 + $0x8] sm:$0xff] %v543
          %548 = vst [vmem:[%s363 + $0x10] sm:$0xff] %v544
          %549 = vst [vmem:[%s363 + $0x18] sm:$0xff] %v545
        $region85: #{_lambda_.28} parent=72 // pred_fallthru
          _
        %s550 = smul.u32 4, %s20
        %p551 = scmp.lt.s32.totalorder %s550, 3
        %s552 = scalar_select %p551, %s550, 3
        %p553 = scmp.lt.s32.totalorder %s21, 0
        %s554 = scalar_select %p553, %s21, 0
        %s555 = sadd.s32 %s554, %s552
        %s556 = smul.addr %s555, 8
        %s557 = scalar_lea.vmem %s4, %s556
        // Predicated region
        $region86: #{_lambda_.28} parent=72 // pred_check
          %p558 = pneg %p164
        $region87: #{_lambda_.28} parent=72 // pred_check_branch
          %560 = sbr.rel (%p558) target = $region89
        $region88: #{_lambda_.28} parent=72 // pred_region
          %s561 = smul.u32 4, %s20
        $region89: #{_lambda_.28} parent=72 // pred_fallthru
          _
        // Predicated region
        $region90: #{_lambda_.28} parent=72 // pred_check
          %p562 = pneg %p164
        $region91: #{_lambda_.28} parent=72 // pred_check_branch
          %564 = sbr.rel (%p562) target = $region93
        $region92: #{_lambda_.28} parent=72 // pred_region
          %s565 = smul.u32 4, %s20
          %p566 = scmp.lt.s32.totalorder %s565, 3
          %s567 = scalar_select %p566, %s565, 3
          %p568 = scmp.lt.s32.totalorder %s21, 0
          %s569 = scalar_select %p568, %s21, 0
          %s570 = sadd.s32 %s569, %s567
          %s571 = smul.addr %s570, 8
          %s572 = scalar_lea.vmem %s4, %s571
        $region93: #{_lambda_.28} parent=72 // pred_fallthru
          _
      $region73: #{_lambda_.28} parent=5 // pred_fallthru
        _
      %p573 = scmp.le.s32.totalorder 2, %s10
      // Predicated region
      $region94: #{_lambda_.28} parent=5 // pred_check
        %p574 = pneg %p573
      $region95: #{_lambda_.28} parent=5 // pred_check_branch
        %576 = sbr.rel (%p574) target = $region97
      $region96: #{_lambda_.28} parent=5 // pred_region
        %s577 = ssub.s32 %s10, 2
      $region97: #{_lambda_.28} parent=5 // pred_fallthru
        _
    $region6: #{_lambda_.28} parent=1 // loop_footer
      %s14 = sadd.s32 1, %s10
    $region7: #{_lambda_.28} parent=1 // loop_footer_branch
      %9 = sbr.rel target = $region3
    $region8: #{_lambda_.28} parent=1 // loop_exit
      _

// kernel: _lambda_.29
$region0: #{_lambda_.29}
  #allocation0 [shape = 'u32[]', space=smem, size = 0x4, offset = 0x4, fixed_abs, tag = 'smem constant byte address 0x4 - core index']
  #allocation1 [shape = 'u32[144,128]{1,0:T(1,128)}', space=vmem, size = 0x12000, scoped, tag = 'internal scratch']
  #allocation2 [shape = 'f32[32,128]{1,0:T(8,128)}', space=vmem, size = 0x4000, scoped, tag = 'scratch operand']
  %s0 = inlined_call_operand.vmem [shape: bf16[32,640], index: 0, kind: input, shape index: {}]
  %s1 = inlined_call_operand.vmem [shape: bf16[640,128], index: 1, kind: input, shape index: {}]
  %s2 = inlined_call_operand.vmem [shape: f32[1,128], index: 2, kind: input, shape index: {}]
  %s3 = inlined_call_operand.vmem [shape: f32[32,128], index: 3, kind: output, shape index: {}]
  %s4 = sld [smem:[#allocation0]]
  $region94: #{_lambda_.29} parent=0
    _
  %s6 = ssub.s32 1, %s4
  %s7 = scalar_select 0, %s6, %s4
  $region1: #{_lambda_.29} parent=0
    #allocation3 [shape = 'u8[16384]{0}', space=vmem, size = 0x4000, scoped, tag = 'input window, operand 0']
    loop: start=0, step=1, limit=7
    $region2: #{_lambda_.29} parent=1 // loop_pre_header
      _
    $region3: #{_lambda_.29} parent=1 // loop_header
      %s9 = sphi 0, %s13
      %p10 = scmp.ge.s32.totalorder %s9, 7
      %s16 = sphi 0, %s35
      %s17 = sphi 0, %s31
      %s18 = sphi 0, %s27
      %s19 = sphi 0, %s16
      %s20 = sphi 0, %s17
      %s21 = sphi 0, %s18
      %s22 = sphi 0, %s19
      %s23 = sphi 0, %s20
      %s24 = sphi 0, %s21
      %s40 = sphi 0, %s42
      %s43 = sphi 0, %s40
      %s44 = sphi 0, %s43
      %s60 = sphi 0, %s44
      %s68 = sphi 0, %s70
      %s71 = sphi 0, %s68
      %s72 = sphi 0, %s71
      %s88 = sphi 0, %s72
      %s94 = sphi 0, %s96
      %s97 = sphi 0, %s94
      %s98 = sphi 0, %s97
      %s114 = sphi 0, %s98
      %s122 = sphi 0, %s124
      %s125 = sphi 0, %s122
      %s126 = sphi 0, %s125
      %s142 = sphi 0, %s126
    $region4: #{_lambda_.29} parent=1 // loop_header_branch
      %12 = sbr.rel (%p10) target = $region8
    $region5: #{_lambda_.29} parent=1 // loop_body
      %s14 = ssub.s32 %s9, 1
      %s15 = ssub.s32 %s9, 2
      %s25 = sadd.s32 1, %s18
      %p26 = scmp.ge.s32.totalorder %s25, 5
      %s27 = scalar_select %p26, 0, %s25
      %s28 = sadd.s32 1, %s17
      %s29 = scalar_select %p26, %s28, %s17
      %p30 = scmp.ge.s32.totalorder %s29, 1
      %s31 = scalar_select %p30, 0, %s29
      %s32 = sadd.s32 1, %s16
      %s33 = scalar_select %p30, %s32, %s16
      %p34 = scmp.ge.s32.totalorder %s33, 1
      %s35 = scalar_select %p34, 0, %s33
      %s36 = ssub.s32 %s16, %s35
      %s37 = ssub.s32 %s18, %s27
      %s38 = sor.u32 %s36, %s37
      %p39 = scmp.eq.s32.totalorder %s38, 0
      %s41 = sadd.s32 %s40, 1
      %s42 = scalar_select %p39, %s40, %s41
      %p45 = pneg %p39
      %p46 = scmp.eq.s32.totalorder %s9, 4
      %p47 = por %p45, %p46
      %p48 = scmp.ne.s32.totalorder %s40, %s43
      %p49 = scmp.eq.s32.totalorder %s9, 0
      %p50 = por %p48, %p49
      %p51 = scmp.ne.s32.totalorder %s40, %s43
      %p52 = scmp.eq.s32.totalorder %s14, 4
      %p53 = por %p51, %p52
      %p54 = scmp.ne.s32.totalorder %s43, %s44
      %p55 = scmp.eq.s32.totalorder %s14, 0
      %p56 = por %p54, %p55
      %p57 = scmp.ne.s32.totalorder %s43, %s44
      %p58 = scmp.eq.s32.totalorder %s15, 4
      %p59 = por %p57, %p58
      %p61 = scmp.ne.s32.totalorder %s44, %s60
      %p62 = scmp.eq.s32.totalorder %s15, 0
      %p63 = por %p61, %p62
      %s64 = ssub.s32 %s18, %s27
      %s65 = ssub.s32 %s17, %s31
      %s66 = sor.u32 %s64, %s65
      %p67 = scmp.eq.s32.totalorder %s66, 0
      %s69 = sadd.s32 %s68, 1
      %s70 = scalar_select %p67, %s68, %s69
      %p73 = pneg %p67
      %p74 = scmp.eq.s32.totalorder %s9, 4
      %p75 = por %p73, %p74
      %p76 = scmp.ne.s32.totalorder %s68, %s71
      %p77 = scmp.eq.s32.totalorder %s9, 0
      %p78 = por %p76, %p77
      %p79 = scmp.ne.s32.totalorder %s68, %s71
      %p80 = scmp.eq.s32.totalorder %s14, 4
      %p81 = por %p79, %p80
      %p82 = scmp.ne.s32.totalorder %s71, %s72
      %p83 = scmp.eq.s32.totalorder %s14, 0
      %p84 = por %p82, %p83
      %p85 = scmp.ne.s32.totalorder %s71, %s72
      %p86 = scmp.eq.s32.totalorder %s15, 4
      %p87 = por %p85, %p86
      %p89 = scmp.ne.s32.totalorder %s72, %s88
      %p90 = scmp.eq.s32.totalorder %s15, 0
      %p91 = por %p89, %p90
      %s92 = ssub.s32 %s17, %s31
      %p93 = scmp.eq.s32.totalorder %s92, 0
      %s95 = sadd.s32 %s94, 1
      %s96 = scalar_select %p93, %s94, %s95
      %p99 = pneg %p93
      %p100 = scmp.eq.s32.totalorder %s9, 4
      %p101 = por %p99, %p100
      %p102 = scmp.ne.s32.totalorder %s94, %s97
      %p103 = scmp.eq.s32.totalorder %s9, 0
      %p104 = por %p102, %p103
      %p105 = scmp.ne.s32.totalorder %s94, %s97
      %p106 = scmp.eq.s32.totalorder %s14, 4
      %p107 = por %p105, %p106
      %p108 = scmp.ne.s32.totalorder %s97, %s98
      %p109 = scmp.eq.s32.totalorder %s14, 0
      %p110 = por %p108, %p109
      %p111 = scmp.ne.s32.totalorder %s97, %s98
      %p112 = scmp.eq.s32.totalorder %s15, 4
      %p113 = por %p111, %p112
      %p115 = scmp.ne.s32.totalorder %s98, %s114
      %p116 = scmp.eq.s32.totalorder %s15, 0
      %p117 = por %p115, %p116
      %s118 = ssub.s32 %s16, %s35
      %s119 = ssub.s32 %s17, %s31
      %s120 = sor.u32 %s118, %s119
      %p121 = scmp.eq.s32.totalorder %s120, 0
      %s123 = sadd.s32 %s122, 1
      %s124 = scalar_select %p121, %s122, %s123
      %p127 = pneg %p121
      %p128 = scmp.eq.s32.totalorder %s9, 4
      %p129 = por %p127, %p128
      %p130 = scmp.ne.s32.totalorder %s122, %s125
      %p131 = scmp.eq.s32.totalorder %s9, 0
      %p132 = por %p130, %p131
      %p133 = scmp.ne.s32.totalorder %s122, %s125
      %p134 = scmp.eq.s32.totalorder %s14, 4
      %p135 = por %p133, %p134
      %p136 = scmp.ne.s32.totalorder %s125, %s126
      %p137 = scmp.eq.s32.totalorder %s14, 0
      %p138 = por %p136, %p137
      %p139 = scmp.ne.s32.totalorder %s125, %s126
      %p140 = scmp.eq.s32.totalorder %s15, 4
      %p141 = por %p139, %p140
      %p143 = scmp.ne.s32.totalorder %s126, %s142
      %p144 = scmp.eq.s32.totalorder %s15, 0
      %p145 = por %p143, %p144
      %p146 = scmp.le.s32.totalorder 1, %s9
      %p147 = scmp.lt.s32.totalorder %s9, 6
      %p148 = pnand %p146, %p147
      %p149 = pneg %p148
      // Predicated region
      $region9: #{_lambda_.29} parent=5 // pred_check
        _
      $region10: #{_lambda_.29} parent=5 // pred_check_branch
        %151 = sbr.rel (%p148) target = $region12
      $region11: #{_lambda_.29} parent=5 // pred_region
        %s152 = ssub.s32 %s9, 1
        // Predicated region
        $region13: #{_lambda_.29} parent=11 // pred_check
          %p153 = pneg %p110
        $region14: #{_lambda_.29} parent=11 // pred_check_branch
          %155 = sbr.rel (%p153) target = $region16
        $region15: #{_lambda_.29} parent=11 // pred_region
          %p156 = scmp.lt.s32.totalorder %s20, 0
          %s157 = scalar_select %p156, %s20, 0
          %s158 = scalar_lea.vmem %s2, %s157
        $region16: #{_lambda_.29} parent=11 // pred_fallthru
          _
      $region12: #{_lambda_.29} parent=5 // pred_fallthru
        _
      %p159 = scmp.lt.s32.totalorder %s9, 5
      // Predicated region
      $region17: #{_lambda_.29} parent=5 // pred_check
        %p160 = pneg %p159
      $region18: #{_lambda_.29} parent=5 // pred_check_branch
        %162 = sbr.rel (%p160) target = $region20
      $region19: #{_lambda_.29} parent=5 // pred_region
        // Predicated region
        $region21: #{_lambda_.29} parent=19 // pred_check
          %p163 = pneg %p50
        $region22: #{_lambda_.29} parent=19 // pred_check_branch
          %165 = sbr.rel (%p163) target = $region24
        $region23: #{_lambda_.29} parent=19 // pred_region
          %s166 = sand.u32 %s40, 1
          %s167 = sand.u32 %s40, 1
          %s168 = smul.addr %s167, 16
          %s169 = scalar_lea.vmem [#allocation3], %s168
          %s170 = smul.u32 4, %s16
          %s171 = smul.addr %s170, 5
          %s172 = sadd.s32 %s18, %s171
          %s173 = smul.addr %s172, 4
          %s174 = scalar_lea.vmem %s0, %s173
          // Predicated region
          $region25: #{_lambda_.29} parent=23 // pred_check
            _
          $region26: #{_lambda_.29} parent=23 // pred_check_branch
            %176 = sbr.rel (0) target = $region28
          $region27: #{_lambda_.29} parent=23 // pred_region
            // Predicated region
            $region29: #{_lambda_.29} parent=27 // pred_check
              _
            $region30: #{_lambda_.29} parent=27 // pred_check_branch
              %178 = sbr.rel target = $region32
            $region31: #{_lambda_.29} parent=27 // pred_region
              // Predicated region
              $region44: #{_lambda_.29} parent=31 // pred_check
                _
              $region45: #{_lambda_.29} parent=31 // pred_check_branch
                %199 = sbr.rel (0) target = $region47
              $region46: #{_lambda_.29} parent=31 // pred_region
                loop: start=0, step=1, limit=1
                $region48: #{_lambda_.29} parent=46 // loop_pre_header
                  _
                $region49: #{_lambda_.29} parent=46 // loop_header
                  %s201 = sphi 0, %s205
                  %p202 = scmp.ge.s32.totalorder %s201, 1
                  %s206 = sphi %s174, %s174
                  %s207 = sphi %s169, %s169
                $region50: #{_lambda_.29} parent=46 // loop_header_branch
                  %204 = sbr.rel (%p202) target = $region54
                $region51: #{_lambda_.29} parent=46 // loop_body
                  _
                $region52: #{_lambda_.29} parent=46 // loop_footer
                  %s205 = sadd.s32 1, %s201
                $region53: #{_lambda_.29} parent=46 // loop_footer_branch
                  %200 = sbr.rel target = $region49
                $region54: #{_lambda_.29} parent=46 // loop_exit
                  _
                loop: start=0, step=1, limit=1
                $region55: #{_lambda_.29} parent=46 // loop_pre_header
                  _
                $region56: #{_lambda_.29} parent=46 // loop_header
                  %s210 = sphi 0, %s214
                  %p211 = scmp.ge.s32.totalorder %s210, 1
                  %s215 = sphi %s174, %s174
                  %s216 = sphi %s169, %s169
                $region57: #{_lambda_.29} parent=46 // loop_header_branch
                  %213 = sbr.rel (%p211) target = $region61
                $region58: #{_lambda_.29} parent=46 // loop_body
                  %v217 = vld [vmem:[%s215] sm:$0xf]
                  %218 = vst [vmem:[%s216] sm:$0xf] %v217
                  %v219 = vld [vmem:[%s215 + $0x14] sm:$0xf]
                  %220 = vst [vmem:[%s216 + $0x4] sm:$0xf] %v219
                  %v221 = vld [vmem:[%s215 + $0x28] sm:$0xf]
                  %222 = vst [vmem:[%s216 + $0x8] sm:$0xf] %v221
                  %v223 = vld [vmem:[%s215 + $0x3c] sm:$0xf]
                  %224 = vst [vmem:[%s216 + $0xc] sm:$0xf] %v223
                $region59: #{_lambda_.29} parent=46 // loop_footer
                  %s214 = sadd.s32 1, %s210
                $region60: #{_lambda_.29} parent=46 // loop_footer_branch
                  %209 = sbr.rel target = $region56
                $region61: #{_lambda_.29} parent=46 // loop_exit
                  _
              $region47: #{_lambda_.29} parent=31 // pred_fallthru
                _
            $region32: #{_lambda_.29} parent=27 // pred_fallthru
              _
            // Predicated region
            $region33: #{_lambda_.29} parent=27 // pred_check
              _
            $region34: #{_lambda_.29} parent=27 // pred_check_branch
              %180 = sbr.rel (0) target = $region36
            $region35: #{_lambda_.29} parent=27 // pred_region
              loop: start=0, step=1, limit=1
              $region37: #{_lambda_.29} parent=35 // loop_pre_header
                _
              $region38: #{_lambda_.29} parent=35 // loop_header
                %s183 = sphi 0, %s187
                %p184 = scmp.ge.s32.totalorder %s183, 1
                %s188 = sphi %s174, %s174
                %s189 = sphi %s169, %s169
              $region39: #{_lambda_.29} parent=35 // loop_header_branch
                %186 = sbr.rel (%p184) target = $region43
              $region40: #{_lambda_.29} parent=35 // loop_body
                %v190 = vld [vmem:[%s188] sm:$0xf]
                %191 = vst [vmem:[%s189] sm:$0xf] %v190
                %v192 = vld [vmem:[%s188 + $0x14] sm:$0xf]
                %193 = vst [vmem:[%s189 + $0x4] sm:$0xf] %v192
                %v194 = vld [vmem:[%s188 + $0x28] sm:$0xf]
                %195 = vst [vmem:[%s189 + $0x8] sm:$0xf] %v194
                %v196 = vld [vmem:[%s188 + $0x3c] sm:$0xf]
                %197 = vst [vmem:[%s189 + $0xc] sm:$0xf] %v196
              $region41: #{_lambda_.29} parent=35 // loop_footer
                %s187 = sadd.s32 1, %s183
              $region42: #{_lambda_.29} parent=35 // loop_footer_branch
                %182 = sbr.rel target = $region38
              $region43: #{_lambda_.29} parent=35 // loop_exit
                _
            $region36: #{_lambda_.29} parent=27 // pred_fallthru
              _
          $region28: #{_lambda_.29} parent=23 // pred_fallthru
            _
          %225 = vnop
        $region24: #{_lambda_.29} parent=19 // pred_fallthru
          _
        // Predicated region
        $region62: #{_lambda_.29} parent=19 // pred_check
          %p226 = pneg %p78
        $region63: #{_lambda_.29} parent=19 // pred_check_branch
          %228 = sbr.rel (%p226) target = $region65
        $region64: #{_lambda_.29} parent=19 // pred_region
          %s229 = smul.u32 16, %s18
          %p230 = scmp.lt.s32.totalorder %s229, 79
          %s231 = scalar_select %p230, %s229, 79
          %p232 = scmp.lt.s32.totalorder %s17, 0
          %s233 = scalar_select %p232, %s17, 0
          %s234 = sadd.s32 %s233, %s231
          %s235 = smul.addr %s234, 4
          %s236 = scalar_lea.vmem %s1, %s235
          %s237 = smul.u32 16, %s18
        $region65: #{_lambda_.29} parent=19 // pred_fallthru
          _
      $region20: #{_lambda_.29} parent=5 // pred_fallthru
        _
      %p238 = scmp.le.s32.totalorder 1, %s9
      %p239 = scmp.lt.s32.totalorder %s9, 6
      %p240 = pnand %p238, %p239
      %p241 = pneg %p240
      // Predicated region
      $region66: #{_lambda_.29} parent=5 // pred_check
        _
      $region67: #{_lambda_.29} parent=5 // pred_check_branch
        %243 = sbr.rel (%p240) target = $region69
      $region68: #{_lambda_.29} parent=5 // pred_region
        %s244 = ssub.s32 %s9, 1
        %s245 = sand.u32 %s43, 1
        %s246 = sand.u32 %s43, 1
        %s247 = smul.addr %s246, 16
        %s248 = scalar_lea.vmem [#allocation3], %s247
        // Predicated region
        $region70: #{_lambda_.29} parent=68 // pred_check
          %p249 = pneg %p56
        $region71: #{_lambda_.29} parent=68 // pred_check_branch
          %251 = sbr.rel (%p249) target = $region73
        $region72: #{_lambda_.29} parent=68 // pred_region
          _
        $region73: #{_lambda_.29} parent=68 // pred_fallthru
          _
        %s252 = sand.u32 %s43, 1
        %s253 = sand.u32 %s43, 1
        %s254 = smul.addr %s253, 16
        %s255 = scalar_lea.vmem [#allocation3], %s254
        %p256 = pneg %p56
        %p257 = pneg %p53
        %s258 = smul.u32 16, %s21
        %p259 = scmp.lt.s32.totalorder %s258, 79
        %s260 = scalar_select %p259, %s258, 79
        %p261 = scmp.lt.s32.totalorder %s20, 0
        %s262 = scalar_select %p261, %s20, 0
        %s263 = sadd.s32 %s262, %s260
        %s264 = smul.addr %s263, 4
        %s265 = scalar_lea.vmem %s1, %s264
        %p266 = pneg %p84
        %p267 = pneg %p81
        %p268 = scmp.lt.s32.totalorder %s20, 0
        %s269 = scalar_select %p268, %s20, 0
        %s270 = scalar_lea.vmem %s2, %s269
        %p271 = pneg %p110
        %p272 = pneg %p107
        %p273 = pneg %p138
        %p274 = pneg %p135
        %s275 = smul.u32 4, %s19
        %p276 = scmp.lt.s32.totalorder %s275, 3
        %s277 = scalar_select %p276, %s275, 3
        %p278 = scmp.lt.s32.totalorder %s20, 0
        %s279 = scalar_select %p278, %s20, 0
        %s280 = sadd.s32 %s279, %s277
        %s281 = smul.addr %s280, 8
        %s282 = scalar_lea.vmem %s3, %s281
        %s283 = smul.u32 4, %s19
        %s284 = smul.u32 16, %s21
        %p285 = scmp.lt.s32.totalorder %s284, 79
        %s286 = scalar_select %p285, %s284, 79
        %p287 = scmp.lt.s32.totalorder %s20, 0
        %s288 = scalar_select %p287, %s20, 0
        %s289 = sadd.s32 %s288, %s286
        %s290 = smul.addr %s289, 4
        %s291 = scalar_lea.vmem %s1, %s290
        %s292 = smul.u32 16, %s21
        %p293 = scmp.lt.s32.totalorder %s20, 0
        %s294 = scalar_select %p293, %s20, 0
        %s295 = scalar_lea.vmem %s2, %s294
        %s296 = smul.u32 4, %s19
        %p297 = scmp.lt.s32.totalorder %s296, 3
        %s298 = scalar_select %p297, %s296, 3
        %p299 = scmp.lt.s32.totalorder %s20, 0
        %s300 = scalar_select %p299, %s20, 0
        %s301 = sadd.s32 %s300, %s298
        %s302 = smul.addr %s301, 8
        %s303 = scalar_lea.vmem %s3, %s302
        %s304 = smul.u32 4, %s19
        %p306 = scmp.eq.s32.totalorder %s21, 0
        // Predicated region
        $region74: #{_lambda_.29} parent=68 // pred_check
          %p307 = pneg %p306
        $region75: #{_lambda_.29} parent=68 // pred_check_branch
          %309 = sbr.rel (%p307) target = $region77
        $region76: #{_lambda_.29} parent=68 // pred_region
          %310 = vst [vmem:[#allocation2] sm:$0xff] 0.0
          %311 = vst [vmem:[#allocation2 + $0x8] sm:$0xff] 0.0
          %312 = vst [vmem:[#allocation2 + $0x10] sm:$0xff] 0.0
          %313 = vst [vmem:[#allocation2 + $0x18] sm:$0xff] 0.0
        $region77: #{_lambda_.29} parent=68 // pred_fallthru
          _
        %v314 = vld [vmem:[#allocation2] sm:$0xff]
        %v315 = vld [vmem:[#allocation2 + $0x8] sm:$0xff]
        %v316 = vld [vmem:[#allocation2 + $0x10] sm:$0xff]
        %v317 = vld [vmem:[#allocation2 + $0x18] sm:$0xff]
        %v318 = vld [vmem:[%s248] sm:$0xf]
        %v319 = vld [vmem:[%s248 + $0x4] sm:$0xf]
        %v320 = vld [vmem:[%s248 + $0x8] sm:$0xf]
        %v321 = vld [vmem:[%s248 + $0xc] sm:$0xf]
        %v322 = vld [vmem:[%s291] sm:$0xf]
        %v323 = vld [vmem:[%s291 + $0x4] sm:$0xf]
        %v324 = vld [vmem:[%s291 + $0x8] sm:$0xf]
        %v325 = vld [vmem:[%s291 + $0xc] sm:$0xf]
        %v326 = vld [vmem:[%s291 + $0x10] sm:$0xf]
        %v327 = vld [vmem:[%s291 + $0x14] sm:$0xf]
        %v328 = vld [vmem:[%s291 + $0x18] sm:$0xf]
        %v329 = vld [vmem:[%s291 + $0x1c] sm:$0xf]
        %v330 = vld [vmem:[%s291 + $0x20] sm:$0xf]
        %v331 = vld [vmem:[%s291 + $0x24] sm:$0xf]
        %v332 = vld [vmem:[%s291 + $0x28] sm:$0xf]
        %v333 = vld [vmem:[%s291 + $0x2c] sm:$0xf]
        %v334 = vld [vmem:[%s291 + $0x30] sm:$0xf]
        %v335 = vld [vmem:[%s291 + $0x34] sm:$0xf]
        %v336 = vld [vmem:[%s291 + $0x38] sm:$0xf]
        %v337 = vld [vmem:[%s291 + $0x3c] sm:$0xf]
        %v342 = vunpack.c.l.b16 %v318
        %v343 = vunpack.c.l.b16 %v319
        %v344 = vunpack.c.l.b16 %v320
        %v345 = vunpack.c.l.b16 %v321
        %v346 = vpack.c.b16 %v343, %v342
        %v347 = vpack.c.b16 %v345, %v344
        %v366 = vunpack.c.l.b16 %v322
        %v367 = vunpack.c.l.b16 %v323
        %v368 = vunpack.c.l.b16 %v324
        %v369 = vunpack.c.l.b16 %v325
        %v370 = vunpack.c.l.b16 %v326
        %v371 = vunpack.c.l.b16 %v327
        %v372 = vunpack.c.l.b16 %v328
        %v373 = vunpack.c.l.b16 %v329
        %v374 = vunpack.c.l.b16 %v330
        %v375 = vunpack.c.l.b16 %v331
        %v376 = vunpack.c.l.b16 %v332
        %v377 = vunpack.c.l.b16 %v333
        %v378 = vunpack.c.l.b16 %v334
        %v379 = vunpack.c.l.b16 %v335
        %v380 = vunpack.c.l.b16 %v336
        %v381 = vunpack.c.l.b16 %v337
        %v382 = vpack.c.b16 %v367, %v366
        %v383 = vpack.c.b16 %v369, %v368
        %v384 = vpack.c.b16 %v371, %v370
        %v385 = vpack.c.b16 %v373, %v372
        %v386 = vpack.c.b16 %v375, %v374
        %v387 = vpack.c.b16 %v377, %v376
        %v388 = vpack.c.b16 %v379, %v378
        %v389 = vpack.c.b16 %v381, %v380
        %398 = vmatprep.subr.bf16.mxu0 0
        %399 = vmatpush1.bf16.msra.mxu0 %v382
        %400 = vmatprep.subr.bf16.mxu0 0
        %401 = vmatpush1.bf16.msra.mxu0 %v383
        %402 = vmatprep.subr.bf16.mxu0 0
        %403 = vmatpush1.bf16.msra.mxu0 %v384
        %404 = vmatprep.subr.bf16.mxu0 0
        %405 = vmatpush1.bf16.msra.mxu0 %v385
        %406 = vmatprep.subr.bf16.mxu0 0
        %407 = vmatpush1.bf16.msra.mxu0 %v386
        %408 = vmatprep.subr.bf16.mxu0 0
        %409 = vmatpush1.bf16.msra.mxu0 %v387
        %410 = vmatprep.subr.bf16.mxu0 0
        %411 = vmatpush1.bf16.msra.mxu0 %v388
        %412 = vmatprep.subr.bf16.mxu0 0
        %413 = vmatpush1.bf16.msra.mxu0 %v389
        %414 = vmatprep.subr.bf16.mxu0 0
        %415 = vmatpush1.bf16.msra.mxu0 0
        %416 = vmatprep.subr.bf16.mxu0 0
        %417 = vmatpush1.bf16.msra.mxu0 0
        %418 = vmatprep.subr.bf16.mxu0 0
        %419 = vmatpush1.bf16.msra.mxu0 0
        %420 = vmatprep.subr.bf16.mxu0 0
        %421 = vmatpush1.bf16.msra.mxu0 0
        %422 = vmatprep.subr.bf16.mxu0 0
        %423 = vmatpush1.bf16.msra.mxu0 0
        %424 = vmatprep.subr.bf16.mxu0 0
        %425 = vmatpush1.bf16.msra.mxu0 0
        %426 = vmatprep.subr.bf16.mxu0 0
        %427 = vmatpush1.bf16.msra.mxu0 0
        %428 = vmatprep.subr.bf16.mxu0 0
        %429 = vmatpush1.bf16.msra.mxu0 0
        %430 = vmatprep.mubr.bf16.mxu0 0
        %431 = vmatmul.mubr.bf16.gmra.mrb[0].mxu0 %v346
        %v432 = vpop.f32.mrb[0].mxu0
        %v433 = vadd.f32 0.0, %v432
        %v434 = vpop.f32.mrb[0].mxu0
        %v435 = vpop.f32.mrb[0].mxu0
        %v436 = vadd.f32 0.0, %v435
        %v437 = vpop.f32.mrb[0].mxu0
        %438 = vmatprep.mubr.bf16.mxu0 0
        %439 = vmatmul.mubr.bf16.gmra.mrb[0].mxu0 %v347
        %v440 = vpop.f32.mrb[0].mxu0
        %v441 = vadd.f32 0.0, %v440
        %v442 = vpop.f32.mrb[0].mxu0
        %v443 = vpop.f32.mrb[0].mxu0
        %v444 = vadd.f32 0.0, %v443
        %v445 = vpop.f32.mrb[0].mxu0
        %446 = vdwg.mxu0
        %v447 = vadd.f32 %v314, %v433
        %v448 = vadd.f32 %v315, %v436
        %v449 = vadd.f32 %v316, %v441
        %v450 = vadd.f32 %v317, %v444
        %451 = vst [vmem:[#allocation2] sm:$0xff] %v447
        %452 = vst [vmem:[#allocation2 + $0x8] sm:$0xff] %v448
        %453 = vst [vmem:[#allocation2 + $0x10] sm:$0xff] %v449
        %454 = vst [vmem:[#allocation2 + $0x18] sm:$0xff] %v450
        %p455 = scmp.eq.s32.totalorder %s21, 4
        // Predicated region
        $region78: #{_lambda_.29} parent=68 // pred_check
          %p456 = pneg %p455
        $region79: #{_lambda_.29} parent=68 // pred_check_branch
          %458 = sbr.rel (%p456) target = $region81
        $region80: #{_lambda_.29} parent=68 // pred_region
          %v459 = vld [vmem:[#allocation2] sm:$0xff]
          %v460 = vld [vmem:[#allocation2 + $0x8] sm:$0xff]
          %v461 = vld [vmem:[#allocation2 + $0x10] sm:$0xff]
          %v462 = vld [vmem:[#allocation2 + $0x18] sm:$0xff]
          %v463 = vld [vmem:[%s295] sm:$0x1]
          %v465 = vlaneseq
          %v466 = vshrl.u32 %v465, 7
          %v467 = vsub.s32 0, %v466
          %v468 = vrot.slane %v463, %v467
          %v470 = vadd.f32 %v459, %v468
          %v471 = vadd.f32 %v460, %v468
          %v472 = vadd.f32 %v461, %v468
          %v473 = vadd.f32 %v462, %v468
          %v474 = vmax.f32 %v470, 0.0
          %v475 = vmax.f32 %v471, 0.0
          %v476 = vmax.f32 %v472, 0.0
          %v477 = vmax.f32 %v473, 0.0
          %478 = vst [vmem:[%s303] sm:$0xff] %v474
          %479 = vst [vmem:[%s303 + $0x8] sm:$0xff] %v475
          %480 = vst [vmem:[%s303 + $0x10] sm:$0xff] %v476
          %481 = vst [vmem:[%s303 + $0x18] sm:$0xff] %v477
        $region81: #{_lambda_.29} parent=68 // pred_fallthru
          _
        %s482 = smul.u32 4, %s19
        %p483 = scmp.lt.s32.totalorder %s482, 3
        %s484 = scalar_select %p483, %s482, 3
        %p485 = scmp.lt.s32.totalorder %s20, 0
        %s486 = scalar_select %p485, %s20, 0
        %s487 = sadd.s32 %s486, %s484
        %s488 = smul.addr %s487, 8
        %s489 = scalar_lea.vmem %s3, %s488
        // Predicated region
        $region82: #{_lambda_.29} parent=68 // pred_check
          %p490 = pneg %p135
        $region83: #{_lambda_.29} parent=68 // pred_check_branch
          %492 = sbr.rel (%p490) target = $region85
        $region84: #{_lambda_.29} parent=68 // pred_region
          %s493 = smul.u32 4, %s19
        $region85: #{_lambda_.29} parent=68 // pred_fallthru
          _
        // Predicated region
        $region86: #{_lambda_.29} parent=68 // pred_check
          %p494 = pneg %p135
        $region87: #{_lambda_.29} parent=68 // pred_check_branch
          %496 = sbr.rel (%p494) target = $region89
        $region88: #{_lambda_.29} parent=68 // pred_region
          %s497 = smul.u32 4, %s19
          %p498 = scmp.lt.s32.totalorder %s497, 3
          %s499 = scalar_select %p498, %s497, 3
          %p500 = scmp.lt.s32.totalorder %s20, 0
          %s501 = scalar_select %p500, %s20, 0
          %s502 = sadd.s32 %s501, %s499
          %s503 = smul.addr %s502, 8
          %s504 = scalar_lea.vmem %s3, %s503
        $region89: #{_lambda_.29} parent=68 // pred_fallthru
          _
      $region69: #{_lambda_.29} parent=5 // pred_fallthru
        _
      %p505 = scmp.le.s32.totalorder 2, %s9
      // Predicated region
      $region90: #{_lambda_.29} parent=5 // pred_check
        %p506 = pneg %p505
      $region91: #{_lambda_.29} parent=5 // pred_check_branch
        %508 = sbr.rel (%p506) target = $region93
      $region92: #{_lambda_.29} parent=5 // pred_region
        %s509 = ssub.s32 %s9, 2
      $region93: #{_lambda_.29} parent=5 // pred_fallthru
        _
    $region6: #{_lambda_.29} parent=1 // loop_footer
      %s13 = sadd.s32 1, %s9
    $region7: #{_lambda_.29} parent=1 // loop_footer_branch
      %8 = sbr.rel target = $region3
    $region8: #{_lambda_.29} parent=1 // loop_exit
      _

// kernel: _lambda_.33
$region0: #{_lambda_.33}
  #allocation0 [shape = 'u32[]', space=smem, size = 0x4, offset = 0x4, fixed_abs, tag = 'smem constant byte address 0x4 - core index']
  #allocation1 [shape = 'u32[144,128]{1,0:T(1,128)}', space=vmem, size = 0x12000, scoped, tag = 'internal scratch']
  #allocation2 [shape = 'f32[16,128]{1,0:T(8,128)}', space=vmem, size = 0x2000, scoped, tag = 'scratch operand']
  %s0 = inlined_call_operand.vmem [shape: bf16[16,128], index: 0, kind: input, shape index: {}]
  %s1 = inlined_call_operand.vmem [shape: bf16[128,128], index: 1, kind: input, shape index: {}]
  %s2 = inlined_call_operand.vmem [shape: f32[1,128], index: 2, kind: input, shape index: {}]
  %s3 = inlined_call_operand.vmem [shape: f32[16,128], index: 3, kind: output, shape index: {}]
  %s4 = sld [smem:[#allocation0]]
  $region30: #{_lambda_.33} parent=0
    _
  %s6 = ssub.s32 1, %s4
  %s7 = scalar_select 0, %s6, %s4
  // Predicated region
  $region2: #{_lambda_.33} parent=0 // pred_check
    _
  $region3: #{_lambda_.33} parent=0 // pred_check_branch
    %9 = sbr.rel (0) target = $region5
  $region4: #{_lambda_.33} parent=0 // pred_region
    _
  $region5: #{_lambda_.33} parent=0 // pred_fallthru
    _
  // Predicated region
  $region6: #{_lambda_.33} parent=0 // pred_check
    _
  $region7: #{_lambda_.33} parent=0 // pred_check_branch
    %11 = sbr.rel (0) target = $region9
  $region8: #{_lambda_.33} parent=0 // pred_region
    _
  $region9: #{_lambda_.33} parent=0 // pred_fallthru
    _
  // Predicated region
  $region10: #{_lambda_.33} parent=0 // pred_check
    _
  $region11: #{_lambda_.33} parent=0 // pred_check_branch
    %13 = sbr.rel (0) target = $region13
  $region12: #{_lambda_.33} parent=0 // pred_region
    _
  $region13: #{_lambda_.33} parent=0 // pred_fallthru
    _
  %p15 = scmp.eq.s32.totalorder 0, 0
  // Predicated region
  $region14: #{_lambda_.33} parent=0 // pred_check
    %p16 = pneg %p15
  $region15: #{_lambda_.33} parent=0 // pred_check_branch
    %18 = sbr.rel (%p16) target = $region17
  $region16: #{_lambda_.33} parent=0 // pred_region
    %19 = vst [vmem:[#allocation2] sm:$0xff] 0.0
    %20 = vst [vmem:[#allocation2 + $0x8] sm:$0xff] 0.0
  $region17: #{_lambda_.33} parent=0 // pred_fallthru
    _
  %v21 = vld [vmem:[#allocation2] sm:$0xff]
  %v22 = vld [vmem:[#allocation2 + $0x8] sm:$0xff]
  %v23 = vld [vmem:[%s0] sm:$0xf]
  %v24 = vld [vmem:[%s0 + $0x4] sm:$0xf]
  %v25 = vld [vmem:[%s1] sm:$0xf]
  %v26 = vld [vmem:[%s1 + $0x4] sm:$0xf]
  %v27 = vld [vmem:[%s1 + $0x8] sm:$0xf]
  %v28 = vld [vmem:[%s1 + $0xc] sm:$0xf]
  %v29 = vld [vmem:[%s1 + $0x10] sm:$0xf]
  %v30 = vld [vmem:[%s1 + $0x14] sm:$0xf]
  %v31 = vld [vmem:[%s1 + $0x18] sm:$0xf]
  %v32 = vld [vmem:[%s1 + $0x1c] sm:$0xf]
  %v33 = vld [vmem:[%s1 + $0x20] sm:$0xf]
  %v34 = vld [vmem:[%s1 + $0x24] sm:$0xf]
  %v35 = vld [vmem:[%s1 + $0x28] sm:$0xf]
  %v36 = vld [vmem:[%s1 + $0x2c] sm:$0xf]
  %v37 = vld [vmem:[%s1 + $0x30] sm:$0xf]
  %v38 = vld [vmem:[%s1 + $0x34] sm:$0xf]
  %v39 = vld [vmem:[%s1 + $0x38] sm:$0xf]
  %v40 = vld [vmem:[%s1 + $0x3c] sm:$0xf]
  %v43 = vunpack.c.l.b16 %v23
  %v44 = vunpack.c.l.b16 %v24
  %v45 = vpack.c.b16 %v44, %v43
  %v63 = vunpack.c.l.b16 %v25
  %v64 = vunpack.c.l.b16 %v26
  %v65 = vunpack.c.l.b16 %v27
  %v66 = vunpack.c.l.b16 %v28
  %v67 = vunpack.c.l.b16 %v29
  %v68 = vunpack.c.l.b16 %v30
  %v69 = vunpack.c.l.b16 %v31
  %v70 = vunpack.c.l.b16 %v32
  %v71 = vunpack.c.l.b16 %v33
  %v72 = vunpack.c.l.b16 %v34
  %v73 = vunpack.c.l.b16 %v35
  %v74 = vunpack.c.l.b16 %v36
  %v75 = vunpack.c.l.b16 %v37
  %v76 = vunpack.c.l.b16 %v38
  %v77 = vunpack.c.l.b16 %v39
  %v78 = vunpack.c.l.b16 %v40
  %v79 = vpack.c.b16 %v64, %v63
  %v80 = vpack.c.b16 %v66, %v65
  %v81 = vpack.c.b16 %v68, %v67
  %v82 = vpack.c.b16 %v70, %v69
  %v83 = vpack.c.b16 %v72, %v71
  %v84 = vpack.c.b16 %v74, %v73
  %v85 = vpack.c.b16 %v76, %v75
  %v86 = vpack.c.b16 %v78, %v77
  %95 = vmatprep.subr.bf16.mxu0 0
  %96 = vmatpush1.bf16.msra.mxu0 %v79
  %97 = vmatprep.subr.bf16.mxu0 0
  %98 = vmatpush1.bf16.msra.mxu0 %v80
  %99 = vmatprep.subr.bf16.mxu0 0
  %100 = vmatpush1.bf16.msra.mxu0 %v81
  %101 = vmatprep.subr.bf16.mxu0 0
  %102 = vmatpush1.bf16.msra.mxu0 %v82
  %103 = vmatprep.subr.bf16.mxu0 0
  %104 = vmatpush1.bf16.msra.mxu0 %v83
  %105 = vmatprep.subr.bf16.mxu0 0
  %106 = vmatpush1.bf16.msra.mxu0 %v84
  %107 = vmatprep.subr.bf16.mxu0 0
  %108 = vmatpush1.bf16.msra.mxu0 %v85
  %109 = vmatprep.subr.bf16.mxu0 0
  %110 = vmatpush1.bf16.msra.mxu0 %v86
  %111 = vmatprep.subr.bf16.mxu0 0
  %112 = vmatpush1.bf16.msra.mxu0 0
  %113 = vmatprep.subr.bf16.mxu0 0
  %114 = vmatpush1.bf16.msra.mxu0 0
  %115 = vmatprep.subr.bf16.mxu0 0
  %116 = vmatpush1.bf16.msra.mxu0 0
  %117 = vmatprep.subr.bf16.mxu0 0
  %118 = vmatpush1.bf16.msra.mxu0 0
  %119 = vmatprep.subr.bf16.mxu0 0
  %120 = vmatpush1.bf16.msra.mxu0 0
  %121 = vmatprep.subr.bf16.mxu0 0
  %122 = vmatpush1.bf16.msra.mxu0 0
  %123 = vmatprep.subr.bf16.mxu0 0
  %124 = vmatpush1.bf16.msra.mxu0 0
  %125 = vmatprep.subr.bf16.mxu0 0
  %126 = vmatpush1.bf16.msra.mxu0 0
  %127 = vmatprep.mubr.bf16.mxu0 0
  %128 = vmatmul.mubr.bf16.gmra.mrb[0].mxu0 %v45
  %v129 = vpop.f32.mrb[0].mxu0
  %v130 = vadd.f32 0.0, %v129
  %v131 = vpop.f32.mrb[0].mxu0
  %v132 = vpop.f32.mrb[0].mxu0
  %v133 = vadd.f32 0.0, %v132
  %v134 = vpop.f32.mrb[0].mxu0
  %135 = vdwg.mxu0
  %v136 = vadd.f32 %v21, %v130
  %v137 = vadd.f32 %v22, %v133
  %138 = vst [vmem:[#allocation2] sm:$0xff] %v136
  %139 = vst [vmem:[#allocation2 + $0x8] sm:$0xff] %v137
  // Predicated region
  $region18: #{_lambda_.33} parent=0 // pred_check
    %p140 = pneg %p15
  $region19: #{_lambda_.33} parent=0 // pred_check_branch
    %142 = sbr.rel (%p140) target = $region21
  $region20: #{_lambda_.33} parent=0 // pred_region
    %v143 = vld [vmem:[#allocation2] sm:$0xff]
    %v144 = vld [vmem:[#allocation2 + $0x8] sm:$0xff]
    %v145 = vld [vmem:[%s2] sm:$0x1]
    %v147 = vlaneseq
    %v148 = vshrl.u32 %v147, 7
    %v149 = vsub.s32 0, %v148
    %v150 = vrot.slane %v145, %v149
    %v152 = vadd.f32 %v143, %v150
    %v153 = vadd.f32 %v144, %v150
    %154 = vst [vmem:[%s3] sm:$0xff] %v152
    %155 = vst [vmem:[%s3 + $0x8] sm:$0xff] %v153
  $region21: #{_lambda_.33} parent=0 // pred_fallthru
    _
  // Predicated region
  $region22: #{_lambda_.33} parent=0 // pred_check
    _
  $region23: #{_lambda_.33} parent=0 // pred_check_branch
    %157 = sbr.rel (0) target = $region25
  $region24: #{_lambda_.33} parent=0 // pred_region
    _
  $region25: #{_lambda_.33} parent=0 // pred_fallthru
    _
  // Predicated region
  $region26: #{_lambda_.33} parent=0 // pred_check
    _
  $region27: #{_lambda_.33} parent=0 // pred_check_branch
    %159 = sbr.rel (0) target = $region29
  $region28: #{_lambda_.33} parent=0 // pred_region
    _
  $region29: #{_lambda_.33} parent=0 // pred_fallthru
    _

</llo_original>
